<compile_context>
chip_gen: v6e
topology: v6e:2x2x1
jax: 0.10.0
libtpu: 0.0.40
codegen_flags: <defaults>
</compile_context>

<pallas_src>
import math
import functools

import jax
import jax.numpy as jnp
from jax.experimental import pallas as pl
from jax.experimental.pallas import tpu as pltpu

NUM_HEADS = 4  # args.num_heads


def _round_up(x, m):
    return ((x + m - 1) // m) * m


def user_encoder_kernel(click_ref, mask_ref, wq_ref, wk_ref, wv_ref,
                        w1_ref, b1_ref, w2_ref, b2_ref, out_ref,
                        *, num_heads, mxu_dtype):
    """One batch tile (BT users) of the UserEncoder hot path.

    click_ref: (BT, H, D) f32   clicked-news embeddings (dropout = identity, eval)
    mask_ref:  (BT, H)    f32   1.0 valid / -1e9 padding (torch masked_fill semantics)
    wq/wk/wv:  (D, D)           MultiHeadAttention projections (pre-transposed), resident
    w1: (D, MED), b1: (1, MED)  AdditiveAttention att_fc1 (pre-transposed), resident
    w2: (1, MED)                AdditiveAttention att_fc2 weight, resident
    b2: (1, 1) in SMEM          att_fc2 bias (softmax-invariant constant shift)
    out_ref: (BT, D)            pooled user vectors for this batch tile
    """
    f32 = jnp.float32
    x = click_ref[...]                         # (BT, H, D)
    mask = mask_ref[...]                       # (BT, H)
    bt, hseq, d = x.shape
    hs = d // num_heads
    scale = 1.0 / math.sqrt(hs)

    # --- MultiHeadAttention (self.multiatt): Q = K = V = click_embed -------------
    # bf16 MXU operands on v6e/v7x (mxu_dtype), f32 accumulation, f32 vector math.
    xm = x.astype(mxu_dtype)
    q = jnp.einsum('bhd,de->bhe', xm, wq_ref[...].astype(mxu_dtype),
                   preferred_element_type=f32)
    k = jnp.einsum('bhd,de->bhe', xm, wk_ref[...].astype(mxu_dtype),
                   preferred_element_type=f32)
    v = jnp.einsum('bhd,de->bhe', xm, wv_ref[...].astype(mxu_dtype),
                   preferred_element_type=f32)
    q = q * scale                              # 1/sqrt(head_size), applied once

    # Heads combined via constant 0/1 lane masks (no 8-lane slices, no lane
    # concatenate): head n's logits are a full K=32 contraction against the
    # head-masked K (zeros contribute nothing), and its output lands only in its
    # own lanes (head-masked V), so summing the per-head results == concat.
    lane_id = jax.lax.broadcasted_iota(jnp.int32, (1, 1, d), 2)
    att_out = jnp.zeros((bt, hseq, d), f32)
    for n in range(num_heads):                 # static loop, nh = 4
        hm = ((lane_id >= n * hs) & (lane_id < (n + 1) * hs)).astype(f32)
        k_n = (k * hm).astype(mxu_dtype)
        v_n = (v * hm).astype(mxu_dtype)
        logits = jnp.einsum('bqd,bkd->bqk', q.astype(mxu_dtype), k_n,
                            preferred_element_type=f32)        # (BT, H, H)
        logits = logits + mask[:, None, :]                     # mask1 broadcast
        m = jnp.max(logits, axis=-1, keepdims=True)
        p = jnp.exp(logits - m)
        aw = p * pl.reciprocal(jnp.sum(p, axis=-1, keepdims=True), approx=True)
        att_out = att_out + jnp.einsum('bqk,bkd->bqd', aw.astype(mxu_dtype), v_n,
                                       preferred_element_type=f32)
    # dropout2 = identity (eval mode)

    # --- AdditiveAttention (self.selfaddatt) --------------------------------------
    e = jnp.tanh(
        jnp.einsum('bhd,dm->bhm', att_out.astype(mxu_dtype),
                   w1_ref[...].astype(mxu_dtype), preferred_element_type=f32)
        + b1_ref[...][None, :, :])                             # (BT, H, MED)
    alpha = jnp.sum(e * w2_ref[...][None, :, :], axis=-1)      # (BT, H), VPU reduce
    alpha = alpha + b2_ref[0, 0]      # SMEM scalar (softmax-invariant, kept for fidelity)
    alpha = alpha + mask              # mask2
    m2 = jnp.max(alpha, axis=-1, keepdims=True)
    p2 = jnp.exp(alpha - m2)
    attw = p2 * pl.reciprocal(jnp.sum(p2, axis=-1, keepdims=True), approx=True)
    out_ref[...] = jnp.sum(attw[:, :, None] * att_out, axis=1)  # (BT, D)


def user_encoder_forward(click_embed, mask, params, *, block_b=1024,
                         mxu_dtype=jnp.float32,
                         vmem_limit_bytes=32 * 1024 * 1024):
    """Batched UserEncoder forward: grid over batch tiles, VMEM-resident weights."""
    B, H, D = click_embed.shape
    bt = _round_up(min(block_b, _round_up(B, 8)), 8)
    b_pad = _round_up(B, bt)
    if b_pad != B:
        # Padded rows: zero embeddings + zero mask -> finite garbage, sliced off.
        click_embed = jnp.pad(click_embed, ((0, b_pad - B), (0, 0), (0, 0)))
        mask = jnp.pad(mask, ((0, b_pad - B), (0, 0)))

    med = params['w1'].shape[1]
    const2 = lambda i: (0, 0)          # constant block index -> weights stay resident
    in_specs = [
        pl.BlockSpec((bt, H, D), lambda i: (i, 0, 0)),          # click tile
        pl.BlockSpec((bt, H), lambda i: (i, 0)),                # mask tile
        pl.BlockSpec((D, D), const2),                           # wq
        pl.BlockSpec((D, D), const2),                           # wk
        pl.BlockSpec((D, D), const2),                           # wv
        pl.BlockSpec((D, med), const2),                         # w1
        pl.BlockSpec((1, med), const2),                         # b1
        pl.BlockSpec((1, med), const2),                         # w2
        pl.BlockSpec(memory_space=pltpu.MemorySpace.SMEM),      # b2 scalar
    ]
    out_specs = pl.BlockSpec((bt, D), lambda i: (i, 0))

    kernel = functools.partial(user_encoder_kernel,
                               num_heads=NUM_HEADS, mxu_dtype=mxu_dtype)
    out = pl.pallas_call(
        kernel,
        out_shape=jax.ShapeDtypeStruct((b_pad, D), jnp.float32),
        grid=(b_pad // bt,),
        in_specs=in_specs,
        out_specs=out_specs,
        compiler_params=pltpu.CompilerParams(
            dimension_semantics=("parallel",),   # shard batch tiles across TCs (v7x)
            vmem_limit_bytes=vmem_limit_bytes),
    )(click_embed, mask,
      params['wq'], params['wk'], params['wv'],
      params['w1'], params['b1'], params['w2'], params['b2'])
    return out[:B]


def news_encoder_stub(token_ids, embed_table, proj_w, proj_b):
    # TODO(synk): the real news encoder is an external module passed to UserEncoder;
    # stubbed deterministically as word-embedding mean-pool + linear projection.
    emb = embed_table[token_ids]              # (N, T, E)
    pooled = jnp.mean(emb, axis=1)            # (N, E)
    return pooled @ proj_w + proj_b           # (N, newssize)


def build_mask(seq_len, his_size):
    idx = jnp.arange(his_size)[None, :]
    m = (idx < seq_len[:, None]).astype(jnp.float32)   # 1.0 / 0.0
    return jnp.where(m == 0.0, -1e9, m)                # valid stays 1.0 (as in torch)


def reference_forward(x, mask, p):
    """Pure-JAX replica of the torch math for verification."""
    B, H, D = x.shape
    nh, hs = NUM_HEADS, D // NUM_HEADS
    q, k, v = x @ p['wq'], x @ p['wk'], x @ p['wv']
    split = lambda t: t.reshape(B, H, nh, hs).transpose(0, 2, 1, 3)
    qh, kh, vh = split(q), split(k), split(v)
    logits = qh @ kh.transpose(0, 1, 3, 2) / math.sqrt(hs) + mask[:, None, None, :]
    aw = jax.nn.softmax(logits, axis=-1)
    att = (aw @ vh).transpose(0, 2, 1, 3).reshape(B, H, D)
    e = jnp.tanh(att @ p['w1'] + p['b1'])
    alpha = jnp.sum(e * p['w2'][None], axis=-1, keepdims=True) + p['b2'][0, 0]
    alpha = alpha + mask[:, :, None]
    w = jax.nn.softmax(alpha, axis=1)
    return jnp.sum(w * att, axis=1)


if __name__ == "__main__":
    # small config: num_heads=4, head_size=8, no_topic=True -> newssize=32,
    # medialayer=16, his_size=8, batch=2, title_len=6, vocab=50, word_embed=16
    B, HIS, TITLE, VOCAB, WEMB = 2, 8, 6, 50, 16
    D = NUM_HEADS * 8          # newssize
    MED = 16                   # args.medialayer

    key = jax.random.PRNGKey(0)
    ks = jax.random.split(key, 14)

    embed_table = 0.1 * jax.random.normal(ks[0], (VOCAB, WEMB), jnp.float32)
    proj_w = 0.1 * jax.random.normal(ks[1], (WEMB, D), jnp.float32)
    proj_b = 0.1 * jax.random.normal(ks[2], (D,), jnp.float32)

    params = {
        # nn.Linear weights stored pre-transposed: y = x @ W
        'wq': 0.1 * jax.random.normal(ks[3], (D, D), jnp.float32),
        'wk': 0.1 * jax.random.normal(ks[4], (D, D), jnp.float32),
        'wv': 0.1 * jax.random.normal(ks[5], (D, D), jnp.float32),
        'w1': 0.1 * jax.random.normal(ks[6], (D, MED), jnp.float32),
        'b1': 0.1 * jax.random.normal(ks[7], (1, MED), jnp.float32),
        'w2': 0.1 * jax.random.normal(ks[8], (1, MED), jnp.float32),
        'b2': 0.1 * jax.random.normal(ks[9], (1, 1), jnp.float32),
    }

    # --- case 1: the module's own tiny shapes (single grid step) -----------------
    user_click = jax.random.randint(ks[10], (B, HIS, TITLE), 0, VOCAB, dtype=jnp.int32)
    seq_len = jnp.array([5, 8], dtype=jnp.int32)

    reshape_user_click = user_click.reshape(-1, TITLE)
    click_embed = news_encoder_stub(
        reshape_user_click, embed_table, proj_w, proj_b).reshape(B, HIS, D)
    mask = build_mask(seq_len, HIS)

    out = user_encoder_forward(click_embed, mask, params)
    jax.block_until_ready(out)
    ref = reference_forward(click_embed, mask, params)
    assert out.shape == (B, D)
    assert jnp.allclose(out, ref, atol=5e-3, rtol=5e-3), "mismatch vs pure-JAX reference"

    # --- case 2: larger batch -> multi-step grid, resident weights ---------------
    B2 = 256
    user_click2 = jax.random.randint(ks[11], (B2, HIS, TITLE), 0, VOCAB, dtype=jnp.int32)
    # seq_len >= 1: zero-length histories produce NaN in torch and the reference too.
    seq_len2 = jax.random.randint(ks[12], (B2,), 1, HIS + 1, dtype=jnp.int32)
    click2 = news_encoder_stub(
        user_click2.reshape(-1, TITLE), embed_table, proj_w, proj_b).reshape(B2, HIS, D)
    mask2 = build_mask(seq_len2, HIS)

    out2 = user_encoder_forward(click2, mask2, params, block_b=64)   # grid = (4,)
    jax.block_until_ready(out2)
    ref2 = reference_forward(click2, mask2, params)
    assert jnp.allclose(out2, ref2, atol=5e-3, rtol=5e-3), "batched kernel mismatch"

    # --- case 3: bf16 MXU operands (v6e/v7x advice), f32 accumulate/vector math ---
    out3 = user_encoder_forward(click2, mask2, params, block_b=64,
                                mxu_dtype=jnp.bfloat16)
    jax.block_until_ready(out3)
    assert jnp.allclose(out3, ref2, atol=3e-2, rtol=3e-2), "bf16 variant mismatch"

    print("KERNEL_OK")
</pallas_src>

<mosaic_0001>
module attributes {stable_mosaic.version = 11 : i64} {
  func.func @user_encoder_kernel(%arg0: i32, %arg1: memref<8x8x32xf32, #tpu.memory_space<vmem>>, %arg2: memref<8x8xf32, #tpu.memory_space<vmem>>, %arg3: memref<32x32xf32, #tpu.memory_space<vmem>>, %arg4: memref<32x32xf32, #tpu.memory_space<vmem>>, %arg5: memref<32x32xf32, #tpu.memory_space<vmem>>, %arg6: memref<32x16xf32, #tpu.memory_space<vmem>>, %arg7: memref<1x16xf32, #tpu.memory_space<vmem>>, %arg8: memref<1x16xf32, #tpu.memory_space<vmem>>, %arg9: memref<1x1xf32, #tpu.memory_space<smem>>, %arg10: memref<8x32xf32, #tpu.memory_space<vmem>>) attributes {dimension_semantics = [#tpu.dimension_semantics<parallel>], iteration_bounds = array<i64: 1>, scalar_prefetch = 0 : i64, scratch_operands = 0 : i64, tpu.core_type = #tpu.core_type<tc>, window_params = [{transform_indices = @transform_0, window_bounds = array<i64: 8, 8, 32>}, {transform_indices = @transform_1, window_bounds = array<i64: 8, 8>}, {pipeline_mode = #tpu.pipeline_mode<synchronous>, transform_indices = @transform_2, window_bounds = array<i64: 32, 32>}, {pipeline_mode = #tpu.pipeline_mode<synchronous>, transform_indices = @transform_3, window_bounds = array<i64: 32, 32>}, {pipeline_mode = #tpu.pipeline_mode<synchronous>, transform_indices = @transform_4, window_bounds = array<i64: 32, 32>}, {pipeline_mode = #tpu.pipeline_mode<synchronous>, transform_indices = @transform_5, window_bounds = array<i64: 32, 16>}, {pipeline_mode = #tpu.pipeline_mode<synchronous>, transform_indices = @transform_6, window_bounds = array<i64: 1, 16>}, {pipeline_mode = #tpu.pipeline_mode<synchronous>, transform_indices = @transform_7, window_bounds = array<i64: 1, 16>}, {transform_indices = @transform_8, window_bounds = array<i64: 1, 1>}, {transform_indices = @transform_9, window_bounds = array<i64: 8, 32>}]} {
    %c0 = arith.constant 0 : index
    %c0_0 = arith.constant 0 : index
    %c0_1 = arith.constant 0 : index
    %0 = vector.load %arg1[%c0, %c0_0, %c0_1] : memref<8x8x32xf32, #tpu.memory_space<vmem>>, vector<8x8x32xf32>
    %c0_2 = arith.constant 0 : index
    %c0_3 = arith.constant 0 : index
    %1 = vector.load %arg2[%c0_2, %c0_3] : memref<8x8xf32, #tpu.memory_space<vmem>>, vector<8x8xf32>
    %c0_4 = arith.constant 0 : index
    %c0_5 = arith.constant 0 : index
    %2 = vector.load %arg3[%c0_4, %c0_5] : memref<32x32xf32, #tpu.memory_space<vmem>>, vector<32x32xf32>
    "tpu.trace_start"() <{level = 10 : i32, message = "bhd,de->bhe"}> : () -> ()
    %cst = arith.constant dense<0.000000e+00> : vector<8x8x32xf32>
    %3 = tpu.matmul %0, %2, %cst {dimension_numbers = #tpu.dot_dimension_numbers<[2], [0], [0, 1], [1], [0, 0, 0, 1, 1, 1], [], []>} : vector<8x8x32xf32>, vector<32x32xf32>, vector<8x8x32xf32> -> vector<8x8x32xf32>
    "tpu.trace_stop"() : () -> ()
    %c0_6 = arith.constant 0 : index
    %c0_7 = arith.constant 0 : index
    %4 = vector.load %arg4[%c0_6, %c0_7] : memref<32x32xf32, #tpu.memory_space<vmem>>, vector<32x32xf32>
    "tpu.trace_start"() <{level = 10 : i32, message = "bhd,de->bhe"}> : () -> ()
    %cst_8 = arith.constant dense<0.000000e+00> : vector<8x8x32xf32>
    %5 = tpu.matmul %0, %4, %cst_8 {dimension_numbers = #tpu.dot_dimension_numbers<[2], [0], [0, 1], [1], [0, 0, 0, 1, 1, 1], [], []>} : vector<8x8x32xf32>, vector<32x32xf32>, vector<8x8x32xf32> -> vector<8x8x32xf32>
    "tpu.trace_stop"() : () -> ()
    %c0_9 = arith.constant 0 : index
    %c0_10 = arith.constant 0 : index
    %6 = vector.load %arg5[%c0_9, %c0_10] : memref<32x32xf32, #tpu.memory_space<vmem>>, vector<32x32xf32>
    "tpu.trace_start"() <{level = 10 : i32, message = "bhd,de->bhe"}> : () -> ()
    %cst_11 = arith.constant dense<0.000000e+00> : vector<8x8x32xf32>
    %7 = tpu.matmul %0, %6, %cst_11 {dimension_numbers = #tpu.dot_dimension_numbers<[2], [0], [0, 1], [1], [0, 0, 0, 1, 1, 1], [], []>} : vector<8x8x32xf32>, vector<32x32xf32>, vector<8x8x32xf32> -> vector<8x8x32xf32>
    "tpu.trace_stop"() : () -> ()
    %cst_12 = arith.constant 0.353553385 : f32
    %8 = vector.broadcast %cst_12 : f32 to vector<8x8x32xf32>
    %9 = arith.mulf %3, %8 : vector<8x8x32xf32>
    %10 = tpu.iota {dimensions = array<i32: 2>} : vector<1x1x32xi32>
    %cst_13 = arith.constant 0.000000e+00 : f32
    %11 = vector.broadcast %cst_13 : f32 to vector<8x8x32xf32>
    %c0_i32 = arith.constant 0 : i32
    %12 = vector.broadcast %c0_i32 : i32 to vector<1x1x32xi32>
    %13 = arith.cmpi sge, %10, %12 : vector<1x1x32xi32>
    %c8_i32 = arith.constant 8 : i32
    %14 = vector.broadcast %c8_i32 : i32 to vector<1x1x32xi32>
    %15 = arith.cmpi slt, %10, %14 : vector<1x1x32xi32>
    %16 = arith.andi %13, %15 : vector<1x1x32xi1>
    %17 = arith.extui %16 : vector<1x1x32xi1> to vector<1x1x32xi32>
    %18 = arith.sitofp %17 : vector<1x1x32xi32> to vector<1x1x32xf32>
    %19 = vector.broadcast %18 : vector<1x1x32xf32> to vector<8x8x32xf32>
    %20 = arith.mulf %5, %19 : vector<8x8x32xf32>
    %21 = vector.broadcast %18 : vector<1x1x32xf32> to vector<8x8x32xf32>
    %22 = arith.mulf %7, %21 : vector<8x8x32xf32>
    "tpu.trace_start"() <{level = 10 : i32, message = "bqd,bkd->bqk"}> : () -> ()
    %cst_14 = arith.constant dense<0.000000e+00> : vector<8x8x8xf32>
    %23 = tpu.matmul %9, %20, %cst_14 {dimension_numbers = #tpu.dot_dimension_numbers<[2], [2], [1], [1], [0, 0, 0, 1, 1, 1], [0], [0]>} : vector<8x8x32xf32>, vector<8x8x32xf32>, vector<8x8x8xf32> -> vector<8x8x8xf32>
    "tpu.trace_stop"() : () -> ()
    %24 = vector.shape_cast %1 : vector<8x8xf32> to vector<8x1x8xf32>
    %25 = vector.broadcast %24 : vector<8x1x8xf32> to vector<8x8x8xf32>
    %26 = arith.addf %23, %25 : vector<8x8x8xf32>
    %cst_15 = arith.constant dense<0xFF800000> : vector<8x8xf32>
    %27 = vector.multi_reduction <maximumf>, %26, %cst_15 [2] : vector<8x8x8xf32> to vector<8x8xf32>
    %28 = vector.shape_cast %27 : vector<8x8xf32> to vector<8x8x1xf32>
    %29 = vector.broadcast %28 : vector<8x8x1xf32> to vector<8x8x8xf32>
    %30 = arith.subf %26, %29 : vector<8x8x8xf32>
    %31 = math.exp %30 : vector<8x8x8xf32>
    %cst_16 = arith.constant dense<0.000000e+00> : vector<8x8xf32>
    %32 = vector.multi_reduction <add>, %31, %cst_16 [2] : vector<8x8x8xf32> to vector<8x8xf32>
    %33 = vector.shape_cast %32 : vector<8x8xf32> to vector<8x8x1xf32>
    %34 = tpu.reciprocal %33 {approx = true} : vector<8x8x1xf32> -> vector<8x8x1xf32>
    %35 = vector.broadcast %34 : vector<8x8x1xf32> to vector<8x8x8xf32>
    %36 = arith.mulf %31, %35 : vector<8x8x8xf32>
    "tpu.trace_start"() <{level = 10 : i32, message = "bqk,bkd->bqd"}> : () -> ()
    %cst_17 = arith.constant dense<0.000000e+00> : vector<8x8x32xf32>
    %37 = tpu.matmul %36, %22, %cst_17 {dimension_numbers = #tpu.dot_dimension_numbers<[2], [1], [1], [2], [0, 0, 0, 1, 1, 2], [0], [0]>} : vector<8x8x8xf32>, vector<8x8x32xf32>, vector<8x8x32xf32> -> vector<8x8x32xf32>
    "tpu.trace_stop"() : () -> ()
    %38 = arith.addf %11, %37 : vector<8x8x32xf32>
    %c8_i32_18 = arith.constant 8 : i32
    %39 = vector.broadcast %c8_i32_18 : i32 to vector<1x1x32xi32>
    %40 = arith.cmpi sge, %10, %39 : vector<1x1x32xi32>
    %c16_i32 = arith.constant 16 : i32
    %41 = vector.broadcast %c16_i32 : i32 to vector<1x1x32xi32>
    %42 = arith.cmpi slt, %10, %41 : vector<1x1x32xi32>
    %43 = arith.andi %40, %42 : vector<1x1x32xi1>
    %44 = arith.extui %43 : vector<1x1x32xi1> to vector<1x1x32xi32>
    %45 = arith.sitofp %44 : vector<1x1x32xi32> to vector<1x1x32xf32>
    %46 = vector.broadcast %45 : vector<1x1x32xf32> to vector<8x8x32xf32>
    %47 = arith.mulf %5, %46 : vector<8x8x32xf32>
    %48 = vector.broadcast %45 : vector<1x1x32xf32> to vector<8x8x32xf32>
    %49 = arith.mulf %7, %48 : vector<8x8x32xf32>
    "tpu.trace_start"() <{level = 10 : i32, message = "bqd,bkd->bqk"}> : () -> ()
    %cst_19 = arith.constant dense<0.000000e+00> : vector<8x8x8xf32>
    %50 = tpu.matmul %9, %47, %cst_19 {dimension_numbers = #tpu.dot_dimension_numbers<[2], [2], [1], [1], [0, 0, 0, 1, 1, 1], [0], [0]>} : vector<8x8x32xf32>, vector<8x8x32xf32>, vector<8x8x8xf32> -> vector<8x8x8xf32>
    "tpu.trace_stop"() : () -> ()
    %51 = vector.shape_cast %1 : vector<8x8xf32> to vector<8x1x8xf32>
    %52 = vector.broadcast %51 : vector<8x1x8xf32> to vector<8x8x8xf32>
    %53 = arith.addf %50, %52 : vector<8x8x8xf32>
    %cst_20 = arith.constant dense<0xFF800000> : vector<8x8xf32>
    %54 = vector.multi_reduction <maximumf>, %53, %cst_20 [2] : vector<8x8x8xf32> to vector<8x8xf32>
    %55 = vector.shape_cast %54 : vector<8x8xf32> to vector<8x8x1xf32>
    %56 = vector.broadcast %55 : vector<8x8x1xf32> to vector<8x8x8xf32>
    %57 = arith.subf %53, %56 : vector<8x8x8xf32>
    %58 = math.exp %57 : vector<8x8x8xf32>
    %cst_21 = arith.constant dense<0.000000e+00> : vector<8x8xf32>
    %59 = vector.multi_reduction <add>, %58, %cst_21 [2] : vector<8x8x8xf32> to vector<8x8xf32>
    %60 = vector.shape_cast %59 : vector<8x8xf32> to vector<8x8x1xf32>
    %61 = tpu.reciprocal %60 {approx = true} : vector<8x8x1xf32> -> vector<8x8x1xf32>
    %62 = vector.broadcast %61 : vector<8x8x1xf32> to vector<8x8x8xf32>
    %63 = arith.mulf %58, %62 : vector<8x8x8xf32>
    "tpu.trace_start"() <{level = 10 : i32, message = "bqk,bkd->bqd"}> : () -> ()
    %cst_22 = arith.constant dense<0.000000e+00> : vector<8x8x32xf32>
    %64 = tpu.matmul %63, %49, %cst_22 {dimension_numbers = #tpu.dot_dimension_numbers<[2], [1], [1], [2], [0, 0, 0, 1, 1, 2], [0], [0]>} : vector<8x8x8xf32>, vector<8x8x32xf32>, vector<8x8x32xf32> -> vector<8x8x32xf32>
    "tpu.trace_stop"() : () -> ()
    %65 = arith.addf %38, %64 : vector<8x8x32xf32>
    %c16_i32_23 = arith.constant 16 : i32
    %66 = vector.broadcast %c16_i32_23 : i32 to vector<1x1x32xi32>
    %67 = arith.cmpi sge, %10, %66 : vector<1x1x32xi32>
    %c24_i32 = arith.constant 24 : i32
    %68 = vector.broadcast %c24_i32 : i32 to vector<1x1x32xi32>
    %69 = arith.cmpi slt, %10, %68 : vector<1x1x32xi32>
    %70 = arith.andi %67, %69 : vector<1x1x32xi1>
    %71 = arith.extui %70 : vector<1x1x32xi1> to vector<1x1x32xi32>
    %72 = arith.sitofp %71 : vector<1x1x32xi32> to vector<1x1x32xf32>
    %73 = vector.broadcast %72 : vector<1x1x32xf32> to vector<8x8x32xf32>
    %74 = arith.mulf %5, %73 : vector<8x8x32xf32>
    %75 = vector.broadcast %72 : vector<1x1x32xf32> to vector<8x8x32xf32>
    %76 = arith.mulf %7, %75 : vector<8x8x32xf32>
    "tpu.trace_start"() <{level = 10 : i32, message = "bqd,bkd->bqk"}> : () -> ()
    %cst_24 = arith.constant dense<0.000000e+00> : vector<8x8x8xf32>
    %77 = tpu.matmul %9, %74, %cst_24 {dimension_numbers = #tpu.dot_dimension_numbers<[2], [2], [1], [1], [0, 0, 0, 1, 1, 1], [0], [0]>} : vector<8x8x32xf32>, vector<8x8x32xf32>, vector<8x8x8xf32> -> vector<8x8x8xf32>
    "tpu.trace_stop"() : () -> ()
    %78 = vector.shape_cast %1 : vector<8x8xf32> to vector<8x1x8xf32>
    %79 = vector.broadcast %78 : vector<8x1x8xf32> to vector<8x8x8xf32>
    %80 = arith.addf %77, %79 : vector<8x8x8xf32>
    %cst_25 = arith.constant dense<0xFF800000> : vector<8x8xf32>
    %81 = vector.multi_reduction <maximumf>, %80, %cst_25 [2] : vector<8x8x8xf32> to vector<8x8xf32>
    %82 = vector.shape_cast %81 : vector<8x8xf32> to vector<8x8x1xf32>
    %83 = vector.broadcast %82 : vector<8x8x1xf32> to vector<8x8x8xf32>
    %84 = arith.subf %80, %83 : vector<8x8x8xf32>
    %85 = math.exp %84 : vector<8x8x8xf32>
    %cst_26 = arith.constant dense<0.000000e+00> : vector<8x8xf32>
    %86 = vector.multi_reduction <add>, %85, %cst_26 [2] : vector<8x8x8xf32> to vector<8x8xf32>
    %87 = vector.shape_cast %86 : vector<8x8xf32> to vector<8x8x1xf32>
    %88 = tpu.reciprocal %87 {approx = true} : vector<8x8x1xf32> -> vector<8x8x1xf32>
    %89 = vector.broadcast %88 : vector<8x8x1xf32> to vector<8x8x8xf32>
    %90 = arith.mulf %85, %89 : vector<8x8x8xf32>
    "tpu.trace_start"() <{level = 10 : i32, message = "bqk,bkd->bqd"}> : () -> ()
    %cst_27 = arith.constant dense<0.000000e+00> : vector<8x8x32xf32>
    %91 = tpu.matmul %90, %76, %cst_27 {dimension_numbers = #tpu.dot_dimension_numbers<[2], [1], [1], [2], [0, 0, 0, 1, 1, 2], [0], [0]>} : vector<8x8x8xf32>, vector<8x8x32xf32>, vector<8x8x32xf32> -> vector<8x8x32xf32>
    "tpu.trace_stop"() : () -> ()
    %92 = arith.addf %65, %91 : vector<8x8x32xf32>
    %c24_i32_28 = arith.constant 24 : i32
    %93 = vector.broadcast %c24_i32_28 : i32 to vector<1x1x32xi32>
    %94 = arith.cmpi sge, %10, %93 : vector<1x1x32xi32>
    %c32_i32 = arith.constant 32 : i32
    %95 = vector.broadcast %c32_i32 : i32 to vector<1x1x32xi32>
    %96 = arith.cmpi slt, %10, %95 : vector<1x1x32xi32>
    %97 = arith.andi %94, %96 : vector<1x1x32xi1>
    %98 = arith.extui %97 : vector<1x1x32xi1> to vector<1x1x32xi32>
    %99 = arith.sitofp %98 : vector<1x1x32xi32> to vector<1x1x32xf32>
    %100 = vector.broadcast %99 : vector<1x1x32xf32> to vector<8x8x32xf32>
    %101 = arith.mulf %5, %100 : vector<8x8x32xf32>
    %102 = vector.broadcast %99 : vector<1x1x32xf32> to vector<8x8x32xf32>
    %103 = arith.mulf %7, %102 : vector<8x8x32xf32>
    "tpu.trace_start"() <{level = 10 : i32, message = "bqd,bkd->bqk"}> : () -> ()
    %cst_29 = arith.constant dense<0.000000e+00> : vector<8x8x8xf32>
    %104 = tpu.matmul %9, %101, %cst_29 {dimension_numbers = #tpu.dot_dimension_numbers<[2], [2], [1], [1], [0, 0, 0, 1, 1, 1], [0], [0]>} : vector<8x8x32xf32>, vector<8x8x32xf32>, vector<8x8x8xf32> -> vector<8x8x8xf32>
    "tpu.trace_stop"() : () -> ()
    %105 = vector.shape_cast %1 : vector<8x8xf32> to vector<8x1x8xf32>
    %106 = vector.broadcast %105 : vector<8x1x8xf32> to vector<8x8x8xf32>
    %107 = arith.addf %104, %106 : vector<8x8x8xf32>
    %cst_30 = arith.constant dense<0xFF800000> : vector<8x8xf32>
    %108 = vector.multi_reduction <maximumf>, %107, %cst_30 [2] : vector<8x8x8xf32> to vector<8x8xf32>
    %109 = vector.shape_cast %108 : vector<8x8xf32> to vector<8x8x1xf32>
    %110 = vector.broadcast %109 : vector<8x8x1xf32> to vector<8x8x8xf32>
    %111 = arith.subf %107, %110 : vector<8x8x8xf32>
    %112 = math.exp %111 : vector<8x8x8xf32>
    %cst_31 = arith.constant dense<0.000000e+00> : vector<8x8xf32>
    %113 = vector.multi_reduction <add>, %112, %cst_31 [2] : vector<8x8x8xf32> to vector<8x8xf32>
    %114 = vector.shape_cast %113 : vector<8x8xf32> to vector<8x8x1xf32>
    %115 = tpu.reciprocal %114 {approx = true} : vector<8x8x1xf32> -> vector<8x8x1xf32>
    %116 = vector.broadcast %115 : vector<8x8x1xf32> to vector<8x8x8xf32>
    %117 = arith.mulf %112, %116 : vector<8x8x8xf32>
    "tpu.trace_start"() <{level = 10 : i32, message = "bqk,bkd->bqd"}> : () -> ()
    %cst_32 = arith.constant dense<0.000000e+00> : vector<8x8x32xf32>
    %118 = tpu.matmul %117, %103, %cst_32 {dimension_numbers = #tpu.dot_dimension_numbers<[2], [1], [1], [2], [0, 0, 0, 1, 1, 2], [0], [0]>} : vector<8x8x8xf32>, vector<8x8x32xf32>, vector<8x8x32xf32> -> vector<8x8x32xf32>
    "tpu.trace_stop"() : () -> ()
    %119 = arith.addf %92, %118 : vector<8x8x32xf32>
    %c0_33 = arith.constant 0 : index
    %c0_34 = arith.constant 0 : index
    %120 = vector.load %arg6[%c0_33, %c0_34] : memref<32x16xf32, #tpu.memory_space<vmem>>, vector<32x16xf32>
    "tpu.trace_start"() <{level = 10 : i32, message = "bhd,dm->bhm"}> : () -> ()
    %cst_35 = arith.constant dense<0.000000e+00> : vector<8x8x16xf32>
    %121 = tpu.matmul %119, %120, %cst_35 {dimension_numbers = #tpu.dot_dimension_numbers<[2], [0], [0, 1], [1], [0, 0, 0, 1, 1, 1], [], []>} : vector<8x8x32xf32>, vector<32x16xf32>, vector<8x8x16xf32> -> vector<8x8x16xf32>
    "tpu.trace_stop"() : () -> ()
    %c0_36 = arith.constant 0 : index
    %c0_37 = arith.constant 0 : index
    %122 = vector.load %arg7[%c0_36, %c0_37] : memref<1x16xf32, #tpu.memory_space<vmem>>, vector<1x16xf32>
    %123 = vector.shape_cast %122 : vector<1x16xf32> to vector<1x1x16xf32>
    %124 = vector.broadcast %123 : vector<1x1x16xf32> to vector<8x8x16xf32>
    %125 = arith.addf %121, %124 : vector<8x8x16xf32>
    %126 = math.tanh %125 : vector<8x8x16xf32>
    %c0_38 = arith.constant 0 : index
    %c0_39 = arith.constant 0 : index
    %127 = vector.load %arg8[%c0_38, %c0_39] : memref<1x16xf32, #tpu.memory_space<vmem>>, vector<1x16xf32>
    %128 = vector.shape_cast %127 : vector<1x16xf32> to vector<1x1x16xf32>
    %129 = vector.broadcast %128 : vector<1x1x16xf32> to vector<8x8x16xf32>
    %130 = arith.mulf %126, %129 : vector<8x8x16xf32>
    %cst_40 = arith.constant dense<0.000000e+00> : vector<8x8xf32>
    %131 = vector.multi_reduction <add>, %130, %cst_40 [2] : vector<8x8x16xf32> to vector<8x8xf32>
    %c0_41 = arith.constant 0 : index
    %c0_42 = arith.constant 0 : index
    %132 = memref.load %arg9[%c0_41, %c0_42] : memref<1x1xf32, #tpu.memory_space<smem>>
    %133 = vector.broadcast %132 : f32 to vector<8x8xf32>
    %134 = arith.addf %131, %133 : vector<8x8xf32>
    %135 = arith.addf %134, %1 : vector<8x8xf32>
    %cst_43 = arith.constant dense<0xFF800000> : vector<8xf32>
    %136 = vector.multi_reduction <maximumf>, %135, %cst_43 [1] : vector<8x8xf32> to vector<8xf32>
    %137 = vector.shape_cast %136 : vector<8xf32> to vector<8x1xf32>
    %138 = vector.broadcast %137 : vector<8x1xf32> to vector<8x8xf32>
    %139 = arith.subf %135, %138 : vector<8x8xf32>
    %140 = math.exp %139 : vector<8x8xf32>
    %cst_44 = arith.constant dense<0.000000e+00> : vector<8xf32>
    %141 = vector.multi_reduction <add>, %140, %cst_44 [1] : vector<8x8xf32> to vector<8xf32>
    %142 = vector.shape_cast %141 : vector<8xf32> to vector<8x1xf32>
    %143 = tpu.reciprocal %142 {approx = true} : vector<8x1xf32> -> vector<8x1xf32>
    %144 = vector.broadcast %143 : vector<8x1xf32> to vector<8x8xf32>
    %145 = arith.mulf %140, %144 : vector<8x8xf32>
    %146 = vector.shape_cast %145 : vector<8x8xf32> to vector<8x8x1xf32>
    %147 = vector.broadcast %146 : vector<8x8x1xf32> to vector<8x8x32xf32>
    %148 = arith.mulf %147, %119 : vector<8x8x32xf32>
    %cst_45 = arith.constant dense<0.000000e+00> : vector<8x32xf32>
    %149 = vector.multi_reduction <add>, %148, %cst_45 [1] : vector<8x8x32xf32> to vector<8x32xf32>
    %c0_46 = arith.constant 0 : index
    %c0_47 = arith.constant 0 : index
    %150 = vector.load %arg10[%c0_46, %c0_47] : memref<8x32xf32, #tpu.memory_space<vmem>>, vector<8x32xf32>
    tpu.vector_store %arg10[%c0_46, %c0_47], %149 {strides = array<i32>} : memref<8x32xf32, #tpu.memory_space<vmem>>, vector<8x32xf32>,
    return
  }
  func.func @transform_0(%arg0: i32) -> (i32, i32, i32) {
    %c0_i32 = arith.constant 0 : i32
    %c0_i32_0 = arith.constant 0 : i32
    %c0_i32_1 = arith.constant 0 : i32
    return %arg0, %c0_i32, %c0_i32_0 : i32, i32, i32
  }
  func.func @transform_1(%arg0: i32) -> (i32, i32) {
    %c0_i32 = arith.constant 0 : i32
    %c0_i32_0 = arith.constant 0 : i32
    return %arg0, %c0_i32 : i32, i32
  }
  func.func @transform_2(%arg0: i32) -> (i32, i32) {
    %c0_i32 = arith.constant 0 : i32
    %c0_i32_0 = arith.constant 0 : i32
    %c0_i32_1 = arith.constant 0 : i32
    return %c0_i32, %c0_i32_0 : i32, i32
  }
  func.func @transform_3(%arg0: i32) -> (i32, i32) {
    %c0_i32 = arith.constant 0 : i32
    %c0_i32_0 = arith.constant 0 : i32
    %c0_i32_1 = arith.constant 0 : i32
    return %c0_i32, %c0_i32_0 : i32, i32
  }
  func.func @transform_4(%arg0: i32) -> (i32, i32) {
    %c0_i32 = arith.constant 0 : i32
    %c0_i32_0 = arith.constant 0 : i32
    %c0_i32_1 = arith.constant 0 : i32
    return %c0_i32, %c0_i32_0 : i32, i32
  }
  func.func @transform_5(%arg0: i32) -> (i32, i32) {
    %c0_i32 = arith.constant 0 : i32
    %c0_i32_0 = arith.constant 0 : i32
    %c0_i32_1 = arith.constant 0 : i32
    return %c0_i32, %c0_i32_0 : i32, i32
  }
  func.func @transform_6(%arg0: i32) -> (i32, i32) {
    %c0_i32 = arith.constant 0 : i32
    %c0_i32_0 = arith.constant 0 : i32
    %c0_i32_1 = arith.constant 0 : i32
    return %c0_i32, %c0_i32_0 : i32, i32
  }
  func.func @transform_7(%arg0: i32) -> (i32, i32) {
    %c0_i32 = arith.constant 0 : i32
    %c0_i32_0 = arith.constant 0 : i32
    %c0_i32_1 = arith.constant 0 : i32
    return %c0_i32, %c0_i32_0 : i32, i32
  }
  func.func @transform_8(%arg0: i32) -> (i32, i32) {
    %c0_i32 = arith.constant 0 : i32
    %c0_i32_0 = arith.constant 0 : i32
    %c0_i32_1 = arith.constant 0 : i32
    return %c0_i32, %c0_i32_0 : i32, i32
  }
  func.func @transform_9(%arg0: i32) -> (i32, i32) {
    %c0_i32 = arith.constant 0 : i32
    %c0_i32_0 = arith.constant 0 : i32
    return %arg0, %c0_i32 : i32, i32
  }
}

</mosaic_0001>

<llo_original>
// kernel: tpu_custom_call.1
$region0: #{tpu_custom_call.1}
  #allocation0 [shape = 'u32[]', space=smem, size = 0x4, offset = 0x4, fixed_abs, tag = 'smem constant byte address 0x4 - core index']
  #allocation1 [shape = 'u32[144,128]{1,0:T(1,128)}', space=vmem, size = 0x12000, scoped, tag = 'internal scratch']
  #allocation2 [shape = 'f32[1,1]{1,0:T(1,128)S(6)}', space=smem, size = 0x200, scoped, tag = 'scoped memory for tpu_custom_call.1']
  %s0 = inlined_call_operand.hbm [shape: f32[8,8,32], index: 0, kind: input, shape index: {}]
  %s1 = inlined_call_operand.vmem [shape: f32[8,8], index: 1, kind: input, shape index: {}]
  %s2 = inlined_call_operand.vmem [shape: f32[32,32], index: 2, kind: input, shape index: {}]
  %s3 = inlined_call_operand.hbm [shape: f32[32,32], index: 3, kind: input, shape index: {}]
  %s4 = inlined_call_operand.hbm [shape: f32[32,32], index: 4, kind: input, shape index: {}]
  %s5 = inlined_call_operand.vmem [shape: f32[32,16], index: 5, kind: input, shape index: {}]
  %s6 = inlined_call_operand.vmem [shape: f32[1,16], index: 6, kind: input, shape index: {}]
  %s7 = inlined_call_operand.vmem [shape: f32[1,16], index: 7, kind: input, shape index: {}]
  %s8 = inlined_call_operand.<no memory space> [shape: f32[1,1], index: 8, kind: input, shape index: {}]
  %s9 = inlined_call_operand.hbm [shape: f32[8,32], index: 9, kind: output, shape index: {}]
  %s10 = sld [smem:[#allocation0]]
  $region58: #{tpu_custom_call.1} parent=0
    _
  %s12 = ssub.s32 1, %s10
  %s13 = scalar_select 0, %s12, %s10
  %14 = sst [smem:[#allocation2]] %s8
  $region1: #{tpu_custom_call.1} parent=0
    #allocation3 [shape = 'u8[32768]{0}', space=vmem, size = 0x8000, scoped, tag = 'input window, operand 0, single buffered']
    #allocation4 [shape = 's32[1]{0}', space=sflag, size = 0x4, scoped, tag = 'scoped memory for tpu_custom_call.1']
    #allocation5 [shape = 's32[1]{0}', space=sflag, size = 0x4, scoped, tag = 'scoped memory for tpu_custom_call.1']
    #allocation6 [shape = 'u8[16384]{0}', space=vmem, size = 0x4000, scoped, tag = 'input window, operand 3, single buffered']
    #allocation7 [shape = 's32[1]{0}', space=sflag, size = 0x4, scoped, tag = 'scoped memory for tpu_custom_call.1']
    #allocation8 [shape = 'u8[16384]{0}', space=vmem, size = 0x4000, scoped, tag = 'input window, operand 4, single buffered']
    #allocation9 [shape = 'u8[4096]{0}', space=vmem, size = 0x1000, scoped, tag = 'output window, operand 0, single buffered']
    %15 = vsyncpa [#allocation4], 0
    %16 = vsyncpa [#allocation7], 0
    %17 = vsyncpa [#allocation5], 0
    // Predicated region
    $region2: #{tpu_custom_call.1} parent=1 // pred_check
      _
    $region3: #{tpu_custom_call.1} parent=1 // pred_check_branch
      %19 = sbr.rel (0) target = $region5
    $region4: #{tpu_custom_call.1} parent=1 // pred_region
      %s21 = ssub.s32 1024, 1024
      %22 = vsyncadd [#allocation4], %s21
      %s23 = sshll.u32 [#allocation3], 4
      %s24 = int_to_ptr.vmem [resolvable:$true] %s23
      %29 = dma.hbm_to_vmem [thread:$0]  %s0, 1024, %s24, [#allocation4], 128, 128, 8
    $region5: #{tpu_custom_call.1} parent=1 // pred_fallthru
      _
    // Predicated region
    $region6: #{tpu_custom_call.1} parent=1 // pred_check
      _
    $region7: #{tpu_custom_call.1} parent=1 // pred_check_branch
      %31 = sbr.rel (0) target = $region9
    $region8: #{tpu_custom_call.1} parent=1 // pred_region
      _
    $region9: #{tpu_custom_call.1} parent=1 // pred_fallthru
      _
    // Predicated region
    $region10: #{tpu_custom_call.1} parent=1 // pred_check
      _
    $region11: #{tpu_custom_call.1} parent=1 // pred_check_branch
      %33 = sbr.rel (0) target = $region13
    $region12: #{tpu_custom_call.1} parent=1 // pred_region
      _
    $region13: #{tpu_custom_call.1} parent=1 // pred_fallthru
      _
    // Predicated region
    $region14: #{tpu_custom_call.1} parent=1 // pred_check
      _
    $region15: #{tpu_custom_call.1} parent=1 // pred_check_branch
      %35 = sbr.rel (0) target = $region17
    $region16: #{tpu_custom_call.1} parent=1 // pred_region
      %s37 = ssub.s32 512, 512
      %38 = vsyncadd [#allocation7], %s37
      %s39 = sshll.u32 [#allocation6], 4
      %s40 = int_to_ptr.vmem [resolvable:$true] %s39
      %45 = dma.hbm_to_vmem [thread:$0]  %s3, 512, %s40, [#allocation7], 128, 128, 8
    $region17: #{tpu_custom_call.1} parent=1 // pred_fallthru
      _
    // Predicated region
    $region18: #{tpu_custom_call.1} parent=1 // pred_check
      _
    $region19: #{tpu_custom_call.1} parent=1 // pred_check_branch
      %47 = sbr.rel (0) target = $region21
    $region20: #{tpu_custom_call.1} parent=1 // pred_region
      %s49 = ssub.s32 512, 512
      %50 = vsyncadd [#allocation7], %s49
      %s51 = sshll.u32 [#allocation8], 4
      %s52 = int_to_ptr.vmem [resolvable:$true] %s51
      %57 = dma.hbm_to_vmem [thread:$0]  %s4, 512, %s52, [#allocation7], 128, 128, 8
    $region21: #{tpu_custom_call.1} parent=1 // pred_fallthru
      _
    // Predicated region
    $region22: #{tpu_custom_call.1} parent=1 // pred_check
      _
    $region23: #{tpu_custom_call.1} parent=1 // pred_check_branch
      %59 = sbr.rel (0) target = $region25
    $region24: #{tpu_custom_call.1} parent=1 // pred_region
      _
    $region25: #{tpu_custom_call.1} parent=1 // pred_fallthru
      _
    // Predicated region
    $region26: #{tpu_custom_call.1} parent=1 // pred_check
      _
    $region27: #{tpu_custom_call.1} parent=1 // pred_check_branch
      %61 = sbr.rel (0) target = $region29
    $region28: #{tpu_custom_call.1} parent=1 // pred_region
      _
    $region29: #{tpu_custom_call.1} parent=1 // pred_fallthru
      _
    // Predicated region
    $region30: #{tpu_custom_call.1} parent=1 // pred_check
      _
    $region31: #{tpu_custom_call.1} parent=1 // pred_check_branch
      %63 = sbr.rel (0) target = $region33
    $region32: #{tpu_custom_call.1} parent=1 // pred_region
      _
    $region33: #{tpu_custom_call.1} parent=1 // pred_fallthru
      _
    // Predicated region
    $region34: #{tpu_custom_call.1} parent=1 // pred_check
      _
    $region35: #{tpu_custom_call.1} parent=1 // pred_check_branch
      %65 = sbr.rel (0) target = $region37
    $region36: #{tpu_custom_call.1} parent=1 // pred_region
      _
    $region37: #{tpu_custom_call.1} parent=1 // pred_fallthru
      _
    // Predicated region
    $region38: #{tpu_custom_call.1} parent=1 // pred_check
      _
    $region39: #{tpu_custom_call.1} parent=1 // pred_check_branch
      %67 = sbr.rel (0) target = $region41
    $region40: #{tpu_custom_call.1} parent=1 // pred_region
      %68 = dma.done [#allocation4], 1024
    $region41: #{tpu_custom_call.1} parent=1 // pred_fallthru
      _
    // Predicated region
    $region42: #{tpu_custom_call.1} parent=1 // pred_check
      _
    $region43: #{tpu_custom_call.1} parent=1 // pred_check_branch
      %70 = sbr.rel (0) target = $region45
    $region44: #{tpu_custom_call.1} parent=1 // pred_region
      %71 = dma.done [#allocation7], 512
    $region45: #{tpu_custom_call.1} parent=1 // pred_fallthru
      _
    // Predicated region
    $region46: #{tpu_custom_call.1} parent=1 // pred_check
      _
    $region47: #{tpu_custom_call.1} parent=1 // pred_check_branch
      %73 = sbr.rel (0) target = $region49
    $region48: #{tpu_custom_call.1} parent=1 // pred_region
      %74 = dma.done [#allocation7], 512
    $region49: #{tpu_custom_call.1} parent=1 // pred_fallthru
      _
    %v75 = vld [vmem:[#allocation3] sm:$0xff]
    %v76 = vld [vmem:[#allocation3 + $0x8] sm:$0xff]
    %v77 = vld [vmem:[#allocation3 + $0x10] sm:$0xff]
    %v78 = vld [vmem:[#allocation3 + $0x18] sm:$0xff]
    %v79 = vld [vmem:[#allocation3 + $0x20] sm:$0xff]
    %v80 = vld [vmem:[#allocation3 + $0x28] sm:$0xff]
    %v81 = vld [vmem:[#allocation3 + $0x30] sm:$0xff]
    %v82 = vld [vmem:[#allocation3 + $0x38] sm:$0xff]
    %v83 = vld [vmem:[%s1] sm:$0xff]
    %v84 = vld [vmem:[%s2] sm:$0xff]
    %v85 = vld [vmem:[%s2 + $0x8] sm:$0xff]
    %v86 = vld [vmem:[%s2 + $0x10] sm:$0xff]
    %v87 = vld [vmem:[%s2 + $0x18] sm:$0xff]
    %vm88 = vcmask 261120
    %v90 = vsel %vm88, %v75, 0
    %v93 = vsel %vm88, %v76, 0
    %v96 = vsel %vm88, %v77, 0
    %v99 = vsel %vm88, %v78, 0
    %v102 = vsel %vm88, %v79, 0
    %v105 = vsel %vm88, %v80, 0
    %v108 = vsel %vm88, %v81, 0
    %v111 = vsel %vm88, %v82, 0
    %113 = vmatprep.subr.mxu0 0.0
    %114 = vmatpush1.msra.mxu0 0.0
    %115 = vmatprep.subr.mxu0 0.0
    %116 = vmatpush1.msra.mxu0 0.0
    %117 = vmatprep.subr.mxu0 0.0
    %118 = vmatpush1.msra.mxu0 0.0
    %119 = vmatprep.subr.mxu0 0.0
    %120 = vmatpush1.msra.mxu0 0.0
    %121 = vmatprep.subr.mxu0 0.0
    %122 = vmatpush1.msra.mxu0 0.0
    %123 = vmatprep.subr.mxu0 0.0
    %124 = vmatpush1.msra.mxu0 0.0
    %125 = vmatprep.subr.mxu0 0.0
    %126 = vmatpush1.msra.mxu0 0.0
    %127 = vmatprep.subr.mxu0 0.0
    %128 = vmatpush1.msra.mxu0 0.0
    %129 = vmatprep.subr.mxu0 0.0
    %130 = vmatpush1.msra.mxu0 0.0
    %131 = vmatprep.subr.mxu0 0.0
    %132 = vmatpush1.msra.mxu0 0.0
    %133 = vmatprep.subr.mxu0 0.0
    %134 = vmatpush1.msra.mxu0 0.0
    %135 = vmatprep.subr.mxu0 0.0
    %136 = vmatpush1.msra.mxu0 0.0
    %137 = vmatprep.subr.mxu0 0.0
    %138 = vmatpush1.msra.mxu0 %v87
    %139 = vmatprep.subr.mxu0 0.0
    %140 = vmatpush1.msra.mxu0 %v86
    %141 = vmatprep.subr.mxu0 0.0
    %142 = vmatpush1.msra.mxu0 %v85
    %143 = vmatprep.subr.mxu0 0.0
    %144 = vmatpush1.msra.mxu0 %v84
    %145 = vmatprep.subr.mxu0 0.0
    %146 = vmatpush2.msra.mxu0 0.0
    %147 = vmatprep.subr.mxu0 0.0
    %148 = vmatpush2.msra.mxu0 0.0
    %149 = vmatprep.subr.mxu0 0.0
    %150 = vmatpush2.msra.mxu0 0.0
    %151 = vmatprep.subr.mxu0 0.0
    %152 = vmatpush2.msra.mxu0 0.0
    %153 = vmatprep.subr.mxu0 0.0
    %154 = vmatpush2.msra.mxu0 0.0
    %155 = vmatprep.subr.mxu0 0.0
    %156 = vmatpush2.msra.mxu0 0.0
    %157 = vmatprep.subr.mxu0 0.0
    %158 = vmatpush2.msra.mxu0 0.0
    %159 = vmatprep.subr.mxu0 0.0
    %160 = vmatpush2.msra.mxu0 0.0
    %161 = vmatprep.subr.mxu0 0.0
    %162 = vmatpush2.msra.mxu0 0.0
    %163 = vmatprep.subr.mxu0 0.0
    %164 = vmatpush2.msra.mxu0 0.0
    %165 = vmatprep.subr.mxu0 0.0
    %166 = vmatpush2.msra.mxu0 0.0
    %167 = vmatprep.subr.mxu0 0.0
    %168 = vmatpush2.msra.mxu0 0.0
    %169 = vmatprep.subr.mxu0 0.0
    %170 = vmatpush2.msra.mxu0 0.0
    %171 = vmatprep.subr.mxu0 0.0
    %172 = vmatpush2.msra.mxu0 0.0
    %173 = vmatprep.subr.mxu0 0.0
    %174 = vmatpush2.msra.mxu0 0.0
    %175 = vmatprep.subr.mxu0 0.0
    %176 = vmatpush2.msra.mxu0 0.0
    %177 = vmatprep.mubr.f32.mxu0 0.0
    %178 = vmatmul.mubr.f32.gmra.mxu0 %v90
    %v179 = vpop.f32.mrf.mxu0
    %v180 = vadd.f32 0.0, %v179
    %v181 = vpop.f32.mrf.mxu0
    %182 = vmatprep.mubr.f32.mxu0 0.0
    %183 = vmatmul.mubr.f32.gmra.mxu0 %v93
    %v184 = vpop.f32.mrf.mxu0
    %v185 = vadd.f32 0.0, %v184
    %v186 = vpop.f32.mrf.mxu0
    %187 = vmatprep.mubr.f32.mxu0 0.0
    %188 = vmatmul.mubr.f32.gmra.mxu0 %v96
    %v189 = vpop.f32.mrf.mxu0
    %v190 = vadd.f32 0.0, %v189
    %v191 = vpop.f32.mrf.mxu0
    %192 = vmatprep.mubr.f32.mxu0 0.0
    %193 = vmatmul.mubr.f32.gmra.mxu0 %v99
    %v194 = vpop.f32.mrf.mxu0
    %v195 = vadd.f32 0.0, %v194
    %v196 = vpop.f32.mrf.mxu0
    %197 = vmatprep.mubr.f32.mxu0 0.0
    %198 = vmatmul.mubr.f32.gmra.mxu0 %v102
    %v199 = vpop.f32.mrf.mxu0
    %v200 = vadd.f32 0.0, %v199
    %v201 = vpop.f32.mrf.mxu0
    %202 = vmatprep.mubr.f32.mxu0 0.0
    %203 = vmatmul.mubr.f32.gmra.mxu0 %v105
    %v204 = vpop.f32.mrf.mxu0
    %v205 = vadd.f32 0.0, %v204
    %v206 = vpop.f32.mrf.mxu0
    %207 = vmatprep.mubr.f32.mxu0 0.0
    %208 = vmatmul.mubr.f32.gmra.mxu0 %v108
    %v209 = vpop.f32.mrf.mxu0
    %v210 = vadd.f32 0.0, %v209
    %v211 = vpop.f32.mrf.mxu0
    %212 = vmatprep.mubr.f32.mxu0 0.0
    %213 = vmatmul.mubr.f32.gmra.mxu0 %v111
    %v214 = vpop.f32.mrf.mxu0
    %v215 = vadd.f32 0.0, %v214
    %v216 = vpop.f32.mrf.mxu0
    %217 = vdwg.mxu0
    %v218 = vld [vmem:[#allocation6] sm:$0xff]
    %v219 = vld [vmem:[#allocation6 + $0x8] sm:$0xff]
    %v220 = vld [vmem:[#allocation6 + $0x10] sm:$0xff]
    %v221 = vld [vmem:[#allocation6 + $0x18] sm:$0xff]
    %222 = vmatprep.subr.mxu0 0.0
    %223 = vmatpush1.msra.mxu0 0.0
    %224 = vmatprep.subr.mxu0 0.0
    %225 = vmatpush1.msra.mxu0 0.0
    %226 = vmatprep.subr.mxu0 0.0
    %227 = vmatpush1.msra.mxu0 0.0
    %228 = vmatprep.subr.mxu0 0.0
    %229 = vmatpush1.msra.mxu0 0.0
    %230 = vmatprep.subr.mxu0 0.0
    %231 = vmatpush1.msra.mxu0 0.0
    %232 = vmatprep.subr.mxu0 0.0
    %233 = vmatpush1.msra.mxu0 0.0
    %234 = vmatprep.subr.mxu0 0.0
    %235 = vmatpush1.msra.mxu0 0.0
    %236 = vmatprep.subr.mxu0 0.0
    %237 = vmatpush1.msra.mxu0 0.0
    %238 = vmatprep.subr.mxu0 0.0
    %239 = vmatpush1.msra.mxu0 0.0
    %240 = vmatprep.subr.mxu0 0.0
    %241 = vmatpush1.msra.mxu0 0.0
    %242 = vmatprep.subr.mxu0 0.0
    %243 = vmatpush1.msra.mxu0 0.0
    %244 = vmatprep.subr.mxu0 0.0
    %245 = vmatpush1.msra.mxu0 0.0
    %246 = vmatprep.subr.mxu0 0.0
    %247 = vmatpush1.msra.mxu0 %v221
    %248 = vmatprep.subr.mxu0 0.0
    %249 = vmatpush1.msra.mxu0 %v220
    %250 = vmatprep.subr.mxu0 0.0
    %251 = vmatpush1.msra.mxu0 %v219
    %252 = vmatprep.subr.mxu0 0.0
    %253 = vmatpush1.msra.mxu0 %v218
    %254 = vmatprep.subr.mxu0 0.0
    %255 = vmatpush2.msra.mxu0 0.0
    %256 = vmatprep.subr.mxu0 0.0
    %257 = vmatpush2.msra.mxu0 0.0
    %258 = vmatprep.subr.mxu0 0.0
    %259 = vmatpush2.msra.mxu0 0.0
    %260 = vmatprep.subr.mxu0 0.0
    %261 = vmatpush2.msra.mxu0 0.0
    %262 = vmatprep.subr.mxu0 0.0
    %263 = vmatpush2.msra.mxu0 0.0
    %264 = vmatprep.subr.mxu0 0.0
    %265 = vmatpush2.msra.mxu0 0.0
    %266 = vmatprep.subr.mxu0 0.0
    %267 = vmatpush2.msra.mxu0 0.0
    %268 = vmatprep.subr.mxu0 0.0
    %269 = vmatpush2.msra.mxu0 0.0
    %270 = vmatprep.subr.mxu0 0.0
    %271 = vmatpush2.msra.mxu0 0.0
    %272 = vmatprep.subr.mxu0 0.0
    %273 = vmatpush2.msra.mxu0 0.0
    %274 = vmatprep.subr.mxu0 0.0
    %275 = vmatpush2.msra.mxu0 0.0
    %276 = vmatprep.subr.mxu0 0.0
    %277 = vmatpush2.msra.mxu0 0.0
    %278 = vmatprep.subr.mxu0 0.0
    %279 = vmatpush2.msra.mxu0 0.0
    %280 = vmatprep.subr.mxu0 0.0
    %281 = vmatpush2.msra.mxu0 0.0
    %282 = vmatprep.subr.mxu0 0.0
    %283 = vmatpush2.msra.mxu0 0.0
    %284 = vmatprep.subr.mxu0 0.0
    %285 = vmatpush2.msra.mxu0 0.0
    %286 = vmatprep.mubr.f32.mxu0 0.0
    %287 = vmatmul.mubr.f32.gmra.mxu0 %v90
    %v288 = vpop.f32.mrf.mxu0
    %v289 = vadd.f32 0.0, %v288
    %v290 = vpop.f32.mrf.mxu0
    %291 = vmatprep.mubr.f32.mxu0 0.0
    %292 = vmatmul.mubr.f32.gmra.mxu0 %v93
    %v293 = vpop.f32.mrf.mxu0
    %v294 = vadd.f32 0.0, %v293
    %v295 = vpop.f32.mrf.mxu0
    %296 = vmatprep.mubr.f32.mxu0 0.0
    %297 = vmatmul.mubr.f32.gmra.mxu0 %v96
    %v298 = vpop.f32.mrf.mxu0
    %v299 = vadd.f32 0.0, %v298
    %v300 = vpop.f32.mrf.mxu0
    %301 = vmatprep.mubr.f32.mxu0 0.0
    %302 = vmatmul.mubr.f32.gmra.mxu0 %v99
    %v303 = vpop.f32.mrf.mxu0
    %v304 = vadd.f32 0.0, %v303
    %v305 = vpop.f32.mrf.mxu0
    %306 = vmatprep.mubr.f32.mxu0 0.0
    %307 = vmatmul.mubr.f32.gmra.mxu0 %v102
    %v308 = vpop.f32.mrf.mxu0
    %v309 = vadd.f32 0.0, %v308
    %v310 = vpop.f32.mrf.mxu0
    %311 = vmatprep.mubr.f32.mxu0 0.0
    %312 = vmatmul.mubr.f32.gmra.mxu0 %v105
    %v313 = vpop.f32.mrf.mxu0
    %v314 = vadd.f32 0.0, %v313
    %v315 = vpop.f32.mrf.mxu0
    %316 = vmatprep.mubr.f32.mxu0 0.0
    %317 = vmatmul.mubr.f32.gmra.mxu0 %v108
    %v318 = vpop.f32.mrf.mxu0
    %v319 = vadd.f32 0.0, %v318
    %v320 = vpop.f32.mrf.mxu0
    %321 = vmatprep.mubr.f32.mxu0 0.0
    %322 = vmatmul.mubr.f32.gmra.mxu0 %v111
    %v323 = vpop.f32.mrf.mxu0
    %v324 = vadd.f32 0.0, %v323
    %v325 = vpop.f32.mrf.mxu0
    %326 = vdwg.mxu0
    %v327 = vld [vmem:[#allocation8] sm:$0xff]
    %v328 = vld [vmem:[#allocation8 + $0x8] sm:$0xff]
    %v329 = vld [vmem:[#allocation8 + $0x10] sm:$0xff]
    %v330 = vld [vmem:[#allocation8 + $0x18] sm:$0xff]
    %331 = vmatprep.subr.mxu0 0.0
    %332 = vmatpush1.msra.mxu0 0.0
    %333 = vmatprep.subr.mxu0 0.0
    %334 = vmatpush1.msra.mxu0 0.0
    %335 = vmatprep.subr.mxu0 0.0
    %336 = vmatpush1.msra.mxu0 0.0
    %337 = vmatprep.subr.mxu0 0.0
    %338 = vmatpush1.msra.mxu0 0.0
    %339 = vmatprep.subr.mxu0 0.0
    %340 = vmatpush1.msra.mxu0 0.0
    %341 = vmatprep.subr.mxu0 0.0
    %342 = vmatpush1.msra.mxu0 0.0
    %343 = vmatprep.subr.mxu0 0.0
    %344 = vmatpush1.msra.mxu0 0.0
    %345 = vmatprep.subr.mxu0 0.0
    %346 = vmatpush1.msra.mxu0 0.0
    %347 = vmatprep.subr.mxu0 0.0
    %348 = vmatpush1.msra.mxu0 0.0
    %349 = vmatprep.subr.mxu0 0.0
    %350 = vmatpush1.msra.mxu0 0.0
    %351 = vmatprep.subr.mxu0 0.0
    %352 = vmatpush1.msra.mxu0 0.0
    %353 = vmatprep.subr.mxu0 0.0
    %354 = vmatpush1.msra.mxu0 0.0
    %355 = vmatprep.subr.mxu0 0.0
    %356 = vmatpush1.msra.mxu0 %v330
    %357 = vmatprep.subr.mxu0 0.0
    %358 = vmatpush1.msra.mxu0 %v329
    %359 = vmatprep.subr.mxu0 0.0
    %360 = vmatpush1.msra.mxu0 %v328
    %361 = vmatprep.subr.mxu0 0.0
    %362 = vmatpush1.msra.mxu0 %v327
    %363 = vmatprep.subr.mxu0 0.0
    %364 = vmatpush2.msra.mxu0 0.0
    %365 = vmatprep.subr.mxu0 0.0
    %366 = vmatpush2.msra.mxu0 0.0
    %367 = vmatprep.subr.mxu0 0.0
    %368 = vmatpush2.msra.mxu0 0.0
    %369 = vmatprep.subr.mxu0 0.0
    %370 = vmatpush2.msra.mxu0 0.0
    %371 = vmatprep.subr.mxu0 0.0
    %372 = vmatpush2.msra.mxu0 0.0
    %373 = vmatprep.subr.mxu0 0.0
    %374 = vmatpush2.msra.mxu0 0.0
    %375 = vmatprep.subr.mxu0 0.0
    %376 = vmatpush2.msra.mxu0 0.0
    %377 = vmatprep.subr.mxu0 0.0
    %378 = vmatpush2.msra.mxu0 0.0
    %379 = vmatprep.subr.mxu0 0.0
    %380 = vmatpush2.msra.mxu0 0.0
    %381 = vmatprep.subr.mxu0 0.0
    %382 = vmatpush2.msra.mxu0 0.0
    %383 = vmatprep.subr.mxu0 0.0
    %384 = vmatpush2.msra.mxu0 0.0
    %385 = vmatprep.subr.mxu0 0.0
    %386 = vmatpush2.msra.mxu0 0.0
    %387 = vmatprep.subr.mxu0 0.0
    %388 = vmatpush2.msra.mxu0 0.0
    %389 = vmatprep.subr.mxu0 0.0
    %390 = vmatpush2.msra.mxu0 0.0
    %391 = vmatprep.subr.mxu0 0.0
    %392 = vmatpush2.msra.mxu0 0.0
    %393 = vmatprep.subr.mxu0 0.0
    %394 = vmatpush2.msra.mxu0 0.0
    %395 = vmatprep.mubr.f32.mxu0 0.0
    %396 = vmatmul.mubr.f32.gmra.mxu0 %v90
    %v397 = vpop.f32.mrf.mxu0
    %v398 = vadd.f32 0.0, %v397
    %v399 = vpop.f32.mrf.mxu0
    %400 = vmatprep.mubr.f32.mxu0 0.0
    %401 = vmatmul.mubr.f32.gmra.mxu0 %v93
    %v402 = vpop.f32.mrf.mxu0
    %v403 = vadd.f32 0.0, %v402
    %v404 = vpop.f32.mrf.mxu0
    %405 = vmatprep.mubr.f32.mxu0 0.0
    %406 = vmatmul.mubr.f32.gmra.mxu0 %v96
    %v407 = vpop.f32.mrf.mxu0
    %v408 = vadd.f32 0.0, %v407
    %v409 = vpop.f32.mrf.mxu0
    %410 = vmatprep.mubr.f32.mxu0 0.0
    %411 = vmatmul.mubr.f32.gmra.mxu0 %v99
    %v412 = vpop.f32.mrf.mxu0
    %v413 = vadd.f32 0.0, %v412
    %v414 = vpop.f32.mrf.mxu0
    %415 = vmatprep.mubr.f32.mxu0 0.0
    %416 = vmatmul.mubr.f32.gmra.mxu0 %v102
    %v417 = vpop.f32.mrf.mxu0
    %v418 = vadd.f32 0.0, %v417
    %v419 = vpop.f32.mrf.mxu0
    %420 = vmatprep.mubr.f32.mxu0 0.0
    %421 = vmatmul.mubr.f32.gmra.mxu0 %v105
    %v422 = vpop.f32.mrf.mxu0
    %v423 = vadd.f32 0.0, %v422
    %v424 = vpop.f32.mrf.mxu0
    %425 = vmatprep.mubr.f32.mxu0 0.0
    %426 = vmatmul.mubr.f32.gmra.mxu0 %v108
    %v427 = vpop.f32.mrf.mxu0
    %v428 = vadd.f32 0.0, %v427
    %v429 = vpop.f32.mrf.mxu0
    %430 = vmatprep.mubr.f32.mxu0 0.0
    %431 = vmatmul.mubr.f32.gmra.mxu0 %v111
    %v432 = vpop.f32.mrf.mxu0
    %v433 = vadd.f32 0.0, %v432
    %v434 = vpop.f32.mrf.mxu0
    %435 = vdwg.mxu0
    %v436 = vmul.f32 %v180, 0.35355338
    %v437 = vmul.f32 %v185, 0.35355338
    %v438 = vmul.f32 %v190, 0.35355338
    %v439 = vmul.f32 %v195, 0.35355338
    %v440 = vmul.f32 %v200, 0.35355338
    %v441 = vmul.f32 %v205, 0.35355338
    %v442 = vmul.f32 %v210, 0.35355338
    %v443 = vmul.f32 %v215, 0.35355338
    %v444 = vlaneseq
    %v445 = vand.u32 %v444, 127
    %vm446 = vcmp.ge.s32.totalorder %v445, 0
    %vm447 = vcmp.lt.s32.totalorder %v445, 8
    %vm448 = vmand %vm446, %vm447
    %v449 = vsel %vm448, 1, 0
    %v450 = vcvt.s32.f32 %v449
    %v451 = vmul.f32 %v289, %v450
    %v452 = vmul.f32 %v294, %v450
    %v453 = vmul.f32 %v299, %v450
    %v454 = vmul.f32 %v304, %v450
    %v455 = vmul.f32 %v309, %v450
    %v456 = vmul.f32 %v314, %v450
    %v457 = vmul.f32 %v319, %v450
    %v458 = vmul.f32 %v324, %v450
    %v459 = vmul.f32 %v398, %v450
    %v460 = vmul.f32 %v403, %v450
    %v461 = vmul.f32 %v408, %v450
    %v462 = vmul.f32 %v413, %v450
    %v463 = vmul.f32 %v418, %v450
    %v464 = vmul.f32 %v423, %v450
    %v465 = vmul.f32 %v428, %v450
    %v466 = vmul.f32 %v433, %v450
    %v468 = vcombine.high %v83, %v83
    %v470 = vunpack.c.l.s4 1966171168
    %v471 = vunpack.c.0.s8 %v470
    %v472 = vlaneseq
    %v473 = vshrl.u32 %v472, 7
    %v474 = vsub.s32 %v471, %v473
    %v475 = vrot.slane %v83, %v474
    %v477 = vunpack.c.l.s4 1966171168
    %v478 = vunpack.c.0.s8 %v477
    %v479 = vlaneseq
    %v480 = vshrl.u32 %v479, 7
    %v481 = vsub.s32 %v478, %v480
    %v482 = vrot.slane %v468, %v481
    %v483 = vcombine.high %v475, %v475
    %v484 = vcombine.high %v482, %v482
    %v486 = vunpack.c.l.s4 1966171168
    %v487 = vunpack.c.0.s8 %v486
    %v488 = vlaneseq
    %v489 = vshrl.u32 %v488, 7
    %v490 = vsub.s32 %v487, %v489
    %v491 = vrot.slane %v475, %v490
    %v493 = vunpack.c.l.s4 1966171168
    %v494 = vunpack.c.0.s8 %v493
    %v495 = vlaneseq
    %v496 = vshrl.u32 %v495, 7
    %v497 = vsub.s32 %v494, %v496
    %v498 = vrot.slane %v482, %v497
    %v500 = vunpack.c.l.s4 1966171168
    %v501 = vunpack.c.0.s8 %v500
    %v502 = vlaneseq
    %v503 = vshrl.u32 %v502, 7
    %v504 = vsub.s32 %v501, %v503
    %v505 = vrot.slane %v483, %v504
    %v507 = vunpack.c.l.s4 1966171168
    %v508 = vunpack.c.0.s8 %v507
    %v509 = vlaneseq
    %v510 = vshrl.u32 %v509, 7
    %v511 = vsub.s32 %v508, %v510
    %v512 = vrot.slane %v484, %v511
    %v513 = vcombine.high %v491, %v491
    %v514 = vcombine.high %v498, %v498
    %v515 = vcombine.high %v505, %v505
    %v516 = vcombine.high %v512, %v512
    %v517 = vlaneseq
    %v518 = vshrl.u32 %v517, 7
    %v519 = vsub.s32 0, %v518
    %v520 = vrot.slane %v491, %v519
    %v521 = vlaneseq
    %v522 = vshrl.u32 %v521, 7
    %v523 = vsub.s32 0, %v522
    %v524 = vrot.slane %v505, %v523
    %v525 = vlaneseq
    %v526 = vshrl.u32 %v525, 7
    %v527 = vsub.s32 0, %v526
    %v528 = vrot.slane %v513, %v527
    %v529 = vlaneseq
    %v530 = vshrl.u32 %v529, 7
    %v531 = vsub.s32 0, %v530
    %v532 = vrot.slane %v515, %v531
    %v533 = vlaneseq
    %v534 = vshrl.u32 %v533, 7
    %v535 = vsub.s32 0, %v534
    %v536 = vrot.slane %v498, %v535
    %v537 = vlaneseq
    %v538 = vshrl.u32 %v537, 7
    %v539 = vsub.s32 0, %v538
    %v540 = vrot.slane %v512, %v539
    %v541 = vlaneseq
    %v542 = vshrl.u32 %v541, 7
    %v543 = vsub.s32 0, %v542
    %v544 = vrot.slane %v514, %v543
    %v545 = vlaneseq
    %v546 = vshrl.u32 %v545, 7
    %v547 = vsub.s32 0, %v546
    %v548 = vrot.slane %v516, %v547
    %v558 = vsel %vm88, %v436, 0
    %v561 = vsel %vm88, %v451, 0
    %563 = vmatprep.subr.mxu0 0.0
    %564 = vmatpush1.xpose.msra.mxu0 0.0
    %565 = vmatprep.subr.mxu0 0.0
    %566 = vmatpush1.xpose.msra.mxu0 0.0
    %567 = vmatprep.subr.mxu0 0.0
    %568 = vmatpush1.xpose.msra.mxu0 0.0
    %569 = vmatprep.subr.mxu0 0.0
    %570 = vmatpush1.xpose.msra.mxu0 0.0
    %571 = vmatprep.subr.mxu0 0.0
    %572 = vmatpush1.xpose.msra.mxu0 0.0
    %573 = vmatprep.subr.mxu0 0.0
    %574 = vmatpush1.xpose.msra.mxu0 0.0
    %575 = vmatprep.subr.mxu0 0.0
    %576 = vmatpush1.xpose.msra.mxu0 0.0
    %577 = vmatprep.subr.mxu0 0.0
    %578 = vmatpush1.xpose.msra.mxu0 0.0
    %579 = vmatprep.subr.mxu0 0.0
    %580 = vmatpush1.xpose.msra.mxu0 0.0
    %581 = vmatprep.subr.mxu0 0.0
    %582 = vmatpush1.xpose.msra.mxu0 0.0
    %583 = vmatprep.subr.mxu0 0.0
    %584 = vmatpush1.xpose.msra.mxu0 0.0
    %585 = vmatprep.subr.mxu0 0.0
    %586 = vmatpush1.xpose.msra.mxu0 0.0
    %587 = vmatprep.subr.mxu0 0.0
    %588 = vmatpush1.xpose.msra.mxu0 0.0
    %589 = vmatprep.subr.mxu0 0.0
    %590 = vmatpush1.xpose.msra.mxu0 0.0
    %591 = vmatprep.subr.mxu0 0.0
    %592 = vmatpush1.xpose.msra.mxu0 0.0
    %593 = vmatprep.subr.mxu0 0.0
    %594 = vmatpush1.xpose.msra.mxu0 %v561
    %595 = vmatprep.subr.mxu0 0.0
    %596 = vmatpush2.xpose.msra.mxu0 0.0
    %597 = vmatprep.subr.mxu0 0.0
    %598 = vmatpush2.xpose.msra.mxu0 0.0
    %599 = vmatprep.subr.mxu0 0.0
    %600 = vmatpush2.xpose.msra.mxu0 0.0
    %601 = vmatprep.subr.mxu0 0.0
    %602 = vmatpush2.xpose.msra.mxu0 0.0
    %603 = vmatprep.subr.mxu0 0.0
    %604 = vmatpush2.xpose.msra.mxu0 0.0
    %605 = vmatprep.subr.mxu0 0.0
    %606 = vmatpush2.xpose.msra.mxu0 0.0
    %607 = vmatprep.subr.mxu0 0.0
    %608 = vmatpush2.xpose.msra.mxu0 0.0
    %609 = vmatprep.subr.mxu0 0.0
    %610 = vmatpush2.xpose.msra.mxu0 0.0
    %611 = vmatprep.subr.mxu0 0.0
    %612 = vmatpush2.xpose.msra.mxu0 0.0
    %613 = vmatprep.subr.mxu0 0.0
    %614 = vmatpush2.xpose.msra.mxu0 0.0
    %615 = vmatprep.subr.mxu0 0.0
    %616 = vmatpush2.xpose.msra.mxu0 0.0
    %617 = vmatprep.subr.mxu0 0.0
    %618 = vmatpush2.xpose.msra.mxu0 0.0
    %619 = vmatprep.subr.mxu0 0.0
    %620 = vmatpush2.xpose.msra.mxu0 0.0
    %621 = vmatprep.subr.mxu0 0.0
    %622 = vmatpush2.xpose.msra.mxu0 0.0
    %623 = vmatprep.subr.mxu0 0.0
    %624 = vmatpush2.xpose.msra.mxu0 0.0
    %625 = vmatprep.subr.mxu0 0.0
    %626 = vmatpush2.xpose.msra.mxu0 0.0
    %627 = vmatprep.mubr.f32.mxu0 0.0
    %628 = vmatmul.mubr.f32.gmra.mxu0 %v558
    %v629 = vpop.f32.mrf.mxu0
    %v630 = vadd.f32 %v520, %v629
    %v631 = vpop.f32.mrf.mxu0
    %632 = vdwg.mxu0
    %v634 = vsel %vm88, %v437, 0
    %v637 = vsel %vm88, %v452, 0
    %639 = vmatprep.subr.mxu0 0.0
    %640 = vmatpush1.xpose.msra.mxu0 0.0
    %641 = vmatprep.subr.mxu0 0.0
    %642 = vmatpush1.xpose.msra.mxu0 0.0
    %643 = vmatprep.subr.mxu0 0.0
    %644 = vmatpush1.xpose.msra.mxu0 0.0
    %645 = vmatprep.subr.mxu0 0.0
    %646 = vmatpush1.xpose.msra.mxu0 0.0
    %647 = vmatprep.subr.mxu0 0.0
    %648 = vmatpush1.xpose.msra.mxu0 0.0
    %649 = vmatprep.subr.mxu0 0.0
    %650 = vmatpush1.xpose.msra.mxu0 0.0
    %651 = vmatprep.subr.mxu0 0.0
    %652 = vmatpush1.xpose.msra.mxu0 0.0
    %653 = vmatprep.subr.mxu0 0.0
    %654 = vmatpush1.xpose.msra.mxu0 0.0
    %655 = vmatprep.subr.mxu0 0.0
    %656 = vmatpush1.xpose.msra.mxu0 0.0
    %657 = vmatprep.subr.mxu0 0.0
    %658 = vmatpush1.xpose.msra.mxu0 0.0
    %659 = vmatprep.subr.mxu0 0.0
    %660 = vmatpush1.xpose.msra.mxu0 0.0
    %661 = vmatprep.subr.mxu0 0.0
    %662 = vmatpush1.xpose.msra.mxu0 0.0
    %663 = vmatprep.subr.mxu0 0.0
    %664 = vmatpush1.xpose.msra.mxu0 0.0
    %665 = vmatprep.subr.mxu0 0.0
    %666 = vmatpush1.xpose.msra.mxu0 0.0
    %667 = vmatprep.subr.mxu0 0.0
    %668 = vmatpush1.xpose.msra.mxu0 0.0
    %669 = vmatprep.subr.mxu0 0.0
    %670 = vmatpush1.xpose.msra.mxu0 %v637
    %671 = vmatprep.subr.mxu0 0.0
    %672 = vmatpush2.xpose.msra.mxu0 0.0
    %673 = vmatprep.subr.mxu0 0.0
    %674 = vmatpush2.xpose.msra.mxu0 0.0
    %675 = vmatprep.subr.mxu0 0.0
    %676 = vmatpush2.xpose.msra.mxu0 0.0
    %677 = vmatprep.subr.mxu0 0.0
    %678 = vmatpush2.xpose.msra.mxu0 0.0
    %679 = vmatprep.subr.mxu0 0.0
    %680 = vmatpush2.xpose.msra.mxu0 0.0
    %681 = vmatprep.subr.mxu0 0.0
    %682 = vmatpush2.xpose.msra.mxu0 0.0
    %683 = vmatprep.subr.mxu0 0.0
    %684 = vmatpush2.xpose.msra.mxu0 0.0
    %685 = vmatprep.subr.mxu0 0.0
    %686 = vmatpush2.xpose.msra.mxu0 0.0
    %687 = vmatprep.subr.mxu0 0.0
    %688 = vmatpush2.xpose.msra.mxu0 0.0
    %689 = vmatprep.subr.mxu0 0.0
    %690 = vmatpush2.xpose.msra.mxu0 0.0
    %691 = vmatprep.subr.mxu0 0.0
    %692 = vmatpush2.xpose.msra.mxu0 0.0
    %693 = vmatprep.subr.mxu0 0.0
    %694 = vmatpush2.xpose.msra.mxu0 0.0
    %695 = vmatprep.subr.mxu0 0.0
    %696 = vmatpush2.xpose.msra.mxu0 0.0
    %697 = vmatprep.subr.mxu0 0.0
    %698 = vmatpush2.xpose.msra.mxu0 0.0
    %699 = vmatprep.subr.mxu0 0.0
    %700 = vmatpush2.xpose.msra.mxu0 0.0
    %701 = vmatprep.subr.mxu0 0.0
    %702 = vmatpush2.xpose.msra.mxu0 0.0
    %703 = vmatprep.mubr.f32.mxu0 0.0
    %704 = vmatmul.mubr.f32.gmra.mxu0 %v634
    %v705 = vpop.f32.mrf.mxu0
    %v706 = vadd.f32 %v524, %v705
    %v707 = vpop.f32.mrf.mxu0
    %708 = vdwg.mxu0
    %v710 = vsel %vm88, %v438, 0
    %v713 = vsel %vm88, %v453, 0
    %715 = vmatprep.subr.mxu0 0.0
    %716 = vmatpush1.xpose.msra.mxu0 0.0
    %717 = vmatprep.subr.mxu0 0.0
    %718 = vmatpush1.xpose.msra.mxu0 0.0
    %719 = vmatprep.subr.mxu0 0.0
    %720 = vmatpush1.xpose.msra.mxu0 0.0
    %721 = vmatprep.subr.mxu0 0.0
    %722 = vmatpush1.xpose.msra.mxu0 0.0
    %723 = vmatprep.subr.mxu0 0.0
    %724 = vmatpush1.xpose.msra.mxu0 0.0
    %725 = vmatprep.subr.mxu0 0.0
    %726 = vmatpush1.xpose.msra.mxu0 0.0
    %727 = vmatprep.subr.mxu0 0.0
    %728 = vmatpush1.xpose.msra.mxu0 0.0
    %729 = vmatprep.subr.mxu0 0.0
    %730 = vmatpush1.xpose.msra.mxu0 0.0
    %731 = vmatprep.subr.mxu0 0.0
    %732 = vmatpush1.xpose.msra.mxu0 0.0
    %733 = vmatprep.subr.mxu0 0.0
    %734 = vmatpush1.xpose.msra.mxu0 0.0
    %735 = vmatprep.subr.mxu0 0.0
    %736 = vmatpush1.xpose.msra.mxu0 0.0
    %737 = vmatprep.subr.mxu0 0.0
    %738 = vmatpush1.xpose.msra.mxu0 0.0
    %739 = vmatprep.subr.mxu0 0.0
    %740 = vmatpush1.xpose.msra.mxu0 0.0
    %741 = vmatprep.subr.mxu0 0.0
    %742 = vmatpush1.xpose.msra.mxu0 0.0
    %743 = vmatprep.subr.mxu0 0.0
    %744 = vmatpush1.xpose.msra.mxu0 0.0
    %745 = vmatprep.subr.mxu0 0.0
    %746 = vmatpush1.xpose.msra.mxu0 %v713
    %747 = vmatprep.subr.mxu0 0.0
    %748 = vmatpush2.xpose.msra.mxu0 0.0
    %749 = vmatprep.subr.mxu0 0.0
    %750 = vmatpush2.xpose.msra.mxu0 0.0
    %751 = vmatprep.subr.mxu0 0.0
    %752 = vmatpush2.xpose.msra.mxu0 0.0
    %753 = vmatprep.subr.mxu0 0.0
    %754 = vmatpush2.xpose.msra.mxu0 0.0
    %755 = vmatprep.subr.mxu0 0.0
    %756 = vmatpush2.xpose.msra.mxu0 0.0
    %757 = vmatprep.subr.mxu0 0.0
    %758 = vmatpush2.xpose.msra.mxu0 0.0
    %759 = vmatprep.subr.mxu0 0.0
    %760 = vmatpush2.xpose.msra.mxu0 0.0
    %761 = vmatprep.subr.mxu0 0.0
    %762 = vmatpush2.xpose.msra.mxu0 0.0
    %763 = vmatprep.subr.mxu0 0.0
    %764 = vmatpush2.xpose.msra.mxu0 0.0
    %765 = vmatprep.subr.mxu0 0.0
    %766 = vmatpush2.xpose.msra.mxu0 0.0
    %767 = vmatprep.subr.mxu0 0.0
    %768 = vmatpush2.xpose.msra.mxu0 0.0
    %769 = vmatprep.subr.mxu0 0.0
    %770 = vmatpush2.xpose.msra.mxu0 0.0
    %771 = vmatprep.subr.mxu0 0.0
    %772 = vmatpush2.xpose.msra.mxu0 0.0
    %773 = vmatprep.subr.mxu0 0.0
    %774 = vmatpush2.xpose.msra.mxu0 0.0
    %775 = vmatprep.subr.mxu0 0.0
    %776 = vmatpush2.xpose.msra.mxu0 0.0
    %777 = vmatprep.subr.mxu0 0.0
    %778 = vmatpush2.xpose.msra.mxu0 0.0
    %779 = vmatprep.mubr.f32.mxu0 0.0
    %780 = vmatmul.mubr.f32.gmra.mxu0 %v710
    %v781 = vpop.f32.mrf.mxu0
    %v782 = vadd.f32 %v528, %v781
    %v783 = vpop.f32.mrf.mxu0
    %784 = vdwg.mxu0
    %v786 = vsel %vm88, %v439, 0
    %v789 = vsel %vm88, %v454, 0
    %791 = vmatprep.subr.mxu0 0.0
    %792 = vmatpush1.xpose.msra.mxu0 0.0
    %793 = vmatprep.subr.mxu0 0.0
    %794 = vmatpush1.xpose.msra.mxu0 0.0
    %795 = vmatprep.subr.mxu0 0.0
    %796 = vmatpush1.xpose.msra.mxu0 0.0
    %797 = vmatprep.subr.mxu0 0.0
    %798 = vmatpush1.xpose.msra.mxu0 0.0
    %799 = vmatprep.subr.mxu0 0.0
    %800 = vmatpush1.xpose.msra.mxu0 0.0
    %801 = vmatprep.subr.mxu0 0.0
    %802 = vmatpush1.xpose.msra.mxu0 0.0
    %803 = vmatprep.subr.mxu0 0.0
    %804 = vmatpush1.xpose.msra.mxu0 0.0
    %805 = vmatprep.subr.mxu0 0.0
    %806 = vmatpush1.xpose.msra.mxu0 0.0
    %807 = vmatprep.subr.mxu0 0.0
    %808 = vmatpush1.xpose.msra.mxu0 0.0
    %809 = vmatprep.subr.mxu0 0.0
    %810 = vmatpush1.xpose.msra.mxu0 0.0
    %811 = vmatprep.subr.mxu0 0.0
    %812 = vmatpush1.xpose.msra.mxu0 0.0
    %813 = vmatprep.subr.mxu0 0.0
    %814 = vmatpush1.xpose.msra.mxu0 0.0
    %815 = vmatprep.subr.mxu0 0.0
    %816 = vmatpush1.xpose.msra.mxu0 0.0
    %817 = vmatprep.subr.mxu0 0.0
    %818 = vmatpush1.xpose.msra.mxu0 0.0
    %819 = vmatprep.subr.mxu0 0.0
    %820 = vmatpush1.xpose.msra.mxu0 0.0
    %821 = vmatprep.subr.mxu0 0.0
    %822 = vmatpush1.xpose.msra.mxu0 %v789
    %823 = vmatprep.subr.mxu0 0.0
    %824 = vmatpush2.xpose.msra.mxu0 0.0
    %825 = vmatprep.subr.mxu0 0.0
    %826 = vmatpush2.xpose.msra.mxu0 0.0
    %827 = vmatprep.subr.mxu0 0.0
    %828 = vmatpush2.xpose.msra.mxu0 0.0
    %829 = vmatprep.subr.mxu0 0.0
    %830 = vmatpush2.xpose.msra.mxu0 0.0
    %831 = vmatprep.subr.mxu0 0.0
    %832 = vmatpush2.xpose.msra.mxu0 0.0
    %833 = vmatprep.subr.mxu0 0.0
    %834 = vmatpush2.xpose.msra.mxu0 0.0
    %835 = vmatprep.subr.mxu0 0.0
    %836 = vmatpush2.xpose.msra.mxu0 0.0
    %837 = vmatprep.subr.mxu0 0.0
    %838 = vmatpush2.xpose.msra.mxu0 0.0
    %839 = vmatprep.subr.mxu0 0.0
    %840 = vmatpush2.xpose.msra.mxu0 0.0
    %841 = vmatprep.subr.mxu0 0.0
    %842 = vmatpush2.xpose.msra.mxu0 0.0
    %843 = vmatprep.subr.mxu0 0.0
    %844 = vmatpush2.xpose.msra.mxu0 0.0
    %845 = vmatprep.subr.mxu0 0.0
    %846 = vmatpush2.xpose.msra.mxu0 0.0
    %847 = vmatprep.subr.mxu0 0.0
    %848 = vmatpush2.xpose.msra.mxu0 0.0
    %849 = vmatprep.subr.mxu0 0.0
    %850 = vmatpush2.xpose.msra.mxu0 0.0
    %851 = vmatprep.subr.mxu0 0.0
    %852 = vmatpush2.xpose.msra.mxu0 0.0
    %853 = vmatprep.subr.mxu0 0.0
    %854 = vmatpush2.xpose.msra.mxu0 0.0
    %855 = vmatprep.mubr.f32.mxu0 0.0
    %856 = vmatmul.mubr.f32.gmra.mxu0 %v786
    %v857 = vpop.f32.mrf.mxu0
    %v858 = vadd.f32 %v532, %v857
    %v859 = vpop.f32.mrf.mxu0
    %860 = vdwg.mxu0
    %v862 = vsel %vm88, %v440, 0
    %v865 = vsel %vm88, %v455, 0
    %867 = vmatprep.subr.mxu0 0.0
    %868 = vmatpush1.xpose.msra.mxu0 0.0
    %869 = vmatprep.subr.mxu0 0.0
    %870 = vmatpush1.xpose.msra.mxu0 0.0
    %871 = vmatprep.subr.mxu0 0.0
    %872 = vmatpush1.xpose.msra.mxu0 0.0
    %873 = vmatprep.subr.mxu0 0.0
    %874 = vmatpush1.xpose.msra.mxu0 0.0
    %875 = vmatprep.subr.mxu0 0.0
    %876 = vmatpush1.xpose.msra.mxu0 0.0
    %877 = vmatprep.subr.mxu0 0.0
    %878 = vmatpush1.xpose.msra.mxu0 0.0
    %879 = vmatprep.subr.mxu0 0.0
    %880 = vmatpush1.xpose.msra.mxu0 0.0
    %881 = vmatprep.subr.mxu0 0.0
    %882 = vmatpush1.xpose.msra.mxu0 0.0
    %883 = vmatprep.subr.mxu0 0.0
    %884 = vmatpush1.xpose.msra.mxu0 0.0
    %885 = vmatprep.subr.mxu0 0.0
    %886 = vmatpush1.xpose.msra.mxu0 0.0
    %887 = vmatprep.subr.mxu0 0.0
    %888 = vmatpush1.xpose.msra.mxu0 0.0
    %889 = vmatprep.subr.mxu0 0.0
    %890 = vmatpush1.xpose.msra.mxu0 0.0
    %891 = vmatprep.subr.mxu0 0.0
    %892 = vmatpush1.xpose.msra.mxu0 0.0
    %893 = vmatprep.subr.mxu0 0.0
    %894 = vmatpush1.xpose.msra.mxu0 0.0
    %895 = vmatprep.subr.mxu0 0.0
    %896 = vmatpush1.xpose.msra.mxu0 0.0
    %897 = vmatprep.subr.mxu0 0.0
    %898 = vmatpush1.xpose.msra.mxu0 %v865
    %899 = vmatprep.subr.mxu0 0.0
    %900 = vmatpush2.xpose.msra.mxu0 0.0
    %901 = vmatprep.subr.mxu0 0.0
    %902 = vmatpush2.xpose.msra.mxu0 0.0
    %903 = vmatprep.subr.mxu0 0.0
    %904 = vmatpush2.xpose.msra.mxu0 0.0
    %905 = vmatprep.subr.mxu0 0.0
    %906 = vmatpush2.xpose.msra.mxu0 0.0
    %907 = vmatprep.subr.mxu0 0.0
    %908 = vmatpush2.xpose.msra.mxu0 0.0
    %909 = vmatprep.subr.mxu0 0.0
    %910 = vmatpush2.xpose.msra.mxu0 0.0
    %911 = vmatprep.subr.mxu0 0.0
    %912 = vmatpush2.xpose.msra.mxu0 0.0
    %913 = vmatprep.subr.mxu0 0.0
    %914 = vmatpush2.xpose.msra.mxu0 0.0
    %915 = vmatprep.subr.mxu0 0.0
    %916 = vmatpush2.xpose.msra.mxu0 0.0
    %917 = vmatprep.subr.mxu0 0.0
    %918 = vmatpush2.xpose.msra.mxu0 0.0
    %919 = vmatprep.subr.mxu0 0.0
    %920 = vmatpush2.xpose.msra.mxu0 0.0
    %921 = vmatprep.subr.mxu0 0.0
    %922 = vmatpush2.xpose.msra.mxu0 0.0
    %923 = vmatprep.subr.mxu0 0.0
    %924 = vmatpush2.xpose.msra.mxu0 0.0
    %925 = vmatprep.subr.mxu0 0.0
    %926 = vmatpush2.xpose.msra.mxu0 0.0
    %927 = vmatprep.subr.mxu0 0.0
    %928 = vmatpush2.xpose.msra.mxu0 0.0
    %929 = vmatprep.subr.mxu0 0.0
    %930 = vmatpush2.xpose.msra.mxu0 0.0
    %931 = vmatprep.mubr.f32.mxu0 0.0
    %932 = vmatmul.mubr.f32.gmra.mxu0 %v862
    %v933 = vpop.f32.mrf.mxu0
    %v934 = vadd.f32 %v536, %v933
    %v935 = vpop.f32.mrf.mxu0
    %936 = vdwg.mxu0
    %v938 = vsel %vm88, %v441, 0
    %v941 = vsel %vm88, %v456, 0
    %943 = vmatprep.subr.mxu0 0.0
    %944 = vmatpush1.xpose.msra.mxu0 0.0
    %945 = vmatprep.subr.mxu0 0.0
    %946 = vmatpush1.xpose.msra.mxu0 0.0
    %947 = vmatprep.subr.mxu0 0.0
    %948 = vmatpush1.xpose.msra.mxu0 0.0
    %949 = vmatprep.subr.mxu0 0.0
    %950 = vmatpush1.xpose.msra.mxu0 0.0
    %951 = vmatprep.subr.mxu0 0.0
    %952 = vmatpush1.xpose.msra.mxu0 0.0
    %953 = vmatprep.subr.mxu0 0.0
    %954 = vmatpush1.xpose.msra.mxu0 0.0
    %955 = vmatprep.subr.mxu0 0.0
    %956 = vmatpush1.xpose.msra.mxu0 0.0
    %957 = vmatprep.subr.mxu0 0.0
    %958 = vmatpush1.xpose.msra.mxu0 0.0
    %959 = vmatprep.subr.mxu0 0.0
    %960 = vmatpush1.xpose.msra.mxu0 0.0
    %961 = vmatprep.subr.mxu0 0.0
    %962 = vmatpush1.xpose.msra.mxu0 0.0
    %963 = vmatprep.subr.mxu0 0.0
    %964 = vmatpush1.xpose.msra.mxu0 0.0
    %965 = vmatprep.subr.mxu0 0.0
    %966 = vmatpush1.xpose.msra.mxu0 0.0
    %967 = vmatprep.subr.mxu0 0.0
    %968 = vmatpush1.xpose.msra.mxu0 0.0
    %969 = vmatprep.subr.mxu0 0.0
    %970 = vmatpush1.xpose.msra.mxu0 0.0
    %971 = vmatprep.subr.mxu0 0.0
    %972 = vmatpush1.xpose.msra.mxu0 0.0
    %973 = vmatprep.subr.mxu0 0.0
    %974 = vmatpush1.xpose.msra.mxu0 %v941
    %975 = vmatprep.subr.mxu0 0.0
    %976 = vmatpush2.xpose.msra.mxu0 0.0
    %977 = vmatprep.subr.mxu0 0.0
    %978 = vmatpush2.xpose.msra.mxu0 0.0
    %979 = vmatprep.subr.mxu0 0.0
    %980 = vmatpush2.xpose.msra.mxu0 0.0
    %981 = vmatprep.subr.mxu0 0.0
    %982 = vmatpush2.xpose.msra.mxu0 0.0
    %983 = vmatprep.subr.mxu0 0.0
    %984 = vmatpush2.xpose.msra.mxu0 0.0
    %985 = vmatprep.subr.mxu0 0.0
    %986 = vmatpush2.xpose.msra.mxu0 0.0
    %987 = vmatprep.subr.mxu0 0.0
    %988 = vmatpush2.xpose.msra.mxu0 0.0
    %989 = vmatprep.subr.mxu0 0.0
    %990 = vmatpush2.xpose.msra.mxu0 0.0
    %991 = vmatprep.subr.mxu0 0.0
    %992 = vmatpush2.xpose.msra.mxu0 0.0
    %993 = vmatprep.subr.mxu0 0.0
    %994 = vmatpush2.xpose.msra.mxu0 0.0
    %995 = vmatprep.subr.mxu0 0.0
    %996 = vmatpush2.xpose.msra.mxu0 0.0
    %997 = vmatprep.subr.mxu0 0.0
    %998 = vmatpush2.xpose.msra.mxu0 0.0
    %999 = vmatprep.subr.mxu0 0.0
    %1000 = vmatpush2.xpose.msra.mxu0 0.0
    %1001 = vmatprep.subr.mxu0 0.0
    %1002 = vmatpush2.xpose.msra.mxu0 0.0
    %1003 = vmatprep.subr.mxu0 0.0
    %1004 = vmatpush2.xpose.msra.mxu0 0.0
    %1005 = vmatprep.subr.mxu0 0.0
    %1006 = vmatpush2.xpose.msra.mxu0 0.0
    %1007 = vmatprep.mubr.f32.mxu0 0.0
    %1008 = vmatmul.mubr.f32.gmra.mxu0 %v938
    %v1009 = vpop.f32.mrf.mxu0
    %v1010 = vadd.f32 %v540, %v1009
    %v1011 = vpop.f32.mrf.mxu0
    %1012 = vdwg.mxu0
    %v1014 = vsel %vm88, %v442, 0
    %v1017 = vsel %vm88, %v457, 0
    %1019 = vmatprep.subr.mxu0 0.0
    %1020 = vmatpush1.xpose.msra.mxu0 0.0
    %1021 = vmatprep.subr.mxu0 0.0
    %1022 = vmatpush1.xpose.msra.mxu0 0.0
    %1023 = vmatprep.subr.mxu0 0.0
    %1024 = vmatpush1.xpose.msra.mxu0 0.0
    %1025 = vmatprep.subr.mxu0 0.0
    %1026 = vmatpush1.xpose.msra.mxu0 0.0
    %1027 = vmatprep.subr.mxu0 0.0
    %1028 = vmatpush1.xpose.msra.mxu0 0.0
    %1029 = vmatprep.subr.mxu0 0.0
    %1030 = vmatpush1.xpose.msra.mxu0 0.0
    %1031 = vmatprep.subr.mxu0 0.0
    %1032 = vmatpush1.xpose.msra.mxu0 0.0
    %1033 = vmatprep.subr.mxu0 0.0
    %1034 = vmatpush1.xpose.msra.mxu0 0.0
    %1035 = vmatprep.subr.mxu0 0.0
    %1036 = vmatpush1.xpose.msra.mxu0 0.0
    %1037 = vmatprep.subr.mxu0 0.0
    %1038 = vmatpush1.xpose.msra.mxu0 0.0
    %1039 = vmatprep.subr.mxu0 0.0
    %1040 = vmatpush1.xpose.msra.mxu0 0.0
    %1041 = vmatprep.subr.mxu0 0.0
    %1042 = vmatpush1.xpose.msra.mxu0 0.0
    %1043 = vmatprep.subr.mxu0 0.0
    %1044 = vmatpush1.xpose.msra.mxu0 0.0
    %1045 = vmatprep.subr.mxu0 0.0
    %1046 = vmatpush1.xpose.msra.mxu0 0.0
    %1047 = vmatprep.subr.mxu0 0.0
    %1048 = vmatpush1.xpose.msra.mxu0 0.0
    %1049 = vmatprep.subr.mxu0 0.0
    %1050 = vmatpush1.xpose.msra.mxu0 %v1017
    %1051 = vmatprep.subr.mxu0 0.0
    %1052 = vmatpush2.xpose.msra.mxu0 0.0
    %1053 = vmatprep.subr.mxu0 0.0
    %1054 = vmatpush2.xpose.msra.mxu0 0.0
    %1055 = vmatprep.subr.mxu0 0.0
    %1056 = vmatpush2.xpose.msra.mxu0 0.0
    %1057 = vmatprep.subr.mxu0 0.0
    %1058 = vmatpush2.xpose.msra.mxu0 0.0
    %1059 = vmatprep.subr.mxu0 0.0
    %1060 = vmatpush2.xpose.msra.mxu0 0.0
    %1061 = vmatprep.subr.mxu0 0.0
    %1062 = vmatpush2.xpose.msra.mxu0 0.0
    %1063 = vmatprep.subr.mxu0 0.0
    %1064 = vmatpush2.xpose.msra.mxu0 0.0
    %1065 = vmatprep.subr.mxu0 0.0
    %1066 = vmatpush2.xpose.msra.mxu0 0.0
    %1067 = vmatprep.subr.mxu0 0.0
    %1068 = vmatpush2.xpose.msra.mxu0 0.0
    %1069 = vmatprep.subr.mxu0 0.0
    %1070 = vmatpush2.xpose.msra.mxu0 0.0
    %1071 = vmatprep.subr.mxu0 0.0
    %1072 = vmatpush2.xpose.msra.mxu0 0.0
    %1073 = vmatprep.subr.mxu0 0.0
    %1074 = vmatpush2.xpose.msra.mxu0 0.0
    %1075 = vmatprep.subr.mxu0 0.0
    %1076 = vmatpush2.xpose.msra.mxu0 0.0
    %1077 = vmatprep.subr.mxu0 0.0
    %1078 = vmatpush2.xpose.msra.mxu0 0.0
    %1079 = vmatprep.subr.mxu0 0.0
    %1080 = vmatpush2.xpose.msra.mxu0 0.0
    %1081 = vmatprep.subr.mxu0 0.0
    %1082 = vmatpush2.xpose.msra.mxu0 0.0
    %1083 = vmatprep.mubr.f32.mxu0 0.0
    %1084 = vmatmul.mubr.f32.gmra.mxu0 %v1014
    %v1085 = vpop.f32.mrf.mxu0
    %v1086 = vadd.f32 %v544, %v1085
    %v1087 = vpop.f32.mrf.mxu0
    %1088 = vdwg.mxu0
    %v1090 = vsel %vm88, %v443, 0
    %v1093 = vsel %vm88, %v458, 0
    %1095 = vmatprep.subr.mxu0 0.0
    %1096 = vmatpush1.xpose.msra.mxu0 0.0
    %1097 = vmatprep.subr.mxu0 0.0
    %1098 = vmatpush1.xpose.msra.mxu0 0.0
    %1099 = vmatprep.subr.mxu0 0.0
    %1100 = vmatpush1.xpose.msra.mxu0 0.0
    %1101 = vmatprep.subr.mxu0 0.0
    %1102 = vmatpush1.xpose.msra.mxu0 0.0
    %1103 = vmatprep.subr.mxu0 0.0
    %1104 = vmatpush1.xpose.msra.mxu0 0.0
    %1105 = vmatprep.subr.mxu0 0.0
    %1106 = vmatpush1.xpose.msra.mxu0 0.0
    %1107 = vmatprep.subr.mxu0 0.0
    %1108 = vmatpush1.xpose.msra.mxu0 0.0
    %1109 = vmatprep.subr.mxu0 0.0
    %1110 = vmatpush1.xpose.msra.mxu0 0.0
    %1111 = vmatprep.subr.mxu0 0.0
    %1112 = vmatpush1.xpose.msra.mxu0 0.0
    %1113 = vmatprep.subr.mxu0 0.0
    %1114 = vmatpush1.xpose.msra.mxu0 0.0
    %1115 = vmatprep.subr.mxu0 0.0
    %1116 = vmatpush1.xpose.msra.mxu0 0.0
    %1117 = vmatprep.subr.mxu0 0.0
    %1118 = vmatpush1.xpose.msra.mxu0 0.0
    %1119 = vmatprep.subr.mxu0 0.0
    %1120 = vmatpush1.xpose.msra.mxu0 0.0
    %1121 = vmatprep.subr.mxu0 0.0
    %1122 = vmatpush1.xpose.msra.mxu0 0.0
    %1123 = vmatprep.subr.mxu0 0.0
    %1124 = vmatpush1.xpose.msra.mxu0 0.0
    %1125 = vmatprep.subr.mxu0 0.0
    %1126 = vmatpush1.xpose.msra.mxu0 %v1093
    %1127 = vmatprep.subr.mxu0 0.0
    %1128 = vmatpush2.xpose.msra.mxu0 0.0
    %1129 = vmatprep.subr.mxu0 0.0
    %1130 = vmatpush2.xpose.msra.mxu0 0.0
    %1131 = vmatprep.subr.mxu0 0.0
    %1132 = vmatpush2.xpose.msra.mxu0 0.0
    %1133 = vmatprep.subr.mxu0 0.0
    %1134 = vmatpush2.xpose.msra.mxu0 0.0
    %1135 = vmatprep.subr.mxu0 0.0
    %1136 = vmatpush2.xpose.msra.mxu0 0.0
    %1137 = vmatprep.subr.mxu0 0.0
    %1138 = vmatpush2.xpose.msra.mxu0 0.0
    %1139 = vmatprep.subr.mxu0 0.0
    %1140 = vmatpush2.xpose.msra.mxu0 0.0
    %1141 = vmatprep.subr.mxu0 0.0
    %1142 = vmatpush2.xpose.msra.mxu0 0.0
    %1143 = vmatprep.subr.mxu0 0.0
    %1144 = vmatpush2.xpose.msra.mxu0 0.0
    %1145 = vmatprep.subr.mxu0 0.0
    %1146 = vmatpush2.xpose.msra.mxu0 0.0
    %1147 = vmatprep.subr.mxu0 0.0
    %1148 = vmatpush2.xpose.msra.mxu0 0.0
    %1149 = vmatprep.subr.mxu0 0.0
    %1150 = vmatpush2.xpose.msra.mxu0 0.0
    %1151 = vmatprep.subr.mxu0 0.0
    %1152 = vmatpush2.xpose.msra.mxu0 0.0
    %1153 = vmatprep.subr.mxu0 0.0
    %1154 = vmatpush2.xpose.msra.mxu0 0.0
    %1155 = vmatprep.subr.mxu0 0.0
    %1156 = vmatpush2.xpose.msra.mxu0 0.0
    %1157 = vmatprep.subr.mxu0 0.0
    %1158 = vmatpush2.xpose.msra.mxu0 0.0
    %1159 = vmatprep.mubr.f32.mxu0 0.0
    %1160 = vmatmul.mubr.f32.gmra.mxu0 %v1090
    %v1161 = vpop.f32.mrf.mxu0
    %v1162 = vadd.f32 %v548, %v1161
    %v1163 = vpop.f32.mrf.mxu0
    %1164 = vdwg.mxu0
    %vm1165 = vcmask 64512
    %v1166 = vsel %vm1165, %v630, -inf
    %1167 = vmax.xlane.f32.xlu0 %v1166
    %v1168 = vpop.xlane.xlu0 %1167
    %v1169 = vsel %vm1165, %v706, -inf
    %1170 = vmax.xlane.f32.xlu0 %v1169
    %v1171 = vpop.xlane.xlu0 %1170
    %v1172 = vsel %vm1165, %v782, -inf
    %1173 = vmax.xlane.f32.xlu0 %v1172
    %v1174 = vpop.xlane.xlu0 %1173
    %v1175 = vsel %vm1165, %v858, -inf
    %1176 = vmax.xlane.f32.xlu0 %v1175
    %v1177 = vpop.xlane.xlu0 %1176
    %v1178 = vsel %vm1165, %v934, -inf
    %1179 = vmax.xlane.f32.xlu0 %v1178
    %v1180 = vpop.xlane.xlu0 %1179
    %v1181 = vsel %vm1165, %v1010, -inf
    %1182 = vmax.xlane.f32.xlu0 %v1181
    %v1183 = vpop.xlane.xlu0 %1182
    %v1184 = vsel %vm1165, %v1086, -inf
    %1185 = vmax.xlane.f32.xlu0 %v1184
    %v1186 = vpop.xlane.xlu0 %1185
    %v1187 = vsel %vm1165, %v1162, -inf
    %1188 = vmax.xlane.f32.xlu0 %v1187
    %v1189 = vpop.xlane.xlu0 %1188
    %v1190 = vsub.f32 %v630, %v1168
    %v1191 = vsub.f32 %v706, %v1171
    %v1192 = vsub.f32 %v782, %v1174
    %v1193 = vsub.f32 %v858, %v1177
    %v1194 = vsub.f32 %v934, %v1180
    %v1195 = vsub.f32 %v1010, %v1183
    %v1196 = vsub.f32 %v1086, %v1186
    %v1197 = vsub.f32 %v1162, %v1189
    %v1198 = vmul.f32 %v1190, 1.442695
    %v1199 = vpow.pop %v1198
    %v1200 = vmul.f32 %v1191, 1.442695
    %v1201 = vpow.pop %v1200
    %v1202 = vmul.f32 %v1192, 1.442695
    %v1203 = vpow.pop %v1202
    %v1204 = vmul.f32 %v1193, 1.442695
    %v1205 = vpow.pop %v1204
    %v1206 = vmul.f32 %v1194, 1.442695
    %v1207 = vpow.pop %v1206
    %v1208 = vmul.f32 %v1195, 1.442695
    %v1209 = vpow.pop %v1208
    %v1210 = vmul.f32 %v1196, 1.442695
    %v1211 = vpow.pop %v1210
    %v1212 = vmul.f32 %v1197, 1.442695
    %v1213 = vpow.pop %v1212
    %v1214 = vsel %vm1165, %v1199, 0.0
    %1215 = vadd.xlane.f32.xlu0 %v1214
    %v1216 = vpop.xlane.xlu0 %1215
    %v1217 = vsel %vm1165, %v1201, 0.0
    %1218 = vadd.xlane.f32.xlu0 %v1217
    %v1219 = vpop.xlane.xlu0 %1218
    %v1220 = vsel %vm1165, %v1203, 0.0
    %1221 = vadd.xlane.f32.xlu0 %v1220
    %v1222 = vpop.xlane.xlu0 %1221
    %v1223 = vsel %vm1165, %v1205, 0.0
    %1224 = vadd.xlane.f32.xlu0 %v1223
    %v1225 = vpop.xlane.xlu0 %1224
    %v1226 = vsel %vm1165, %v1207, 0.0
    %1227 = vadd.xlane.f32.xlu0 %v1226
    %v1228 = vpop.xlane.xlu0 %1227
    %v1229 = vsel %vm1165, %v1209, 0.0
    %1230 = vadd.xlane.f32.xlu0 %v1229
    %v1231 = vpop.xlane.xlu0 %1230
    %v1232 = vsel %vm1165, %v1211, 0.0
    %1233 = vadd.xlane.f32.xlu0 %v1232
    %v1234 = vpop.xlane.xlu0 %1233
    %v1235 = vsel %vm1165, %v1213, 0.0
    %1236 = vadd.xlane.f32.xlu0 %v1235
    %v1237 = vpop.xlane.xlu0 %1236
    %v1238 = vrcp.pop %v1216
    %v1239 = vrcp.pop %v1219
    %v1240 = vrcp.pop %v1222
    %v1241 = vrcp.pop %v1225
    %v1242 = vrcp.pop %v1228
    %v1243 = vrcp.pop %v1231
    %v1244 = vrcp.pop %v1234
    %v1245 = vrcp.pop %v1237
    %v1246 = vmul.f32 %v1199, %v1238
    %v1247 = vmul.f32 %v1201, %v1239
    %v1248 = vmul.f32 %v1203, %v1240
    %v1249 = vmul.f32 %v1205, %v1241
    %v1250 = vmul.f32 %v1207, %v1242
    %v1251 = vmul.f32 %v1209, %v1243
    %v1252 = vmul.f32 %v1211, %v1244
    %v1253 = vmul.f32 %v1213, %v1245
    %vm1254 = vcmp.ge.s32.totalorder %v445, 8
    %vm1255 = vcmp.lt.s32.totalorder %v445, 16
    %vm1256 = vmand %vm1254, %vm1255
    %v1257 = vsel %vm1256, 1, 0
    %v1258 = vcvt.s32.f32 %v1257
    %v1259 = vmul.f32 %v289, %v1258
    %v1260 = vmul.f32 %v294, %v1258
    %v1261 = vmul.f32 %v299, %v1258
    %v1262 = vmul.f32 %v304, %v1258
    %v1263 = vmul.f32 %v309, %v1258
    %v1264 = vmul.f32 %v314, %v1258
    %v1265 = vmul.f32 %v319, %v1258
    %v1266 = vmul.f32 %v324, %v1258
    %v1267 = vmul.f32 %v398, %v1258
    %v1268 = vmul.f32 %v403, %v1258
    %v1269 = vmul.f32 %v408, %v1258
    %v1270 = vmul.f32 %v413, %v1258
    %v1271 = vmul.f32 %v418, %v1258
    %v1272 = vmul.f32 %v423, %v1258
    %v1273 = vmul.f32 %v428, %v1258
    %v1274 = vmul.f32 %v433, %v1258
    %v1276 = vsel %vm88, %v1259, 0
    %1278 = vmatprep.subr.mxu0 0.0
    %1279 = vmatpush1.xpose.msra.mxu0 0.0
    %1280 = vmatprep.subr.mxu0 0.0
    %1281 = vmatpush1.xpose.msra.mxu0 0.0
    %1282 = vmatprep.subr.mxu0 0.0
    %1283 = vmatpush1.xpose.msra.mxu0 0.0
    %1284 = vmatprep.subr.mxu0 0.0
    %1285 = vmatpush1.xpose.msra.mxu0 0.0
    %1286 = vmatprep.subr.mxu0 0.0
    %1287 = vmatpush1.xpose.msra.mxu0 0.0
    %1288 = vmatprep.subr.mxu0 0.0
    %1289 = vmatpush1.xpose.msra.mxu0 0.0
    %1290 = vmatprep.subr.mxu0 0.0
    %1291 = vmatpush1.xpose.msra.mxu0 0.0
    %1292 = vmatprep.subr.mxu0 0.0
    %1293 = vmatpush1.xpose.msra.mxu0 0.0
    %1294 = vmatprep.subr.mxu0 0.0
    %1295 = vmatpush1.xpose.msra.mxu0 0.0
    %1296 = vmatprep.subr.mxu0 0.0
    %1297 = vmatpush1.xpose.msra.mxu0 0.0
    %1298 = vmatprep.subr.mxu0 0.0
    %1299 = vmatpush1.xpose.msra.mxu0 0.0
    %1300 = vmatprep.subr.mxu0 0.0
    %1301 = vmatpush1.xpose.msra.mxu0 0.0
    %1302 = vmatprep.subr.mxu0 0.0
    %1303 = vmatpush1.xpose.msra.mxu0 0.0
    %1304 = vmatprep.subr.mxu0 0.0
    %1305 = vmatpush1.xpose.msra.mxu0 0.0
    %1306 = vmatprep.subr.mxu0 0.0
    %1307 = vmatpush1.xpose.msra.mxu0 0.0
    %1308 = vmatprep.subr.mxu0 0.0
    %1309 = vmatpush1.xpose.msra.mxu0 %v1276
    %1310 = vmatprep.subr.mxu0 0.0
    %1311 = vmatpush2.xpose.msra.mxu0 0.0
    %1312 = vmatprep.subr.mxu0 0.0
    %1313 = vmatpush2.xpose.msra.mxu0 0.0
    %1314 = vmatprep.subr.mxu0 0.0
    %1315 = vmatpush2.xpose.msra.mxu0 0.0
    %1316 = vmatprep.subr.mxu0 0.0
    %1317 = vmatpush2.xpose.msra.mxu0 0.0
    %1318 = vmatprep.subr.mxu0 0.0
    %1319 = vmatpush2.xpose.msra.mxu0 0.0
    %1320 = vmatprep.subr.mxu0 0.0
    %1321 = vmatpush2.xpose.msra.mxu0 0.0
    %1322 = vmatprep.subr.mxu0 0.0
    %1323 = vmatpush2.xpose.msra.mxu0 0.0
    %1324 = vmatprep.subr.mxu0 0.0
    %1325 = vmatpush2.xpose.msra.mxu0 0.0
    %1326 = vmatprep.subr.mxu0 0.0
    %1327 = vmatpush2.xpose.msra.mxu0 0.0
    %1328 = vmatprep.subr.mxu0 0.0
    %1329 = vmatpush2.xpose.msra.mxu0 0.0
    %1330 = vmatprep.subr.mxu0 0.0
    %1331 = vmatpush2.xpose.msra.mxu0 0.0
    %1332 = vmatprep.subr.mxu0 0.0
    %1333 = vmatpush2.xpose.msra.mxu0 0.0
    %1334 = vmatprep.subr.mxu0 0.0
    %1335 = vmatpush2.xpose.msra.mxu0 0.0
    %1336 = vmatprep.subr.mxu0 0.0
    %1337 = vmatpush2.xpose.msra.mxu0 0.0
    %1338 = vmatprep.subr.mxu0 0.0
    %1339 = vmatpush2.xpose.msra.mxu0 0.0
    %1340 = vmatprep.subr.mxu0 0.0
    %1341 = vmatpush2.xpose.msra.mxu0 0.0
    %1342 = vmatprep.mubr.f32.mxu0 0.0
    %1343 = vmatmul.mubr.f32.gmra.mxu0 %v558
    %v1344 = vpop.f32.mrf.mxu0
    %v1345 = vadd.f32 %v520, %v1344
    %v1346 = vpop.f32.mrf.mxu0
    %1347 = vdwg.mxu0
    %v1349 = vsel %vm88, %v1260, 0
    %1351 = vmatprep.subr.mxu0 0.0
    %1352 = vmatpush1.xpose.msra.mxu0 0.0
    %1353 = vmatprep.subr.mxu0 0.0
    %1354 = vmatpush1.xpose.msra.mxu0 0.0
    %1355 = vmatprep.subr.mxu0 0.0
    %1356 = vmatpush1.xpose.msra.mxu0 0.0
    %1357 = vmatprep.subr.mxu0 0.0
    %1358 = vmatpush1.xpose.msra.mxu0 0.0
    %1359 = vmatprep.subr.mxu0 0.0
    %1360 = vmatpush1.xpose.msra.mxu0 0.0
    %1361 = vmatprep.subr.mxu0 0.0
    %1362 = vmatpush1.xpose.msra.mxu0 0.0
    %1363 = vmatprep.subr.mxu0 0.0
    %1364 = vmatpush1.xpose.msra.mxu0 0.0
    %1365 = vmatprep.subr.mxu0 0.0
    %1366 = vmatpush1.xpose.msra.mxu0 0.0
    %1367 = vmatprep.subr.mxu0 0.0
    %1368 = vmatpush1.xpose.msra.mxu0 0.0
    %1369 = vmatprep.subr.mxu0 0.0
    %1370 = vmatpush1.xpose.msra.mxu0 0.0
    %1371 = vmatprep.subr.mxu0 0.0
    %1372 = vmatpush1.xpose.msra.mxu0 0.0
    %1373 = vmatprep.subr.mxu0 0.0
    %1374 = vmatpush1.xpose.msra.mxu0 0.0
    %1375 = vmatprep.subr.mxu0 0.0
    %1376 = vmatpush1.xpose.msra.mxu0 0.0
    %1377 = vmatprep.subr.mxu0 0.0
    %1378 = vmatpush1.xpose.msra.mxu0 0.0
    %1379 = vmatprep.subr.mxu0 0.0
    %1380 = vmatpush1.xpose.msra.mxu0 0.0
    %1381 = vmatprep.subr.mxu0 0.0
    %1382 = vmatpush1.xpose.msra.mxu0 %v1349
    %1383 = vmatprep.subr.mxu0 0.0
    %1384 = vmatpush2.xpose.msra.mxu0 0.0
    %1385 = vmatprep.subr.mxu0 0.0
    %1386 = vmatpush2.xpose.msra.mxu0 0.0
    %1387 = vmatprep.subr.mxu0 0.0
    %1388 = vmatpush2.xpose.msra.mxu0 0.0
    %1389 = vmatprep.subr.mxu0 0.0
    %1390 = vmatpush2.xpose.msra.mxu0 0.0
    %1391 = vmatprep.subr.mxu0 0.0
    %1392 = vmatpush2.xpose.msra.mxu0 0.0
    %1393 = vmatprep.subr.mxu0 0.0
    %1394 = vmatpush2.xpose.msra.mxu0 0.0
    %1395 = vmatprep.subr.mxu0 0.0
    %1396 = vmatpush2.xpose.msra.mxu0 0.0
    %1397 = vmatprep.subr.mxu0 0.0
    %1398 = vmatpush2.xpose.msra.mxu0 0.0
    %1399 = vmatprep.subr.mxu0 0.0
    %1400 = vmatpush2.xpose.msra.mxu0 0.0
    %1401 = vmatprep.subr.mxu0 0.0
    %1402 = vmatpush2.xpose.msra.mxu0 0.0
    %1403 = vmatprep.subr.mxu0 0.0
    %1404 = vmatpush2.xpose.msra.mxu0 0.0
    %1405 = vmatprep.subr.mxu0 0.0
    %1406 = vmatpush2.xpose.msra.mxu0 0.0
    %1407 = vmatprep.subr.mxu0 0.0
    %1408 = vmatpush2.xpose.msra.mxu0 0.0
    %1409 = vmatprep.subr.mxu0 0.0
    %1410 = vmatpush2.xpose.msra.mxu0 0.0
    %1411 = vmatprep.subr.mxu0 0.0
    %1412 = vmatpush2.xpose.msra.mxu0 0.0
    %1413 = vmatprep.subr.mxu0 0.0
    %1414 = vmatpush2.xpose.msra.mxu0 0.0
    %1415 = vmatprep.mubr.f32.mxu0 0.0
    %1416 = vmatmul.mubr.f32.gmra.mxu0 %v634
    %v1417 = vpop.f32.mrf.mxu0
    %v1418 = vadd.f32 %v524, %v1417
    %v1419 = vpop.f32.mrf.mxu0
    %1420 = vdwg.mxu0
    %v1422 = vsel %vm88, %v1261, 0
    %1424 = vmatprep.subr.mxu0 0.0
    %1425 = vmatpush1.xpose.msra.mxu0 0.0
    %1426 = vmatprep.subr.mxu0 0.0
    %1427 = vmatpush1.xpose.msra.mxu0 0.0
    %1428 = vmatprep.subr.mxu0 0.0
    %1429 = vmatpush1.xpose.msra.mxu0 0.0
    %1430 = vmatprep.subr.mxu0 0.0
    %1431 = vmatpush1.xpose.msra.mxu0 0.0
    %1432 = vmatprep.subr.mxu0 0.0
    %1433 = vmatpush1.xpose.msra.mxu0 0.0
    %1434 = vmatprep.subr.mxu0 0.0
    %1435 = vmatpush1.xpose.msra.mxu0 0.0
    %1436 = vmatprep.subr.mxu0 0.0
    %1437 = vmatpush1.xpose.msra.mxu0 0.0
    %1438 = vmatprep.subr.mxu0 0.0
    %1439 = vmatpush1.xpose.msra.mxu0 0.0
    %1440 = vmatprep.subr.mxu0 0.0
    %1441 = vmatpush1.xpose.msra.mxu0 0.0
    %1442 = vmatprep.subr.mxu0 0.0
    %1443 = vmatpush1.xpose.msra.mxu0 0.0
    %1444 = vmatprep.subr.mxu0 0.0
    %1445 = vmatpush1.xpose.msra.mxu0 0.0
    %1446 = vmatprep.subr.mxu0 0.0
    %1447 = vmatpush1.xpose.msra.mxu0 0.0
    %1448 = vmatprep.subr.mxu0 0.0
    %1449 = vmatpush1.xpose.msra.mxu0 0.0
    %1450 = vmatprep.subr.mxu0 0.0
    %1451 = vmatpush1.xpose.msra.mxu0 0.0
    %1452 = vmatprep.subr.mxu0 0.0
    %1453 = vmatpush1.xpose.msra.mxu0 0.0
    %1454 = vmatprep.subr.mxu0 0.0
    %1455 = vmatpush1.xpose.msra.mxu0 %v1422
    %1456 = vmatprep.subr.mxu0 0.0
    %1457 = vmatpush2.xpose.msra.mxu0 0.0
    %1458 = vmatprep.subr.mxu0 0.0
    %1459 = vmatpush2.xpose.msra.mxu0 0.0
    %1460 = vmatprep.subr.mxu0 0.0
    %1461 = vmatpush2.xpose.msra.mxu0 0.0
    %1462 = vmatprep.subr.mxu0 0.0
    %1463 = vmatpush2.xpose.msra.mxu0 0.0
    %1464 = vmatprep.subr.mxu0 0.0
    %1465 = vmatpush2.xpose.msra.mxu0 0.0
    %1466 = vmatprep.subr.mxu0 0.0
    %1467 = vmatpush2.xpose.msra.mxu0 0.0
    %1468 = vmatprep.subr.mxu0 0.0
    %1469 = vmatpush2.xpose.msra.mxu0 0.0
    %1470 = vmatprep.subr.mxu0 0.0
    %1471 = vmatpush2.xpose.msra.mxu0 0.0
    %1472 = vmatprep.subr.mxu0 0.0
    %1473 = vmatpush2.xpose.msra.mxu0 0.0
    %1474 = vmatprep.subr.mxu0 0.0
    %1475 = vmatpush2.xpose.msra.mxu0 0.0
    %1476 = vmatprep.subr.mxu0 0.0
    %1477 = vmatpush2.xpose.msra.mxu0 0.0
    %1478 = vmatprep.subr.mxu0 0.0
    %1479 = vmatpush2.xpose.msra.mxu0 0.0
    %1480 = vmatprep.subr.mxu0 0.0
    %1481 = vmatpush2.xpose.msra.mxu0 0.0
    %1482 = vmatprep.subr.mxu0 0.0
    %1483 = vmatpush2.xpose.msra.mxu0 0.0
    %1484 = vmatprep.subr.mxu0 0.0
    %1485 = vmatpush2.xpose.msra.mxu0 0.0
    %1486 = vmatprep.subr.mxu0 0.0
    %1487 = vmatpush2.xpose.msra.mxu0 0.0
    %1488 = vmatprep.mubr.f32.mxu0 0.0
    %1489 = vmatmul.mubr.f32.gmra.mxu0 %v710
    %v1490 = vpop.f32.mrf.mxu0
    %v1491 = vadd.f32 %v528, %v1490
    %v1492 = vpop.f32.mrf.mxu0
    %1493 = vdwg.mxu0
    %v1495 = vsel %vm88, %v1262, 0
    %1497 = vmatprep.subr.mxu0 0.0
    %1498 = vmatpush1.xpose.msra.mxu0 0.0
    %1499 = vmatprep.subr.mxu0 0.0
    %1500 = vmatpush1.xpose.msra.mxu0 0.0
    %1501 = vmatprep.subr.mxu0 0.0
    %1502 = vmatpush1.xpose.msra.mxu0 0.0
    %1503 = vmatprep.subr.mxu0 0.0
    %1504 = vmatpush1.xpose.msra.mxu0 0.0
    %1505 = vmatprep.subr.mxu0 0.0
    %1506 = vmatpush1.xpose.msra.mxu0 0.0
    %1507 = vmatprep.subr.mxu0 0.0
    %1508 = vmatpush1.xpose.msra.mxu0 0.0
    %1509 = vmatprep.subr.mxu0 0.0
    %1510 = vmatpush1.xpose.msra.mxu0 0.0
    %1511 = vmatprep.subr.mxu0 0.0
    %1512 = vmatpush1.xpose.msra.mxu0 0.0
    %1513 = vmatprep.subr.mxu0 0.0
    %1514 = vmatpush1.xpose.msra.mxu0 0.0
    %1515 = vmatprep.subr.mxu0 0.0
    %1516 = vmatpush1.xpose.msra.mxu0 0.0
    %1517 = vmatprep.subr.mxu0 0.0
    %1518 = vmatpush1.xpose.msra.mxu0 0.0
    %1519 = vmatprep.subr.mxu0 0.0
    %1520 = vmatpush1.xpose.msra.mxu0 0.0
    %1521 = vmatprep.subr.mxu0 0.0
    %1522 = vmatpush1.xpose.msra.mxu0 0.0
    %1523 = vmatprep.subr.mxu0 0.0
    %1524 = vmatpush1.xpose.msra.mxu0 0.0
    %1525 = vmatprep.subr.mxu0 0.0
    %1526 = vmatpush1.xpose.msra.mxu0 0.0
    %1527 = vmatprep.subr.mxu0 0.0
    %1528 = vmatpush1.xpose.msra.mxu0 %v1495
    %1529 = vmatprep.subr.mxu0 0.0
    %1530 = vmatpush2.xpose.msra.mxu0 0.0
    %1531 = vmatprep.subr.mxu0 0.0
    %1532 = vmatpush2.xpose.msra.mxu0 0.0
    %1533 = vmatprep.subr.mxu0 0.0
    %1534 = vmatpush2.xpose.msra.mxu0 0.0
    %1535 = vmatprep.subr.mxu0 0.0
    %1536 = vmatpush2.xpose.msra.mxu0 0.0
    %1537 = vmatprep.subr.mxu0 0.0
    %1538 = vmatpush2.xpose.msra.mxu0 0.0
    %1539 = vmatprep.subr.mxu0 0.0
    %1540 = vmatpush2.xpose.msra.mxu0 0.0
    %1541 = vmatprep.subr.mxu0 0.0
    %1542 = vmatpush2.xpose.msra.mxu0 0.0
    %1543 = vmatprep.subr.mxu0 0.0
    %1544 = vmatpush2.xpose.msra.mxu0 0.0
    %1545 = vmatprep.subr.mxu0 0.0
    %1546 = vmatpush2.xpose.msra.mxu0 0.0
    %1547 = vmatprep.subr.mxu0 0.0
    %1548 = vmatpush2.xpose.msra.mxu0 0.0
    %1549 = vmatprep.subr.mxu0 0.0
    %1550 = vmatpush2.xpose.msra.mxu0 0.0
    %1551 = vmatprep.subr.mxu0 0.0
    %1552 = vmatpush2.xpose.msra.mxu0 0.0
    %1553 = vmatprep.subr.mxu0 0.0
    %1554 = vmatpush2.xpose.msra.mxu0 0.0
    %1555 = vmatprep.subr.mxu0 0.0
    %1556 = vmatpush2.xpose.msra.mxu0 0.0
    %1557 = vmatprep.subr.mxu0 0.0
    %1558 = vmatpush2.xpose.msra.mxu0 0.0
    %1559 = vmatprep.subr.mxu0 0.0
    %1560 = vmatpush2.xpose.msra.mxu0 0.0
    %1561 = vmatprep.mubr.f32.mxu0 0.0
    %1562 = vmatmul.mubr.f32.gmra.mxu0 %v786
    %v1563 = vpop.f32.mrf.mxu0
    %v1564 = vadd.f32 %v532, %v1563
    %v1565 = vpop.f32.mrf.mxu0
    %1566 = vdwg.mxu0
    %v1568 = vsel %vm88, %v1263, 0
    %1570 = vmatprep.subr.mxu0 0.0
    %1571 = vmatpush1.xpose.msra.mxu0 0.0
    %1572 = vmatprep.subr.mxu0 0.0
    %1573 = vmatpush1.xpose.msra.mxu0 0.0
    %1574 = vmatprep.subr.mxu0 0.0
    %1575 = vmatpush1.xpose.msra.mxu0 0.0
    %1576 = vmatprep.subr.mxu0 0.0
    %1577 = vmatpush1.xpose.msra.mxu0 0.0
    %1578 = vmatprep.subr.mxu0 0.0
    %1579 = vmatpush1.xpose.msra.mxu0 0.0
    %1580 = vmatprep.subr.mxu0 0.0
    %1581 = vmatpush1.xpose.msra.mxu0 0.0
    %1582 = vmatprep.subr.mxu0 0.0
    %1583 = vmatpush1.xpose.msra.mxu0 0.0
    %1584 = vmatprep.subr.mxu0 0.0
    %1585 = vmatpush1.xpose.msra.mxu0 0.0
    %1586 = vmatprep.subr.mxu0 0.0
    %1587 = vmatpush1.xpose.msra.mxu0 0.0
    %1588 = vmatprep.subr.mxu0 0.0
    %1589 = vmatpush1.xpose.msra.mxu0 0.0
    %1590 = vmatprep.subr.mxu0 0.0
    %1591 = vmatpush1.xpose.msra.mxu0 0.0
    %1592 = vmatprep.subr.mxu0 0.0
    %1593 = vmatpush1.xpose.msra.mxu0 0.0
    %1594 = vmatprep.subr.mxu0 0.0
    %1595 = vmatpush1.xpose.msra.mxu0 0.0
    %1596 = vmatprep.subr.mxu0 0.0
    %1597 = vmatpush1.xpose.msra.mxu0 0.0
    %1598 = vmatprep.subr.mxu0 0.0
    %1599 = vmatpush1.xpose.msra.mxu0 0.0
    %1600 = vmatprep.subr.mxu0 0.0
    %1601 = vmatpush1.xpose.msra.mxu0 %v1568
    %1602 = vmatprep.subr.mxu0 0.0
    %1603 = vmatpush2.xpose.msra.mxu0 0.0
    %1604 = vmatprep.subr.mxu0 0.0
    %1605 = vmatpush2.xpose.msra.mxu0 0.0
    %1606 = vmatprep.subr.mxu0 0.0
    %1607 = vmatpush2.xpose.msra.mxu0 0.0
    %1608 = vmatprep.subr.mxu0 0.0
    %1609 = vmatpush2.xpose.msra.mxu0 0.0
    %1610 = vmatprep.subr.mxu0 0.0
    %1611 = vmatpush2.xpose.msra.mxu0 0.0
    %1612 = vmatprep.subr.mxu0 0.0
    %1613 = vmatpush2.xpose.msra.mxu0 0.0
    %1614 = vmatprep.subr.mxu0 0.0
    %1615 = vmatpush2.xpose.msra.mxu0 0.0
    %1616 = vmatprep.subr.mxu0 0.0
    %1617 = vmatpush2.xpose.msra.mxu0 0.0
    %1618 = vmatprep.subr.mxu0 0.0
    %1619 = vmatpush2.xpose.msra.mxu0 0.0
    %1620 = vmatprep.subr.mxu0 0.0
    %1621 = vmatpush2.xpose.msra.mxu0 0.0
    %1622 = vmatprep.subr.mxu0 0.0
    %1623 = vmatpush2.xpose.msra.mxu0 0.0
    %1624 = vmatprep.subr.mxu0 0.0
    %1625 = vmatpush2.xpose.msra.mxu0 0.0
    %1626 = vmatprep.subr.mxu0 0.0
    %1627 = vmatpush2.xpose.msra.mxu0 0.0
    %1628 = vmatprep.subr.mxu0 0.0
    %1629 = vmatpush2.xpose.msra.mxu0 0.0
    %1630 = vmatprep.subr.mxu0 0.0
    %1631 = vmatpush2.xpose.msra.mxu0 0.0
    %1632 = vmatprep.subr.mxu0 0.0
    %1633 = vmatpush2.xpose.msra.mxu0 0.0
    %1634 = vmatprep.mubr.f32.mxu0 0.0
    %1635 = vmatmul.mubr.f32.gmra.mxu0 %v862
    %v1636 = vpop.f32.mrf.mxu0
    %v1637 = vadd.f32 %v536, %v1636
    %v1638 = vpop.f32.mrf.mxu0
    %1639 = vdwg.mxu0
    %v1641 = vsel %vm88, %v1264, 0
    %1643 = vmatprep.subr.mxu0 0.0
    %1644 = vmatpush1.xpose.msra.mxu0 0.0
    %1645 = vmatprep.subr.mxu0 0.0
    %1646 = vmatpush1.xpose.msra.mxu0 0.0
    %1647 = vmatprep.subr.mxu0 0.0
    %1648 = vmatpush1.xpose.msra.mxu0 0.0
    %1649 = vmatprep.subr.mxu0 0.0
    %1650 = vmatpush1.xpose.msra.mxu0 0.0
    %1651 = vmatprep.subr.mxu0 0.0
    %1652 = vmatpush1.xpose.msra.mxu0 0.0
    %1653 = vmatprep.subr.mxu0 0.0
    %1654 = vmatpush1.xpose.msra.mxu0 0.0
    %1655 = vmatprep.subr.mxu0 0.0
    %1656 = vmatpush1.xpose.msra.mxu0 0.0
    %1657 = vmatprep.subr.mxu0 0.0
    %1658 = vmatpush1.xpose.msra.mxu0 0.0
    %1659 = vmatprep.subr.mxu0 0.0
    %1660 = vmatpush1.xpose.msra.mxu0 0.0
    %1661 = vmatprep.subr.mxu0 0.0
    %1662 = vmatpush1.xpose.msra.mxu0 0.0
    %1663 = vmatprep.subr.mxu0 0.0
    %1664 = vmatpush1.xpose.msra.mxu0 0.0
    %1665 = vmatprep.subr.mxu0 0.0
    %1666 = vmatpush1.xpose.msra.mxu0 0.0
    %1667 = vmatprep.subr.mxu0 0.0
    %1668 = vmatpush1.xpose.msra.mxu0 0.0
    %1669 = vmatprep.subr.mxu0 0.0
    %1670 = vmatpush1.xpose.msra.mxu0 0.0
    %1671 = vmatprep.subr.mxu0 0.0
    %1672 = vmatpush1.xpose.msra.mxu0 0.0
    %1673 = vmatprep.subr.mxu0 0.0
    %1674 = vmatpush1.xpose.msra.mxu0 %v1641
    %1675 = vmatprep.subr.mxu0 0.0
    %1676 = vmatpush2.xpose.msra.mxu0 0.0
    %1677 = vmatprep.subr.mxu0 0.0
    %1678 = vmatpush2.xpose.msra.mxu0 0.0
    %1679 = vmatprep.subr.mxu0 0.0
    %1680 = vmatpush2.xpose.msra.mxu0 0.0
    %1681 = vmatprep.subr.mxu0 0.0
    %1682 = vmatpush2.xpose.msra.mxu0 0.0
    %1683 = vmatprep.subr.mxu0 0.0
    %1684 = vmatpush2.xpose.msra.mxu0 0.0
    %1685 = vmatprep.subr.mxu0 0.0
    %1686 = vmatpush2.xpose.msra.mxu0 0.0
    %1687 = vmatprep.subr.mxu0 0.0
    %1688 = vmatpush2.xpose.msra.mxu0 0.0
    %1689 = vmatprep.subr.mxu0 0.0
    %1690 = vmatpush2.xpose.msra.mxu0 0.0
    %1691 = vmatprep.subr.mxu0 0.0
    %1692 = vmatpush2.xpose.msra.mxu0 0.0
    %1693 = vmatprep.subr.mxu0 0.0
    %1694 = vmatpush2.xpose.msra.mxu0 0.0
    %1695 = vmatprep.subr.mxu0 0.0
    %1696 = vmatpush2.xpose.msra.mxu0 0.0
    %1697 = vmatprep.subr.mxu0 0.0
    %1698 = vmatpush2.xpose.msra.mxu0 0.0
    %1699 = vmatprep.subr.mxu0 0.0
    %1700 = vmatpush2.xpose.msra.mxu0 0.0
    %1701 = vmatprep.subr.mxu0 0.0
    %1702 = vmatpush2.xpose.msra.mxu0 0.0
    %1703 = vmatprep.subr.mxu0 0.0
    %1704 = vmatpush2.xpose.msra.mxu0 0.0
    %1705 = vmatprep.subr.mxu0 0.0
    %1706 = vmatpush2.xpose.msra.mxu0 0.0
    %1707 = vmatprep.mubr.f32.mxu0 0.0
    %1708 = vmatmul.mubr.f32.gmra.mxu0 %v938
    %v1709 = vpop.f32.mrf.mxu0
    %v1710 = vadd.f32 %v540, %v1709
    %v1711 = vpop.f32.mrf.mxu0
    %1712 = vdwg.mxu0
    %v1714 = vsel %vm88, %v1265, 0
    %1716 = vmatprep.subr.mxu0 0.0
    %1717 = vmatpush1.xpose.msra.mxu0 0.0
    %1718 = vmatprep.subr.mxu0 0.0
    %1719 = vmatpush1.xpose.msra.mxu0 0.0
    %1720 = vmatprep.subr.mxu0 0.0
    %1721 = vmatpush1.xpose.msra.mxu0 0.0
    %1722 = vmatprep.subr.mxu0 0.0
    %1723 = vmatpush1.xpose.msra.mxu0 0.0
    %1724 = vmatprep.subr.mxu0 0.0
    %1725 = vmatpush1.xpose.msra.mxu0 0.0
    %1726 = vmatprep.subr.mxu0 0.0
    %1727 = vmatpush1.xpose.msra.mxu0 0.0
    %1728 = vmatprep.subr.mxu0 0.0
    %1729 = vmatpush1.xpose.msra.mxu0 0.0
    %1730 = vmatprep.subr.mxu0 0.0
    %1731 = vmatpush1.xpose.msra.mxu0 0.0
    %1732 = vmatprep.subr.mxu0 0.0
    %1733 = vmatpush1.xpose.msra.mxu0 0.0
    %1734 = vmatprep.subr.mxu0 0.0
    %1735 = vmatpush1.xpose.msra.mxu0 0.0
    %1736 = vmatprep.subr.mxu0 0.0
    %1737 = vmatpush1.xpose.msra.mxu0 0.0
    %1738 = vmatprep.subr.mxu0 0.0
    %1739 = vmatpush1.xpose.msra.mxu0 0.0
    %1740 = vmatprep.subr.mxu0 0.0
    %1741 = vmatpush1.xpose.msra.mxu0 0.0
    %1742 = vmatprep.subr.mxu0 0.0
    %1743 = vmatpush1.xpose.msra.mxu0 0.0
    %1744 = vmatprep.subr.mxu0 0.0
    %1745 = vmatpush1.xpose.msra.mxu0 0.0
    %1746 = vmatprep.subr.mxu0 0.0
    %1747 = vmatpush1.xpose.msra.mxu0 %v1714
    %1748 = vmatprep.subr.mxu0 0.0
    %1749 = vmatpush2.xpose.msra.mxu0 0.0
    %1750 = vmatprep.subr.mxu0 0.0
    %1751 = vmatpush2.xpose.msra.mxu0 0.0
    %1752 = vmatprep.subr.mxu0 0.0
    %1753 = vmatpush2.xpose.msra.mxu0 0.0
    %1754 = vmatprep.subr.mxu0 0.0
    %1755 = vmatpush2.xpose.msra.mxu0 0.0
    %1756 = vmatprep.subr.mxu0 0.0
    %1757 = vmatpush2.xpose.msra.mxu0 0.0
    %1758 = vmatprep.subr.mxu0 0.0
    %1759 = vmatpush2.xpose.msra.mxu0 0.0
    %1760 = vmatprep.subr.mxu0 0.0
    %1761 = vmatpush2.xpose.msra.mxu0 0.0
    %1762 = vmatprep.subr.mxu0 0.0
    %1763 = vmatpush2.xpose.msra.mxu0 0.0
    %1764 = vmatprep.subr.mxu0 0.0
    %1765 = vmatpush2.xpose.msra.mxu0 0.0
    %1766 = vmatprep.subr.mxu0 0.0
    %1767 = vmatpush2.xpose.msra.mxu0 0.0
    %1768 = vmatprep.subr.mxu0 0.0
    %1769 = vmatpush2.xpose.msra.mxu0 0.0
    %1770 = vmatprep.subr.mxu0 0.0
    %1771 = vmatpush2.xpose.msra.mxu0 0.0
    %1772 = vmatprep.subr.mxu0 0.0
    %1773 = vmatpush2.xpose.msra.mxu0 0.0
    %1774 = vmatprep.subr.mxu0 0.0
    %1775 = vmatpush2.xpose.msra.mxu0 0.0
    %1776 = vmatprep.subr.mxu0 0.0
    %1777 = vmatpush2.xpose.msra.mxu0 0.0
    %1778 = vmatprep.subr.mxu0 0.0
    %1779 = vmatpush2.xpose.msra.mxu0 0.0
    %1780 = vmatprep.mubr.f32.mxu0 0.0
    %1781 = vmatmul.mubr.f32.gmra.mxu0 %v1014
    %v1782 = vpop.f32.mrf.mxu0
    %v1783 = vadd.f32 %v544, %v1782
    %v1784 = vpop.f32.mrf.mxu0
    %1785 = vdwg.mxu0
    %v1787 = vsel %vm88, %v1266, 0
    %1789 = vmatprep.subr.mxu0 0.0
    %1790 = vmatpush1.xpose.msra.mxu0 0.0
    %1791 = vmatprep.subr.mxu0 0.0
    %1792 = vmatpush1.xpose.msra.mxu0 0.0
    %1793 = vmatprep.subr.mxu0 0.0
    %1794 = vmatpush1.xpose.msra.mxu0 0.0
    %1795 = vmatprep.subr.mxu0 0.0
    %1796 = vmatpush1.xpose.msra.mxu0 0.0
    %1797 = vmatprep.subr.mxu0 0.0
    %1798 = vmatpush1.xpose.msra.mxu0 0.0
    %1799 = vmatprep.subr.mxu0 0.0
    %1800 = vmatpush1.xpose.msra.mxu0 0.0
    %1801 = vmatprep.subr.mxu0 0.0
    %1802 = vmatpush1.xpose.msra.mxu0 0.0
    %1803 = vmatprep.subr.mxu0 0.0
    %1804 = vmatpush1.xpose.msra.mxu0 0.0
    %1805 = vmatprep.subr.mxu0 0.0
    %1806 = vmatpush1.xpose.msra.mxu0 0.0
    %1807 = vmatprep.subr.mxu0 0.0
    %1808 = vmatpush1.xpose.msra.mxu0 0.0
    %1809 = vmatprep.subr.mxu0 0.0
    %1810 = vmatpush1.xpose.msra.mxu0 0.0
    %1811 = vmatprep.subr.mxu0 0.0
    %1812 = vmatpush1.xpose.msra.mxu0 0.0
    %1813 = vmatprep.subr.mxu0 0.0
    %1814 = vmatpush1.xpose.msra.mxu0 0.0
    %1815 = vmatprep.subr.mxu0 0.0
    %1816 = vmatpush1.xpose.msra.mxu0 0.0
    %1817 = vmatprep.subr.mxu0 0.0
    %1818 = vmatpush1.xpose.msra.mxu0 0.0
    %1819 = vmatprep.subr.mxu0 0.0
    %1820 = vmatpush1.xpose.msra.mxu0 %v1787
    %1821 = vmatprep.subr.mxu0 0.0
    %1822 = vmatpush2.xpose.msra.mxu0 0.0
    %1823 = vmatprep.subr.mxu0 0.0
    %1824 = vmatpush2.xpose.msra.mxu0 0.0
    %1825 = vmatprep.subr.mxu0 0.0
    %1826 = vmatpush2.xpose.msra.mxu0 0.0
    %1827 = vmatprep.subr.mxu0 0.0
    %1828 = vmatpush2.xpose.msra.mxu0 0.0
    %1829 = vmatprep.subr.mxu0 0.0
    %1830 = vmatpush2.xpose.msra.mxu0 0.0
    %1831 = vmatprep.subr.mxu0 0.0
    %1832 = vmatpush2.xpose.msra.mxu0 0.0
    %1833 = vmatprep.subr.mxu0 0.0
    %1834 = vmatpush2.xpose.msra.mxu0 0.0
    %1835 = vmatprep.subr.mxu0 0.0
    %1836 = vmatpush2.xpose.msra.mxu0 0.0
    %1837 = vmatprep.subr.mxu0 0.0
    %1838 = vmatpush2.xpose.msra.mxu0 0.0
    %1839 = vmatprep.subr.mxu0 0.0
    %1840 = vmatpush2.xpose.msra.mxu0 0.0
    %1841 = vmatprep.subr.mxu0 0.0
    %1842 = vmatpush2.xpose.msra.mxu0 0.0
    %1843 = vmatprep.subr.mxu0 0.0
    %1844 = vmatpush2.xpose.msra.mxu0 0.0
    %1845 = vmatprep.subr.mxu0 0.0
    %1846 = vmatpush2.xpose.msra.mxu0 0.0
    %1847 = vmatprep.subr.mxu0 0.0
    %1848 = vmatpush2.xpose.msra.mxu0 0.0
    %1849 = vmatprep.subr.mxu0 0.0
    %1850 = vmatpush2.xpose.msra.mxu0 0.0
    %1851 = vmatprep.subr.mxu0 0.0
    %1852 = vmatpush2.xpose.msra.mxu0 0.0
    %1853 = vmatprep.mubr.f32.mxu0 0.0
    %1854 = vmatmul.mubr.f32.gmra.mxu0 %v1090
    %v1855 = vpop.f32.mrf.mxu0
    %v1856 = vadd.f32 %v548, %v1855
    %v1857 = vpop.f32.mrf.mxu0
    %1858 = vdwg.mxu0
    %v1859 = vsel %vm1165, %v1345, -inf
    %1860 = vmax.xlane.f32.xlu0 %v1859
    %v1861 = vpop.xlane.xlu0 %1860
    %v1862 = vsel %vm1165, %v1418, -inf
    %1863 = vmax.xlane.f32.xlu0 %v1862
    %v1864 = vpop.xlane.xlu0 %1863
    %v1865 = vsel %vm1165, %v1491, -inf
    %1866 = vmax.xlane.f32.xlu0 %v1865
    %v1867 = vpop.xlane.xlu0 %1866
    %v1868 = vsel %vm1165, %v1564, -inf
    %1869 = vmax.xlane.f32.xlu0 %v1868
    %v1870 = vpop.xlane.xlu0 %1869
    %v1871 = vsel %vm1165, %v1637, -inf
    %1872 = vmax.xlane.f32.xlu0 %v1871
    %v1873 = vpop.xlane.xlu0 %1872
    %v1874 = vsel %vm1165, %v1710, -inf
    %1875 = vmax.xlane.f32.xlu0 %v1874
    %v1876 = vpop.xlane.xlu0 %1875
    %v1877 = vsel %vm1165, %v1783, -inf
    %1878 = vmax.xlane.f32.xlu0 %v1877
    %v1879 = vpop.xlane.xlu0 %1878
    %v1880 = vsel %vm1165, %v1856, -inf
    %1881 = vmax.xlane.f32.xlu0 %v1880
    %v1882 = vpop.xlane.xlu0 %1881
    %v1883 = vsub.f32 %v1345, %v1861
    %v1884 = vsub.f32 %v1418, %v1864
    %v1885 = vsub.f32 %v1491, %v1867
    %v1886 = vsub.f32 %v1564, %v1870
    %v1887 = vsub.f32 %v1637, %v1873
    %v1888 = vsub.f32 %v1710, %v1876
    %v1889 = vsub.f32 %v1783, %v1879
    %v1890 = vsub.f32 %v1856, %v1882
    %v1891 = vmul.f32 %v1883, 1.442695
    %v1892 = vpow.pop %v1891
    %v1893 = vmul.f32 %v1884, 1.442695
    %v1894 = vpow.pop %v1893
    %v1895 = vmul.f32 %v1885, 1.442695
    %v1896 = vpow.pop %v1895
    %v1897 = vmul.f32 %v1886, 1.442695
    %v1898 = vpow.pop %v1897
    %v1899 = vmul.f32 %v1887, 1.442695
    %v1900 = vpow.pop %v1899
    %v1901 = vmul.f32 %v1888, 1.442695
    %v1902 = vpow.pop %v1901
    %v1903 = vmul.f32 %v1889, 1.442695
    %v1904 = vpow.pop %v1903
    %v1905 = vmul.f32 %v1890, 1.442695
    %v1906 = vpow.pop %v1905
    %v1907 = vsel %vm1165, %v1892, 0.0
    %1908 = vadd.xlane.f32.xlu0 %v1907
    %v1909 = vpop.xlane.xlu0 %1908
    %v1910 = vsel %vm1165, %v1894, 0.0
    %1911 = vadd.xlane.f32.xlu0 %v1910
    %v1912 = vpop.xlane.xlu0 %1911
    %v1913 = vsel %vm1165, %v1896, 0.0
    %1914 = vadd.xlane.f32.xlu0 %v1913
    %v1915 = vpop.xlane.xlu0 %1914
    %v1916 = vsel %vm1165, %v1898, 0.0
    %1917 = vadd.xlane.f32.xlu0 %v1916
    %v1918 = vpop.xlane.xlu0 %1917
    %v1919 = vsel %vm1165, %v1900, 0.0
    %1920 = vadd.xlane.f32.xlu0 %v1919
    %v1921 = vpop.xlane.xlu0 %1920
    %v1922 = vsel %vm1165, %v1902, 0.0
    %1923 = vadd.xlane.f32.xlu0 %v1922
    %v1924 = vpop.xlane.xlu0 %1923
    %v1925 = vsel %vm1165, %v1904, 0.0
    %1926 = vadd.xlane.f32.xlu0 %v1925
    %v1927 = vpop.xlane.xlu0 %1926
    %v1928 = vsel %vm1165, %v1906, 0.0
    %1929 = vadd.xlane.f32.xlu0 %v1928
    %v1930 = vpop.xlane.xlu0 %1929
    %v1931 = vrcp.pop %v1909
    %v1932 = vrcp.pop %v1912
    %v1933 = vrcp.pop %v1915
    %v1934 = vrcp.pop %v1918
    %v1935 = vrcp.pop %v1921
    %v1936 = vrcp.pop %v1924
    %v1937 = vrcp.pop %v1927
    %v1938 = vrcp.pop %v1930
    %v1939 = vmul.f32 %v1892, %v1931
    %v1940 = vmul.f32 %v1894, %v1932
    %v1941 = vmul.f32 %v1896, %v1933
    %v1942 = vmul.f32 %v1898, %v1934
    %v1943 = vmul.f32 %v1900, %v1935
    %v1944 = vmul.f32 %v1902, %v1936
    %v1945 = vmul.f32 %v1904, %v1937
    %v1946 = vmul.f32 %v1906, %v1938
    %v1948 = vsel %vm1165, %v1939, 0
    %1950 = vmatprep.subr.mxu0 0.0
    %1951 = vmatpush1.msra.mxu0 0.0
    %1952 = vmatprep.subr.mxu0 0.0
    %1953 = vmatpush1.msra.mxu0 0.0
    %1954 = vmatprep.subr.mxu0 0.0
    %1955 = vmatpush1.msra.mxu0 0.0
    %1956 = vmatprep.subr.mxu0 0.0
    %1957 = vmatpush1.msra.mxu0 0.0
    %1958 = vmatprep.subr.mxu0 0.0
    %1959 = vmatpush1.msra.mxu0 0.0
    %1960 = vmatprep.subr.mxu0 0.0
    %1961 = vmatpush1.msra.mxu0 0.0
    %1962 = vmatprep.subr.mxu0 0.0
    %1963 = vmatpush1.msra.mxu0 0.0
    %1964 = vmatprep.subr.mxu0 0.0
    %1965 = vmatpush1.msra.mxu0 0.0
    %1966 = vmatprep.subr.mxu0 0.0
    %1967 = vmatpush1.msra.mxu0 0.0
    %1968 = vmatprep.subr.mxu0 0.0
    %1969 = vmatpush1.msra.mxu0 0.0
    %1970 = vmatprep.subr.mxu0 0.0
    %1971 = vmatpush1.msra.mxu0 0.0
    %1972 = vmatprep.subr.mxu0 0.0
    %1973 = vmatpush1.msra.mxu0 0.0
    %1974 = vmatprep.subr.mxu0 0.0
    %1975 = vmatpush1.msra.mxu0 0.0
    %1976 = vmatprep.subr.mxu0 0.0
    %1977 = vmatpush1.msra.mxu0 0.0
    %1978 = vmatprep.subr.mxu0 0.0
    %1979 = vmatpush1.msra.mxu0 0.0
    %1980 = vmatprep.subr.mxu0 0.0
    %1981 = vmatpush1.msra.mxu0 %v1267
    %1982 = vmatprep.subr.mxu0 0.0
    %1983 = vmatpush2.msra.mxu0 0.0
    %1984 = vmatprep.subr.mxu0 0.0
    %1985 = vmatpush2.msra.mxu0 0.0
    %1986 = vmatprep.subr.mxu0 0.0
    %1987 = vmatpush2.msra.mxu0 0.0
    %1988 = vmatprep.subr.mxu0 0.0
    %1989 = vmatpush2.msra.mxu0 0.0
    %1990 = vmatprep.subr.mxu0 0.0
    %1991 = vmatpush2.msra.mxu0 0.0
    %1992 = vmatprep.subr.mxu0 0.0
    %1993 = vmatpush2.msra.mxu0 0.0
    %1994 = vmatprep.subr.mxu0 0.0
    %1995 = vmatpush2.msra.mxu0 0.0
    %1996 = vmatprep.subr.mxu0 0.0
    %1997 = vmatpush2.msra.mxu0 0.0
    %1998 = vmatprep.subr.mxu0 0.0
    %1999 = vmatpush2.msra.mxu0 0.0
    %2000 = vmatprep.subr.mxu0 0.0
    %2001 = vmatpush2.msra.mxu0 0.0
    %2002 = vmatprep.subr.mxu0 0.0
    %2003 = vmatpush2.msra.mxu0 0.0
    %2004 = vmatprep.subr.mxu0 0.0
    %2005 = vmatpush2.msra.mxu0 0.0
    %2006 = vmatprep.subr.mxu0 0.0
    %2007 = vmatpush2.msra.mxu0 0.0
    %2008 = vmatprep.subr.mxu0 0.0
    %2009 = vmatpush2.msra.mxu0 0.0
    %2010 = vmatprep.subr.mxu0 0.0
    %2011 = vmatpush2.msra.mxu0 0.0
    %2012 = vmatprep.subr.mxu0 0.0
    %2013 = vmatpush2.msra.mxu0 0.0
    %2014 = vmatprep.mubr.f32.mxu0 0.0
    %2015 = vmatmul.mubr.f32.gmra.mxu0 %v1948
    %v2016 = vpop.f32.mrf.mxu0
    %v2017 = vadd.f32 0.0, %v2016
    %v2018 = vpop.f32.mrf.mxu0
    %2019 = vdwg.mxu0
    %v2021 = vsel %vm1165, %v1940, 0
    %2023 = vmatprep.subr.mxu0 0.0
    %2024 = vmatpush1.msra.mxu0 0.0
    %2025 = vmatprep.subr.mxu0 0.0
    %2026 = vmatpush1.msra.mxu0 0.0
    %2027 = vmatprep.subr.mxu0 0.0
    %2028 = vmatpush1.msra.mxu0 0.0
    %2029 = vmatprep.subr.mxu0 0.0
    %2030 = vmatpush1.msra.mxu0 0.0
    %2031 = vmatprep.subr.mxu0 0.0
    %2032 = vmatpush1.msra.mxu0 0.0
    %2033 = vmatprep.subr.mxu0 0.0
    %2034 = vmatpush1.msra.mxu0 0.0
    %2035 = vmatprep.subr.mxu0 0.0
    %2036 = vmatpush1.msra.mxu0 0.0
    %2037 = vmatprep.subr.mxu0 0.0
    %2038 = vmatpush1.msra.mxu0 0.0
    %2039 = vmatprep.subr.mxu0 0.0
    %2040 = vmatpush1.msra.mxu0 0.0
    %2041 = vmatprep.subr.mxu0 0.0
    %2042 = vmatpush1.msra.mxu0 0.0
    %2043 = vmatprep.subr.mxu0 0.0
    %2044 = vmatpush1.msra.mxu0 0.0
    %2045 = vmatprep.subr.mxu0 0.0
    %2046 = vmatpush1.msra.mxu0 0.0
    %2047 = vmatprep.subr.mxu0 0.0
    %2048 = vmatpush1.msra.mxu0 0.0
    %2049 = vmatprep.subr.mxu0 0.0
    %2050 = vmatpush1.msra.mxu0 0.0
    %2051 = vmatprep.subr.mxu0 0.0
    %2052 = vmatpush1.msra.mxu0 0.0
    %2053 = vmatprep.subr.mxu0 0.0
    %2054 = vmatpush1.msra.mxu0 %v1268
    %2055 = vmatprep.subr.mxu0 0.0
    %2056 = vmatpush2.msra.mxu0 0.0
    %2057 = vmatprep.subr.mxu0 0.0
    %2058 = vmatpush2.msra.mxu0 0.0
    %2059 = vmatprep.subr.mxu0 0.0
    %2060 = vmatpush2.msra.mxu0 0.0
    %2061 = vmatprep.subr.mxu0 0.0
    %2062 = vmatpush2.msra.mxu0 0.0
    %2063 = vmatprep.subr.mxu0 0.0
    %2064 = vmatpush2.msra.mxu0 0.0
    %2065 = vmatprep.subr.mxu0 0.0
    %2066 = vmatpush2.msra.mxu0 0.0
    %2067 = vmatprep.subr.mxu0 0.0
    %2068 = vmatpush2.msra.mxu0 0.0
    %2069 = vmatprep.subr.mxu0 0.0
    %2070 = vmatpush2.msra.mxu0 0.0
    %2071 = vmatprep.subr.mxu0 0.0
    %2072 = vmatpush2.msra.mxu0 0.0
    %2073 = vmatprep.subr.mxu0 0.0
    %2074 = vmatpush2.msra.mxu0 0.0
    %2075 = vmatprep.subr.mxu0 0.0
    %2076 = vmatpush2.msra.mxu0 0.0
    %2077 = vmatprep.subr.mxu0 0.0
    %2078 = vmatpush2.msra.mxu0 0.0
    %2079 = vmatprep.subr.mxu0 0.0
    %2080 = vmatpush2.msra.mxu0 0.0
    %2081 = vmatprep.subr.mxu0 0.0
    %2082 = vmatpush2.msra.mxu0 0.0
    %2083 = vmatprep.subr.mxu0 0.0
    %2084 = vmatpush2.msra.mxu0 0.0
    %2085 = vmatprep.subr.mxu0 0.0
    %2086 = vmatpush2.msra.mxu0 0.0
    %2087 = vmatprep.mubr.f32.mxu0 0.0
    %2088 = vmatmul.mubr.f32.gmra.mxu0 %v2021
    %v2089 = vpop.f32.mrf.mxu0
    %v2090 = vadd.f32 0.0, %v2089
    %v2091 = vpop.f32.mrf.mxu0
    %2092 = vdwg.mxu0
    %v2094 = vsel %vm1165, %v1941, 0
    %2096 = vmatprep.subr.mxu0 0.0
    %2097 = vmatpush1.msra.mxu0 0.0
    %2098 = vmatprep.subr.mxu0 0.0
    %2099 = vmatpush1.msra.mxu0 0.0
    %2100 = vmatprep.subr.mxu0 0.0
    %2101 = vmatpush1.msra.mxu0 0.0
    %2102 = vmatprep.subr.mxu0 0.0
    %2103 = vmatpush1.msra.mxu0 0.0
    %2104 = vmatprep.subr.mxu0 0.0
    %2105 = vmatpush1.msra.mxu0 0.0
    %2106 = vmatprep.subr.mxu0 0.0
    %2107 = vmatpush1.msra.mxu0 0.0
    %2108 = vmatprep.subr.mxu0 0.0
    %2109 = vmatpush1.msra.mxu0 0.0
    %2110 = vmatprep.subr.mxu0 0.0
    %2111 = vmatpush1.msra.mxu0 0.0
    %2112 = vmatprep.subr.mxu0 0.0
    %2113 = vmatpush1.msra.mxu0 0.0
    %2114 = vmatprep.subr.mxu0 0.0
    %2115 = vmatpush1.msra.mxu0 0.0
    %2116 = vmatprep.subr.mxu0 0.0
    %2117 = vmatpush1.msra.mxu0 0.0
    %2118 = vmatprep.subr.mxu0 0.0
    %2119 = vmatpush1.msra.mxu0 0.0
    %2120 = vmatprep.subr.mxu0 0.0
    %2121 = vmatpush1.msra.mxu0 0.0
    %2122 = vmatprep.subr.mxu0 0.0
    %2123 = vmatpush1.msra.mxu0 0.0
    %2124 = vmatprep.subr.mxu0 0.0
    %2125 = vmatpush1.msra.mxu0 0.0
    %2126 = vmatprep.subr.mxu0 0.0
    %2127 = vmatpush1.msra.mxu0 %v1269
    %2128 = vmatprep.subr.mxu0 0.0
    %2129 = vmatpush2.msra.mxu0 0.0
    %2130 = vmatprep.subr.mxu0 0.0
    %2131 = vmatpush2.msra.mxu0 0.0
    %2132 = vmatprep.subr.mxu0 0.0
    %2133 = vmatpush2.msra.mxu0 0.0
    %2134 = vmatprep.subr.mxu0 0.0
    %2135 = vmatpush2.msra.mxu0 0.0
    %2136 = vmatprep.subr.mxu0 0.0
    %2137 = vmatpush2.msra.mxu0 0.0
    %2138 = vmatprep.subr.mxu0 0.0
    %2139 = vmatpush2.msra.mxu0 0.0
    %2140 = vmatprep.subr.mxu0 0.0
    %2141 = vmatpush2.msra.mxu0 0.0
    %2142 = vmatprep.subr.mxu0 0.0
    %2143 = vmatpush2.msra.mxu0 0.0
    %2144 = vmatprep.subr.mxu0 0.0
    %2145 = vmatpush2.msra.mxu0 0.0
    %2146 = vmatprep.subr.mxu0 0.0
    %2147 = vmatpush2.msra.mxu0 0.0
    %2148 = vmatprep.subr.mxu0 0.0
    %2149 = vmatpush2.msra.mxu0 0.0
    %2150 = vmatprep.subr.mxu0 0.0
    %2151 = vmatpush2.msra.mxu0 0.0
    %2152 = vmatprep.subr.mxu0 0.0
    %2153 = vmatpush2.msra.mxu0 0.0
    %2154 = vmatprep.subr.mxu0 0.0
    %2155 = vmatpush2.msra.mxu0 0.0
    %2156 = vmatprep.subr.mxu0 0.0
    %2157 = vmatpush2.msra.mxu0 0.0
    %2158 = vmatprep.subr.mxu0 0.0
    %2159 = vmatpush2.msra.mxu0 0.0
    %2160 = vmatprep.mubr.f32.mxu0 0.0
    %2161 = vmatmul.mubr.f32.gmra.mxu0 %v2094
    %v2162 = vpop.f32.mrf.mxu0
    %v2163 = vadd.f32 0.0, %v2162
    %v2164 = vpop.f32.mrf.mxu0
    %2165 = vdwg.mxu0
    %v2167 = vsel %vm1165, %v1942, 0
    %2169 = vmatprep.subr.mxu0 0.0
    %2170 = vmatpush1.msra.mxu0 0.0
    %2171 = vmatprep.subr.mxu0 0.0
    %2172 = vmatpush1.msra.mxu0 0.0
    %2173 = vmatprep.subr.mxu0 0.0
    %2174 = vmatpush1.msra.mxu0 0.0
    %2175 = vmatprep.subr.mxu0 0.0
    %2176 = vmatpush1.msra.mxu0 0.0
    %2177 = vmatprep.subr.mxu0 0.0
    %2178 = vmatpush1.msra.mxu0 0.0
    %2179 = vmatprep.subr.mxu0 0.0
    %2180 = vmatpush1.msra.mxu0 0.0
    %2181 = vmatprep.subr.mxu0 0.0
    %2182 = vmatpush1.msra.mxu0 0.0
    %2183 = vmatprep.subr.mxu0 0.0
    %2184 = vmatpush1.msra.mxu0 0.0
    %2185 = vmatprep.subr.mxu0 0.0
    %2186 = vmatpush1.msra.mxu0 0.0
    %2187 = vmatprep.subr.mxu0 0.0
    %2188 = vmatpush1.msra.mxu0 0.0
    %2189 = vmatprep.subr.mxu0 0.0
    %2190 = vmatpush1.msra.mxu0 0.0
    %2191 = vmatprep.subr.mxu0 0.0
    %2192 = vmatpush1.msra.mxu0 0.0
    %2193 = vmatprep.subr.mxu0 0.0
    %2194 = vmatpush1.msra.mxu0 0.0
    %2195 = vmatprep.subr.mxu0 0.0
    %2196 = vmatpush1.msra.mxu0 0.0
    %2197 = vmatprep.subr.mxu0 0.0
    %2198 = vmatpush1.msra.mxu0 0.0
    %2199 = vmatprep.subr.mxu0 0.0
    %2200 = vmatpush1.msra.mxu0 %v1270
    %2201 = vmatprep.subr.mxu0 0.0
    %2202 = vmatpush2.msra.mxu0 0.0
    %2203 = vmatprep.subr.mxu0 0.0
    %2204 = vmatpush2.msra.mxu0 0.0
    %2205 = vmatprep.subr.mxu0 0.0
    %2206 = vmatpush2.msra.mxu0 0.0
    %2207 = vmatprep.subr.mxu0 0.0
    %2208 = vmatpush2.msra.mxu0 0.0
    %2209 = vmatprep.subr.mxu0 0.0
    %2210 = vmatpush2.msra.mxu0 0.0
    %2211 = vmatprep.subr.mxu0 0.0
    %2212 = vmatpush2.msra.mxu0 0.0
    %2213 = vmatprep.subr.mxu0 0.0
    %2214 = vmatpush2.msra.mxu0 0.0
    %2215 = vmatprep.subr.mxu0 0.0
    %2216 = vmatpush2.msra.mxu0 0.0
    %2217 = vmatprep.subr.mxu0 0.0
    %2218 = vmatpush2.msra.mxu0 0.0
    %2219 = vmatprep.subr.mxu0 0.0
    %2220 = vmatpush2.msra.mxu0 0.0
    %2221 = vmatprep.subr.mxu0 0.0
    %2222 = vmatpush2.msra.mxu0 0.0
    %2223 = vmatprep.subr.mxu0 0.0
    %2224 = vmatpush2.msra.mxu0 0.0
    %2225 = vmatprep.subr.mxu0 0.0
    %2226 = vmatpush2.msra.mxu0 0.0
    %2227 = vmatprep.subr.mxu0 0.0
    %2228 = vmatpush2.msra.mxu0 0.0
    %2229 = vmatprep.subr.mxu0 0.0
    %2230 = vmatpush2.msra.mxu0 0.0
    %2231 = vmatprep.subr.mxu0 0.0
    %2232 = vmatpush2.msra.mxu0 0.0
    %2233 = vmatprep.mubr.f32.mxu0 0.0
    %2234 = vmatmul.mubr.f32.gmra.mxu0 %v2167
    %v2235 = vpop.f32.mrf.mxu0
    %v2236 = vadd.f32 0.0, %v2235
    %v2237 = vpop.f32.mrf.mxu0
    %2238 = vdwg.mxu0
    %v2240 = vsel %vm1165, %v1943, 0
    %2242 = vmatprep.subr.mxu0 0.0
    %2243 = vmatpush1.msra.mxu0 0.0
    %2244 = vmatprep.subr.mxu0 0.0
    %2245 = vmatpush1.msra.mxu0 0.0
    %2246 = vmatprep.subr.mxu0 0.0
    %2247 = vmatpush1.msra.mxu0 0.0
    %2248 = vmatprep.subr.mxu0 0.0
    %2249 = vmatpush1.msra.mxu0 0.0
    %2250 = vmatprep.subr.mxu0 0.0
    %2251 = vmatpush1.msra.mxu0 0.0
    %2252 = vmatprep.subr.mxu0 0.0
    %2253 = vmatpush1.msra.mxu0 0.0
    %2254 = vmatprep.subr.mxu0 0.0
    %2255 = vmatpush1.msra.mxu0 0.0
    %2256 = vmatprep.subr.mxu0 0.0
    %2257 = vmatpush1.msra.mxu0 0.0
    %2258 = vmatprep.subr.mxu0 0.0
    %2259 = vmatpush1.msra.mxu0 0.0
    %2260 = vmatprep.subr.mxu0 0.0
    %2261 = vmatpush1.msra.mxu0 0.0
    %2262 = vmatprep.subr.mxu0 0.0
    %2263 = vmatpush1.msra.mxu0 0.0
    %2264 = vmatprep.subr.mxu0 0.0
    %2265 = vmatpush1.msra.mxu0 0.0
    %2266 = vmatprep.subr.mxu0 0.0
    %2267 = vmatpush1.msra.mxu0 0.0
    %2268 = vmatprep.subr.mxu0 0.0
    %2269 = vmatpush1.msra.mxu0 0.0
    %2270 = vmatprep.subr.mxu0 0.0
    %2271 = vmatpush1.msra.mxu0 0.0
    %2272 = vmatprep.subr.mxu0 0.0
    %2273 = vmatpush1.msra.mxu0 %v1271
    %2274 = vmatprep.subr.mxu0 0.0
    %2275 = vmatpush2.msra.mxu0 0.0
    %2276 = vmatprep.subr.mxu0 0.0
    %2277 = vmatpush2.msra.mxu0 0.0
    %2278 = vmatprep.subr.mxu0 0.0
    %2279 = vmatpush2.msra.mxu0 0.0
    %2280 = vmatprep.subr.mxu0 0.0
    %2281 = vmatpush2.msra.mxu0 0.0
    %2282 = vmatprep.subr.mxu0 0.0
    %2283 = vmatpush2.msra.mxu0 0.0
    %2284 = vmatprep.subr.mxu0 0.0
    %2285 = vmatpush2.msra.mxu0 0.0
    %2286 = vmatprep.subr.mxu0 0.0
    %2287 = vmatpush2.msra.mxu0 0.0
    %2288 = vmatprep.subr.mxu0 0.0
    %2289 = vmatpush2.msra.mxu0 0.0
    %2290 = vmatprep.subr.mxu0 0.0
    %2291 = vmatpush2.msra.mxu0 0.0
    %2292 = vmatprep.subr.mxu0 0.0
    %2293 = vmatpush2.msra.mxu0 0.0
    %2294 = vmatprep.subr.mxu0 0.0
    %2295 = vmatpush2.msra.mxu0 0.0
    %2296 = vmatprep.subr.mxu0 0.0
    %2297 = vmatpush2.msra.mxu0 0.0
    %2298 = vmatprep.subr.mxu0 0.0
    %2299 = vmatpush2.msra.mxu0 0.0
    %2300 = vmatprep.subr.mxu0 0.0
    %2301 = vmatpush2.msra.mxu0 0.0
    %2302 = vmatprep.subr.mxu0 0.0
    %2303 = vmatpush2.msra.mxu0 0.0
    %2304 = vmatprep.subr.mxu0 0.0
    %2305 = vmatpush2.msra.mxu0 0.0
    %2306 = vmatprep.mubr.f32.mxu0 0.0
    %2307 = vmatmul.mubr.f32.gmra.mxu0 %v2240
    %v2308 = vpop.f32.mrf.mxu0
    %v2309 = vadd.f32 0.0, %v2308
    %v2310 = vpop.f32.mrf.mxu0
    %2311 = vdwg.mxu0
    %v2313 = vsel %vm1165, %v1944, 0
    %2315 = vmatprep.subr.mxu0 0.0
    %2316 = vmatpush1.msra.mxu0 0.0
    %2317 = vmatprep.subr.mxu0 0.0
    %2318 = vmatpush1.msra.mxu0 0.0
    %2319 = vmatprep.subr.mxu0 0.0
    %2320 = vmatpush1.msra.mxu0 0.0
    %2321 = vmatprep.subr.mxu0 0.0
    %2322 = vmatpush1.msra.mxu0 0.0
    %2323 = vmatprep.subr.mxu0 0.0
    %2324 = vmatpush1.msra.mxu0 0.0
    %2325 = vmatprep.subr.mxu0 0.0
    %2326 = vmatpush1.msra.mxu0 0.0
    %2327 = vmatprep.subr.mxu0 0.0
    %2328 = vmatpush1.msra.mxu0 0.0
    %2329 = vmatprep.subr.mxu0 0.0
    %2330 = vmatpush1.msra.mxu0 0.0
    %2331 = vmatprep.subr.mxu0 0.0
    %2332 = vmatpush1.msra.mxu0 0.0
    %2333 = vmatprep.subr.mxu0 0.0
    %2334 = vmatpush1.msra.mxu0 0.0
    %2335 = vmatprep.subr.mxu0 0.0
    %2336 = vmatpush1.msra.mxu0 0.0
    %2337 = vmatprep.subr.mxu0 0.0
    %2338 = vmatpush1.msra.mxu0 0.0
    %2339 = vmatprep.subr.mxu0 0.0
    %2340 = vmatpush1.msra.mxu0 0.0
    %2341 = vmatprep.subr.mxu0 0.0
    %2342 = vmatpush1.msra.mxu0 0.0
    %2343 = vmatprep.subr.mxu0 0.0
    %2344 = vmatpush1.msra.mxu0 0.0
    %2345 = vmatprep.subr.mxu0 0.0
    %2346 = vmatpush1.msra.mxu0 %v1272
    %2347 = vmatprep.subr.mxu0 0.0
    %2348 = vmatpush2.msra.mxu0 0.0
    %2349 = vmatprep.subr.mxu0 0.0
    %2350 = vmatpush2.msra.mxu0 0.0
    %2351 = vmatprep.subr.mxu0 0.0
    %2352 = vmatpush2.msra.mxu0 0.0
    %2353 = vmatprep.subr.mxu0 0.0
    %2354 = vmatpush2.msra.mxu0 0.0
    %2355 = vmatprep.subr.mxu0 0.0
    %2356 = vmatpush2.msra.mxu0 0.0
    %2357 = vmatprep.subr.mxu0 0.0
    %2358 = vmatpush2.msra.mxu0 0.0
    %2359 = vmatprep.subr.mxu0 0.0
    %2360 = vmatpush2.msra.mxu0 0.0
    %2361 = vmatprep.subr.mxu0 0.0
    %2362 = vmatpush2.msra.mxu0 0.0
    %2363 = vmatprep.subr.mxu0 0.0
    %2364 = vmatpush2.msra.mxu0 0.0
    %2365 = vmatprep.subr.mxu0 0.0
    %2366 = vmatpush2.msra.mxu0 0.0
    %2367 = vmatprep.subr.mxu0 0.0
    %2368 = vmatpush2.msra.mxu0 0.0
    %2369 = vmatprep.subr.mxu0 0.0
    %2370 = vmatpush2.msra.mxu0 0.0
    %2371 = vmatprep.subr.mxu0 0.0
    %2372 = vmatpush2.msra.mxu0 0.0
    %2373 = vmatprep.subr.mxu0 0.0
    %2374 = vmatpush2.msra.mxu0 0.0
    %2375 = vmatprep.subr.mxu0 0.0
    %2376 = vmatpush2.msra.mxu0 0.0
    %2377 = vmatprep.subr.mxu0 0.0
    %2378 = vmatpush2.msra.mxu0 0.0
    %2379 = vmatprep.mubr.f32.mxu0 0.0
    %2380 = vmatmul.mubr.f32.gmra.mxu0 %v2313
    %v2381 = vpop.f32.mrf.mxu0
    %v2382 = vadd.f32 0.0, %v2381
    %v2383 = vpop.f32.mrf.mxu0
    %2384 = vdwg.mxu0
    %v2386 = vsel %vm1165, %v1945, 0
    %2388 = vmatprep.subr.mxu0 0.0
    %2389 = vmatpush1.msra.mxu0 0.0
    %2390 = vmatprep.subr.mxu0 0.0
    %2391 = vmatpush1.msra.mxu0 0.0
    %2392 = vmatprep.subr.mxu0 0.0
    %2393 = vmatpush1.msra.mxu0 0.0
    %2394 = vmatprep.subr.mxu0 0.0
    %2395 = vmatpush1.msra.mxu0 0.0
    %2396 = vmatprep.subr.mxu0 0.0
    %2397 = vmatpush1.msra.mxu0 0.0
    %2398 = vmatprep.subr.mxu0 0.0
    %2399 = vmatpush1.msra.mxu0 0.0
    %2400 = vmatprep.subr.mxu0 0.0
    %2401 = vmatpush1.msra.mxu0 0.0
    %2402 = vmatprep.subr.mxu0 0.0
    %2403 = vmatpush1.msra.mxu0 0.0
    %2404 = vmatprep.subr.mxu0 0.0
    %2405 = vmatpush1.msra.mxu0 0.0
    %2406 = vmatprep.subr.mxu0 0.0
    %2407 = vmatpush1.msra.mxu0 0.0
    %2408 = vmatprep.subr.mxu0 0.0
    %2409 = vmatpush1.msra.mxu0 0.0
    %2410 = vmatprep.subr.mxu0 0.0
    %2411 = vmatpush1.msra.mxu0 0.0
    %2412 = vmatprep.subr.mxu0 0.0
    %2413 = vmatpush1.msra.mxu0 0.0
    %2414 = vmatprep.subr.mxu0 0.0
    %2415 = vmatpush1.msra.mxu0 0.0
    %2416 = vmatprep.subr.mxu0 0.0
    %2417 = vmatpush1.msra.mxu0 0.0
    %2418 = vmatprep.subr.mxu0 0.0
    %2419 = vmatpush1.msra.mxu0 %v1273
    %2420 = vmatprep.subr.mxu0 0.0
    %2421 = vmatpush2.msra.mxu0 0.0
    %2422 = vmatprep.subr.mxu0 0.0
    %2423 = vmatpush2.msra.mxu0 0.0
    %2424 = vmatprep.subr.mxu0 0.0
    %2425 = vmatpush2.msra.mxu0 0.0
    %2426 = vmatprep.subr.mxu0 0.0
    %2427 = vmatpush2.msra.mxu0 0.0
    %2428 = vmatprep.subr.mxu0 0.0
    %2429 = vmatpush2.msra.mxu0 0.0
    %2430 = vmatprep.subr.mxu0 0.0
    %2431 = vmatpush2.msra.mxu0 0.0
    %2432 = vmatprep.subr.mxu0 0.0
    %2433 = vmatpush2.msra.mxu0 0.0
    %2434 = vmatprep.subr.mxu0 0.0
    %2435 = vmatpush2.msra.mxu0 0.0
    %2436 = vmatprep.subr.mxu0 0.0
    %2437 = vmatpush2.msra.mxu0 0.0
    %2438 = vmatprep.subr.mxu0 0.0
    %2439 = vmatpush2.msra.mxu0 0.0
    %2440 = vmatprep.subr.mxu0 0.0
    %2441 = vmatpush2.msra.mxu0 0.0
    %2442 = vmatprep.subr.mxu0 0.0
    %2443 = vmatpush2.msra.mxu0 0.0
    %2444 = vmatprep.subr.mxu0 0.0
    %2445 = vmatpush2.msra.mxu0 0.0
    %2446 = vmatprep.subr.mxu0 0.0
    %2447 = vmatpush2.msra.mxu0 0.0
    %2448 = vmatprep.subr.mxu0 0.0
    %2449 = vmatpush2.msra.mxu0 0.0
    %2450 = vmatprep.subr.mxu0 0.0
    %2451 = vmatpush2.msra.mxu0 0.0
    %2452 = vmatprep.mubr.f32.mxu0 0.0
    %2453 = vmatmul.mubr.f32.gmra.mxu0 %v2386
    %v2454 = vpop.f32.mrf.mxu0
    %v2455 = vadd.f32 0.0, %v2454
    %v2456 = vpop.f32.mrf.mxu0
    %2457 = vdwg.mxu0
    %v2459 = vsel %vm1165, %v1946, 0
    %2461 = vmatprep.subr.mxu0 0.0
    %2462 = vmatpush1.msra.mxu0 0.0
    %2463 = vmatprep.subr.mxu0 0.0
    %2464 = vmatpush1.msra.mxu0 0.0
    %2465 = vmatprep.subr.mxu0 0.0
    %2466 = vmatpush1.msra.mxu0 0.0
    %2467 = vmatprep.subr.mxu0 0.0
    %2468 = vmatpush1.msra.mxu0 0.0
    %2469 = vmatprep.subr.mxu0 0.0
    %2470 = vmatpush1.msra.mxu0 0.0
    %2471 = vmatprep.subr.mxu0 0.0
    %2472 = vmatpush1.msra.mxu0 0.0
    %2473 = vmatprep.subr.mxu0 0.0
    %2474 = vmatpush1.msra.mxu0 0.0
    %2475 = vmatprep.subr.mxu0 0.0
    %2476 = vmatpush1.msra.mxu0 0.0
    %2477 = vmatprep.subr.mxu0 0.0
    %2478 = vmatpush1.msra.mxu0 0.0
    %2479 = vmatprep.subr.mxu0 0.0
    %2480 = vmatpush1.msra.mxu0 0.0
    %2481 = vmatprep.subr.mxu0 0.0
    %2482 = vmatpush1.msra.mxu0 0.0
    %2483 = vmatprep.subr.mxu0 0.0
    %2484 = vmatpush1.msra.mxu0 0.0
    %2485 = vmatprep.subr.mxu0 0.0
    %2486 = vmatpush1.msra.mxu0 0.0
    %2487 = vmatprep.subr.mxu0 0.0
    %2488 = vmatpush1.msra.mxu0 0.0
    %2489 = vmatprep.subr.mxu0 0.0
    %2490 = vmatpush1.msra.mxu0 0.0
    %2491 = vmatprep.subr.mxu0 0.0
    %2492 = vmatpush1.msra.mxu0 %v1274
    %2493 = vmatprep.subr.mxu0 0.0
    %2494 = vmatpush2.msra.mxu0 0.0
    %2495 = vmatprep.subr.mxu0 0.0
    %2496 = vmatpush2.msra.mxu0 0.0
    %2497 = vmatprep.subr.mxu0 0.0
    %2498 = vmatpush2.msra.mxu0 0.0
    %2499 = vmatprep.subr.mxu0 0.0
    %2500 = vmatpush2.msra.mxu0 0.0
    %2501 = vmatprep.subr.mxu0 0.0
    %2502 = vmatpush2.msra.mxu0 0.0
    %2503 = vmatprep.subr.mxu0 0.0
    %2504 = vmatpush2.msra.mxu0 0.0
    %2505 = vmatprep.subr.mxu0 0.0
    %2506 = vmatpush2.msra.mxu0 0.0
    %2507 = vmatprep.subr.mxu0 0.0
    %2508 = vmatpush2.msra.mxu0 0.0
    %2509 = vmatprep.subr.mxu0 0.0
    %2510 = vmatpush2.msra.mxu0 0.0
    %2511 = vmatprep.subr.mxu0 0.0
    %2512 = vmatpush2.msra.mxu0 0.0
    %2513 = vmatprep.subr.mxu0 0.0
    %2514 = vmatpush2.msra.mxu0 0.0
    %2515 = vmatprep.subr.mxu0 0.0
    %2516 = vmatpush2.msra.mxu0 0.0
    %2517 = vmatprep.subr.mxu0 0.0
    %2518 = vmatpush2.msra.mxu0 0.0
    %2519 = vmatprep.subr.mxu0 0.0
    %2520 = vmatpush2.msra.mxu0 0.0
    %2521 = vmatprep.subr.mxu0 0.0
    %2522 = vmatpush2.msra.mxu0 0.0
    %2523 = vmatprep.subr.mxu0 0.0
    %2524 = vmatpush2.msra.mxu0 0.0
    %2525 = vmatprep.mubr.f32.mxu0 0.0
    %2526 = vmatmul.mubr.f32.gmra.mxu0 %v2459
    %v2527 = vpop.f32.mrf.mxu0
    %v2528 = vadd.f32 0.0, %v2527
    %v2529 = vpop.f32.mrf.mxu0
    %2530 = vdwg.mxu0
    %v2532 = vsel %vm1165, %v1246, 0
    %2534 = vmatprep.subr.mxu0 0.0
    %2535 = vmatpush1.msra.mxu0 0.0
    %2536 = vmatprep.subr.mxu0 0.0
    %2537 = vmatpush1.msra.mxu0 0.0
    %2538 = vmatprep.subr.mxu0 0.0
    %2539 = vmatpush1.msra.mxu0 0.0
    %2540 = vmatprep.subr.mxu0 0.0
    %2541 = vmatpush1.msra.mxu0 0.0
    %2542 = vmatprep.subr.mxu0 0.0
    %2543 = vmatpush1.msra.mxu0 0.0
    %2544 = vmatprep.subr.mxu0 0.0
    %2545 = vmatpush1.msra.mxu0 0.0
    %2546 = vmatprep.subr.mxu0 0.0
    %2547 = vmatpush1.msra.mxu0 0.0
    %2548 = vmatprep.subr.mxu0 0.0
    %2549 = vmatpush1.msra.mxu0 0.0
    %2550 = vmatprep.subr.mxu0 0.0
    %2551 = vmatpush1.msra.mxu0 0.0
    %2552 = vmatprep.subr.mxu0 0.0
    %2553 = vmatpush1.msra.mxu0 0.0
    %2554 = vmatprep.subr.mxu0 0.0
    %2555 = vmatpush1.msra.mxu0 0.0
    %2556 = vmatprep.subr.mxu0 0.0
    %2557 = vmatpush1.msra.mxu0 0.0
    %2558 = vmatprep.subr.mxu0 0.0
    %2559 = vmatpush1.msra.mxu0 0.0
    %2560 = vmatprep.subr.mxu0 0.0
    %2561 = vmatpush1.msra.mxu0 0.0
    %2562 = vmatprep.subr.mxu0 0.0
    %2563 = vmatpush1.msra.mxu0 0.0
    %2564 = vmatprep.subr.mxu0 0.0
    %2565 = vmatpush1.msra.mxu0 %v459
    %2566 = vmatprep.subr.mxu0 0.0
    %2567 = vmatpush2.msra.mxu0 0.0
    %2568 = vmatprep.subr.mxu0 0.0
    %2569 = vmatpush2.msra.mxu0 0.0
    %2570 = vmatprep.subr.mxu0 0.0
    %2571 = vmatpush2.msra.mxu0 0.0
    %2572 = vmatprep.subr.mxu0 0.0
    %2573 = vmatpush2.msra.mxu0 0.0
    %2574 = vmatprep.subr.mxu0 0.0
    %2575 = vmatpush2.msra.mxu0 0.0
    %2576 = vmatprep.subr.mxu0 0.0
    %2577 = vmatpush2.msra.mxu0 0.0
    %2578 = vmatprep.subr.mxu0 0.0
    %2579 = vmatpush2.msra.mxu0 0.0
    %2580 = vmatprep.subr.mxu0 0.0
    %2581 = vmatpush2.msra.mxu0 0.0
    %2582 = vmatprep.subr.mxu0 0.0
    %2583 = vmatpush2.msra.mxu0 0.0
    %2584 = vmatprep.subr.mxu0 0.0
    %2585 = vmatpush2.msra.mxu0 0.0
    %2586 = vmatprep.subr.mxu0 0.0
    %2587 = vmatpush2.msra.mxu0 0.0
    %2588 = vmatprep.subr.mxu0 0.0
    %2589 = vmatpush2.msra.mxu0 0.0
    %2590 = vmatprep.subr.mxu0 0.0
    %2591 = vmatpush2.msra.mxu0 0.0
    %2592 = vmatprep.subr.mxu0 0.0
    %2593 = vmatpush2.msra.mxu0 0.0
    %2594 = vmatprep.subr.mxu0 0.0
    %2595 = vmatpush2.msra.mxu0 0.0
    %2596 = vmatprep.subr.mxu0 0.0
    %2597 = vmatpush2.msra.mxu0 0.0
    %2598 = vmatprep.mubr.f32.mxu0 0.0
    %2599 = vmatmul.mubr.f32.gmra.mxu0 %v2532
    %v2600 = vpop.f32.mrf.mxu0
    %v2601 = vadd.f32 %v2017, %v2600
    %v2602 = vpop.f32.mrf.mxu0
    %2603 = vdwg.mxu0
    %v2605 = vsel %vm1165, %v1247, 0
    %2607 = vmatprep.subr.mxu0 0.0
    %2608 = vmatpush1.msra.mxu0 0.0
    %2609 = vmatprep.subr.mxu0 0.0
    %2610 = vmatpush1.msra.mxu0 0.0
    %2611 = vmatprep.subr.mxu0 0.0
    %2612 = vmatpush1.msra.mxu0 0.0
    %2613 = vmatprep.subr.mxu0 0.0
    %2614 = vmatpush1.msra.mxu0 0.0
    %2615 = vmatprep.subr.mxu0 0.0
    %2616 = vmatpush1.msra.mxu0 0.0
    %2617 = vmatprep.subr.mxu0 0.0
    %2618 = vmatpush1.msra.mxu0 0.0
    %2619 = vmatprep.subr.mxu0 0.0
    %2620 = vmatpush1.msra.mxu0 0.0
    %2621 = vmatprep.subr.mxu0 0.0
    %2622 = vmatpush1.msra.mxu0 0.0
    %2623 = vmatprep.subr.mxu0 0.0
    %2624 = vmatpush1.msra.mxu0 0.0
    %2625 = vmatprep.subr.mxu0 0.0
    %2626 = vmatpush1.msra.mxu0 0.0
    %2627 = vmatprep.subr.mxu0 0.0
    %2628 = vmatpush1.msra.mxu0 0.0
    %2629 = vmatprep.subr.mxu0 0.0
    %2630 = vmatpush1.msra.mxu0 0.0
    %2631 = vmatprep.subr.mxu0 0.0
    %2632 = vmatpush1.msra.mxu0 0.0
    %2633 = vmatprep.subr.mxu0 0.0
    %2634 = vmatpush1.msra.mxu0 0.0
    %2635 = vmatprep.subr.mxu0 0.0
    %2636 = vmatpush1.msra.mxu0 0.0
    %2637 = vmatprep.subr.mxu0 0.0
    %2638 = vmatpush1.msra.mxu0 %v460
    %2639 = vmatprep.subr.mxu0 0.0
    %2640 = vmatpush2.msra.mxu0 0.0
    %2641 = vmatprep.subr.mxu0 0.0
    %2642 = vmatpush2.msra.mxu0 0.0
    %2643 = vmatprep.subr.mxu0 0.0
    %2644 = vmatpush2.msra.mxu0 0.0
    %2645 = vmatprep.subr.mxu0 0.0
    %2646 = vmatpush2.msra.mxu0 0.0
    %2647 = vmatprep.subr.mxu0 0.0
    %2648 = vmatpush2.msra.mxu0 0.0
    %2649 = vmatprep.subr.mxu0 0.0
    %2650 = vmatpush2.msra.mxu0 0.0
    %2651 = vmatprep.subr.mxu0 0.0
    %2652 = vmatpush2.msra.mxu0 0.0
    %2653 = vmatprep.subr.mxu0 0.0
    %2654 = vmatpush2.msra.mxu0 0.0
    %2655 = vmatprep.subr.mxu0 0.0
    %2656 = vmatpush2.msra.mxu0 0.0
    %2657 = vmatprep.subr.mxu0 0.0
    %2658 = vmatpush2.msra.mxu0 0.0
    %2659 = vmatprep.subr.mxu0 0.0
    %2660 = vmatpush2.msra.mxu0 0.0
    %2661 = vmatprep.subr.mxu0 0.0
    %2662 = vmatpush2.msra.mxu0 0.0
    %2663 = vmatprep.subr.mxu0 0.0
    %2664 = vmatpush2.msra.mxu0 0.0
    %2665 = vmatprep.subr.mxu0 0.0
    %2666 = vmatpush2.msra.mxu0 0.0
    %2667 = vmatprep.subr.mxu0 0.0
    %2668 = vmatpush2.msra.mxu0 0.0
    %2669 = vmatprep.subr.mxu0 0.0
    %2670 = vmatpush2.msra.mxu0 0.0
    %2671 = vmatprep.mubr.f32.mxu0 0.0
    %2672 = vmatmul.mubr.f32.gmra.mxu0 %v2605
    %v2673 = vpop.f32.mrf.mxu0
    %v2674 = vadd.f32 %v2090, %v2673
    %v2675 = vpop.f32.mrf.mxu0
    %2676 = vdwg.mxu0
    %v2678 = vsel %vm1165, %v1248, 0
    %2680 = vmatprep.subr.mxu0 0.0
    %2681 = vmatpush1.msra.mxu0 0.0
    %2682 = vmatprep.subr.mxu0 0.0
    %2683 = vmatpush1.msra.mxu0 0.0
    %2684 = vmatprep.subr.mxu0 0.0
    %2685 = vmatpush1.msra.mxu0 0.0
    %2686 = vmatprep.subr.mxu0 0.0
    %2687 = vmatpush1.msra.mxu0 0.0
    %2688 = vmatprep.subr.mxu0 0.0
    %2689 = vmatpush1.msra.mxu0 0.0
    %2690 = vmatprep.subr.mxu0 0.0
    %2691 = vmatpush1.msra.mxu0 0.0
    %2692 = vmatprep.subr.mxu0 0.0
    %2693 = vmatpush1.msra.mxu0 0.0
    %2694 = vmatprep.subr.mxu0 0.0
    %2695 = vmatpush1.msra.mxu0 0.0
    %2696 = vmatprep.subr.mxu0 0.0
    %2697 = vmatpush1.msra.mxu0 0.0
    %2698 = vmatprep.subr.mxu0 0.0
    %2699 = vmatpush1.msra.mxu0 0.0
    %2700 = vmatprep.subr.mxu0 0.0
    %2701 = vmatpush1.msra.mxu0 0.0
    %2702 = vmatprep.subr.mxu0 0.0
    %2703 = vmatpush1.msra.mxu0 0.0
    %2704 = vmatprep.subr.mxu0 0.0
    %2705 = vmatpush1.msra.mxu0 0.0
    %2706 = vmatprep.subr.mxu0 0.0
    %2707 = vmatpush1.msra.mxu0 0.0
    %2708 = vmatprep.subr.mxu0 0.0
    %2709 = vmatpush1.msra.mxu0 0.0
    %2710 = vmatprep.subr.mxu0 0.0
    %2711 = vmatpush1.msra.mxu0 %v461
    %2712 = vmatprep.subr.mxu0 0.0
    %2713 = vmatpush2.msra.mxu0 0.0
    %2714 = vmatprep.subr.mxu0 0.0
    %2715 = vmatpush2.msra.mxu0 0.0
    %2716 = vmatprep.subr.mxu0 0.0
    %2717 = vmatpush2.msra.mxu0 0.0
    %2718 = vmatprep.subr.mxu0 0.0
    %2719 = vmatpush2.msra.mxu0 0.0
    %2720 = vmatprep.subr.mxu0 0.0
    %2721 = vmatpush2.msra.mxu0 0.0
    %2722 = vmatprep.subr.mxu0 0.0
    %2723 = vmatpush2.msra.mxu0 0.0
    %2724 = vmatprep.subr.mxu0 0.0
    %2725 = vmatpush2.msra.mxu0 0.0
    %2726 = vmatprep.subr.mxu0 0.0
    %2727 = vmatpush2.msra.mxu0 0.0
    %2728 = vmatprep.subr.mxu0 0.0
    %2729 = vmatpush2.msra.mxu0 0.0
    %2730 = vmatprep.subr.mxu0 0.0
    %2731 = vmatpush2.msra.mxu0 0.0
    %2732 = vmatprep.subr.mxu0 0.0
    %2733 = vmatpush2.msra.mxu0 0.0
    %2734 = vmatprep.subr.mxu0 0.0
    %2735 = vmatpush2.msra.mxu0 0.0
    %2736 = vmatprep.subr.mxu0 0.0
    %2737 = vmatpush2.msra.mxu0 0.0
    %2738 = vmatprep.subr.mxu0 0.0
    %2739 = vmatpush2.msra.mxu0 0.0
    %2740 = vmatprep.subr.mxu0 0.0
    %2741 = vmatpush2.msra.mxu0 0.0
    %2742 = vmatprep.subr.mxu0 0.0
    %2743 = vmatpush2.msra.mxu0 0.0
    %2744 = vmatprep.mubr.f32.mxu0 0.0
    %2745 = vmatmul.mubr.f32.gmra.mxu0 %v2678
    %v2746 = vpop.f32.mrf.mxu0
    %v2747 = vadd.f32 %v2163, %v2746
    %v2748 = vpop.f32.mrf.mxu0
    %2749 = vdwg.mxu0
    %v2751 = vsel %vm1165, %v1249, 0
    %2753 = vmatprep.subr.mxu0 0.0
    %2754 = vmatpush1.msra.mxu0 0.0
    %2755 = vmatprep.subr.mxu0 0.0
    %2756 = vmatpush1.msra.mxu0 0.0
    %2757 = vmatprep.subr.mxu0 0.0
    %2758 = vmatpush1.msra.mxu0 0.0
    %2759 = vmatprep.subr.mxu0 0.0
    %2760 = vmatpush1.msra.mxu0 0.0
    %2761 = vmatprep.subr.mxu0 0.0
    %2762 = vmatpush1.msra.mxu0 0.0
    %2763 = vmatprep.subr.mxu0 0.0
    %2764 = vmatpush1.msra.mxu0 0.0
    %2765 = vmatprep.subr.mxu0 0.0
    %2766 = vmatpush1.msra.mxu0 0.0
    %2767 = vmatprep.subr.mxu0 0.0
    %2768 = vmatpush1.msra.mxu0 0.0
    %2769 = vmatprep.subr.mxu0 0.0
    %2770 = vmatpush1.msra.mxu0 0.0
    %2771 = vmatprep.subr.mxu0 0.0
    %2772 = vmatpush1.msra.mxu0 0.0
    %2773 = vmatprep.subr.mxu0 0.0
    %2774 = vmatpush1.msra.mxu0 0.0
    %2775 = vmatprep.subr.mxu0 0.0
    %2776 = vmatpush1.msra.mxu0 0.0
    %2777 = vmatprep.subr.mxu0 0.0
    %2778 = vmatpush1.msra.mxu0 0.0
    %2779 = vmatprep.subr.mxu0 0.0
    %2780 = vmatpush1.msra.mxu0 0.0
    %2781 = vmatprep.subr.mxu0 0.0
    %2782 = vmatpush1.msra.mxu0 0.0
    %2783 = vmatprep.subr.mxu0 0.0
    %2784 = vmatpush1.msra.mxu0 %v462
    %2785 = vmatprep.subr.mxu0 0.0
    %2786 = vmatpush2.msra.mxu0 0.0
    %2787 = vmatprep.subr.mxu0 0.0
    %2788 = vmatpush2.msra.mxu0 0.0
    %2789 = vmatprep.subr.mxu0 0.0
    %2790 = vmatpush2.msra.mxu0 0.0
    %2791 = vmatprep.subr.mxu0 0.0
    %2792 = vmatpush2.msra.mxu0 0.0
    %2793 = vmatprep.subr.mxu0 0.0
    %2794 = vmatpush2.msra.mxu0 0.0
    %2795 = vmatprep.subr.mxu0 0.0
    %2796 = vmatpush2.msra.mxu0 0.0
    %2797 = vmatprep.subr.mxu0 0.0
    %2798 = vmatpush2.msra.mxu0 0.0
    %2799 = vmatprep.subr.mxu0 0.0
    %2800 = vmatpush2.msra.mxu0 0.0
    %2801 = vmatprep.subr.mxu0 0.0
    %2802 = vmatpush2.msra.mxu0 0.0
    %2803 = vmatprep.subr.mxu0 0.0
    %2804 = vmatpush2.msra.mxu0 0.0
    %2805 = vmatprep.subr.mxu0 0.0
    %2806 = vmatpush2.msra.mxu0 0.0
    %2807 = vmatprep.subr.mxu0 0.0
    %2808 = vmatpush2.msra.mxu0 0.0
    %2809 = vmatprep.subr.mxu0 0.0
    %2810 = vmatpush2.msra.mxu0 0.0
    %2811 = vmatprep.subr.mxu0 0.0
    %2812 = vmatpush2.msra.mxu0 0.0
    %2813 = vmatprep.subr.mxu0 0.0
    %2814 = vmatpush2.msra.mxu0 0.0
    %2815 = vmatprep.subr.mxu0 0.0
    %2816 = vmatpush2.msra.mxu0 0.0
    %2817 = vmatprep.mubr.f32.mxu0 0.0
    %2818 = vmatmul.mubr.f32.gmra.mxu0 %v2751
    %v2819 = vpop.f32.mrf.mxu0
    %v2820 = vadd.f32 %v2236, %v2819
    %v2821 = vpop.f32.mrf.mxu0
    %2822 = vdwg.mxu0
    %v2824 = vsel %vm1165, %v1250, 0
    %2826 = vmatprep.subr.mxu0 0.0
    %2827 = vmatpush1.msra.mxu0 0.0
    %2828 = vmatprep.subr.mxu0 0.0
    %2829 = vmatpush1.msra.mxu0 0.0
    %2830 = vmatprep.subr.mxu0 0.0
    %2831 = vmatpush1.msra.mxu0 0.0
    %2832 = vmatprep.subr.mxu0 0.0
    %2833 = vmatpush1.msra.mxu0 0.0
    %2834 = vmatprep.subr.mxu0 0.0
    %2835 = vmatpush1.msra.mxu0 0.0
    %2836 = vmatprep.subr.mxu0 0.0
    %2837 = vmatpush1.msra.mxu0 0.0
    %2838 = vmatprep.subr.mxu0 0.0
    %2839 = vmatpush1.msra.mxu0 0.0
    %2840 = vmatprep.subr.mxu0 0.0
    %2841 = vmatpush1.msra.mxu0 0.0
    %2842 = vmatprep.subr.mxu0 0.0
    %2843 = vmatpush1.msra.mxu0 0.0
    %2844 = vmatprep.subr.mxu0 0.0
    %2845 = vmatpush1.msra.mxu0 0.0
    %2846 = vmatprep.subr.mxu0 0.0
    %2847 = vmatpush1.msra.mxu0 0.0
    %2848 = vmatprep.subr.mxu0 0.0
    %2849 = vmatpush1.msra.mxu0 0.0
    %2850 = vmatprep.subr.mxu0 0.0
    %2851 = vmatpush1.msra.mxu0 0.0
    %2852 = vmatprep.subr.mxu0 0.0
    %2853 = vmatpush1.msra.mxu0 0.0
    %2854 = vmatprep.subr.mxu0 0.0
    %2855 = vmatpush1.msra.mxu0 0.0
    %2856 = vmatprep.subr.mxu0 0.0
    %2857 = vmatpush1.msra.mxu0 %v463
    %2858 = vmatprep.subr.mxu0 0.0
    %2859 = vmatpush2.msra.mxu0 0.0
    %2860 = vmatprep.subr.mxu0 0.0
    %2861 = vmatpush2.msra.mxu0 0.0
    %2862 = vmatprep.subr.mxu0 0.0
    %2863 = vmatpush2.msra.mxu0 0.0
    %2864 = vmatprep.subr.mxu0 0.0
    %2865 = vmatpush2.msra.mxu0 0.0
    %2866 = vmatprep.subr.mxu0 0.0
    %2867 = vmatpush2.msra.mxu0 0.0
    %2868 = vmatprep.subr.mxu0 0.0
    %2869 = vmatpush2.msra.mxu0 0.0
    %2870 = vmatprep.subr.mxu0 0.0
    %2871 = vmatpush2.msra.mxu0 0.0
    %2872 = vmatprep.subr.mxu0 0.0
    %2873 = vmatpush2.msra.mxu0 0.0
    %2874 = vmatprep.subr.mxu0 0.0
    %2875 = vmatpush2.msra.mxu0 0.0
    %2876 = vmatprep.subr.mxu0 0.0
    %2877 = vmatpush2.msra.mxu0 0.0
    %2878 = vmatprep.subr.mxu0 0.0
    %2879 = vmatpush2.msra.mxu0 0.0
    %2880 = vmatprep.subr.mxu0 0.0
    %2881 = vmatpush2.msra.mxu0 0.0
    %2882 = vmatprep.subr.mxu0 0.0
    %2883 = vmatpush2.msra.mxu0 0.0
    %2884 = vmatprep.subr.mxu0 0.0
    %2885 = vmatpush2.msra.mxu0 0.0
    %2886 = vmatprep.subr.mxu0 0.0
    %2887 = vmatpush2.msra.mxu0 0.0
    %2888 = vmatprep.subr.mxu0 0.0
    %2889 = vmatpush2.msra.mxu0 0.0
    %2890 = vmatprep.mubr.f32.mxu0 0.0
    %2891 = vmatmul.mubr.f32.gmra.mxu0 %v2824
    %v2892 = vpop.f32.mrf.mxu0
    %v2893 = vadd.f32 %v2309, %v2892
    %v2894 = vpop.f32.mrf.mxu0
    %2895 = vdwg.mxu0
    %v2897 = vsel %vm1165, %v1251, 0
    %2899 = vmatprep.subr.mxu0 0.0
    %2900 = vmatpush1.msra.mxu0 0.0
    %2901 = vmatprep.subr.mxu0 0.0
    %2902 = vmatpush1.msra.mxu0 0.0
    %2903 = vmatprep.subr.mxu0 0.0
    %2904 = vmatpush1.msra.mxu0 0.0
    %2905 = vmatprep.subr.mxu0 0.0
    %2906 = vmatpush1.msra.mxu0 0.0
    %2907 = vmatprep.subr.mxu0 0.0
    %2908 = vmatpush1.msra.mxu0 0.0
    %2909 = vmatprep.subr.mxu0 0.0
    %2910 = vmatpush1.msra.mxu0 0.0
    %2911 = vmatprep.subr.mxu0 0.0
    %2912 = vmatpush1.msra.mxu0 0.0
    %2913 = vmatprep.subr.mxu0 0.0
    %2914 = vmatpush1.msra.mxu0 0.0
    %2915 = vmatprep.subr.mxu0 0.0
    %2916 = vmatpush1.msra.mxu0 0.0
    %2917 = vmatprep.subr.mxu0 0.0
    %2918 = vmatpush1.msra.mxu0 0.0
    %2919 = vmatprep.subr.mxu0 0.0
    %2920 = vmatpush1.msra.mxu0 0.0
    %2921 = vmatprep.subr.mxu0 0.0
    %2922 = vmatpush1.msra.mxu0 0.0
    %2923 = vmatprep.subr.mxu0 0.0
    %2924 = vmatpush1.msra.mxu0 0.0
    %2925 = vmatprep.subr.mxu0 0.0
    %2926 = vmatpush1.msra.mxu0 0.0
    %2927 = vmatprep.subr.mxu0 0.0
    %2928 = vmatpush1.msra.mxu0 0.0
    %2929 = vmatprep.subr.mxu0 0.0
    %2930 = vmatpush1.msra.mxu0 %v464
    %2931 = vmatprep.subr.mxu0 0.0
    %2932 = vmatpush2.msra.mxu0 0.0
    %2933 = vmatprep.subr.mxu0 0.0
    %2934 = vmatpush2.msra.mxu0 0.0
    %2935 = vmatprep.subr.mxu0 0.0
    %2936 = vmatpush2.msra.mxu0 0.0
    %2937 = vmatprep.subr.mxu0 0.0
    %2938 = vmatpush2.msra.mxu0 0.0
    %2939 = vmatprep.subr.mxu0 0.0
    %2940 = vmatpush2.msra.mxu0 0.0
    %2941 = vmatprep.subr.mxu0 0.0
    %2942 = vmatpush2.msra.mxu0 0.0
    %2943 = vmatprep.subr.mxu0 0.0
    %2944 = vmatpush2.msra.mxu0 0.0
    %2945 = vmatprep.subr.mxu0 0.0
    %2946 = vmatpush2.msra.mxu0 0.0
    %2947 = vmatprep.subr.mxu0 0.0
    %2948 = vmatpush2.msra.mxu0 0.0
    %2949 = vmatprep.subr.mxu0 0.0
    %2950 = vmatpush2.msra.mxu0 0.0
    %2951 = vmatprep.subr.mxu0 0.0
    %2952 = vmatpush2.msra.mxu0 0.0
    %2953 = vmatprep.subr.mxu0 0.0
    %2954 = vmatpush2.msra.mxu0 0.0
    %2955 = vmatprep.subr.mxu0 0.0
    %2956 = vmatpush2.msra.mxu0 0.0
    %2957 = vmatprep.subr.mxu0 0.0
    %2958 = vmatpush2.msra.mxu0 0.0
    %2959 = vmatprep.subr.mxu0 0.0
    %2960 = vmatpush2.msra.mxu0 0.0
    %2961 = vmatprep.subr.mxu0 0.0
    %2962 = vmatpush2.msra.mxu0 0.0
    %2963 = vmatprep.mubr.f32.mxu0 0.0
    %2964 = vmatmul.mubr.f32.gmra.mxu0 %v2897
    %v2965 = vpop.f32.mrf.mxu0
    %v2966 = vadd.f32 %v2382, %v2965
    %v2967 = vpop.f32.mrf.mxu0
    %2968 = vdwg.mxu0
    %v2970 = vsel %vm1165, %v1252, 0
    %2972 = vmatprep.subr.mxu0 0.0
    %2973 = vmatpush1.msra.mxu0 0.0
    %2974 = vmatprep.subr.mxu0 0.0
    %2975 = vmatpush1.msra.mxu0 0.0
    %2976 = vmatprep.subr.mxu0 0.0
    %2977 = vmatpush1.msra.mxu0 0.0
    %2978 = vmatprep.subr.mxu0 0.0
    %2979 = vmatpush1.msra.mxu0 0.0
    %2980 = vmatprep.subr.mxu0 0.0
    %2981 = vmatpush1.msra.mxu0 0.0
    %2982 = vmatprep.subr.mxu0 0.0
    %2983 = vmatpush1.msra.mxu0 0.0
    %2984 = vmatprep.subr.mxu0 0.0
    %2985 = vmatpush1.msra.mxu0 0.0
    %2986 = vmatprep.subr.mxu0 0.0
    %2987 = vmatpush1.msra.mxu0 0.0
    %2988 = vmatprep.subr.mxu0 0.0
    %2989 = vmatpush1.msra.mxu0 0.0
    %2990 = vmatprep.subr.mxu0 0.0
    %2991 = vmatpush1.msra.mxu0 0.0
    %2992 = vmatprep.subr.mxu0 0.0
    %2993 = vmatpush1.msra.mxu0 0.0
    %2994 = vmatprep.subr.mxu0 0.0
    %2995 = vmatpush1.msra.mxu0 0.0
    %2996 = vmatprep.subr.mxu0 0.0
    %2997 = vmatpush1.msra.mxu0 0.0
    %2998 = vmatprep.subr.mxu0 0.0
    %2999 = vmatpush1.msra.mxu0 0.0
    %3000 = vmatprep.subr.mxu0 0.0
    %3001 = vmatpush1.msra.mxu0 0.0
    %3002 = vmatprep.subr.mxu0 0.0
    %3003 = vmatpush1.msra.mxu0 %v465
    %3004 = vmatprep.subr.mxu0 0.0
    %3005 = vmatpush2.msra.mxu0 0.0
    %3006 = vmatprep.subr.mxu0 0.0
    %3007 = vmatpush2.msra.mxu0 0.0
    %3008 = vmatprep.subr.mxu0 0.0
    %3009 = vmatpush2.msra.mxu0 0.0
    %3010 = vmatprep.subr.mxu0 0.0
    %3011 = vmatpush2.msra.mxu0 0.0
    %3012 = vmatprep.subr.mxu0 0.0
    %3013 = vmatpush2.msra.mxu0 0.0
    %3014 = vmatprep.subr.mxu0 0.0
    %3015 = vmatpush2.msra.mxu0 0.0
    %3016 = vmatprep.subr.mxu0 0.0
    %3017 = vmatpush2.msra.mxu0 0.0
    %3018 = vmatprep.subr.mxu0 0.0
    %3019 = vmatpush2.msra.mxu0 0.0
    %3020 = vmatprep.subr.mxu0 0.0
    %3021 = vmatpush2.msra.mxu0 0.0
    %3022 = vmatprep.subr.mxu0 0.0
    %3023 = vmatpush2.msra.mxu0 0.0
    %3024 = vmatprep.subr.mxu0 0.0
    %3025 = vmatpush2.msra.mxu0 0.0
    %3026 = vmatprep.subr.mxu0 0.0
    %3027 = vmatpush2.msra.mxu0 0.0
    %3028 = vmatprep.subr.mxu0 0.0
    %3029 = vmatpush2.msra.mxu0 0.0
    %3030 = vmatprep.subr.mxu0 0.0
    %3031 = vmatpush2.msra.mxu0 0.0
    %3032 = vmatprep.subr.mxu0 0.0
    %3033 = vmatpush2.msra.mxu0 0.0
    %3034 = vmatprep.subr.mxu0 0.0
    %3035 = vmatpush2.msra.mxu0 0.0
    %3036 = vmatprep.mubr.f32.mxu0 0.0
    %3037 = vmatmul.mubr.f32.gmra.mxu0 %v2970
    %v3038 = vpop.f32.mrf.mxu0
    %v3039 = vadd.f32 %v2455, %v3038
    %v3040 = vpop.f32.mrf.mxu0
    %3041 = vdwg.mxu0
    %v3043 = vsel %vm1165, %v1253, 0
    %3045 = vmatprep.subr.mxu0 0.0
    %3046 = vmatpush1.msra.mxu0 0.0
    %3047 = vmatprep.subr.mxu0 0.0
    %3048 = vmatpush1.msra.mxu0 0.0
    %3049 = vmatprep.subr.mxu0 0.0
    %3050 = vmatpush1.msra.mxu0 0.0
    %3051 = vmatprep.subr.mxu0 0.0
    %3052 = vmatpush1.msra.mxu0 0.0
    %3053 = vmatprep.subr.mxu0 0.0
    %3054 = vmatpush1.msra.mxu0 0.0
    %3055 = vmatprep.subr.mxu0 0.0
    %3056 = vmatpush1.msra.mxu0 0.0
    %3057 = vmatprep.subr.mxu0 0.0
    %3058 = vmatpush1.msra.mxu0 0.0
    %3059 = vmatprep.subr.mxu0 0.0
    %3060 = vmatpush1.msra.mxu0 0.0
    %3061 = vmatprep.subr.mxu0 0.0
    %3062 = vmatpush1.msra.mxu0 0.0
    %3063 = vmatprep.subr.mxu0 0.0
    %3064 = vmatpush1.msra.mxu0 0.0
    %3065 = vmatprep.subr.mxu0 0.0
    %3066 = vmatpush1.msra.mxu0 0.0
    %3067 = vmatprep.subr.mxu0 0.0
    %3068 = vmatpush1.msra.mxu0 0.0
    %3069 = vmatprep.subr.mxu0 0.0
    %3070 = vmatpush1.msra.mxu0 0.0
    %3071 = vmatprep.subr.mxu0 0.0
    %3072 = vmatpush1.msra.mxu0 0.0
    %3073 = vmatprep.subr.mxu0 0.0
    %3074 = vmatpush1.msra.mxu0 0.0
    %3075 = vmatprep.subr.mxu0 0.0
    %3076 = vmatpush1.msra.mxu0 %v466
    %3077 = vmatprep.subr.mxu0 0.0
    %3078 = vmatpush2.msra.mxu0 0.0
    %3079 = vmatprep.subr.mxu0 0.0
    %3080 = vmatpush2.msra.mxu0 0.0
    %3081 = vmatprep.subr.mxu0 0.0
    %3082 = vmatpush2.msra.mxu0 0.0
    %3083 = vmatprep.subr.mxu0 0.0
    %3084 = vmatpush2.msra.mxu0 0.0
    %3085 = vmatprep.subr.mxu0 0.0
    %3086 = vmatpush2.msra.mxu0 0.0
    %3087 = vmatprep.subr.mxu0 0.0
    %3088 = vmatpush2.msra.mxu0 0.0
    %3089 = vmatprep.subr.mxu0 0.0
    %3090 = vmatpush2.msra.mxu0 0.0
    %3091 = vmatprep.subr.mxu0 0.0
    %3092 = vmatpush2.msra.mxu0 0.0
    %3093 = vmatprep.subr.mxu0 0.0
    %3094 = vmatpush2.msra.mxu0 0.0
    %3095 = vmatprep.subr.mxu0 0.0
    %3096 = vmatpush2.msra.mxu0 0.0
    %3097 = vmatprep.subr.mxu0 0.0
    %3098 = vmatpush2.msra.mxu0 0.0
    %3099 = vmatprep.subr.mxu0 0.0
    %3100 = vmatpush2.msra.mxu0 0.0
    %3101 = vmatprep.subr.mxu0 0.0
    %3102 = vmatpush2.msra.mxu0 0.0
    %3103 = vmatprep.subr.mxu0 0.0
    %3104 = vmatpush2.msra.mxu0 0.0
    %3105 = vmatprep.subr.mxu0 0.0
    %3106 = vmatpush2.msra.mxu0 0.0
    %3107 = vmatprep.subr.mxu0 0.0
    %3108 = vmatpush2.msra.mxu0 0.0
    %3109 = vmatprep.mubr.f32.mxu0 0.0
    %3110 = vmatmul.mubr.f32.gmra.mxu0 %v3043
    %v3111 = vpop.f32.mrf.mxu0
    %v3112 = vadd.f32 %v2528, %v3111
    %v3113 = vpop.f32.mrf.mxu0
    %3114 = vdwg.mxu0
    %vm3115 = vcmp.ge.s32.totalorder %v445, 16
    %vm3116 = vcmp.lt.s32.totalorder %v445, 24
    %vm3117 = vmand %vm3115, %vm3116
    %v3118 = vsel %vm3117, 1, 0
    %v3119 = vcvt.s32.f32 %v3118
    %v3120 = vmul.f32 %v289, %v3119
    %v3121 = vmul.f32 %v294, %v3119
    %v3122 = vmul.f32 %v299, %v3119
    %v3123 = vmul.f32 %v304, %v3119
    %v3124 = vmul.f32 %v309, %v3119
    %v3125 = vmul.f32 %v314, %v3119
    %v3126 = vmul.f32 %v319, %v3119
    %v3127 = vmul.f32 %v324, %v3119
    %v3128 = vmul.f32 %v398, %v3119
    %v3129 = vmul.f32 %v403, %v3119
    %v3130 = vmul.f32 %v408, %v3119
    %v3131 = vmul.f32 %v413, %v3119
    %v3132 = vmul.f32 %v418, %v3119
    %v3133 = vmul.f32 %v423, %v3119
    %v3134 = vmul.f32 %v428, %v3119
    %v3135 = vmul.f32 %v433, %v3119
    %v3137 = vsel %vm88, %v3120, 0
    %3139 = vmatprep.subr.mxu0 0.0
    %3140 = vmatpush1.xpose.msra.mxu0 0.0
    %3141 = vmatprep.subr.mxu0 0.0
    %3142 = vmatpush1.xpose.msra.mxu0 0.0
    %3143 = vmatprep.subr.mxu0 0.0
    %3144 = vmatpush1.xpose.msra.mxu0 0.0
    %3145 = vmatprep.subr.mxu0 0.0
    %3146 = vmatpush1.xpose.msra.mxu0 0.0
    %3147 = vmatprep.subr.mxu0 0.0
    %3148 = vmatpush1.xpose.msra.mxu0 0.0
    %3149 = vmatprep.subr.mxu0 0.0
    %3150 = vmatpush1.xpose.msra.mxu0 0.0
    %3151 = vmatprep.subr.mxu0 0.0
    %3152 = vmatpush1.xpose.msra.mxu0 0.0
    %3153 = vmatprep.subr.mxu0 0.0
    %3154 = vmatpush1.xpose.msra.mxu0 0.0
    %3155 = vmatprep.subr.mxu0 0.0
    %3156 = vmatpush1.xpose.msra.mxu0 0.0
    %3157 = vmatprep.subr.mxu0 0.0
    %3158 = vmatpush1.xpose.msra.mxu0 0.0
    %3159 = vmatprep.subr.mxu0 0.0
    %3160 = vmatpush1.xpose.msra.mxu0 0.0
    %3161 = vmatprep.subr.mxu0 0.0
    %3162 = vmatpush1.xpose.msra.mxu0 0.0
    %3163 = vmatprep.subr.mxu0 0.0
    %3164 = vmatpush1.xpose.msra.mxu0 0.0
    %3165 = vmatprep.subr.mxu0 0.0
    %3166 = vmatpush1.xpose.msra.mxu0 0.0
    %3167 = vmatprep.subr.mxu0 0.0
    %3168 = vmatpush1.xpose.msra.mxu0 0.0
    %3169 = vmatprep.subr.mxu0 0.0
    %3170 = vmatpush1.xpose.msra.mxu0 %v3137
    %3171 = vmatprep.subr.mxu0 0.0
    %3172 = vmatpush2.xpose.msra.mxu0 0.0
    %3173 = vmatprep.subr.mxu0 0.0
    %3174 = vmatpush2.xpose.msra.mxu0 0.0
    %3175 = vmatprep.subr.mxu0 0.0
    %3176 = vmatpush2.xpose.msra.mxu0 0.0
    %3177 = vmatprep.subr.mxu0 0.0
    %3178 = vmatpush2.xpose.msra.mxu0 0.0
    %3179 = vmatprep.subr.mxu0 0.0
    %3180 = vmatpush2.xpose.msra.mxu0 0.0
    %3181 = vmatprep.subr.mxu0 0.0
    %3182 = vmatpush2.xpose.msra.mxu0 0.0
    %3183 = vmatprep.subr.mxu0 0.0
    %3184 = vmatpush2.xpose.msra.mxu0 0.0
    %3185 = vmatprep.subr.mxu0 0.0
    %3186 = vmatpush2.xpose.msra.mxu0 0.0
    %3187 = vmatprep.subr.mxu0 0.0
    %3188 = vmatpush2.xpose.msra.mxu0 0.0
    %3189 = vmatprep.subr.mxu0 0.0
    %3190 = vmatpush2.xpose.msra.mxu0 0.0
    %3191 = vmatprep.subr.mxu0 0.0
    %3192 = vmatpush2.xpose.msra.mxu0 0.0
    %3193 = vmatprep.subr.mxu0 0.0
    %3194 = vmatpush2.xpose.msra.mxu0 0.0
    %3195 = vmatprep.subr.mxu0 0.0
    %3196 = vmatpush2.xpose.msra.mxu0 0.0
    %3197 = vmatprep.subr.mxu0 0.0
    %3198 = vmatpush2.xpose.msra.mxu0 0.0
    %3199 = vmatprep.subr.mxu0 0.0
    %3200 = vmatpush2.xpose.msra.mxu0 0.0
    %3201 = vmatprep.subr.mxu0 0.0
    %3202 = vmatpush2.xpose.msra.mxu0 0.0
    %3203 = vmatprep.mubr.f32.mxu0 0.0
    %3204 = vmatmul.mubr.f32.gmra.mxu0 %v558
    %v3205 = vpop.f32.mrf.mxu0
    %v3206 = vadd.f32 %v520, %v3205
    %v3207 = vpop.f32.mrf.mxu0
    %3208 = vdwg.mxu0
    %v3210 = vsel %vm88, %v3121, 0
    %3212 = vmatprep.subr.mxu0 0.0
    %3213 = vmatpush1.xpose.msra.mxu0 0.0
    %3214 = vmatprep.subr.mxu0 0.0
    %3215 = vmatpush1.xpose.msra.mxu0 0.0
    %3216 = vmatprep.subr.mxu0 0.0
    %3217 = vmatpush1.xpose.msra.mxu0 0.0
    %3218 = vmatprep.subr.mxu0 0.0
    %3219 = vmatpush1.xpose.msra.mxu0 0.0
    %3220 = vmatprep.subr.mxu0 0.0
    %3221 = vmatpush1.xpose.msra.mxu0 0.0
    %3222 = vmatprep.subr.mxu0 0.0
    %3223 = vmatpush1.xpose.msra.mxu0 0.0
    %3224 = vmatprep.subr.mxu0 0.0
    %3225 = vmatpush1.xpose.msra.mxu0 0.0
    %3226 = vmatprep.subr.mxu0 0.0
    %3227 = vmatpush1.xpose.msra.mxu0 0.0
    %3228 = vmatprep.subr.mxu0 0.0
    %3229 = vmatpush1.xpose.msra.mxu0 0.0
    %3230 = vmatprep.subr.mxu0 0.0
    %3231 = vmatpush1.xpose.msra.mxu0 0.0
    %3232 = vmatprep.subr.mxu0 0.0
    %3233 = vmatpush1.xpose.msra.mxu0 0.0
    %3234 = vmatprep.subr.mxu0 0.0
    %3235 = vmatpush1.xpose.msra.mxu0 0.0
    %3236 = vmatprep.subr.mxu0 0.0
    %3237 = vmatpush1.xpose.msra.mxu0 0.0
    %3238 = vmatprep.subr.mxu0 0.0
    %3239 = vmatpush1.xpose.msra.mxu0 0.0
    %3240 = vmatprep.subr.mxu0 0.0
    %3241 = vmatpush1.xpose.msra.mxu0 0.0
    %3242 = vmatprep.subr.mxu0 0.0
    %3243 = vmatpush1.xpose.msra.mxu0 %v3210
    %3244 = vmatprep.subr.mxu0 0.0
    %3245 = vmatpush2.xpose.msra.mxu0 0.0
    %3246 = vmatprep.subr.mxu0 0.0
    %3247 = vmatpush2.xpose.msra.mxu0 0.0
    %3248 = vmatprep.subr.mxu0 0.0
    %3249 = vmatpush2.xpose.msra.mxu0 0.0
    %3250 = vmatprep.subr.mxu0 0.0
    %3251 = vmatpush2.xpose.msra.mxu0 0.0
    %3252 = vmatprep.subr.mxu0 0.0
    %3253 = vmatpush2.xpose.msra.mxu0 0.0
    %3254 = vmatprep.subr.mxu0 0.0
    %3255 = vmatpush2.xpose.msra.mxu0 0.0
    %3256 = vmatprep.subr.mxu0 0.0
    %3257 = vmatpush2.xpose.msra.mxu0 0.0
    %3258 = vmatprep.subr.mxu0 0.0
    %3259 = vmatpush2.xpose.msra.mxu0 0.0
    %3260 = vmatprep.subr.mxu0 0.0
    %3261 = vmatpush2.xpose.msra.mxu0 0.0
    %3262 = vmatprep.subr.mxu0 0.0
    %3263 = vmatpush2.xpose.msra.mxu0 0.0
    %3264 = vmatprep.subr.mxu0 0.0
    %3265 = vmatpush2.xpose.msra.mxu0 0.0
    %3266 = vmatprep.subr.mxu0 0.0
    %3267 = vmatpush2.xpose.msra.mxu0 0.0
    %3268 = vmatprep.subr.mxu0 0.0
    %3269 = vmatpush2.xpose.msra.mxu0 0.0
    %3270 = vmatprep.subr.mxu0 0.0
    %3271 = vmatpush2.xpose.msra.mxu0 0.0
    %3272 = vmatprep.subr.mxu0 0.0
    %3273 = vmatpush2.xpose.msra.mxu0 0.0
    %3274 = vmatprep.subr.mxu0 0.0
    %3275 = vmatpush2.xpose.msra.mxu0 0.0
    %3276 = vmatprep.mubr.f32.mxu0 0.0
    %3277 = vmatmul.mubr.f32.gmra.mxu0 %v634
    %v3278 = vpop.f32.mrf.mxu0
    %v3279 = vadd.f32 %v524, %v3278
    %v3280 = vpop.f32.mrf.mxu0
    %3281 = vdwg.mxu0
    %v3283 = vsel %vm88, %v3122, 0
    %3285 = vmatprep.subr.mxu0 0.0
    %3286 = vmatpush1.xpose.msra.mxu0 0.0
    %3287 = vmatprep.subr.mxu0 0.0
    %3288 = vmatpush1.xpose.msra.mxu0 0.0
    %3289 = vmatprep.subr.mxu0 0.0
    %3290 = vmatpush1.xpose.msra.mxu0 0.0
    %3291 = vmatprep.subr.mxu0 0.0
    %3292 = vmatpush1.xpose.msra.mxu0 0.0
    %3293 = vmatprep.subr.mxu0 0.0
    %3294 = vmatpush1.xpose.msra.mxu0 0.0
    %3295 = vmatprep.subr.mxu0 0.0
    %3296 = vmatpush1.xpose.msra.mxu0 0.0
    %3297 = vmatprep.subr.mxu0 0.0
    %3298 = vmatpush1.xpose.msra.mxu0 0.0
    %3299 = vmatprep.subr.mxu0 0.0
    %3300 = vmatpush1.xpose.msra.mxu0 0.0
    %3301 = vmatprep.subr.mxu0 0.0
    %3302 = vmatpush1.xpose.msra.mxu0 0.0
    %3303 = vmatprep.subr.mxu0 0.0
    %3304 = vmatpush1.xpose.msra.mxu0 0.0
    %3305 = vmatprep.subr.mxu0 0.0
    %3306 = vmatpush1.xpose.msra.mxu0 0.0
    %3307 = vmatprep.subr.mxu0 0.0
    %3308 = vmatpush1.xpose.msra.mxu0 0.0
    %3309 = vmatprep.subr.mxu0 0.0
    %3310 = vmatpush1.xpose.msra.mxu0 0.0
    %3311 = vmatprep.subr.mxu0 0.0
    %3312 = vmatpush1.xpose.msra.mxu0 0.0
    %3313 = vmatprep.subr.mxu0 0.0
    %3314 = vmatpush1.xpose.msra.mxu0 0.0
    %3315 = vmatprep.subr.mxu0 0.0
    %3316 = vmatpush1.xpose.msra.mxu0 %v3283
    %3317 = vmatprep.subr.mxu0 0.0
    %3318 = vmatpush2.xpose.msra.mxu0 0.0
    %3319 = vmatprep.subr.mxu0 0.0
    %3320 = vmatpush2.xpose.msra.mxu0 0.0
    %3321 = vmatprep.subr.mxu0 0.0
    %3322 = vmatpush2.xpose.msra.mxu0 0.0
    %3323 = vmatprep.subr.mxu0 0.0
    %3324 = vmatpush2.xpose.msra.mxu0 0.0
    %3325 = vmatprep.subr.mxu0 0.0
    %3326 = vmatpush2.xpose.msra.mxu0 0.0
    %3327 = vmatprep.subr.mxu0 0.0
    %3328 = vmatpush2.xpose.msra.mxu0 0.0
    %3329 = vmatprep.subr.mxu0 0.0
    %3330 = vmatpush2.xpose.msra.mxu0 0.0
    %3331 = vmatprep.subr.mxu0 0.0
    %3332 = vmatpush2.xpose.msra.mxu0 0.0
    %3333 = vmatprep.subr.mxu0 0.0
    %3334 = vmatpush2.xpose.msra.mxu0 0.0
    %3335 = vmatprep.subr.mxu0 0.0
    %3336 = vmatpush2.xpose.msra.mxu0 0.0
    %3337 = vmatprep.subr.mxu0 0.0
    %3338 = vmatpush2.xpose.msra.mxu0 0.0
    %3339 = vmatprep.subr.mxu0 0.0
    %3340 = vmatpush2.xpose.msra.mxu0 0.0
    %3341 = vmatprep.subr.mxu0 0.0
    %3342 = vmatpush2.xpose.msra.mxu0 0.0
    %3343 = vmatprep.subr.mxu0 0.0
    %3344 = vmatpush2.xpose.msra.mxu0 0.0
    %3345 = vmatprep.subr.mxu0 0.0
    %3346 = vmatpush2.xpose.msra.mxu0 0.0
    %3347 = vmatprep.subr.mxu0 0.0
    %3348 = vmatpush2.xpose.msra.mxu0 0.0
    %3349 = vmatprep.mubr.f32.mxu0 0.0
    %3350 = vmatmul.mubr.f32.gmra.mxu0 %v710
    %v3351 = vpop.f32.mrf.mxu0
    %v3352 = vadd.f32 %v528, %v3351
    %v3353 = vpop.f32.mrf.mxu0
    %3354 = vdwg.mxu0
    %v3356 = vsel %vm88, %v3123, 0
    %3358 = vmatprep.subr.mxu0 0.0
    %3359 = vmatpush1.xpose.msra.mxu0 0.0
    %3360 = vmatprep.subr.mxu0 0.0
    %3361 = vmatpush1.xpose.msra.mxu0 0.0
    %3362 = vmatprep.subr.mxu0 0.0
    %3363 = vmatpush1.xpose.msra.mxu0 0.0
    %3364 = vmatprep.subr.mxu0 0.0
    %3365 = vmatpush1.xpose.msra.mxu0 0.0
    %3366 = vmatprep.subr.mxu0 0.0
    %3367 = vmatpush1.xpose.msra.mxu0 0.0
    %3368 = vmatprep.subr.mxu0 0.0
    %3369 = vmatpush1.xpose.msra.mxu0 0.0
    %3370 = vmatprep.subr.mxu0 0.0
    %3371 = vmatpush1.xpose.msra.mxu0 0.0
    %3372 = vmatprep.subr.mxu0 0.0
    %3373 = vmatpush1.xpose.msra.mxu0 0.0
    %3374 = vmatprep.subr.mxu0 0.0
    %3375 = vmatpush1.xpose.msra.mxu0 0.0
    %3376 = vmatprep.subr.mxu0 0.0
    %3377 = vmatpush1.xpose.msra.mxu0 0.0
    %3378 = vmatprep.subr.mxu0 0.0
    %3379 = vmatpush1.xpose.msra.mxu0 0.0
    %3380 = vmatprep.subr.mxu0 0.0
    %3381 = vmatpush1.xpose.msra.mxu0 0.0
    %3382 = vmatprep.subr.mxu0 0.0
    %3383 = vmatpush1.xpose.msra.mxu0 0.0
    %3384 = vmatprep.subr.mxu0 0.0
    %3385 = vmatpush1.xpose.msra.mxu0 0.0
    %3386 = vmatprep.subr.mxu0 0.0
    %3387 = vmatpush1.xpose.msra.mxu0 0.0
    %3388 = vmatprep.subr.mxu0 0.0
    %3389 = vmatpush1.xpose.msra.mxu0 %v3356
    %3390 = vmatprep.subr.mxu0 0.0
    %3391 = vmatpush2.xpose.msra.mxu0 0.0
    %3392 = vmatprep.subr.mxu0 0.0
    %3393 = vmatpush2.xpose.msra.mxu0 0.0
    %3394 = vmatprep.subr.mxu0 0.0
    %3395 = vmatpush2.xpose.msra.mxu0 0.0
    %3396 = vmatprep.subr.mxu0 0.0
    %3397 = vmatpush2.xpose.msra.mxu0 0.0
    %3398 = vmatprep.subr.mxu0 0.0
    %3399 = vmatpush2.xpose.msra.mxu0 0.0
    %3400 = vmatprep.subr.mxu0 0.0
    %3401 = vmatpush2.xpose.msra.mxu0 0.0
    %3402 = vmatprep.subr.mxu0 0.0
    %3403 = vmatpush2.xpose.msra.mxu0 0.0
    %3404 = vmatprep.subr.mxu0 0.0
    %3405 = vmatpush2.xpose.msra.mxu0 0.0
    %3406 = vmatprep.subr.mxu0 0.0
    %3407 = vmatpush2.xpose.msra.mxu0 0.0
    %3408 = vmatprep.subr.mxu0 0.0
    %3409 = vmatpush2.xpose.msra.mxu0 0.0
    %3410 = vmatprep.subr.mxu0 0.0
    %3411 = vmatpush2.xpose.msra.mxu0 0.0
    %3412 = vmatprep.subr.mxu0 0.0
    %3413 = vmatpush2.xpose.msra.mxu0 0.0
    %3414 = vmatprep.subr.mxu0 0.0
    %3415 = vmatpush2.xpose.msra.mxu0 0.0
    %3416 = vmatprep.subr.mxu0 0.0
    %3417 = vmatpush2.xpose.msra.mxu0 0.0
    %3418 = vmatprep.subr.mxu0 0.0
    %3419 = vmatpush2.xpose.msra.mxu0 0.0
    %3420 = vmatprep.subr.mxu0 0.0
    %3421 = vmatpush2.xpose.msra.mxu0 0.0
    %3422 = vmatprep.mubr.f32.mxu0 0.0
    %3423 = vmatmul.mubr.f32.gmra.mxu0 %v786
    %v3424 = vpop.f32.mrf.mxu0
    %v3425 = vadd.f32 %v532, %v3424
    %v3426 = vpop.f32.mrf.mxu0
    %3427 = vdwg.mxu0
    %v3429 = vsel %vm88, %v3124, 0
    %3431 = vmatprep.subr.mxu0 0.0
    %3432 = vmatpush1.xpose.msra.mxu0 0.0
    %3433 = vmatprep.subr.mxu0 0.0
    %3434 = vmatpush1.xpose.msra.mxu0 0.0
    %3435 = vmatprep.subr.mxu0 0.0
    %3436 = vmatpush1.xpose.msra.mxu0 0.0
    %3437 = vmatprep.subr.mxu0 0.0
    %3438 = vmatpush1.xpose.msra.mxu0 0.0
    %3439 = vmatprep.subr.mxu0 0.0
    %3440 = vmatpush1.xpose.msra.mxu0 0.0
    %3441 = vmatprep.subr.mxu0 0.0
    %3442 = vmatpush1.xpose.msra.mxu0 0.0
    %3443 = vmatprep.subr.mxu0 0.0
    %3444 = vmatpush1.xpose.msra.mxu0 0.0
    %3445 = vmatprep.subr.mxu0 0.0
    %3446 = vmatpush1.xpose.msra.mxu0 0.0
    %3447 = vmatprep.subr.mxu0 0.0
    %3448 = vmatpush1.xpose.msra.mxu0 0.0
    %3449 = vmatprep.subr.mxu0 0.0
    %3450 = vmatpush1.xpose.msra.mxu0 0.0
    %3451 = vmatprep.subr.mxu0 0.0
    %3452 = vmatpush1.xpose.msra.mxu0 0.0
    %3453 = vmatprep.subr.mxu0 0.0
    %3454 = vmatpush1.xpose.msra.mxu0 0.0
    %3455 = vmatprep.subr.mxu0 0.0
    %3456 = vmatpush1.xpose.msra.mxu0 0.0
    %3457 = vmatprep.subr.mxu0 0.0
    %3458 = vmatpush1.xpose.msra.mxu0 0.0
    %3459 = vmatprep.subr.mxu0 0.0
    %3460 = vmatpush1.xpose.msra.mxu0 0.0
    %3461 = vmatprep.subr.mxu0 0.0
    %3462 = vmatpush1.xpose.msra.mxu0 %v3429
    %3463 = vmatprep.subr.mxu0 0.0
    %3464 = vmatpush2.xpose.msra.mxu0 0.0
    %3465 = vmatprep.subr.mxu0 0.0
    %3466 = vmatpush2.xpose.msra.mxu0 0.0
    %3467 = vmatprep.subr.mxu0 0.0
    %3468 = vmatpush2.xpose.msra.mxu0 0.0
    %3469 = vmatprep.subr.mxu0 0.0
    %3470 = vmatpush2.xpose.msra.mxu0 0.0
    %3471 = vmatprep.subr.mxu0 0.0
    %3472 = vmatpush2.xpose.msra.mxu0 0.0
    %3473 = vmatprep.subr.mxu0 0.0
    %3474 = vmatpush2.xpose.msra.mxu0 0.0
    %3475 = vmatprep.subr.mxu0 0.0
    %3476 = vmatpush2.xpose.msra.mxu0 0.0
    %3477 = vmatprep.subr.mxu0 0.0
    %3478 = vmatpush2.xpose.msra.mxu0 0.0
    %3479 = vmatprep.subr.mxu0 0.0
    %3480 = vmatpush2.xpose.msra.mxu0 0.0
    %3481 = vmatprep.subr.mxu0 0.0
    %3482 = vmatpush2.xpose.msra.mxu0 0.0
    %3483 = vmatprep.subr.mxu0 0.0
    %3484 = vmatpush2.xpose.msra.mxu0 0.0
    %3485 = vmatprep.subr.mxu0 0.0
    %3486 = vmatpush2.xpose.msra.mxu0 0.0
    %3487 = vmatprep.subr.mxu0 0.0
    %3488 = vmatpush2.xpose.msra.mxu0 0.0
    %3489 = vmatprep.subr.mxu0 0.0
    %3490 = vmatpush2.xpose.msra.mxu0 0.0
    %3491 = vmatprep.subr.mxu0 0.0
    %3492 = vmatpush2.xpose.msra.mxu0 0.0
    %3493 = vmatprep.subr.mxu0 0.0
    %3494 = vmatpush2.xpose.msra.mxu0 0.0
    %3495 = vmatprep.mubr.f32.mxu0 0.0
    %3496 = vmatmul.mubr.f32.gmra.mxu0 %v862
    %v3497 = vpop.f32.mrf.mxu0
    %v3498 = vadd.f32 %v536, %v3497
    %v3499 = vpop.f32.mrf.mxu0
    %3500 = vdwg.mxu0
    %v3502 = vsel %vm88, %v3125, 0
    %3504 = vmatprep.subr.mxu0 0.0
    %3505 = vmatpush1.xpose.msra.mxu0 0.0
    %3506 = vmatprep.subr.mxu0 0.0
    %3507 = vmatpush1.xpose.msra.mxu0 0.0
    %3508 = vmatprep.subr.mxu0 0.0
    %3509 = vmatpush1.xpose.msra.mxu0 0.0
    %3510 = vmatprep.subr.mxu0 0.0
    %3511 = vmatpush1.xpose.msra.mxu0 0.0
    %3512 = vmatprep.subr.mxu0 0.0
    %3513 = vmatpush1.xpose.msra.mxu0 0.0
    %3514 = vmatprep.subr.mxu0 0.0
    %3515 = vmatpush1.xpose.msra.mxu0 0.0
    %3516 = vmatprep.subr.mxu0 0.0
    %3517 = vmatpush1.xpose.msra.mxu0 0.0
    %3518 = vmatprep.subr.mxu0 0.0
    %3519 = vmatpush1.xpose.msra.mxu0 0.0
    %3520 = vmatprep.subr.mxu0 0.0
    %3521 = vmatpush1.xpose.msra.mxu0 0.0
    %3522 = vmatprep.subr.mxu0 0.0
    %3523 = vmatpush1.xpose.msra.mxu0 0.0
    %3524 = vmatprep.subr.mxu0 0.0
    %3525 = vmatpush1.xpose.msra.mxu0 0.0
    %3526 = vmatprep.subr.mxu0 0.0
    %3527 = vmatpush1.xpose.msra.mxu0 0.0
    %3528 = vmatprep.subr.mxu0 0.0
    %3529 = vmatpush1.xpose.msra.mxu0 0.0
    %3530 = vmatprep.subr.mxu0 0.0
    %3531 = vmatpush1.xpose.msra.mxu0 0.0
    %3532 = vmatprep.subr.mxu0 0.0
    %3533 = vmatpush1.xpose.msra.mxu0 0.0
    %3534 = vmatprep.subr.mxu0 0.0
    %3535 = vmatpush1.xpose.msra.mxu0 %v3502
    %3536 = vmatprep.subr.mxu0 0.0
    %3537 = vmatpush2.xpose.msra.mxu0 0.0
    %3538 = vmatprep.subr.mxu0 0.0
    %3539 = vmatpush2.xpose.msra.mxu0 0.0
    %3540 = vmatprep.subr.mxu0 0.0
    %3541 = vmatpush2.xpose.msra.mxu0 0.0
    %3542 = vmatprep.subr.mxu0 0.0
    %3543 = vmatpush2.xpose.msra.mxu0 0.0
    %3544 = vmatprep.subr.mxu0 0.0
    %3545 = vmatpush2.xpose.msra.mxu0 0.0
    %3546 = vmatprep.subr.mxu0 0.0
    %3547 = vmatpush2.xpose.msra.mxu0 0.0
    %3548 = vmatprep.subr.mxu0 0.0
    %3549 = vmatpush2.xpose.msra.mxu0 0.0
    %3550 = vmatprep.subr.mxu0 0.0
    %3551 = vmatpush2.xpose.msra.mxu0 0.0
    %3552 = vmatprep.subr.mxu0 0.0
    %3553 = vmatpush2.xpose.msra.mxu0 0.0
    %3554 = vmatprep.subr.mxu0 0.0
    %3555 = vmatpush2.xpose.msra.mxu0 0.0
    %3556 = vmatprep.subr.mxu0 0.0
    %3557 = vmatpush2.xpose.msra.mxu0 0.0
    %3558 = vmatprep.subr.mxu0 0.0
    %3559 = vmatpush2.xpose.msra.mxu0 0.0
    %3560 = vmatprep.subr.mxu0 0.0
    %3561 = vmatpush2.xpose.msra.mxu0 0.0
    %3562 = vmatprep.subr.mxu0 0.0
    %3563 = vmatpush2.xpose.msra.mxu0 0.0
    %3564 = vmatprep.subr.mxu0 0.0
    %3565 = vmatpush2.xpose.msra.mxu0 0.0
    %3566 = vmatprep.subr.mxu0 0.0
    %3567 = vmatpush2.xpose.msra.mxu0 0.0
    %3568 = vmatprep.mubr.f32.mxu0 0.0
    %3569 = vmatmul.mubr.f32.gmra.mxu0 %v938
    %v3570 = vpop.f32.mrf.mxu0
    %v3571 = vadd.f32 %v540, %v3570
    %v3572 = vpop.f32.mrf.mxu0
    %3573 = vdwg.mxu0
    %v3575 = vsel %vm88, %v3126, 0
    %3577 = vmatprep.subr.mxu0 0.0
    %3578 = vmatpush1.xpose.msra.mxu0 0.0
    %3579 = vmatprep.subr.mxu0 0.0
    %3580 = vmatpush1.xpose.msra.mxu0 0.0
    %3581 = vmatprep.subr.mxu0 0.0
    %3582 = vmatpush1.xpose.msra.mxu0 0.0
    %3583 = vmatprep.subr.mxu0 0.0
    %3584 = vmatpush1.xpose.msra.mxu0 0.0
    %3585 = vmatprep.subr.mxu0 0.0
    %3586 = vmatpush1.xpose.msra.mxu0 0.0
    %3587 = vmatprep.subr.mxu0 0.0
    %3588 = vmatpush1.xpose.msra.mxu0 0.0
    %3589 = vmatprep.subr.mxu0 0.0
    %3590 = vmatpush1.xpose.msra.mxu0 0.0
    %3591 = vmatprep.subr.mxu0 0.0
    %3592 = vmatpush1.xpose.msra.mxu0 0.0
    %3593 = vmatprep.subr.mxu0 0.0
    %3594 = vmatpush1.xpose.msra.mxu0 0.0
    %3595 = vmatprep.subr.mxu0 0.0
    %3596 = vmatpush1.xpose.msra.mxu0 0.0
    %3597 = vmatprep.subr.mxu0 0.0
    %3598 = vmatpush1.xpose.msra.mxu0 0.0
    %3599 = vmatprep.subr.mxu0 0.0
    %3600 = vmatpush1.xpose.msra.mxu0 0.0
    %3601 = vmatprep.subr.mxu0 0.0
    %3602 = vmatpush1.xpose.msra.mxu0 0.0
    %3603 = vmatprep.subr.mxu0 0.0
    %3604 = vmatpush1.xpose.msra.mxu0 0.0
    %3605 = vmatprep.subr.mxu0 0.0
    %3606 = vmatpush1.xpose.msra.mxu0 0.0
    %3607 = vmatprep.subr.mxu0 0.0
    %3608 = vmatpush1.xpose.msra.mxu0 %v3575
    %3609 = vmatprep.subr.mxu0 0.0
    %3610 = vmatpush2.xpose.msra.mxu0 0.0
    %3611 = vmatprep.subr.mxu0 0.0
    %3612 = vmatpush2.xpose.msra.mxu0 0.0
    %3613 = vmatprep.subr.mxu0 0.0
    %3614 = vmatpush2.xpose.msra.mxu0 0.0
    %3615 = vmatprep.subr.mxu0 0.0
    %3616 = vmatpush2.xpose.msra.mxu0 0.0
    %3617 = vmatprep.subr.mxu0 0.0
    %3618 = vmatpush2.xpose.msra.mxu0 0.0
    %3619 = vmatprep.subr.mxu0 0.0
    %3620 = vmatpush2.xpose.msra.mxu0 0.0
    %3621 = vmatprep.subr.mxu0 0.0
    %3622 = vmatpush2.xpose.msra.mxu0 0.0
    %3623 = vmatprep.subr.mxu0 0.0
    %3624 = vmatpush2.xpose.msra.mxu0 0.0
    %3625 = vmatprep.subr.mxu0 0.0
    %3626 = vmatpush2.xpose.msra.mxu0 0.0
    %3627 = vmatprep.subr.mxu0 0.0
    %3628 = vmatpush2.xpose.msra.mxu0 0.0
    %3629 = vmatprep.subr.mxu0 0.0
    %3630 = vmatpush2.xpose.msra.mxu0 0.0
    %3631 = vmatprep.subr.mxu0 0.0
    %3632 = vmatpush2.xpose.msra.mxu0 0.0
    %3633 = vmatprep.subr.mxu0 0.0
    %3634 = vmatpush2.xpose.msra.mxu0 0.0
    %3635 = vmatprep.subr.mxu0 0.0
    %3636 = vmatpush2.xpose.msra.mxu0 0.0
    %3637 = vmatprep.subr.mxu0 0.0
    %3638 = vmatpush2.xpose.msra.mxu0 0.0
    %3639 = vmatprep.subr.mxu0 0.0
    %3640 = vmatpush2.xpose.msra.mxu0 0.0
    %3641 = vmatprep.mubr.f32.mxu0 0.0
    %3642 = vmatmul.mubr.f32.gmra.mxu0 %v1014
    %v3643 = vpop.f32.mrf.mxu0
    %v3644 = vadd.f32 %v544, %v3643
    %v3645 = vpop.f32.mrf.mxu0
    %3646 = vdwg.mxu0
    %v3648 = vsel %vm88, %v3127, 0
    %3650 = vmatprep.subr.mxu0 0.0
    %3651 = vmatpush1.xpose.msra.mxu0 0.0
    %3652 = vmatprep.subr.mxu0 0.0
    %3653 = vmatpush1.xpose.msra.mxu0 0.0
    %3654 = vmatprep.subr.mxu0 0.0
    %3655 = vmatpush1.xpose.msra.mxu0 0.0
    %3656 = vmatprep.subr.mxu0 0.0
    %3657 = vmatpush1.xpose.msra.mxu0 0.0
    %3658 = vmatprep.subr.mxu0 0.0
    %3659 = vmatpush1.xpose.msra.mxu0 0.0
    %3660 = vmatprep.subr.mxu0 0.0
    %3661 = vmatpush1.xpose.msra.mxu0 0.0
    %3662 = vmatprep.subr.mxu0 0.0
    %3663 = vmatpush1.xpose.msra.mxu0 0.0
    %3664 = vmatprep.subr.mxu0 0.0
    %3665 = vmatpush1.xpose.msra.mxu0 0.0
    %3666 = vmatprep.subr.mxu0 0.0
    %3667 = vmatpush1.xpose.msra.mxu0 0.0
    %3668 = vmatprep.subr.mxu0 0.0
    %3669 = vmatpush1.xpose.msra.mxu0 0.0
    %3670 = vmatprep.subr.mxu0 0.0
    %3671 = vmatpush1.xpose.msra.mxu0 0.0
    %3672 = vmatprep.subr.mxu0 0.0
    %3673 = vmatpush1.xpose.msra.mxu0 0.0
    %3674 = vmatprep.subr.mxu0 0.0
    %3675 = vmatpush1.xpose.msra.mxu0 0.0
    %3676 = vmatprep.subr.mxu0 0.0
    %3677 = vmatpush1.xpose.msra.mxu0 0.0
    %3678 = vmatprep.subr.mxu0 0.0
    %3679 = vmatpush1.xpose.msra.mxu0 0.0
    %3680 = vmatprep.subr.mxu0 0.0
    %3681 = vmatpush1.xpose.msra.mxu0 %v3648
    %3682 = vmatprep.subr.mxu0 0.0
    %3683 = vmatpush2.xpose.msra.mxu0 0.0
    %3684 = vmatprep.subr.mxu0 0.0
    %3685 = vmatpush2.xpose.msra.mxu0 0.0
    %3686 = vmatprep.subr.mxu0 0.0
    %3687 = vmatpush2.xpose.msra.mxu0 0.0
    %3688 = vmatprep.subr.mxu0 0.0
    %3689 = vmatpush2.xpose.msra.mxu0 0.0
    %3690 = vmatprep.subr.mxu0 0.0
    %3691 = vmatpush2.xpose.msra.mxu0 0.0
    %3692 = vmatprep.subr.mxu0 0.0
    %3693 = vmatpush2.xpose.msra.mxu0 0.0
    %3694 = vmatprep.subr.mxu0 0.0
    %3695 = vmatpush2.xpose.msra.mxu0 0.0
    %3696 = vmatprep.subr.mxu0 0.0
    %3697 = vmatpush2.xpose.msra.mxu0 0.0
    %3698 = vmatprep.subr.mxu0 0.0
    %3699 = vmatpush2.xpose.msra.mxu0 0.0
    %3700 = vmatprep.subr.mxu0 0.0
    %3701 = vmatpush2.xpose.msra.mxu0 0.0
    %3702 = vmatprep.subr.mxu0 0.0
    %3703 = vmatpush2.xpose.msra.mxu0 0.0
    %3704 = vmatprep.subr.mxu0 0.0
    %3705 = vmatpush2.xpose.msra.mxu0 0.0
    %3706 = vmatprep.subr.mxu0 0.0
    %3707 = vmatpush2.xpose.msra.mxu0 0.0
    %3708 = vmatprep.subr.mxu0 0.0
    %3709 = vmatpush2.xpose.msra.mxu0 0.0
    %3710 = vmatprep.subr.mxu0 0.0
    %3711 = vmatpush2.xpose.msra.mxu0 0.0
    %3712 = vmatprep.subr.mxu0 0.0
    %3713 = vmatpush2.xpose.msra.mxu0 0.0
    %3714 = vmatprep.mubr.f32.mxu0 0.0
    %3715 = vmatmul.mubr.f32.gmra.mxu0 %v1090
    %v3716 = vpop.f32.mrf.mxu0
    %v3717 = vadd.f32 %v548, %v3716
    %v3718 = vpop.f32.mrf.mxu0
    %3719 = vdwg.mxu0
    %v3720 = vsel %vm1165, %v3206, -inf
    %3721 = vmax.xlane.f32.xlu0 %v3720
    %v3722 = vpop.xlane.xlu0 %3721
    %v3723 = vsel %vm1165, %v3279, -inf
    %3724 = vmax.xlane.f32.xlu0 %v3723
    %v3725 = vpop.xlane.xlu0 %3724
    %v3726 = vsel %vm1165, %v3352, -inf
    %3727 = vmax.xlane.f32.xlu0 %v3726
    %v3728 = vpop.xlane.xlu0 %3727
    %v3729 = vsel %vm1165, %v3425, -inf
    %3730 = vmax.xlane.f32.xlu0 %v3729
    %v3731 = vpop.xlane.xlu0 %3730
    %v3732 = vsel %vm1165, %v3498, -inf
    %3733 = vmax.xlane.f32.xlu0 %v3732
    %v3734 = vpop.xlane.xlu0 %3733
    %v3735 = vsel %vm1165, %v3571, -inf
    %3736 = vmax.xlane.f32.xlu0 %v3735
    %v3737 = vpop.xlane.xlu0 %3736
    %v3738 = vsel %vm1165, %v3644, -inf
    %3739 = vmax.xlane.f32.xlu0 %v3738
    %v3740 = vpop.xlane.xlu0 %3739
    %v3741 = vsel %vm1165, %v3717, -inf
    %3742 = vmax.xlane.f32.xlu0 %v3741
    %v3743 = vpop.xlane.xlu0 %3742
    %v3744 = vsub.f32 %v3206, %v3722
    %v3745 = vsub.f32 %v3279, %v3725
    %v3746 = vsub.f32 %v3352, %v3728
    %v3747 = vsub.f32 %v3425, %v3731
    %v3748 = vsub.f32 %v3498, %v3734
    %v3749 = vsub.f32 %v3571, %v3737
    %v3750 = vsub.f32 %v3644, %v3740
    %v3751 = vsub.f32 %v3717, %v3743
    %v3752 = vmul.f32 %v3744, 1.442695
    %v3753 = vpow.pop %v3752
    %v3754 = vmul.f32 %v3745, 1.442695
    %v3755 = vpow.pop %v3754
    %v3756 = vmul.f32 %v3746, 1.442695
    %v3757 = vpow.pop %v3756
    %v3758 = vmul.f32 %v3747, 1.442695
    %v3759 = vpow.pop %v3758
    %v3760 = vmul.f32 %v3748, 1.442695
    %v3761 = vpow.pop %v3760
    %v3762 = vmul.f32 %v3749, 1.442695
    %v3763 = vpow.pop %v3762
    %v3764 = vmul.f32 %v3750, 1.442695
    %v3765 = vpow.pop %v3764
    %v3766 = vmul.f32 %v3751, 1.442695
    %v3767 = vpow.pop %v3766
    %v3768 = vsel %vm1165, %v3753, 0.0
    %3769 = vadd.xlane.f32.xlu0 %v3768
    %v3770 = vpop.xlane.xlu0 %3769
    %v3771 = vsel %vm1165, %v3755, 0.0
    %3772 = vadd.xlane.f32.xlu0 %v3771
    %v3773 = vpop.xlane.xlu0 %3772
    %v3774 = vsel %vm1165, %v3757, 0.0
    %3775 = vadd.xlane.f32.xlu0 %v3774
    %v3776 = vpop.xlane.xlu0 %3775
    %v3777 = vsel %vm1165, %v3759, 0.0
    %3778 = vadd.xlane.f32.xlu0 %v3777
    %v3779 = vpop.xlane.xlu0 %3778
    %v3780 = vsel %vm1165, %v3761, 0.0
    %3781 = vadd.xlane.f32.xlu0 %v3780
    %v3782 = vpop.xlane.xlu0 %3781
    %v3783 = vsel %vm1165, %v3763, 0.0
    %3784 = vadd.xlane.f32.xlu0 %v3783
    %v3785 = vpop.xlane.xlu0 %3784
    %v3786 = vsel %vm1165, %v3765, 0.0
    %3787 = vadd.xlane.f32.xlu0 %v3786
    %v3788 = vpop.xlane.xlu0 %3787
    %v3789 = vsel %vm1165, %v3767, 0.0
    %3790 = vadd.xlane.f32.xlu0 %v3789
    %v3791 = vpop.xlane.xlu0 %3790
    %v3792 = vrcp.pop %v3770
    %v3793 = vrcp.pop %v3773
    %v3794 = vrcp.pop %v3776
    %v3795 = vrcp.pop %v3779
    %v3796 = vrcp.pop %v3782
    %v3797 = vrcp.pop %v3785
    %v3798 = vrcp.pop %v3788
    %v3799 = vrcp.pop %v3791
    %v3800 = vmul.f32 %v3753, %v3792
    %v3801 = vmul.f32 %v3755, %v3793
    %v3802 = vmul.f32 %v3757, %v3794
    %v3803 = vmul.f32 %v3759, %v3795
    %v3804 = vmul.f32 %v3761, %v3796
    %v3805 = vmul.f32 %v3763, %v3797
    %v3806 = vmul.f32 %v3765, %v3798
    %v3807 = vmul.f32 %v3767, %v3799
    %v3809 = vsel %vm1165, %v3800, 0
    %3811 = vmatprep.subr.mxu0 0.0
    %3812 = vmatpush1.msra.mxu0 0.0
    %3813 = vmatprep.subr.mxu0 0.0
    %3814 = vmatpush1.msra.mxu0 0.0
    %3815 = vmatprep.subr.mxu0 0.0
    %3816 = vmatpush1.msra.mxu0 0.0
    %3817 = vmatprep.subr.mxu0 0.0
    %3818 = vmatpush1.msra.mxu0 0.0
    %3819 = vmatprep.subr.mxu0 0.0
    %3820 = vmatpush1.msra.mxu0 0.0
    %3821 = vmatprep.subr.mxu0 0.0
    %3822 = vmatpush1.msra.mxu0 0.0
    %3823 = vmatprep.subr.mxu0 0.0
    %3824 = vmatpush1.msra.mxu0 0.0
    %3825 = vmatprep.subr.mxu0 0.0
    %3826 = vmatpush1.msra.mxu0 0.0
    %3827 = vmatprep.subr.mxu0 0.0
    %3828 = vmatpush1.msra.mxu0 0.0
    %3829 = vmatprep.subr.mxu0 0.0
    %3830 = vmatpush1.msra.mxu0 0.0
    %3831 = vmatprep.subr.mxu0 0.0
    %3832 = vmatpush1.msra.mxu0 0.0
    %3833 = vmatprep.subr.mxu0 0.0
    %3834 = vmatpush1.msra.mxu0 0.0
    %3835 = vmatprep.subr.mxu0 0.0
    %3836 = vmatpush1.msra.mxu0 0.0
    %3837 = vmatprep.subr.mxu0 0.0
    %3838 = vmatpush1.msra.mxu0 0.0
    %3839 = vmatprep.subr.mxu0 0.0
    %3840 = vmatpush1.msra.mxu0 0.0
    %3841 = vmatprep.subr.mxu0 0.0
    %3842 = vmatpush1.msra.mxu0 %v3128
    %3843 = vmatprep.subr.mxu0 0.0
    %3844 = vmatpush2.msra.mxu0 0.0
    %3845 = vmatprep.subr.mxu0 0.0
    %3846 = vmatpush2.msra.mxu0 0.0
    %3847 = vmatprep.subr.mxu0 0.0
    %3848 = vmatpush2.msra.mxu0 0.0
    %3849 = vmatprep.subr.mxu0 0.0
    %3850 = vmatpush2.msra.mxu0 0.0
    %3851 = vmatprep.subr.mxu0 0.0
    %3852 = vmatpush2.msra.mxu0 0.0
    %3853 = vmatprep.subr.mxu0 0.0
    %3854 = vmatpush2.msra.mxu0 0.0
    %3855 = vmatprep.subr.mxu0 0.0
    %3856 = vmatpush2.msra.mxu0 0.0
    %3857 = vmatprep.subr.mxu0 0.0
    %3858 = vmatpush2.msra.mxu0 0.0
    %3859 = vmatprep.subr.mxu0 0.0
    %3860 = vmatpush2.msra.mxu0 0.0
    %3861 = vmatprep.subr.mxu0 0.0
    %3862 = vmatpush2.msra.mxu0 0.0
    %3863 = vmatprep.subr.mxu0 0.0
    %3864 = vmatpush2.msra.mxu0 0.0
    %3865 = vmatprep.subr.mxu0 0.0
    %3866 = vmatpush2.msra.mxu0 0.0
    %3867 = vmatprep.subr.mxu0 0.0
    %3868 = vmatpush2.msra.mxu0 0.0
    %3869 = vmatprep.subr.mxu0 0.0
    %3870 = vmatpush2.msra.mxu0 0.0
    %3871 = vmatprep.subr.mxu0 0.0
    %3872 = vmatpush2.msra.mxu0 0.0
    %3873 = vmatprep.subr.mxu0 0.0
    %3874 = vmatpush2.msra.mxu0 0.0
    %3875 = vmatprep.mubr.f32.mxu0 0.0
    %3876 = vmatmul.mubr.f32.gmra.mxu0 %v3809
    %v3877 = vpop.f32.mrf.mxu0
    %v3878 = vadd.f32 0.0, %v3877
    %v3879 = vpop.f32.mrf.mxu0
    %3880 = vdwg.mxu0
    %v3882 = vsel %vm1165, %v3801, 0
    %3884 = vmatprep.subr.mxu0 0.0
    %3885 = vmatpush1.msra.mxu0 0.0
    %3886 = vmatprep.subr.mxu0 0.0
    %3887 = vmatpush1.msra.mxu0 0.0
    %3888 = vmatprep.subr.mxu0 0.0
    %3889 = vmatpush1.msra.mxu0 0.0
    %3890 = vmatprep.subr.mxu0 0.0
    %3891 = vmatpush1.msra.mxu0 0.0
    %3892 = vmatprep.subr.mxu0 0.0
    %3893 = vmatpush1.msra.mxu0 0.0
    %3894 = vmatprep.subr.mxu0 0.0
    %3895 = vmatpush1.msra.mxu0 0.0
    %3896 = vmatprep.subr.mxu0 0.0
    %3897 = vmatpush1.msra.mxu0 0.0
    %3898 = vmatprep.subr.mxu0 0.0
    %3899 = vmatpush1.msra.mxu0 0.0
    %3900 = vmatprep.subr.mxu0 0.0
    %3901 = vmatpush1.msra.mxu0 0.0
    %3902 = vmatprep.subr.mxu0 0.0
    %3903 = vmatpush1.msra.mxu0 0.0
    %3904 = vmatprep.subr.mxu0 0.0
    %3905 = vmatpush1.msra.mxu0 0.0
    %3906 = vmatprep.subr.mxu0 0.0
    %3907 = vmatpush1.msra.mxu0 0.0
    %3908 = vmatprep.subr.mxu0 0.0
    %3909 = vmatpush1.msra.mxu0 0.0
    %3910 = vmatprep.subr.mxu0 0.0
    %3911 = vmatpush1.msra.mxu0 0.0
    %3912 = vmatprep.subr.mxu0 0.0
    %3913 = vmatpush1.msra.mxu0 0.0
    %3914 = vmatprep.subr.mxu0 0.0
    %3915 = vmatpush1.msra.mxu0 %v3129
    %3916 = vmatprep.subr.mxu0 0.0
    %3917 = vmatpush2.msra.mxu0 0.0
    %3918 = vmatprep.subr.mxu0 0.0
    %3919 = vmatpush2.msra.mxu0 0.0
    %3920 = vmatprep.subr.mxu0 0.0
    %3921 = vmatpush2.msra.mxu0 0.0
    %3922 = vmatprep.subr.mxu0 0.0
    %3923 = vmatpush2.msra.mxu0 0.0
    %3924 = vmatprep.subr.mxu0 0.0
    %3925 = vmatpush2.msra.mxu0 0.0
    %3926 = vmatprep.subr.mxu0 0.0
    %3927 = vmatpush2.msra.mxu0 0.0
    %3928 = vmatprep.subr.mxu0 0.0
    %3929 = vmatpush2.msra.mxu0 0.0
    %3930 = vmatprep.subr.mxu0 0.0
    %3931 = vmatpush2.msra.mxu0 0.0
    %3932 = vmatprep.subr.mxu0 0.0
    %3933 = vmatpush2.msra.mxu0 0.0
    %3934 = vmatprep.subr.mxu0 0.0
    %3935 = vmatpush2.msra.mxu0 0.0
    %3936 = vmatprep.subr.mxu0 0.0
    %3937 = vmatpush2.msra.mxu0 0.0
    %3938 = vmatprep.subr.mxu0 0.0
    %3939 = vmatpush2.msra.mxu0 0.0
    %3940 = vmatprep.subr.mxu0 0.0
    %3941 = vmatpush2.msra.mxu0 0.0
    %3942 = vmatprep.subr.mxu0 0.0
    %3943 = vmatpush2.msra.mxu0 0.0
    %3944 = vmatprep.subr.mxu0 0.0
    %3945 = vmatpush2.msra.mxu0 0.0
    %3946 = vmatprep.subr.mxu0 0.0
    %3947 = vmatpush2.msra.mxu0 0.0
    %3948 = vmatprep.mubr.f32.mxu0 0.0
    %3949 = vmatmul.mubr.f32.gmra.mxu0 %v3882
    %v3950 = vpop.f32.mrf.mxu0
    %v3951 = vadd.f32 0.0, %v3950
    %v3952 = vpop.f32.mrf.mxu0
    %3953 = vdwg.mxu0
    %v3955 = vsel %vm1165, %v3802, 0
    %3957 = vmatprep.subr.mxu0 0.0
    %3958 = vmatpush1.msra.mxu0 0.0
    %3959 = vmatprep.subr.mxu0 0.0
    %3960 = vmatpush1.msra.mxu0 0.0
    %3961 = vmatprep.subr.mxu0 0.0
    %3962 = vmatpush1.msra.mxu0 0.0
    %3963 = vmatprep.subr.mxu0 0.0
    %3964 = vmatpush1.msra.mxu0 0.0
    %3965 = vmatprep.subr.mxu0 0.0
    %3966 = vmatpush1.msra.mxu0 0.0
    %3967 = vmatprep.subr.mxu0 0.0
    %3968 = vmatpush1.msra.mxu0 0.0
    %3969 = vmatprep.subr.mxu0 0.0
    %3970 = vmatpush1.msra.mxu0 0.0
    %3971 = vmatprep.subr.mxu0 0.0
    %3972 = vmatpush1.msra.mxu0 0.0
    %3973 = vmatprep.subr.mxu0 0.0
    %3974 = vmatpush1.msra.mxu0 0.0
    %3975 = vmatprep.subr.mxu0 0.0
    %3976 = vmatpush1.msra.mxu0 0.0
    %3977 = vmatprep.subr.mxu0 0.0
    %3978 = vmatpush1.msra.mxu0 0.0
    %3979 = vmatprep.subr.mxu0 0.0
    %3980 = vmatpush1.msra.mxu0 0.0
    %3981 = vmatprep.subr.mxu0 0.0
    %3982 = vmatpush1.msra.mxu0 0.0
    %3983 = vmatprep.subr.mxu0 0.0
    %3984 = vmatpush1.msra.mxu0 0.0
    %3985 = vmatprep.subr.mxu0 0.0
    %3986 = vmatpush1.msra.mxu0 0.0
    %3987 = vmatprep.subr.mxu0 0.0
    %3988 = vmatpush1.msra.mxu0 %v3130
    %3989 = vmatprep.subr.mxu0 0.0
    %3990 = vmatpush2.msra.mxu0 0.0
    %3991 = vmatprep.subr.mxu0 0.0
    %3992 = vmatpush2.msra.mxu0 0.0
    %3993 = vmatprep.subr.mxu0 0.0
    %3994 = vmatpush2.msra.mxu0 0.0
    %3995 = vmatprep.subr.mxu0 0.0
    %3996 = vmatpush2.msra.mxu0 0.0
    %3997 = vmatprep.subr.mxu0 0.0
    %3998 = vmatpush2.msra.mxu0 0.0
    %3999 = vmatprep.subr.mxu0 0.0
    %4000 = vmatpush2.msra.mxu0 0.0
    %4001 = vmatprep.subr.mxu0 0.0
    %4002 = vmatpush2.msra.mxu0 0.0
    %4003 = vmatprep.subr.mxu0 0.0
    %4004 = vmatpush2.msra.mxu0 0.0
    %4005 = vmatprep.subr.mxu0 0.0
    %4006 = vmatpush2.msra.mxu0 0.0
    %4007 = vmatprep.subr.mxu0 0.0
    %4008 = vmatpush2.msra.mxu0 0.0
    %4009 = vmatprep.subr.mxu0 0.0
    %4010 = vmatpush2.msra.mxu0 0.0
    %4011 = vmatprep.subr.mxu0 0.0
    %4012 = vmatpush2.msra.mxu0 0.0
    %4013 = vmatprep.subr.mxu0 0.0
    %4014 = vmatpush2.msra.mxu0 0.0
    %4015 = vmatprep.subr.mxu0 0.0
    %4016 = vmatpush2.msra.mxu0 0.0
    %4017 = vmatprep.subr.mxu0 0.0
    %4018 = vmatpush2.msra.mxu0 0.0
    %4019 = vmatprep.subr.mxu0 0.0
    %4020 = vmatpush2.msra.mxu0 0.0
    %4021 = vmatprep.mubr.f32.mxu0 0.0
    %4022 = vmatmul.mubr.f32.gmra.mxu0 %v3955
    %v4023 = vpop.f32.mrf.mxu0
    %v4024 = vadd.f32 0.0, %v4023
    %v4025 = vpop.f32.mrf.mxu0
    %4026 = vdwg.mxu0
    %v4028 = vsel %vm1165, %v3803, 0
    %4030 = vmatprep.subr.mxu0 0.0
    %4031 = vmatpush1.msra.mxu0 0.0
    %4032 = vmatprep.subr.mxu0 0.0
    %4033 = vmatpush1.msra.mxu0 0.0
    %4034 = vmatprep.subr.mxu0 0.0
    %4035 = vmatpush1.msra.mxu0 0.0
    %4036 = vmatprep.subr.mxu0 0.0
    %4037 = vmatpush1.msra.mxu0 0.0
    %4038 = vmatprep.subr.mxu0 0.0
    %4039 = vmatpush1.msra.mxu0 0.0
    %4040 = vmatprep.subr.mxu0 0.0
    %4041 = vmatpush1.msra.mxu0 0.0
    %4042 = vmatprep.subr.mxu0 0.0
    %4043 = vmatpush1.msra.mxu0 0.0
    %4044 = vmatprep.subr.mxu0 0.0
    %4045 = vmatpush1.msra.mxu0 0.0
    %4046 = vmatprep.subr.mxu0 0.0
    %4047 = vmatpush1.msra.mxu0 0.0
    %4048 = vmatprep.subr.mxu0 0.0
    %4049 = vmatpush1.msra.mxu0 0.0
    %4050 = vmatprep.subr.mxu0 0.0
    %4051 = vmatpush1.msra.mxu0 0.0
    %4052 = vmatprep.subr.mxu0 0.0
    %4053 = vmatpush1.msra.mxu0 0.0
    %4054 = vmatprep.subr.mxu0 0.0
    %4055 = vmatpush1.msra.mxu0 0.0
    %4056 = vmatprep.subr.mxu0 0.0
    %4057 = vmatpush1.msra.mxu0 0.0
    %4058 = vmatprep.subr.mxu0 0.0
    %4059 = vmatpush1.msra.mxu0 0.0
    %4060 = vmatprep.subr.mxu0 0.0
    %4061 = vmatpush1.msra.mxu0 %v3131
    %4062 = vmatprep.subr.mxu0 0.0
    %4063 = vmatpush2.msra.mxu0 0.0
    %4064 = vmatprep.subr.mxu0 0.0
    %4065 = vmatpush2.msra.mxu0 0.0
    %4066 = vmatprep.subr.mxu0 0.0
    %4067 = vmatpush2.msra.mxu0 0.0
    %4068 = vmatprep.subr.mxu0 0.0
    %4069 = vmatpush2.msra.mxu0 0.0
    %4070 = vmatprep.subr.mxu0 0.0
    %4071 = vmatpush2.msra.mxu0 0.0
    %4072 = vmatprep.subr.mxu0 0.0
    %4073 = vmatpush2.msra.mxu0 0.0
    %4074 = vmatprep.subr.mxu0 0.0
    %4075 = vmatpush2.msra.mxu0 0.0
    %4076 = vmatprep.subr.mxu0 0.0
    %4077 = vmatpush2.msra.mxu0 0.0
    %4078 = vmatprep.subr.mxu0 0.0
    %4079 = vmatpush2.msra.mxu0 0.0
    %4080 = vmatprep.subr.mxu0 0.0
    %4081 = vmatpush2.msra.mxu0 0.0
    %4082 = vmatprep.subr.mxu0 0.0
    %4083 = vmatpush2.msra.mxu0 0.0
    %4084 = vmatprep.subr.mxu0 0.0
    %4085 = vmatpush2.msra.mxu0 0.0
    %4086 = vmatprep.subr.mxu0 0.0
    %4087 = vmatpush2.msra.mxu0 0.0
    %4088 = vmatprep.subr.mxu0 0.0
    %4089 = vmatpush2.msra.mxu0 0.0
    %4090 = vmatprep.subr.mxu0 0.0
    %4091 = vmatpush2.msra.mxu0 0.0
    %4092 = vmatprep.subr.mxu0 0.0
    %4093 = vmatpush2.msra.mxu0 0.0
    %4094 = vmatprep.mubr.f32.mxu0 0.0
    %4095 = vmatmul.mubr.f32.gmra.mxu0 %v4028
    %v4096 = vpop.f32.mrf.mxu0
    %v4097 = vadd.f32 0.0, %v4096
    %v4098 = vpop.f32.mrf.mxu0
    %4099 = vdwg.mxu0
    %v4101 = vsel %vm1165, %v3804, 0
    %4103 = vmatprep.subr.mxu0 0.0
    %4104 = vmatpush1.msra.mxu0 0.0
    %4105 = vmatprep.subr.mxu0 0.0
    %4106 = vmatpush1.msra.mxu0 0.0
    %4107 = vmatprep.subr.mxu0 0.0
    %4108 = vmatpush1.msra.mxu0 0.0
    %4109 = vmatprep.subr.mxu0 0.0
    %4110 = vmatpush1.msra.mxu0 0.0
    %4111 = vmatprep.subr.mxu0 0.0
    %4112 = vmatpush1.msra.mxu0 0.0
    %4113 = vmatprep.subr.mxu0 0.0
    %4114 = vmatpush1.msra.mxu0 0.0
    %4115 = vmatprep.subr.mxu0 0.0
    %4116 = vmatpush1.msra.mxu0 0.0
    %4117 = vmatprep.subr.mxu0 0.0
    %4118 = vmatpush1.msra.mxu0 0.0
    %4119 = vmatprep.subr.mxu0 0.0
    %4120 = vmatpush1.msra.mxu0 0.0
    %4121 = vmatprep.subr.mxu0 0.0
    %4122 = vmatpush1.msra.mxu0 0.0
    %4123 = vmatprep.subr.mxu0 0.0
    %4124 = vmatpush1.msra.mxu0 0.0
    %4125 = vmatprep.subr.mxu0 0.0
    %4126 = vmatpush1.msra.mxu0 0.0
    %4127 = vmatprep.subr.mxu0 0.0
    %4128 = vmatpush1.msra.mxu0 0.0
    %4129 = vmatprep.subr.mxu0 0.0
    %4130 = vmatpush1.msra.mxu0 0.0
    %4131 = vmatprep.subr.mxu0 0.0
    %4132 = vmatpush1.msra.mxu0 0.0
    %4133 = vmatprep.subr.mxu0 0.0
    %4134 = vmatpush1.msra.mxu0 %v3132
    %4135 = vmatprep.subr.mxu0 0.0
    %4136 = vmatpush2.msra.mxu0 0.0
    %4137 = vmatprep.subr.mxu0 0.0
    %4138 = vmatpush2.msra.mxu0 0.0
    %4139 = vmatprep.subr.mxu0 0.0
    %4140 = vmatpush2.msra.mxu0 0.0
    %4141 = vmatprep.subr.mxu0 0.0
    %4142 = vmatpush2.msra.mxu0 0.0
    %4143 = vmatprep.subr.mxu0 0.0
    %4144 = vmatpush2.msra.mxu0 0.0
    %4145 = vmatprep.subr.mxu0 0.0
    %4146 = vmatpush2.msra.mxu0 0.0
    %4147 = vmatprep.subr.mxu0 0.0
    %4148 = vmatpush2.msra.mxu0 0.0
    %4149 = vmatprep.subr.mxu0 0.0
    %4150 = vmatpush2.msra.mxu0 0.0
    %4151 = vmatprep.subr.mxu0 0.0
    %4152 = vmatpush2.msra.mxu0 0.0
    %4153 = vmatprep.subr.mxu0 0.0
    %4154 = vmatpush2.msra.mxu0 0.0
    %4155 = vmatprep.subr.mxu0 0.0
    %4156 = vmatpush2.msra.mxu0 0.0
    %4157 = vmatprep.subr.mxu0 0.0
    %4158 = vmatpush2.msra.mxu0 0.0
    %4159 = vmatprep.subr.mxu0 0.0
    %4160 = vmatpush2.msra.mxu0 0.0
    %4161 = vmatprep.subr.mxu0 0.0
    %4162 = vmatpush2.msra.mxu0 0.0
    %4163 = vmatprep.subr.mxu0 0.0
    %4164 = vmatpush2.msra.mxu0 0.0
    %4165 = vmatprep.subr.mxu0 0.0
    %4166 = vmatpush2.msra.mxu0 0.0
    %4167 = vmatprep.mubr.f32.mxu0 0.0
    %4168 = vmatmul.mubr.f32.gmra.mxu0 %v4101
    %v4169 = vpop.f32.mrf.mxu0
    %v4170 = vadd.f32 0.0, %v4169
    %v4171 = vpop.f32.mrf.mxu0
    %4172 = vdwg.mxu0
    %v4174 = vsel %vm1165, %v3805, 0
    %4176 = vmatprep.subr.mxu0 0.0
    %4177 = vmatpush1.msra.mxu0 0.0
    %4178 = vmatprep.subr.mxu0 0.0
    %4179 = vmatpush1.msra.mxu0 0.0
    %4180 = vmatprep.subr.mxu0 0.0
    %4181 = vmatpush1.msra.mxu0 0.0
    %4182 = vmatprep.subr.mxu0 0.0
    %4183 = vmatpush1.msra.mxu0 0.0
    %4184 = vmatprep.subr.mxu0 0.0
    %4185 = vmatpush1.msra.mxu0 0.0
    %4186 = vmatprep.subr.mxu0 0.0
    %4187 = vmatpush1.msra.mxu0 0.0
    %4188 = vmatprep.subr.mxu0 0.0
    %4189 = vmatpush1.msra.mxu0 0.0
    %4190 = vmatprep.subr.mxu0 0.0
    %4191 = vmatpush1.msra.mxu0 0.0
    %4192 = vmatprep.subr.mxu0 0.0
    %4193 = vmatpush1.msra.mxu0 0.0
    %4194 = vmatprep.subr.mxu0 0.0
    %4195 = vmatpush1.msra.mxu0 0.0
    %4196 = vmatprep.subr.mxu0 0.0
    %4197 = vmatpush1.msra.mxu0 0.0
    %4198 = vmatprep.subr.mxu0 0.0
    %4199 = vmatpush1.msra.mxu0 0.0
    %4200 = vmatprep.subr.mxu0 0.0
    %4201 = vmatpush1.msra.mxu0 0.0
    %4202 = vmatprep.subr.mxu0 0.0
    %4203 = vmatpush1.msra.mxu0 0.0
    %4204 = vmatprep.subr.mxu0 0.0
    %4205 = vmatpush1.msra.mxu0 0.0
    %4206 = vmatprep.subr.mxu0 0.0
    %4207 = vmatpush1.msra.mxu0 %v3133
    %4208 = vmatprep.subr.mxu0 0.0
    %4209 = vmatpush2.msra.mxu0 0.0
    %4210 = vmatprep.subr.mxu0 0.0
    %4211 = vmatpush2.msra.mxu0 0.0
    %4212 = vmatprep.subr.mxu0 0.0
    %4213 = vmatpush2.msra.mxu0 0.0
    %4214 = vmatprep.subr.mxu0 0.0
    %4215 = vmatpush2.msra.mxu0 0.0
    %4216 = vmatprep.subr.mxu0 0.0
    %4217 = vmatpush2.msra.mxu0 0.0
    %4218 = vmatprep.subr.mxu0 0.0
    %4219 = vmatpush2.msra.mxu0 0.0
    %4220 = vmatprep.subr.mxu0 0.0
    %4221 = vmatpush2.msra.mxu0 0.0
    %4222 = vmatprep.subr.mxu0 0.0
    %4223 = vmatpush2.msra.mxu0 0.0
    %4224 = vmatprep.subr.mxu0 0.0
    %4225 = vmatpush2.msra.mxu0 0.0
    %4226 = vmatprep.subr.mxu0 0.0
    %4227 = vmatpush2.msra.mxu0 0.0
    %4228 = vmatprep.subr.mxu0 0.0
    %4229 = vmatpush2.msra.mxu0 0.0
    %4230 = vmatprep.subr.mxu0 0.0
    %4231 = vmatpush2.msra.mxu0 0.0
    %4232 = vmatprep.subr.mxu0 0.0
    %4233 = vmatpush2.msra.mxu0 0.0
    %4234 = vmatprep.subr.mxu0 0.0
    %4235 = vmatpush2.msra.mxu0 0.0
    %4236 = vmatprep.subr.mxu0 0.0
    %4237 = vmatpush2.msra.mxu0 0.0
    %4238 = vmatprep.subr.mxu0 0.0
    %4239 = vmatpush2.msra.mxu0 0.0
    %4240 = vmatprep.mubr.f32.mxu0 0.0
    %4241 = vmatmul.mubr.f32.gmra.mxu0 %v4174
    %v4242 = vpop.f32.mrf.mxu0
    %v4243 = vadd.f32 0.0, %v4242
    %v4244 = vpop.f32.mrf.mxu0
    %4245 = vdwg.mxu0
    %v4247 = vsel %vm1165, %v3806, 0
    %4249 = vmatprep.subr.mxu0 0.0
    %4250 = vmatpush1.msra.mxu0 0.0
    %4251 = vmatprep.subr.mxu0 0.0
    %4252 = vmatpush1.msra.mxu0 0.0
    %4253 = vmatprep.subr.mxu0 0.0
    %4254 = vmatpush1.msra.mxu0 0.0
    %4255 = vmatprep.subr.mxu0 0.0
    %4256 = vmatpush1.msra.mxu0 0.0
    %4257 = vmatprep.subr.mxu0 0.0
    %4258 = vmatpush1.msra.mxu0 0.0
    %4259 = vmatprep.subr.mxu0 0.0
    %4260 = vmatpush1.msra.mxu0 0.0
    %4261 = vmatprep.subr.mxu0 0.0
    %4262 = vmatpush1.msra.mxu0 0.0
    %4263 = vmatprep.subr.mxu0 0.0
    %4264 = vmatpush1.msra.mxu0 0.0
    %4265 = vmatprep.subr.mxu0 0.0
    %4266 = vmatpush1.msra.mxu0 0.0
    %4267 = vmatprep.subr.mxu0 0.0
    %4268 = vmatpush1.msra.mxu0 0.0
    %4269 = vmatprep.subr.mxu0 0.0
    %4270 = vmatpush1.msra.mxu0 0.0
    %4271 = vmatprep.subr.mxu0 0.0
    %4272 = vmatpush1.msra.mxu0 0.0
    %4273 = vmatprep.subr.mxu0 0.0
    %4274 = vmatpush1.msra.mxu0 0.0
    %4275 = vmatprep.subr.mxu0 0.0
    %4276 = vmatpush1.msra.mxu0 0.0
    %4277 = vmatprep.subr.mxu0 0.0
    %4278 = vmatpush1.msra.mxu0 0.0
    %4279 = vmatprep.subr.mxu0 0.0
    %4280 = vmatpush1.msra.mxu0 %v3134
    %4281 = vmatprep.subr.mxu0 0.0
    %4282 = vmatpush2.msra.mxu0 0.0
    %4283 = vmatprep.subr.mxu0 0.0
    %4284 = vmatpush2.msra.mxu0 0.0
    %4285 = vmatprep.subr.mxu0 0.0
    %4286 = vmatpush2.msra.mxu0 0.0
    %4287 = vmatprep.subr.mxu0 0.0
    %4288 = vmatpush2.msra.mxu0 0.0
    %4289 = vmatprep.subr.mxu0 0.0
    %4290 = vmatpush2.msra.mxu0 0.0
    %4291 = vmatprep.subr.mxu0 0.0
    %4292 = vmatpush2.msra.mxu0 0.0
    %4293 = vmatprep.subr.mxu0 0.0
    %4294 = vmatpush2.msra.mxu0 0.0
    %4295 = vmatprep.subr.mxu0 0.0
    %4296 = vmatpush2.msra.mxu0 0.0
    %4297 = vmatprep.subr.mxu0 0.0
    %4298 = vmatpush2.msra.mxu0 0.0
    %4299 = vmatprep.subr.mxu0 0.0
    %4300 = vmatpush2.msra.mxu0 0.0
    %4301 = vmatprep.subr.mxu0 0.0
    %4302 = vmatpush2.msra.mxu0 0.0
    %4303 = vmatprep.subr.mxu0 0.0
    %4304 = vmatpush2.msra.mxu0 0.0
    %4305 = vmatprep.subr.mxu0 0.0
    %4306 = vmatpush2.msra.mxu0 0.0
    %4307 = vmatprep.subr.mxu0 0.0
    %4308 = vmatpush2.msra.mxu0 0.0
    %4309 = vmatprep.subr.mxu0 0.0
    %4310 = vmatpush2.msra.mxu0 0.0
    %4311 = vmatprep.subr.mxu0 0.0
    %4312 = vmatpush2.msra.mxu0 0.0
    %4313 = vmatprep.mubr.f32.mxu0 0.0
    %4314 = vmatmul.mubr.f32.gmra.mxu0 %v4247
    %v4315 = vpop.f32.mrf.mxu0
    %v4316 = vadd.f32 0.0, %v4315
    %v4317 = vpop.f32.mrf.mxu0
    %4318 = vdwg.mxu0
    %v4320 = vsel %vm1165, %v3807, 0
    %4322 = vmatprep.subr.mxu0 0.0
    %4323 = vmatpush1.msra.mxu0 0.0
    %4324 = vmatprep.subr.mxu0 0.0
    %4325 = vmatpush1.msra.mxu0 0.0
    %4326 = vmatprep.subr.mxu0 0.0
    %4327 = vmatpush1.msra.mxu0 0.0
    %4328 = vmatprep.subr.mxu0 0.0
    %4329 = vmatpush1.msra.mxu0 0.0
    %4330 = vmatprep.subr.mxu0 0.0
    %4331 = vmatpush1.msra.mxu0 0.0
    %4332 = vmatprep.subr.mxu0 0.0
    %4333 = vmatpush1.msra.mxu0 0.0
    %4334 = vmatprep.subr.mxu0 0.0
    %4335 = vmatpush1.msra.mxu0 0.0
    %4336 = vmatprep.subr.mxu0 0.0
    %4337 = vmatpush1.msra.mxu0 0.0
    %4338 = vmatprep.subr.mxu0 0.0
    %4339 = vmatpush1.msra.mxu0 0.0
    %4340 = vmatprep.subr.mxu0 0.0
    %4341 = vmatpush1.msra.mxu0 0.0
    %4342 = vmatprep.subr.mxu0 0.0
    %4343 = vmatpush1.msra.mxu0 0.0
    %4344 = vmatprep.subr.mxu0 0.0
    %4345 = vmatpush1.msra.mxu0 0.0
    %4346 = vmatprep.subr.mxu0 0.0
    %4347 = vmatpush1.msra.mxu0 0.0
    %4348 = vmatprep.subr.mxu0 0.0
    %4349 = vmatpush1.msra.mxu0 0.0
    %4350 = vmatprep.subr.mxu0 0.0
    %4351 = vmatpush1.msra.mxu0 0.0
    %4352 = vmatprep.subr.mxu0 0.0
    %4353 = vmatpush1.msra.mxu0 %v3135
    %4354 = vmatprep.subr.mxu0 0.0
    %4355 = vmatpush2.msra.mxu0 0.0
    %4356 = vmatprep.subr.mxu0 0.0
    %4357 = vmatpush2.msra.mxu0 0.0
    %4358 = vmatprep.subr.mxu0 0.0
    %4359 = vmatpush2.msra.mxu0 0.0
    %4360 = vmatprep.subr.mxu0 0.0
    %4361 = vmatpush2.msra.mxu0 0.0
    %4362 = vmatprep.subr.mxu0 0.0
    %4363 = vmatpush2.msra.mxu0 0.0
    %4364 = vmatprep.subr.mxu0 0.0
    %4365 = vmatpush2.msra.mxu0 0.0
    %4366 = vmatprep.subr.mxu0 0.0
    %4367 = vmatpush2.msra.mxu0 0.0
    %4368 = vmatprep.subr.mxu0 0.0
    %4369 = vmatpush2.msra.mxu0 0.0
    %4370 = vmatprep.subr.mxu0 0.0
    %4371 = vmatpush2.msra.mxu0 0.0
    %4372 = vmatprep.subr.mxu0 0.0
    %4373 = vmatpush2.msra.mxu0 0.0
    %4374 = vmatprep.subr.mxu0 0.0
    %4375 = vmatpush2.msra.mxu0 0.0
    %4376 = vmatprep.subr.mxu0 0.0
    %4377 = vmatpush2.msra.mxu0 0.0
    %4378 = vmatprep.subr.mxu0 0.0
    %4379 = vmatpush2.msra.mxu0 0.0
    %4380 = vmatprep.subr.mxu0 0.0
    %4381 = vmatpush2.msra.mxu0 0.0
    %4382 = vmatprep.subr.mxu0 0.0
    %4383 = vmatpush2.msra.mxu0 0.0
    %4384 = vmatprep.subr.mxu0 0.0
    %4385 = vmatpush2.msra.mxu0 0.0
    %4386 = vmatprep.mubr.f32.mxu0 0.0
    %4387 = vmatmul.mubr.f32.gmra.mxu0 %v4320
    %v4388 = vpop.f32.mrf.mxu0
    %v4389 = vadd.f32 0.0, %v4388
    %v4390 = vpop.f32.mrf.mxu0
    %4391 = vdwg.mxu0
    %v4392 = vadd.f32 %v2601, %v3878
    %v4393 = vadd.f32 %v2674, %v3951
    %v4394 = vadd.f32 %v2747, %v4024
    %v4395 = vadd.f32 %v2820, %v4097
    %v4396 = vadd.f32 %v2893, %v4170
    %v4397 = vadd.f32 %v2966, %v4243
    %v4398 = vadd.f32 %v3039, %v4316
    %v4399 = vadd.f32 %v3112, %v4389
    %vm4400 = vcmp.ge.s32.totalorder %v445, 24
    %vm4401 = vcmp.lt.s32.totalorder %v445, 32
    %vm4402 = vmand %vm4400, %vm4401
    %v4403 = vsel %vm4402, 1, 0
    %v4404 = vcvt.s32.f32 %v4403
    %v4405 = vmul.f32 %v289, %v4404
    %v4406 = vmul.f32 %v294, %v4404
    %v4407 = vmul.f32 %v299, %v4404
    %v4408 = vmul.f32 %v304, %v4404
    %v4409 = vmul.f32 %v309, %v4404
    %v4410 = vmul.f32 %v314, %v4404
    %v4411 = vmul.f32 %v319, %v4404
    %v4412 = vmul.f32 %v324, %v4404
    %v4413 = vmul.f32 %v398, %v4404
    %v4414 = vmul.f32 %v403, %v4404
    %v4415 = vmul.f32 %v408, %v4404
    %v4416 = vmul.f32 %v413, %v4404
    %v4417 = vmul.f32 %v418, %v4404
    %v4418 = vmul.f32 %v423, %v4404
    %v4419 = vmul.f32 %v428, %v4404
    %v4420 = vmul.f32 %v433, %v4404
    %v4422 = vsel %vm88, %v4405, 0
    %4424 = vmatprep.subr.mxu0 0.0
    %4425 = vmatpush1.xpose.msra.mxu0 0.0
    %4426 = vmatprep.subr.mxu0 0.0
    %4427 = vmatpush1.xpose.msra.mxu0 0.0
    %4428 = vmatprep.subr.mxu0 0.0
    %4429 = vmatpush1.xpose.msra.mxu0 0.0
    %4430 = vmatprep.subr.mxu0 0.0
    %4431 = vmatpush1.xpose.msra.mxu0 0.0
    %4432 = vmatprep.subr.mxu0 0.0
    %4433 = vmatpush1.xpose.msra.mxu0 0.0
    %4434 = vmatprep.subr.mxu0 0.0
    %4435 = vmatpush1.xpose.msra.mxu0 0.0
    %4436 = vmatprep.subr.mxu0 0.0
    %4437 = vmatpush1.xpose.msra.mxu0 0.0
    %4438 = vmatprep.subr.mxu0 0.0
    %4439 = vmatpush1.xpose.msra.mxu0 0.0
    %4440 = vmatprep.subr.mxu0 0.0
    %4441 = vmatpush1.xpose.msra.mxu0 0.0
    %4442 = vmatprep.subr.mxu0 0.0
    %4443 = vmatpush1.xpose.msra.mxu0 0.0
    %4444 = vmatprep.subr.mxu0 0.0
    %4445 = vmatpush1.xpose.msra.mxu0 0.0
    %4446 = vmatprep.subr.mxu0 0.0
    %4447 = vmatpush1.xpose.msra.mxu0 0.0
    %4448 = vmatprep.subr.mxu0 0.0
    %4449 = vmatpush1.xpose.msra.mxu0 0.0
    %4450 = vmatprep.subr.mxu0 0.0
    %4451 = vmatpush1.xpose.msra.mxu0 0.0
    %4452 = vmatprep.subr.mxu0 0.0
    %4453 = vmatpush1.xpose.msra.mxu0 0.0
    %4454 = vmatprep.subr.mxu0 0.0
    %4455 = vmatpush1.xpose.msra.mxu0 %v4422
    %4456 = vmatprep.subr.mxu0 0.0
    %4457 = vmatpush2.xpose.msra.mxu0 0.0
    %4458 = vmatprep.subr.mxu0 0.0
    %4459 = vmatpush2.xpose.msra.mxu0 0.0
    %4460 = vmatprep.subr.mxu0 0.0
    %4461 = vmatpush2.xpose.msra.mxu0 0.0
    %4462 = vmatprep.subr.mxu0 0.0
    %4463 = vmatpush2.xpose.msra.mxu0 0.0
    %4464 = vmatprep.subr.mxu0 0.0
    %4465 = vmatpush2.xpose.msra.mxu0 0.0
    %4466 = vmatprep.subr.mxu0 0.0
    %4467 = vmatpush2.xpose.msra.mxu0 0.0
    %4468 = vmatprep.subr.mxu0 0.0
    %4469 = vmatpush2.xpose.msra.mxu0 0.0
    %4470 = vmatprep.subr.mxu0 0.0
    %4471 = vmatpush2.xpose.msra.mxu0 0.0
    %4472 = vmatprep.subr.mxu0 0.0
    %4473 = vmatpush2.xpose.msra.mxu0 0.0
    %4474 = vmatprep.subr.mxu0 0.0
    %4475 = vmatpush2.xpose.msra.mxu0 0.0
    %4476 = vmatprep.subr.mxu0 0.0
    %4477 = vmatpush2.xpose.msra.mxu0 0.0
    %4478 = vmatprep.subr.mxu0 0.0
    %4479 = vmatpush2.xpose.msra.mxu0 0.0
    %4480 = vmatprep.subr.mxu0 0.0
    %4481 = vmatpush2.xpose.msra.mxu0 0.0
    %4482 = vmatprep.subr.mxu0 0.0
    %4483 = vmatpush2.xpose.msra.mxu0 0.0
    %4484 = vmatprep.subr.mxu0 0.0
    %4485 = vmatpush2.xpose.msra.mxu0 0.0
    %4486 = vmatprep.subr.mxu0 0.0
    %4487 = vmatpush2.xpose.msra.mxu0 0.0
    %4488 = vmatprep.mubr.f32.mxu0 0.0
    %4489 = vmatmul.mubr.f32.gmra.mxu0 %v558
    %v4490 = vpop.f32.mrf.mxu0
    %v4491 = vadd.f32 %v520, %v4490
    %v4492 = vpop.f32.mrf.mxu0
    %4493 = vdwg.mxu0
    %v4495 = vsel %vm88, %v4406, 0
    %4497 = vmatprep.subr.mxu0 0.0
    %4498 = vmatpush1.xpose.msra.mxu0 0.0
    %4499 = vmatprep.subr.mxu0 0.0
    %4500 = vmatpush1.xpose.msra.mxu0 0.0
    %4501 = vmatprep.subr.mxu0 0.0
    %4502 = vmatpush1.xpose.msra.mxu0 0.0
    %4503 = vmatprep.subr.mxu0 0.0
    %4504 = vmatpush1.xpose.msra.mxu0 0.0
    %4505 = vmatprep.subr.mxu0 0.0
    %4506 = vmatpush1.xpose.msra.mxu0 0.0
    %4507 = vmatprep.subr.mxu0 0.0
    %4508 = vmatpush1.xpose.msra.mxu0 0.0
    %4509 = vmatprep.subr.mxu0 0.0
    %4510 = vmatpush1.xpose.msra.mxu0 0.0
    %4511 = vmatprep.subr.mxu0 0.0
    %4512 = vmatpush1.xpose.msra.mxu0 0.0
    %4513 = vmatprep.subr.mxu0 0.0
    %4514 = vmatpush1.xpose.msra.mxu0 0.0
    %4515 = vmatprep.subr.mxu0 0.0
    %4516 = vmatpush1.xpose.msra.mxu0 0.0
    %4517 = vmatprep.subr.mxu0 0.0
    %4518 = vmatpush1.xpose.msra.mxu0 0.0
    %4519 = vmatprep.subr.mxu0 0.0
    %4520 = vmatpush1.xpose.msra.mxu0 0.0
    %4521 = vmatprep.subr.mxu0 0.0
    %4522 = vmatpush1.xpose.msra.mxu0 0.0
    %4523 = vmatprep.subr.mxu0 0.0
    %4524 = vmatpush1.xpose.msra.mxu0 0.0
    %4525 = vmatprep.subr.mxu0 0.0
    %4526 = vmatpush1.xpose.msra.mxu0 0.0
    %4527 = vmatprep.subr.mxu0 0.0
    %4528 = vmatpush1.xpose.msra.mxu0 %v4495
    %4529 = vmatprep.subr.mxu0 0.0
    %4530 = vmatpush2.xpose.msra.mxu0 0.0
    %4531 = vmatprep.subr.mxu0 0.0
    %4532 = vmatpush2.xpose.msra.mxu0 0.0
    %4533 = vmatprep.subr.mxu0 0.0
    %4534 = vmatpush2.xpose.msra.mxu0 0.0
    %4535 = vmatprep.subr.mxu0 0.0
    %4536 = vmatpush2.xpose.msra.mxu0 0.0
    %4537 = vmatprep.subr.mxu0 0.0
    %4538 = vmatpush2.xpose.msra.mxu0 0.0
    %4539 = vmatprep.subr.mxu0 0.0
    %4540 = vmatpush2.xpose.msra.mxu0 0.0
    %4541 = vmatprep.subr.mxu0 0.0
    %4542 = vmatpush2.xpose.msra.mxu0 0.0
    %4543 = vmatprep.subr.mxu0 0.0
    %4544 = vmatpush2.xpose.msra.mxu0 0.0
    %4545 = vmatprep.subr.mxu0 0.0
    %4546 = vmatpush2.xpose.msra.mxu0 0.0
    %4547 = vmatprep.subr.mxu0 0.0
    %4548 = vmatpush2.xpose.msra.mxu0 0.0
    %4549 = vmatprep.subr.mxu0 0.0
    %4550 = vmatpush2.xpose.msra.mxu0 0.0
    %4551 = vmatprep.subr.mxu0 0.0
    %4552 = vmatpush2.xpose.msra.mxu0 0.0
    %4553 = vmatprep.subr.mxu0 0.0
    %4554 = vmatpush2.xpose.msra.mxu0 0.0
    %4555 = vmatprep.subr.mxu0 0.0
    %4556 = vmatpush2.xpose.msra.mxu0 0.0
    %4557 = vmatprep.subr.mxu0 0.0
    %4558 = vmatpush2.xpose.msra.mxu0 0.0
    %4559 = vmatprep.subr.mxu0 0.0
    %4560 = vmatpush2.xpose.msra.mxu0 0.0
    %4561 = vmatprep.mubr.f32.mxu0 0.0
    %4562 = vmatmul.mubr.f32.gmra.mxu0 %v634
    %v4563 = vpop.f32.mrf.mxu0
    %v4564 = vadd.f32 %v524, %v4563
    %v4565 = vpop.f32.mrf.mxu0
    %4566 = vdwg.mxu0
    %v4568 = vsel %vm88, %v4407, 0
    %4570 = vmatprep.subr.mxu0 0.0
    %4571 = vmatpush1.xpose.msra.mxu0 0.0
    %4572 = vmatprep.subr.mxu0 0.0
    %4573 = vmatpush1.xpose.msra.mxu0 0.0
    %4574 = vmatprep.subr.mxu0 0.0
    %4575 = vmatpush1.xpose.msra.mxu0 0.0
    %4576 = vmatprep.subr.mxu0 0.0
    %4577 = vmatpush1.xpose.msra.mxu0 0.0
    %4578 = vmatprep.subr.mxu0 0.0
    %4579 = vmatpush1.xpose.msra.mxu0 0.0
    %4580 = vmatprep.subr.mxu0 0.0
    %4581 = vmatpush1.xpose.msra.mxu0 0.0
    %4582 = vmatprep.subr.mxu0 0.0
    %4583 = vmatpush1.xpose.msra.mxu0 0.0
    %4584 = vmatprep.subr.mxu0 0.0
    %4585 = vmatpush1.xpose.msra.mxu0 0.0
    %4586 = vmatprep.subr.mxu0 0.0
    %4587 = vmatpush1.xpose.msra.mxu0 0.0
    %4588 = vmatprep.subr.mxu0 0.0
    %4589 = vmatpush1.xpose.msra.mxu0 0.0
    %4590 = vmatprep.subr.mxu0 0.0
    %4591 = vmatpush1.xpose.msra.mxu0 0.0
    %4592 = vmatprep.subr.mxu0 0.0
    %4593 = vmatpush1.xpose.msra.mxu0 0.0
    %4594 = vmatprep.subr.mxu0 0.0
    %4595 = vmatpush1.xpose.msra.mxu0 0.0
    %4596 = vmatprep.subr.mxu0 0.0
    %4597 = vmatpush1.xpose.msra.mxu0 0.0
    %4598 = vmatprep.subr.mxu0 0.0
    %4599 = vmatpush1.xpose.msra.mxu0 0.0
    %4600 = vmatprep.subr.mxu0 0.0
    %4601 = vmatpush1.xpose.msra.mxu0 %v4568
    %4602 = vmatprep.subr.mxu0 0.0
    %4603 = vmatpush2.xpose.msra.mxu0 0.0
    %4604 = vmatprep.subr.mxu0 0.0
    %4605 = vmatpush2.xpose.msra.mxu0 0.0
    %4606 = vmatprep.subr.mxu0 0.0
    %4607 = vmatpush2.xpose.msra.mxu0 0.0
    %4608 = vmatprep.subr.mxu0 0.0
    %4609 = vmatpush2.xpose.msra.mxu0 0.0
    %4610 = vmatprep.subr.mxu0 0.0
    %4611 = vmatpush2.xpose.msra.mxu0 0.0
    %4612 = vmatprep.subr.mxu0 0.0
    %4613 = vmatpush2.xpose.msra.mxu0 0.0
    %4614 = vmatprep.subr.mxu0 0.0
    %4615 = vmatpush2.xpose.msra.mxu0 0.0
    %4616 = vmatprep.subr.mxu0 0.0
    %4617 = vmatpush2.xpose.msra.mxu0 0.0
    %4618 = vmatprep.subr.mxu0 0.0
    %4619 = vmatpush2.xpose.msra.mxu0 0.0
    %4620 = vmatprep.subr.mxu0 0.0
    %4621 = vmatpush2.xpose.msra.mxu0 0.0
    %4622 = vmatprep.subr.mxu0 0.0
    %4623 = vmatpush2.xpose.msra.mxu0 0.0
    %4624 = vmatprep.subr.mxu0 0.0
    %4625 = vmatpush2.xpose.msra.mxu0 0.0
    %4626 = vmatprep.subr.mxu0 0.0
    %4627 = vmatpush2.xpose.msra.mxu0 0.0
    %4628 = vmatprep.subr.mxu0 0.0
    %4629 = vmatpush2.xpose.msra.mxu0 0.0
    %4630 = vmatprep.subr.mxu0 0.0
    %4631 = vmatpush2.xpose.msra.mxu0 0.0
    %4632 = vmatprep.subr.mxu0 0.0
    %4633 = vmatpush2.xpose.msra.mxu0 0.0
    %4634 = vmatprep.mubr.f32.mxu0 0.0
    %4635 = vmatmul.mubr.f32.gmra.mxu0 %v710
    %v4636 = vpop.f32.mrf.mxu0
    %v4637 = vadd.f32 %v528, %v4636
    %v4638 = vpop.f32.mrf.mxu0
    %4639 = vdwg.mxu0
    %v4641 = vsel %vm88, %v4408, 0
    %4643 = vmatprep.subr.mxu0 0.0
    %4644 = vmatpush1.xpose.msra.mxu0 0.0
    %4645 = vmatprep.subr.mxu0 0.0
    %4646 = vmatpush1.xpose.msra.mxu0 0.0
    %4647 = vmatprep.subr.mxu0 0.0
    %4648 = vmatpush1.xpose.msra.mxu0 0.0
    %4649 = vmatprep.subr.mxu0 0.0
    %4650 = vmatpush1.xpose.msra.mxu0 0.0
    %4651 = vmatprep.subr.mxu0 0.0
    %4652 = vmatpush1.xpose.msra.mxu0 0.0
    %4653 = vmatprep.subr.mxu0 0.0
    %4654 = vmatpush1.xpose.msra.mxu0 0.0
    %4655 = vmatprep.subr.mxu0 0.0
    %4656 = vmatpush1.xpose.msra.mxu0 0.0
    %4657 = vmatprep.subr.mxu0 0.0
    %4658 = vmatpush1.xpose.msra.mxu0 0.0
    %4659 = vmatprep.subr.mxu0 0.0
    %4660 = vmatpush1.xpose.msra.mxu0 0.0
    %4661 = vmatprep.subr.mxu0 0.0
    %4662 = vmatpush1.xpose.msra.mxu0 0.0
    %4663 = vmatprep.subr.mxu0 0.0
    %4664 = vmatpush1.xpose.msra.mxu0 0.0
    %4665 = vmatprep.subr.mxu0 0.0
    %4666 = vmatpush1.xpose.msra.mxu0 0.0
    %4667 = vmatprep.subr.mxu0 0.0
    %4668 = vmatpush1.xpose.msra.mxu0 0.0
    %4669 = vmatprep.subr.mxu0 0.0
    %4670 = vmatpush1.xpose.msra.mxu0 0.0
    %4671 = vmatprep.subr.mxu0 0.0
    %4672 = vmatpush1.xpose.msra.mxu0 0.0
    %4673 = vmatprep.subr.mxu0 0.0
    %4674 = vmatpush1.xpose.msra.mxu0 %v4641
    %4675 = vmatprep.subr.mxu0 0.0
    %4676 = vmatpush2.xpose.msra.mxu0 0.0
    %4677 = vmatprep.subr.mxu0 0.0
    %4678 = vmatpush2.xpose.msra.mxu0 0.0
    %4679 = vmatprep.subr.mxu0 0.0
    %4680 = vmatpush2.xpose.msra.mxu0 0.0
    %4681 = vmatprep.subr.mxu0 0.0
    %4682 = vmatpush2.xpose.msra.mxu0 0.0
    %4683 = vmatprep.subr.mxu0 0.0
    %4684 = vmatpush2.xpose.msra.mxu0 0.0
    %4685 = vmatprep.subr.mxu0 0.0
    %4686 = vmatpush2.xpose.msra.mxu0 0.0
    %4687 = vmatprep.subr.mxu0 0.0
    %4688 = vmatpush2.xpose.msra.mxu0 0.0
    %4689 = vmatprep.subr.mxu0 0.0
    %4690 = vmatpush2.xpose.msra.mxu0 0.0
    %4691 = vmatprep.subr.mxu0 0.0
    %4692 = vmatpush2.xpose.msra.mxu0 0.0
    %4693 = vmatprep.subr.mxu0 0.0
    %4694 = vmatpush2.xpose.msra.mxu0 0.0
    %4695 = vmatprep.subr.mxu0 0.0
    %4696 = vmatpush2.xpose.msra.mxu0 0.0
    %4697 = vmatprep.subr.mxu0 0.0
    %4698 = vmatpush2.xpose.msra.mxu0 0.0
    %4699 = vmatprep.subr.mxu0 0.0
    %4700 = vmatpush2.xpose.msra.mxu0 0.0
    %4701 = vmatprep.subr.mxu0 0.0
    %4702 = vmatpush2.xpose.msra.mxu0 0.0
    %4703 = vmatprep.subr.mxu0 0.0
    %4704 = vmatpush2.xpose.msra.mxu0 0.0
    %4705 = vmatprep.subr.mxu0 0.0
    %4706 = vmatpush2.xpose.msra.mxu0 0.0
    %4707 = vmatprep.mubr.f32.mxu0 0.0
    %4708 = vmatmul.mubr.f32.gmra.mxu0 %v786
    %v4709 = vpop.f32.mrf.mxu0
    %v4710 = vadd.f32 %v532, %v4709
    %v4711 = vpop.f32.mrf.mxu0
    %4712 = vdwg.mxu0
    %v4714 = vsel %vm88, %v4409, 0
    %4716 = vmatprep.subr.mxu0 0.0
    %4717 = vmatpush1.xpose.msra.mxu0 0.0
    %4718 = vmatprep.subr.mxu0 0.0
    %4719 = vmatpush1.xpose.msra.mxu0 0.0
    %4720 = vmatprep.subr.mxu0 0.0
    %4721 = vmatpush1.xpose.msra.mxu0 0.0
    %4722 = vmatprep.subr.mxu0 0.0
    %4723 = vmatpush1.xpose.msra.mxu0 0.0
    %4724 = vmatprep.subr.mxu0 0.0
    %4725 = vmatpush1.xpose.msra.mxu0 0.0
    %4726 = vmatprep.subr.mxu0 0.0
    %4727 = vmatpush1.xpose.msra.mxu0 0.0
    %4728 = vmatprep.subr.mxu0 0.0
    %4729 = vmatpush1.xpose.msra.mxu0 0.0
    %4730 = vmatprep.subr.mxu0 0.0
    %4731 = vmatpush1.xpose.msra.mxu0 0.0
    %4732 = vmatprep.subr.mxu0 0.0
    %4733 = vmatpush1.xpose.msra.mxu0 0.0
    %4734 = vmatprep.subr.mxu0 0.0
    %4735 = vmatpush1.xpose.msra.mxu0 0.0
    %4736 = vmatprep.subr.mxu0 0.0
    %4737 = vmatpush1.xpose.msra.mxu0 0.0
    %4738 = vmatprep.subr.mxu0 0.0
    %4739 = vmatpush1.xpose.msra.mxu0 0.0
    %4740 = vmatprep.subr.mxu0 0.0
    %4741 = vmatpush1.xpose.msra.mxu0 0.0
    %4742 = vmatprep.subr.mxu0 0.0
    %4743 = vmatpush1.xpose.msra.mxu0 0.0
    %4744 = vmatprep.subr.mxu0 0.0
    %4745 = vmatpush1.xpose.msra.mxu0 0.0
    %4746 = vmatprep.subr.mxu0 0.0
    %4747 = vmatpush1.xpose.msra.mxu0 %v4714
    %4748 = vmatprep.subr.mxu0 0.0
    %4749 = vmatpush2.xpose.msra.mxu0 0.0
    %4750 = vmatprep.subr.mxu0 0.0
    %4751 = vmatpush2.xpose.msra.mxu0 0.0
    %4752 = vmatprep.subr.mxu0 0.0
    %4753 = vmatpush2.xpose.msra.mxu0 0.0
    %4754 = vmatprep.subr.mxu0 0.0
    %4755 = vmatpush2.xpose.msra.mxu0 0.0
    %4756 = vmatprep.subr.mxu0 0.0
    %4757 = vmatpush2.xpose.msra.mxu0 0.0
    %4758 = vmatprep.subr.mxu0 0.0
    %4759 = vmatpush2.xpose.msra.mxu0 0.0
    %4760 = vmatprep.subr.mxu0 0.0
    %4761 = vmatpush2.xpose.msra.mxu0 0.0
    %4762 = vmatprep.subr.mxu0 0.0
    %4763 = vmatpush2.xpose.msra.mxu0 0.0
    %4764 = vmatprep.subr.mxu0 0.0
    %4765 = vmatpush2.xpose.msra.mxu0 0.0
    %4766 = vmatprep.subr.mxu0 0.0
    %4767 = vmatpush2.xpose.msra.mxu0 0.0
    %4768 = vmatprep.subr.mxu0 0.0
    %4769 = vmatpush2.xpose.msra.mxu0 0.0
    %4770 = vmatprep.subr.mxu0 0.0
    %4771 = vmatpush2.xpose.msra.mxu0 0.0
    %4772 = vmatprep.subr.mxu0 0.0
    %4773 = vmatpush2.xpose.msra.mxu0 0.0
    %4774 = vmatprep.subr.mxu0 0.0
    %4775 = vmatpush2.xpose.msra.mxu0 0.0
    %4776 = vmatprep.subr.mxu0 0.0
    %4777 = vmatpush2.xpose.msra.mxu0 0.0
    %4778 = vmatprep.subr.mxu0 0.0
    %4779 = vmatpush2.xpose.msra.mxu0 0.0
    %4780 = vmatprep.mubr.f32.mxu0 0.0
    %4781 = vmatmul.mubr.f32.gmra.mxu0 %v862
    %v4782 = vpop.f32.mrf.mxu0
    %v4783 = vadd.f32 %v536, %v4782
    %v4784 = vpop.f32.mrf.mxu0
    %4785 = vdwg.mxu0
    %v4787 = vsel %vm88, %v4410, 0
    %4789 = vmatprep.subr.mxu0 0.0
    %4790 = vmatpush1.xpose.msra.mxu0 0.0
    %4791 = vmatprep.subr.mxu0 0.0
    %4792 = vmatpush1.xpose.msra.mxu0 0.0
    %4793 = vmatprep.subr.mxu0 0.0
    %4794 = vmatpush1.xpose.msra.mxu0 0.0
    %4795 = vmatprep.subr.mxu0 0.0
    %4796 = vmatpush1.xpose.msra.mxu0 0.0
    %4797 = vmatprep.subr.mxu0 0.0
    %4798 = vmatpush1.xpose.msra.mxu0 0.0
    %4799 = vmatprep.subr.mxu0 0.0
    %4800 = vmatpush1.xpose.msra.mxu0 0.0
    %4801 = vmatprep.subr.mxu0 0.0
    %4802 = vmatpush1.xpose.msra.mxu0 0.0
    %4803 = vmatprep.subr.mxu0 0.0
    %4804 = vmatpush1.xpose.msra.mxu0 0.0
    %4805 = vmatprep.subr.mxu0 0.0
    %4806 = vmatpush1.xpose.msra.mxu0 0.0
    %4807 = vmatprep.subr.mxu0 0.0
    %4808 = vmatpush1.xpose.msra.mxu0 0.0
    %4809 = vmatprep.subr.mxu0 0.0
    %4810 = vmatpush1.xpose.msra.mxu0 0.0
    %4811 = vmatprep.subr.mxu0 0.0
    %4812 = vmatpush1.xpose.msra.mxu0 0.0
    %4813 = vmatprep.subr.mxu0 0.0
    %4814 = vmatpush1.xpose.msra.mxu0 0.0
    %4815 = vmatprep.subr.mxu0 0.0
    %4816 = vmatpush1.xpose.msra.mxu0 0.0
    %4817 = vmatprep.subr.mxu0 0.0
    %4818 = vmatpush1.xpose.msra.mxu0 0.0
    %4819 = vmatprep.subr.mxu0 0.0
    %4820 = vmatpush1.xpose.msra.mxu0 %v4787
    %4821 = vmatprep.subr.mxu0 0.0
    %4822 = vmatpush2.xpose.msra.mxu0 0.0
    %4823 = vmatprep.subr.mxu0 0.0
    %4824 = vmatpush2.xpose.msra.mxu0 0.0
    %4825 = vmatprep.subr.mxu0 0.0
    %4826 = vmatpush2.xpose.msra.mxu0 0.0
    %4827 = vmatprep.subr.mxu0 0.0
    %4828 = vmatpush2.xpose.msra.mxu0 0.0
    %4829 = vmatprep.subr.mxu0 0.0
    %4830 = vmatpush2.xpose.msra.mxu0 0.0
    %4831 = vmatprep.subr.mxu0 0.0
    %4832 = vmatpush2.xpose.msra.mxu0 0.0
    %4833 = vmatprep.subr.mxu0 0.0
    %4834 = vmatpush2.xpose.msra.mxu0 0.0
    %4835 = vmatprep.subr.mxu0 0.0
    %4836 = vmatpush2.xpose.msra.mxu0 0.0
    %4837 = vmatprep.subr.mxu0 0.0
    %4838 = vmatpush2.xpose.msra.mxu0 0.0
    %4839 = vmatprep.subr.mxu0 0.0
    %4840 = vmatpush2.xpose.msra.mxu0 0.0
    %4841 = vmatprep.subr.mxu0 0.0
    %4842 = vmatpush2.xpose.msra.mxu0 0.0
    %4843 = vmatprep.subr.mxu0 0.0
    %4844 = vmatpush2.xpose.msra.mxu0 0.0
    %4845 = vmatprep.subr.mxu0 0.0
    %4846 = vmatpush2.xpose.msra.mxu0 0.0
    %4847 = vmatprep.subr.mxu0 0.0
    %4848 = vmatpush2.xpose.msra.mxu0 0.0
    %4849 = vmatprep.subr.mxu0 0.0
    %4850 = vmatpush2.xpose.msra.mxu0 0.0
    %4851 = vmatprep.subr.mxu0 0.0
    %4852 = vmatpush2.xpose.msra.mxu0 0.0
    %4853 = vmatprep.mubr.f32.mxu0 0.0
    %4854 = vmatmul.mubr.f32.gmra.mxu0 %v938
    %v4855 = vpop.f32.mrf.mxu0
    %v4856 = vadd.f32 %v540, %v4855
    %v4857 = vpop.f32.mrf.mxu0
    %4858 = vdwg.mxu0
    %v4860 = vsel %vm88, %v4411, 0
    %4862 = vmatprep.subr.mxu0 0.0
    %4863 = vmatpush1.xpose.msra.mxu0 0.0
    %4864 = vmatprep.subr.mxu0 0.0
    %4865 = vmatpush1.xpose.msra.mxu0 0.0
    %4866 = vmatprep.subr.mxu0 0.0
    %4867 = vmatpush1.xpose.msra.mxu0 0.0
    %4868 = vmatprep.subr.mxu0 0.0
    %4869 = vmatpush1.xpose.msra.mxu0 0.0
    %4870 = vmatprep.subr.mxu0 0.0
    %4871 = vmatpush1.xpose.msra.mxu0 0.0
    %4872 = vmatprep.subr.mxu0 0.0
    %4873 = vmatpush1.xpose.msra.mxu0 0.0
    %4874 = vmatprep.subr.mxu0 0.0
    %4875 = vmatpush1.xpose.msra.mxu0 0.0
    %4876 = vmatprep.subr.mxu0 0.0
    %4877 = vmatpush1.xpose.msra.mxu0 0.0
    %4878 = vmatprep.subr.mxu0 0.0
    %4879 = vmatpush1.xpose.msra.mxu0 0.0
    %4880 = vmatprep.subr.mxu0 0.0
    %4881 = vmatpush1.xpose.msra.mxu0 0.0
    %4882 = vmatprep.subr.mxu0 0.0
    %4883 = vmatpush1.xpose.msra.mxu0 0.0
    %4884 = vmatprep.subr.mxu0 0.0
    %4885 = vmatpush1.xpose.msra.mxu0 0.0
    %4886 = vmatprep.subr.mxu0 0.0
    %4887 = vmatpush1.xpose.msra.mxu0 0.0
    %4888 = vmatprep.subr.mxu0 0.0
    %4889 = vmatpush1.xpose.msra.mxu0 0.0
    %4890 = vmatprep.subr.mxu0 0.0
    %4891 = vmatpush1.xpose.msra.mxu0 0.0
    %4892 = vmatprep.subr.mxu0 0.0
    %4893 = vmatpush1.xpose.msra.mxu0 %v4860
    %4894 = vmatprep.subr.mxu0 0.0
    %4895 = vmatpush2.xpose.msra.mxu0 0.0
    %4896 = vmatprep.subr.mxu0 0.0
    %4897 = vmatpush2.xpose.msra.mxu0 0.0
    %4898 = vmatprep.subr.mxu0 0.0
    %4899 = vmatpush2.xpose.msra.mxu0 0.0
    %4900 = vmatprep.subr.mxu0 0.0
    %4901 = vmatpush2.xpose.msra.mxu0 0.0
    %4902 = vmatprep.subr.mxu0 0.0
    %4903 = vmatpush2.xpose.msra.mxu0 0.0
    %4904 = vmatprep.subr.mxu0 0.0
    %4905 = vmatpush2.xpose.msra.mxu0 0.0
    %4906 = vmatprep.subr.mxu0 0.0
    %4907 = vmatpush2.xpose.msra.mxu0 0.0
    %4908 = vmatprep.subr.mxu0 0.0
    %4909 = vmatpush2.xpose.msra.mxu0 0.0
    %4910 = vmatprep.subr.mxu0 0.0
    %4911 = vmatpush2.xpose.msra.mxu0 0.0
    %4912 = vmatprep.subr.mxu0 0.0
    %4913 = vmatpush2.xpose.msra.mxu0 0.0
    %4914 = vmatprep.subr.mxu0 0.0
    %4915 = vmatpush2.xpose.msra.mxu0 0.0
    %4916 = vmatprep.subr.mxu0 0.0
    %4917 = vmatpush2.xpose.msra.mxu0 0.0
    %4918 = vmatprep.subr.mxu0 0.0
    %4919 = vmatpush2.xpose.msra.mxu0 0.0
    %4920 = vmatprep.subr.mxu0 0.0
    %4921 = vmatpush2.xpose.msra.mxu0 0.0
    %4922 = vmatprep.subr.mxu0 0.0
    %4923 = vmatpush2.xpose.msra.mxu0 0.0
    %4924 = vmatprep.subr.mxu0 0.0
    %4925 = vmatpush2.xpose.msra.mxu0 0.0
    %4926 = vmatprep.mubr.f32.mxu0 0.0
    %4927 = vmatmul.mubr.f32.gmra.mxu0 %v1014
    %v4928 = vpop.f32.mrf.mxu0
    %v4929 = vadd.f32 %v544, %v4928
    %v4930 = vpop.f32.mrf.mxu0
    %4931 = vdwg.mxu0
    %v4933 = vsel %vm88, %v4412, 0
    %4935 = vmatprep.subr.mxu0 0.0
    %4936 = vmatpush1.xpose.msra.mxu0 0.0
    %4937 = vmatprep.subr.mxu0 0.0
    %4938 = vmatpush1.xpose.msra.mxu0 0.0
    %4939 = vmatprep.subr.mxu0 0.0
    %4940 = vmatpush1.xpose.msra.mxu0 0.0
    %4941 = vmatprep.subr.mxu0 0.0
    %4942 = vmatpush1.xpose.msra.mxu0 0.0
    %4943 = vmatprep.subr.mxu0 0.0
    %4944 = vmatpush1.xpose.msra.mxu0 0.0
    %4945 = vmatprep.subr.mxu0 0.0
    %4946 = vmatpush1.xpose.msra.mxu0 0.0
    %4947 = vmatprep.subr.mxu0 0.0
    %4948 = vmatpush1.xpose.msra.mxu0 0.0
    %4949 = vmatprep.subr.mxu0 0.0
    %4950 = vmatpush1.xpose.msra.mxu0 0.0
    %4951 = vmatprep.subr.mxu0 0.0
    %4952 = vmatpush1.xpose.msra.mxu0 0.0
    %4953 = vmatprep.subr.mxu0 0.0
    %4954 = vmatpush1.xpose.msra.mxu0 0.0
    %4955 = vmatprep.subr.mxu0 0.0
    %4956 = vmatpush1.xpose.msra.mxu0 0.0
    %4957 = vmatprep.subr.mxu0 0.0
    %4958 = vmatpush1.xpose.msra.mxu0 0.0
    %4959 = vmatprep.subr.mxu0 0.0
    %4960 = vmatpush1.xpose.msra.mxu0 0.0
    %4961 = vmatprep.subr.mxu0 0.0
    %4962 = vmatpush1.xpose.msra.mxu0 0.0
    %4963 = vmatprep.subr.mxu0 0.0
    %4964 = vmatpush1.xpose.msra.mxu0 0.0
    %4965 = vmatprep.subr.mxu0 0.0
    %4966 = vmatpush1.xpose.msra.mxu0 %v4933
    %4967 = vmatprep.subr.mxu0 0.0
    %4968 = vmatpush2.xpose.msra.mxu0 0.0
    %4969 = vmatprep.subr.mxu0 0.0
    %4970 = vmatpush2.xpose.msra.mxu0 0.0
    %4971 = vmatprep.subr.mxu0 0.0
    %4972 = vmatpush2.xpose.msra.mxu0 0.0
    %4973 = vmatprep.subr.mxu0 0.0
    %4974 = vmatpush2.xpose.msra.mxu0 0.0
    %4975 = vmatprep.subr.mxu0 0.0
    %4976 = vmatpush2.xpose.msra.mxu0 0.0
    %4977 = vmatprep.subr.mxu0 0.0
    %4978 = vmatpush2.xpose.msra.mxu0 0.0
    %4979 = vmatprep.subr.mxu0 0.0
    %4980 = vmatpush2.xpose.msra.mxu0 0.0
    %4981 = vmatprep.subr.mxu0 0.0
    %4982 = vmatpush2.xpose.msra.mxu0 0.0
    %4983 = vmatprep.subr.mxu0 0.0
    %4984 = vmatpush2.xpose.msra.mxu0 0.0
    %4985 = vmatprep.subr.mxu0 0.0
    %4986 = vmatpush2.xpose.msra.mxu0 0.0
    %4987 = vmatprep.subr.mxu0 0.0
    %4988 = vmatpush2.xpose.msra.mxu0 0.0
    %4989 = vmatprep.subr.mxu0 0.0
    %4990 = vmatpush2.xpose.msra.mxu0 0.0
    %4991 = vmatprep.subr.mxu0 0.0
    %4992 = vmatpush2.xpose.msra.mxu0 0.0
    %4993 = vmatprep.subr.mxu0 0.0
    %4994 = vmatpush2.xpose.msra.mxu0 0.0
    %4995 = vmatprep.subr.mxu0 0.0
    %4996 = vmatpush2.xpose.msra.mxu0 0.0
    %4997 = vmatprep.subr.mxu0 0.0
    %4998 = vmatpush2.xpose.msra.mxu0 0.0
    %4999 = vmatprep.mubr.f32.mxu0 0.0
    %5000 = vmatmul.mubr.f32.gmra.mxu0 %v1090
    %v5001 = vpop.f32.mrf.mxu0
    %v5002 = vadd.f32 %v548, %v5001
    %v5003 = vpop.f32.mrf.mxu0
    %5004 = vdwg.mxu0
    %v5005 = vsel %vm1165, %v4491, -inf
    %5006 = vmax.xlane.f32.xlu0 %v5005
    %v5007 = vpop.xlane.xlu0 %5006
    %v5008 = vsel %vm1165, %v4564, -inf
    %5009 = vmax.xlane.f32.xlu0 %v5008
    %v5010 = vpop.xlane.xlu0 %5009
    %v5011 = vsel %vm1165, %v4637, -inf
    %5012 = vmax.xlane.f32.xlu0 %v5011
    %v5013 = vpop.xlane.xlu0 %5012
    %v5014 = vsel %vm1165, %v4710, -inf
    %5015 = vmax.xlane.f32.xlu0 %v5014
    %v5016 = vpop.xlane.xlu0 %5015
    %v5017 = vsel %vm1165, %v4783, -inf
    %5018 = vmax.xlane.f32.xlu0 %v5017
    %v5019 = vpop.xlane.xlu0 %5018
    %v5020 = vsel %vm1165, %v4856, -inf
    %5021 = vmax.xlane.f32.xlu0 %v5020
    %v5022 = vpop.xlane.xlu0 %5021
    %v5023 = vsel %vm1165, %v4929, -inf
    %5024 = vmax.xlane.f32.xlu0 %v5023
    %v5025 = vpop.xlane.xlu0 %5024
    %v5026 = vsel %vm1165, %v5002, -inf
    %5027 = vmax.xlane.f32.xlu0 %v5026
    %v5028 = vpop.xlane.xlu0 %5027
    %v5029 = vsub.f32 %v4491, %v5007
    %v5030 = vsub.f32 %v4564, %v5010
    %v5031 = vsub.f32 %v4637, %v5013
    %v5032 = vsub.f32 %v4710, %v5016
    %v5033 = vsub.f32 %v4783, %v5019
    %v5034 = vsub.f32 %v4856, %v5022
    %v5035 = vsub.f32 %v4929, %v5025
    %v5036 = vsub.f32 %v5002, %v5028
    %v5037 = vmul.f32 %v5029, 1.442695
    %v5038 = vpow.pop %v5037
    %v5039 = vmul.f32 %v5030, 1.442695
    %v5040 = vpow.pop %v5039
    %v5041 = vmul.f32 %v5031, 1.442695
    %v5042 = vpow.pop %v5041
    %v5043 = vmul.f32 %v5032, 1.442695
    %v5044 = vpow.pop %v5043
    %v5045 = vmul.f32 %v5033, 1.442695
    %v5046 = vpow.pop %v5045
    %v5047 = vmul.f32 %v5034, 1.442695
    %v5048 = vpow.pop %v5047
    %v5049 = vmul.f32 %v5035, 1.442695
    %v5050 = vpow.pop %v5049
    %v5051 = vmul.f32 %v5036, 1.442695
    %v5052 = vpow.pop %v5051
    %v5053 = vsel %vm1165, %v5038, 0.0
    %5054 = vadd.xlane.f32.xlu0 %v5053
    %v5055 = vpop.xlane.xlu0 %5054
    %v5056 = vsel %vm1165, %v5040, 0.0
    %5057 = vadd.xlane.f32.xlu0 %v5056
    %v5058 = vpop.xlane.xlu0 %5057
    %v5059 = vsel %vm1165, %v5042, 0.0
    %5060 = vadd.xlane.f32.xlu0 %v5059
    %v5061 = vpop.xlane.xlu0 %5060
    %v5062 = vsel %vm1165, %v5044, 0.0
    %5063 = vadd.xlane.f32.xlu0 %v5062
    %v5064 = vpop.xlane.xlu0 %5063
    %v5065 = vsel %vm1165, %v5046, 0.0
    %5066 = vadd.xlane.f32.xlu0 %v5065
    %v5067 = vpop.xlane.xlu0 %5066
    %v5068 = vsel %vm1165, %v5048, 0.0
    %5069 = vadd.xlane.f32.xlu0 %v5068
    %v5070 = vpop.xlane.xlu0 %5069
    %v5071 = vsel %vm1165, %v5050, 0.0
    %5072 = vadd.xlane.f32.xlu0 %v5071
    %v5073 = vpop.xlane.xlu0 %5072
    %v5074 = vsel %vm1165, %v5052, 0.0
    %5075 = vadd.xlane.f32.xlu0 %v5074
    %v5076 = vpop.xlane.xlu0 %5075
    %v5077 = vrcp.pop %v5055
    %v5078 = vrcp.pop %v5058
    %v5079 = vrcp.pop %v5061
    %v5080 = vrcp.pop %v5064
    %v5081 = vrcp.pop %v5067
    %v5082 = vrcp.pop %v5070
    %v5083 = vrcp.pop %v5073
    %v5084 = vrcp.pop %v5076
    %v5085 = vmul.f32 %v5038, %v5077
    %v5086 = vmul.f32 %v5040, %v5078
    %v5087 = vmul.f32 %v5042, %v5079
    %v5088 = vmul.f32 %v5044, %v5080
    %v5089 = vmul.f32 %v5046, %v5081
    %v5090 = vmul.f32 %v5048, %v5082
    %v5091 = vmul.f32 %v5050, %v5083
    %v5092 = vmul.f32 %v5052, %v5084
    %v5094 = vsel %vm1165, %v5085, 0
    %5096 = vmatprep.subr.mxu0 0.0
    %5097 = vmatpush1.msra.mxu0 0.0
    %5098 = vmatprep.subr.mxu0 0.0
    %5099 = vmatpush1.msra.mxu0 0.0
    %5100 = vmatprep.subr.mxu0 0.0
    %5101 = vmatpush1.msra.mxu0 0.0
    %5102 = vmatprep.subr.mxu0 0.0
    %5103 = vmatpush1.msra.mxu0 0.0
    %5104 = vmatprep.subr.mxu0 0.0
    %5105 = vmatpush1.msra.mxu0 0.0
    %5106 = vmatprep.subr.mxu0 0.0
    %5107 = vmatpush1.msra.mxu0 0.0
    %5108 = vmatprep.subr.mxu0 0.0
    %5109 = vmatpush1.msra.mxu0 0.0
    %5110 = vmatprep.subr.mxu0 0.0
    %5111 = vmatpush1.msra.mxu0 0.0
    %5112 = vmatprep.subr.mxu0 0.0
    %5113 = vmatpush1.msra.mxu0 0.0
    %5114 = vmatprep.subr.mxu0 0.0
    %5115 = vmatpush1.msra.mxu0 0.0
    %5116 = vmatprep.subr.mxu0 0.0
    %5117 = vmatpush1.msra.mxu0 0.0
    %5118 = vmatprep.subr.mxu0 0.0
    %5119 = vmatpush1.msra.mxu0 0.0
    %5120 = vmatprep.subr.mxu0 0.0
    %5121 = vmatpush1.msra.mxu0 0.0
    %5122 = vmatprep.subr.mxu0 0.0
    %5123 = vmatpush1.msra.mxu0 0.0
    %5124 = vmatprep.subr.mxu0 0.0
    %5125 = vmatpush1.msra.mxu0 0.0
    %5126 = vmatprep.subr.mxu0 0.0
    %5127 = vmatpush1.msra.mxu0 %v4413
    %5128 = vmatprep.subr.mxu0 0.0
    %5129 = vmatpush2.msra.mxu0 0.0
    %5130 = vmatprep.subr.mxu0 0.0
    %5131 = vmatpush2.msra.mxu0 0.0
    %5132 = vmatprep.subr.mxu0 0.0
    %5133 = vmatpush2.msra.mxu0 0.0
    %5134 = vmatprep.subr.mxu0 0.0
    %5135 = vmatpush2.msra.mxu0 0.0
    %5136 = vmatprep.subr.mxu0 0.0
    %5137 = vmatpush2.msra.mxu0 0.0
    %5138 = vmatprep.subr.mxu0 0.0
    %5139 = vmatpush2.msra.mxu0 0.0
    %5140 = vmatprep.subr.mxu0 0.0
    %5141 = vmatpush2.msra.mxu0 0.0
    %5142 = vmatprep.subr.mxu0 0.0
    %5143 = vmatpush2.msra.mxu0 0.0
    %5144 = vmatprep.subr.mxu0 0.0
    %5145 = vmatpush2.msra.mxu0 0.0
    %5146 = vmatprep.subr.mxu0 0.0
    %5147 = vmatpush2.msra.mxu0 0.0
    %5148 = vmatprep.subr.mxu0 0.0
    %5149 = vmatpush2.msra.mxu0 0.0
    %5150 = vmatprep.subr.mxu0 0.0
    %5151 = vmatpush2.msra.mxu0 0.0
    %5152 = vmatprep.subr.mxu0 0.0
    %5153 = vmatpush2.msra.mxu0 0.0
    %5154 = vmatprep.subr.mxu0 0.0
    %5155 = vmatpush2.msra.mxu0 0.0
    %5156 = vmatprep.subr.mxu0 0.0
    %5157 = vmatpush2.msra.mxu0 0.0
    %5158 = vmatprep.subr.mxu0 0.0
    %5159 = vmatpush2.msra.mxu0 0.0
    %5160 = vmatprep.mubr.f32.mxu0 0.0
    %5161 = vmatmul.mubr.f32.gmra.mxu0 %v5094
    %v5162 = vpop.f32.mrf.mxu0
    %v5163 = vadd.f32 0.0, %v5162
    %v5164 = vpop.f32.mrf.mxu0
    %5165 = vdwg.mxu0
    %v5167 = vsel %vm1165, %v5086, 0
    %5169 = vmatprep.subr.mxu0 0.0
    %5170 = vmatpush1.msra.mxu0 0.0
    %5171 = vmatprep.subr.mxu0 0.0
    %5172 = vmatpush1.msra.mxu0 0.0
    %5173 = vmatprep.subr.mxu0 0.0
    %5174 = vmatpush1.msra.mxu0 0.0
    %5175 = vmatprep.subr.mxu0 0.0
    %5176 = vmatpush1.msra.mxu0 0.0
    %5177 = vmatprep.subr.mxu0 0.0
    %5178 = vmatpush1.msra.mxu0 0.0
    %5179 = vmatprep.subr.mxu0 0.0
    %5180 = vmatpush1.msra.mxu0 0.0
    %5181 = vmatprep.subr.mxu0 0.0
    %5182 = vmatpush1.msra.mxu0 0.0
    %5183 = vmatprep.subr.mxu0 0.0
    %5184 = vmatpush1.msra.mxu0 0.0
    %5185 = vmatprep.subr.mxu0 0.0
    %5186 = vmatpush1.msra.mxu0 0.0
    %5187 = vmatprep.subr.mxu0 0.0
    %5188 = vmatpush1.msra.mxu0 0.0
    %5189 = vmatprep.subr.mxu0 0.0
    %5190 = vmatpush1.msra.mxu0 0.0
    %5191 = vmatprep.subr.mxu0 0.0
    %5192 = vmatpush1.msra.mxu0 0.0
    %5193 = vmatprep.subr.mxu0 0.0
    %5194 = vmatpush1.msra.mxu0 0.0
    %5195 = vmatprep.subr.mxu0 0.0
    %5196 = vmatpush1.msra.mxu0 0.0
    %5197 = vmatprep.subr.mxu0 0.0
    %5198 = vmatpush1.msra.mxu0 0.0
    %5199 = vmatprep.subr.mxu0 0.0
    %5200 = vmatpush1.msra.mxu0 %v4414
    %5201 = vmatprep.subr.mxu0 0.0
    %5202 = vmatpush2.msra.mxu0 0.0
    %5203 = vmatprep.subr.mxu0 0.0
    %5204 = vmatpush2.msra.mxu0 0.0
    %5205 = vmatprep.subr.mxu0 0.0
    %5206 = vmatpush2.msra.mxu0 0.0
    %5207 = vmatprep.subr.mxu0 0.0
    %5208 = vmatpush2.msra.mxu0 0.0
    %5209 = vmatprep.subr.mxu0 0.0
    %5210 = vmatpush2.msra.mxu0 0.0
    %5211 = vmatprep.subr.mxu0 0.0
    %5212 = vmatpush2.msra.mxu0 0.0
    %5213 = vmatprep.subr.mxu0 0.0
    %5214 = vmatpush2.msra.mxu0 0.0
    %5215 = vmatprep.subr.mxu0 0.0
    %5216 = vmatpush2.msra.mxu0 0.0
    %5217 = vmatprep.subr.mxu0 0.0
    %5218 = vmatpush2.msra.mxu0 0.0
    %5219 = vmatprep.subr.mxu0 0.0
    %5220 = vmatpush2.msra.mxu0 0.0
    %5221 = vmatprep.subr.mxu0 0.0
    %5222 = vmatpush2.msra.mxu0 0.0
    %5223 = vmatprep.subr.mxu0 0.0
    %5224 = vmatpush2.msra.mxu0 0.0
    %5225 = vmatprep.subr.mxu0 0.0
    %5226 = vmatpush2.msra.mxu0 0.0
    %5227 = vmatprep.subr.mxu0 0.0
    %5228 = vmatpush2.msra.mxu0 0.0
    %5229 = vmatprep.subr.mxu0 0.0
    %5230 = vmatpush2.msra.mxu0 0.0
    %5231 = vmatprep.subr.mxu0 0.0
    %5232 = vmatpush2.msra.mxu0 0.0
    %5233 = vmatprep.mubr.f32.mxu0 0.0
    %5234 = vmatmul.mubr.f32.gmra.mxu0 %v5167
    %v5235 = vpop.f32.mrf.mxu0
    %v5236 = vadd.f32 0.0, %v5235
    %v5237 = vpop.f32.mrf.mxu0
    %5238 = vdwg.mxu0
    %v5240 = vsel %vm1165, %v5087, 0
    %5242 = vmatprep.subr.mxu0 0.0
    %5243 = vmatpush1.msra.mxu0 0.0
    %5244 = vmatprep.subr.mxu0 0.0
    %5245 = vmatpush1.msra.mxu0 0.0
    %5246 = vmatprep.subr.mxu0 0.0
    %5247 = vmatpush1.msra.mxu0 0.0
    %5248 = vmatprep.subr.mxu0 0.0
    %5249 = vmatpush1.msra.mxu0 0.0
    %5250 = vmatprep.subr.mxu0 0.0
    %5251 = vmatpush1.msra.mxu0 0.0
    %5252 = vmatprep.subr.mxu0 0.0
    %5253 = vmatpush1.msra.mxu0 0.0
    %5254 = vmatprep.subr.mxu0 0.0
    %5255 = vmatpush1.msra.mxu0 0.0
    %5256 = vmatprep.subr.mxu0 0.0
    %5257 = vmatpush1.msra.mxu0 0.0
    %5258 = vmatprep.subr.mxu0 0.0
    %5259 = vmatpush1.msra.mxu0 0.0
    %5260 = vmatprep.subr.mxu0 0.0
    %5261 = vmatpush1.msra.mxu0 0.0
    %5262 = vmatprep.subr.mxu0 0.0
    %5263 = vmatpush1.msra.mxu0 0.0
    %5264 = vmatprep.subr.mxu0 0.0
    %5265 = vmatpush1.msra.mxu0 0.0
    %5266 = vmatprep.subr.mxu0 0.0
    %5267 = vmatpush1.msra.mxu0 0.0
    %5268 = vmatprep.subr.mxu0 0.0
    %5269 = vmatpush1.msra.mxu0 0.0
    %5270 = vmatprep.subr.mxu0 0.0
    %5271 = vmatpush1.msra.mxu0 0.0
    %5272 = vmatprep.subr.mxu0 0.0
    %5273 = vmatpush1.msra.mxu0 %v4415
    %5274 = vmatprep.subr.mxu0 0.0
    %5275 = vmatpush2.msra.mxu0 0.0
    %5276 = vmatprep.subr.mxu0 0.0
    %5277 = vmatpush2.msra.mxu0 0.0
    %5278 = vmatprep.subr.mxu0 0.0
    %5279 = vmatpush2.msra.mxu0 0.0
    %5280 = vmatprep.subr.mxu0 0.0
    %5281 = vmatpush2.msra.mxu0 0.0
    %5282 = vmatprep.subr.mxu0 0.0
    %5283 = vmatpush2.msra.mxu0 0.0
    %5284 = vmatprep.subr.mxu0 0.0
    %5285 = vmatpush2.msra.mxu0 0.0
    %5286 = vmatprep.subr.mxu0 0.0
    %5287 = vmatpush2.msra.mxu0 0.0
    %5288 = vmatprep.subr.mxu0 0.0
    %5289 = vmatpush2.msra.mxu0 0.0
    %5290 = vmatprep.subr.mxu0 0.0
    %5291 = vmatpush2.msra.mxu0 0.0
    %5292 = vmatprep.subr.mxu0 0.0
    %5293 = vmatpush2.msra.mxu0 0.0
    %5294 = vmatprep.subr.mxu0 0.0
    %5295 = vmatpush2.msra.mxu0 0.0
    %5296 = vmatprep.subr.mxu0 0.0
    %5297 = vmatpush2.msra.mxu0 0.0
    %5298 = vmatprep.subr.mxu0 0.0
    %5299 = vmatpush2.msra.mxu0 0.0
    %5300 = vmatprep.subr.mxu0 0.0
    %5301 = vmatpush2.msra.mxu0 0.0
    %5302 = vmatprep.subr.mxu0 0.0
    %5303 = vmatpush2.msra.mxu0 0.0
    %5304 = vmatprep.subr.mxu0 0.0
    %5305 = vmatpush2.msra.mxu0 0.0
    %5306 = vmatprep.mubr.f32.mxu0 0.0
    %5307 = vmatmul.mubr.f32.gmra.mxu0 %v5240
    %v5308 = vpop.f32.mrf.mxu0
    %v5309 = vadd.f32 0.0, %v5308
    %v5310 = vpop.f32.mrf.mxu0
    %5311 = vdwg.mxu0
    %v5313 = vsel %vm1165, %v5088, 0
    %5315 = vmatprep.subr.mxu0 0.0
    %5316 = vmatpush1.msra.mxu0 0.0
    %5317 = vmatprep.subr.mxu0 0.0
    %5318 = vmatpush1.msra.mxu0 0.0
    %5319 = vmatprep.subr.mxu0 0.0
    %5320 = vmatpush1.msra.mxu0 0.0
    %5321 = vmatprep.subr.mxu0 0.0
    %5322 = vmatpush1.msra.mxu0 0.0
    %5323 = vmatprep.subr.mxu0 0.0
    %5324 = vmatpush1.msra.mxu0 0.0
    %5325 = vmatprep.subr.mxu0 0.0
    %5326 = vmatpush1.msra.mxu0 0.0
    %5327 = vmatprep.subr.mxu0 0.0
    %5328 = vmatpush1.msra.mxu0 0.0
    %5329 = vmatprep.subr.mxu0 0.0
    %5330 = vmatpush1.msra.mxu0 0.0
    %5331 = vmatprep.subr.mxu0 0.0
    %5332 = vmatpush1.msra.mxu0 0.0
    %5333 = vmatprep.subr.mxu0 0.0
    %5334 = vmatpush1.msra.mxu0 0.0
    %5335 = vmatprep.subr.mxu0 0.0
    %5336 = vmatpush1.msra.mxu0 0.0
    %5337 = vmatprep.subr.mxu0 0.0
    %5338 = vmatpush1.msra.mxu0 0.0
    %5339 = vmatprep.subr.mxu0 0.0
    %5340 = vmatpush1.msra.mxu0 0.0
    %5341 = vmatprep.subr.mxu0 0.0
    %5342 = vmatpush1.msra.mxu0 0.0
    %5343 = vmatprep.subr.mxu0 0.0
    %5344 = vmatpush1.msra.mxu0 0.0
    %5345 = vmatprep.subr.mxu0 0.0
    %5346 = vmatpush1.msra.mxu0 %v4416
    %5347 = vmatprep.subr.mxu0 0.0
    %5348 = vmatpush2.msra.mxu0 0.0
    %5349 = vmatprep.subr.mxu0 0.0
    %5350 = vmatpush2.msra.mxu0 0.0
    %5351 = vmatprep.subr.mxu0 0.0
    %5352 = vmatpush2.msra.mxu0 0.0
    %5353 = vmatprep.subr.mxu0 0.0
    %5354 = vmatpush2.msra.mxu0 0.0
    %5355 = vmatprep.subr.mxu0 0.0
    %5356 = vmatpush2.msra.mxu0 0.0
    %5357 = vmatprep.subr.mxu0 0.0
    %5358 = vmatpush2.msra.mxu0 0.0
    %5359 = vmatprep.subr.mxu0 0.0
    %5360 = vmatpush2.msra.mxu0 0.0
    %5361 = vmatprep.subr.mxu0 0.0
    %5362 = vmatpush2.msra.mxu0 0.0
    %5363 = vmatprep.subr.mxu0 0.0
    %5364 = vmatpush2.msra.mxu0 0.0
    %5365 = vmatprep.subr.mxu0 0.0
    %5366 = vmatpush2.msra.mxu0 0.0
    %5367 = vmatprep.subr.mxu0 0.0
    %5368 = vmatpush2.msra.mxu0 0.0
    %5369 = vmatprep.subr.mxu0 0.0
    %5370 = vmatpush2.msra.mxu0 0.0
    %5371 = vmatprep.subr.mxu0 0.0
    %5372 = vmatpush2.msra.mxu0 0.0
    %5373 = vmatprep.subr.mxu0 0.0
    %5374 = vmatpush2.msra.mxu0 0.0
    %5375 = vmatprep.subr.mxu0 0.0
    %5376 = vmatpush2.msra.mxu0 0.0
    %5377 = vmatprep.subr.mxu0 0.0
    %5378 = vmatpush2.msra.mxu0 0.0
    %5379 = vmatprep.mubr.f32.mxu0 0.0
    %5380 = vmatmul.mubr.f32.gmra.mxu0 %v5313
    %v5381 = vpop.f32.mrf.mxu0
    %v5382 = vadd.f32 0.0, %v5381
    %v5383 = vpop.f32.mrf.mxu0
    %5384 = vdwg.mxu0
    %v5386 = vsel %vm1165, %v5089, 0
    %5388 = vmatprep.subr.mxu0 0.0
    %5389 = vmatpush1.msra.mxu0 0.0
    %5390 = vmatprep.subr.mxu0 0.0
    %5391 = vmatpush1.msra.mxu0 0.0
    %5392 = vmatprep.subr.mxu0 0.0
    %5393 = vmatpush1.msra.mxu0 0.0
    %5394 = vmatprep.subr.mxu0 0.0
    %5395 = vmatpush1.msra.mxu0 0.0
    %5396 = vmatprep.subr.mxu0 0.0
    %5397 = vmatpush1.msra.mxu0 0.0
    %5398 = vmatprep.subr.mxu0 0.0
    %5399 = vmatpush1.msra.mxu0 0.0
    %5400 = vmatprep.subr.mxu0 0.0
    %5401 = vmatpush1.msra.mxu0 0.0
    %5402 = vmatprep.subr.mxu0 0.0
    %5403 = vmatpush1.msra.mxu0 0.0
    %5404 = vmatprep.subr.mxu0 0.0
    %5405 = vmatpush1.msra.mxu0 0.0
    %5406 = vmatprep.subr.mxu0 0.0
    %5407 = vmatpush1.msra.mxu0 0.0
    %5408 = vmatprep.subr.mxu0 0.0
    %5409 = vmatpush1.msra.mxu0 0.0
    %5410 = vmatprep.subr.mxu0 0.0
    %5411 = vmatpush1.msra.mxu0 0.0
    %5412 = vmatprep.subr.mxu0 0.0
    %5413 = vmatpush1.msra.mxu0 0.0
    %5414 = vmatprep.subr.mxu0 0.0
    %5415 = vmatpush1.msra.mxu0 0.0
    %5416 = vmatprep.subr.mxu0 0.0
    %5417 = vmatpush1.msra.mxu0 0.0
    %5418 = vmatprep.subr.mxu0 0.0
    %5419 = vmatpush1.msra.mxu0 %v4417
    %5420 = vmatprep.subr.mxu0 0.0
    %5421 = vmatpush2.msra.mxu0 0.0
    %5422 = vmatprep.subr.mxu0 0.0
    %5423 = vmatpush2.msra.mxu0 0.0
    %5424 = vmatprep.subr.mxu0 0.0
    %5425 = vmatpush2.msra.mxu0 0.0
    %5426 = vmatprep.subr.mxu0 0.0
    %5427 = vmatpush2.msra.mxu0 0.0
    %5428 = vmatprep.subr.mxu0 0.0
    %5429 = vmatpush2.msra.mxu0 0.0
    %5430 = vmatprep.subr.mxu0 0.0
    %5431 = vmatpush2.msra.mxu0 0.0
    %5432 = vmatprep.subr.mxu0 0.0
    %5433 = vmatpush2.msra.mxu0 0.0
    %5434 = vmatprep.subr.mxu0 0.0
    %5435 = vmatpush2.msra.mxu0 0.0
    %5436 = vmatprep.subr.mxu0 0.0
    %5437 = vmatpush2.msra.mxu0 0.0
    %5438 = vmatprep.subr.mxu0 0.0
    %5439 = vmatpush2.msra.mxu0 0.0
    %5440 = vmatprep.subr.mxu0 0.0
    %5441 = vmatpush2.msra.mxu0 0.0
    %5442 = vmatprep.subr.mxu0 0.0
    %5443 = vmatpush2.msra.mxu0 0.0
    %5444 = vmatprep.subr.mxu0 0.0
    %5445 = vmatpush2.msra.mxu0 0.0
    %5446 = vmatprep.subr.mxu0 0.0
    %5447 = vmatpush2.msra.mxu0 0.0
    %5448 = vmatprep.subr.mxu0 0.0
    %5449 = vmatpush2.msra.mxu0 0.0
    %5450 = vmatprep.subr.mxu0 0.0
    %5451 = vmatpush2.msra.mxu0 0.0
    %5452 = vmatprep.mubr.f32.mxu0 0.0
    %5453 = vmatmul.mubr.f32.gmra.mxu0 %v5386
    %v5454 = vpop.f32.mrf.mxu0
    %v5455 = vadd.f32 0.0, %v5454
    %v5456 = vpop.f32.mrf.mxu0
    %5457 = vdwg.mxu0
    %v5459 = vsel %vm1165, %v5090, 0
    %5461 = vmatprep.subr.mxu0 0.0
    %5462 = vmatpush1.msra.mxu0 0.0
    %5463 = vmatprep.subr.mxu0 0.0
    %5464 = vmatpush1.msra.mxu0 0.0
    %5465 = vmatprep.subr.mxu0 0.0
    %5466 = vmatpush1.msra.mxu0 0.0
    %5467 = vmatprep.subr.mxu0 0.0
    %5468 = vmatpush1.msra.mxu0 0.0
    %5469 = vmatprep.subr.mxu0 0.0
    %5470 = vmatpush1.msra.mxu0 0.0
    %5471 = vmatprep.subr.mxu0 0.0
    %5472 = vmatpush1.msra.mxu0 0.0
    %5473 = vmatprep.subr.mxu0 0.0
    %5474 = vmatpush1.msra.mxu0 0.0
    %5475 = vmatprep.subr.mxu0 0.0
    %5476 = vmatpush1.msra.mxu0 0.0
    %5477 = vmatprep.subr.mxu0 0.0
    %5478 = vmatpush1.msra.mxu0 0.0
    %5479 = vmatprep.subr.mxu0 0.0
    %5480 = vmatpush1.msra.mxu0 0.0
    %5481 = vmatprep.subr.mxu0 0.0
    %5482 = vmatpush1.msra.mxu0 0.0
    %5483 = vmatprep.subr.mxu0 0.0
    %5484 = vmatpush1.msra.mxu0 0.0
    %5485 = vmatprep.subr.mxu0 0.0
    %5486 = vmatpush1.msra.mxu0 0.0
    %5487 = vmatprep.subr.mxu0 0.0
    %5488 = vmatpush1.msra.mxu0 0.0
    %5489 = vmatprep.subr.mxu0 0.0
    %5490 = vmatpush1.msra.mxu0 0.0
    %5491 = vmatprep.subr.mxu0 0.0
    %5492 = vmatpush1.msra.mxu0 %v4418
    %5493 = vmatprep.subr.mxu0 0.0
    %5494 = vmatpush2.msra.mxu0 0.0
    %5495 = vmatprep.subr.mxu0 0.0
    %5496 = vmatpush2.msra.mxu0 0.0
    %5497 = vmatprep.subr.mxu0 0.0
    %5498 = vmatpush2.msra.mxu0 0.0
    %5499 = vmatprep.subr.mxu0 0.0
    %5500 = vmatpush2.msra.mxu0 0.0
    %5501 = vmatprep.subr.mxu0 0.0
    %5502 = vmatpush2.msra.mxu0 0.0
    %5503 = vmatprep.subr.mxu0 0.0
    %5504 = vmatpush2.msra.mxu0 0.0
    %5505 = vmatprep.subr.mxu0 0.0
    %5506 = vmatpush2.msra.mxu0 0.0
    %5507 = vmatprep.subr.mxu0 0.0
    %5508 = vmatpush2.msra.mxu0 0.0
    %5509 = vmatprep.subr.mxu0 0.0
    %5510 = vmatpush2.msra.mxu0 0.0
    %5511 = vmatprep.subr.mxu0 0.0
    %5512 = vmatpush2.msra.mxu0 0.0
    %5513 = vmatprep.subr.mxu0 0.0
    %5514 = vmatpush2.msra.mxu0 0.0
    %5515 = vmatprep.subr.mxu0 0.0
    %5516 = vmatpush2.msra.mxu0 0.0
    %5517 = vmatprep.subr.mxu0 0.0
    %5518 = vmatpush2.msra.mxu0 0.0
    %5519 = vmatprep.subr.mxu0 0.0
    %5520 = vmatpush2.msra.mxu0 0.0
    %5521 = vmatprep.subr.mxu0 0.0
    %5522 = vmatpush2.msra.mxu0 0.0
    %5523 = vmatprep.subr.mxu0 0.0
    %5524 = vmatpush2.msra.mxu0 0.0
    %5525 = vmatprep.mubr.f32.mxu0 0.0
    %5526 = vmatmul.mubr.f32.gmra.mxu0 %v5459
    %v5527 = vpop.f32.mrf.mxu0
    %v5528 = vadd.f32 0.0, %v5527
    %v5529 = vpop.f32.mrf.mxu0
    %5530 = vdwg.mxu0
    %v5532 = vsel %vm1165, %v5091, 0
    %5534 = vmatprep.subr.mxu0 0.0
    %5535 = vmatpush1.msra.mxu0 0.0
    %5536 = vmatprep.subr.mxu0 0.0
    %5537 = vmatpush1.msra.mxu0 0.0
    %5538 = vmatprep.subr.mxu0 0.0
    %5539 = vmatpush1.msra.mxu0 0.0
    %5540 = vmatprep.subr.mxu0 0.0
    %5541 = vmatpush1.msra.mxu0 0.0
    %5542 = vmatprep.subr.mxu0 0.0
    %5543 = vmatpush1.msra.mxu0 0.0
    %5544 = vmatprep.subr.mxu0 0.0
    %5545 = vmatpush1.msra.mxu0 0.0
    %5546 = vmatprep.subr.mxu0 0.0
    %5547 = vmatpush1.msra.mxu0 0.0
    %5548 = vmatprep.subr.mxu0 0.0
    %5549 = vmatpush1.msra.mxu0 0.0
    %5550 = vmatprep.subr.mxu0 0.0
    %5551 = vmatpush1.msra.mxu0 0.0
    %5552 = vmatprep.subr.mxu0 0.0
    %5553 = vmatpush1.msra.mxu0 0.0
    %5554 = vmatprep.subr.mxu0 0.0
    %5555 = vmatpush1.msra.mxu0 0.0
    %5556 = vmatprep.subr.mxu0 0.0
    %5557 = vmatpush1.msra.mxu0 0.0
    %5558 = vmatprep.subr.mxu0 0.0
    %5559 = vmatpush1.msra.mxu0 0.0
    %5560 = vmatprep.subr.mxu0 0.0
    %5561 = vmatpush1.msra.mxu0 0.0
    %5562 = vmatprep.subr.mxu0 0.0
    %5563 = vmatpush1.msra.mxu0 0.0
    %5564 = vmatprep.subr.mxu0 0.0
    %5565 = vmatpush1.msra.mxu0 %v4419
    %5566 = vmatprep.subr.mxu0 0.0
    %5567 = vmatpush2.msra.mxu0 0.0
    %5568 = vmatprep.subr.mxu0 0.0
    %5569 = vmatpush2.msra.mxu0 0.0
    %5570 = vmatprep.subr.mxu0 0.0
    %5571 = vmatpush2.msra.mxu0 0.0
    %5572 = vmatprep.subr.mxu0 0.0
    %5573 = vmatpush2.msra.mxu0 0.0
    %5574 = vmatprep.subr.mxu0 0.0
    %5575 = vmatpush2.msra.mxu0 0.0
    %5576 = vmatprep.subr.mxu0 0.0
    %5577 = vmatpush2.msra.mxu0 0.0
    %5578 = vmatprep.subr.mxu0 0.0
    %5579 = vmatpush2.msra.mxu0 0.0
    %5580 = vmatprep.subr.mxu0 0.0
    %5581 = vmatpush2.msra.mxu0 0.0
    %5582 = vmatprep.subr.mxu0 0.0
    %5583 = vmatpush2.msra.mxu0 0.0
    %5584 = vmatprep.subr.mxu0 0.0
    %5585 = vmatpush2.msra.mxu0 0.0
    %5586 = vmatprep.subr.mxu0 0.0
    %5587 = vmatpush2.msra.mxu0 0.0
    %5588 = vmatprep.subr.mxu0 0.0
    %5589 = vmatpush2.msra.mxu0 0.0
    %5590 = vmatprep.subr.mxu0 0.0
    %5591 = vmatpush2.msra.mxu0 0.0
    %5592 = vmatprep.subr.mxu0 0.0
    %5593 = vmatpush2.msra.mxu0 0.0
    %5594 = vmatprep.subr.mxu0 0.0
    %5595 = vmatpush2.msra.mxu0 0.0
    %5596 = vmatprep.subr.mxu0 0.0
    %5597 = vmatpush2.msra.mxu0 0.0
    %5598 = vmatprep.mubr.f32.mxu0 0.0
    %5599 = vmatmul.mubr.f32.gmra.mxu0 %v5532
    %v5600 = vpop.f32.mrf.mxu0
    %v5601 = vadd.f32 0.0, %v5600
    %v5602 = vpop.f32.mrf.mxu0
    %5603 = vdwg.mxu0
    %v5605 = vsel %vm1165, %v5092, 0
    %5607 = vmatprep.subr.mxu0 0.0
    %5608 = vmatpush1.msra.mxu0 0.0
    %5609 = vmatprep.subr.mxu0 0.0
    %5610 = vmatpush1.msra.mxu0 0.0
    %5611 = vmatprep.subr.mxu0 0.0
    %5612 = vmatpush1.msra.mxu0 0.0
    %5613 = vmatprep.subr.mxu0 0.0
    %5614 = vmatpush1.msra.mxu0 0.0
    %5615 = vmatprep.subr.mxu0 0.0
    %5616 = vmatpush1.msra.mxu0 0.0
    %5617 = vmatprep.subr.mxu0 0.0
    %5618 = vmatpush1.msra.mxu0 0.0
    %5619 = vmatprep.subr.mxu0 0.0
    %5620 = vmatpush1.msra.mxu0 0.0
    %5621 = vmatprep.subr.mxu0 0.0
    %5622 = vmatpush1.msra.mxu0 0.0
    %5623 = vmatprep.subr.mxu0 0.0
    %5624 = vmatpush1.msra.mxu0 0.0
    %5625 = vmatprep.subr.mxu0 0.0
    %5626 = vmatpush1.msra.mxu0 0.0
    %5627 = vmatprep.subr.mxu0 0.0
    %5628 = vmatpush1.msra.mxu0 0.0
    %5629 = vmatprep.subr.mxu0 0.0
    %5630 = vmatpush1.msra.mxu0 0.0
    %5631 = vmatprep.subr.mxu0 0.0
    %5632 = vmatpush1.msra.mxu0 0.0
    %5633 = vmatprep.subr.mxu0 0.0
    %5634 = vmatpush1.msra.mxu0 0.0
    %5635 = vmatprep.subr.mxu0 0.0
    %5636 = vmatpush1.msra.mxu0 0.0
    %5637 = vmatprep.subr.mxu0 0.0
    %5638 = vmatpush1.msra.mxu0 %v4420
    %5639 = vmatprep.subr.mxu0 0.0
    %5640 = vmatpush2.msra.mxu0 0.0
    %5641 = vmatprep.subr.mxu0 0.0
    %5642 = vmatpush2.msra.mxu0 0.0
    %5643 = vmatprep.subr.mxu0 0.0
    %5644 = vmatpush2.msra.mxu0 0.0
    %5645 = vmatprep.subr.mxu0 0.0
    %5646 = vmatpush2.msra.mxu0 0.0
    %5647 = vmatprep.subr.mxu0 0.0
    %5648 = vmatpush2.msra.mxu0 0.0
    %5649 = vmatprep.subr.mxu0 0.0
    %5650 = vmatpush2.msra.mxu0 0.0
    %5651 = vmatprep.subr.mxu0 0.0
    %5652 = vmatpush2.msra.mxu0 0.0
    %5653 = vmatprep.subr.mxu0 0.0
    %5654 = vmatpush2.msra.mxu0 0.0
    %5655 = vmatprep.subr.mxu0 0.0
    %5656 = vmatpush2.msra.mxu0 0.0
    %5657 = vmatprep.subr.mxu0 0.0
    %5658 = vmatpush2.msra.mxu0 0.0
    %5659 = vmatprep.subr.mxu0 0.0
    %5660 = vmatpush2.msra.mxu0 0.0
    %5661 = vmatprep.subr.mxu0 0.0
    %5662 = vmatpush2.msra.mxu0 0.0
    %5663 = vmatprep.subr.mxu0 0.0
    %5664 = vmatpush2.msra.mxu0 0.0
    %5665 = vmatprep.subr.mxu0 0.0
    %5666 = vmatpush2.msra.mxu0 0.0
    %5667 = vmatprep.subr.mxu0 0.0
    %5668 = vmatpush2.msra.mxu0 0.0
    %5669 = vmatprep.subr.mxu0 0.0
    %5670 = vmatpush2.msra.mxu0 0.0
    %5671 = vmatprep.mubr.f32.mxu0 0.0
    %5672 = vmatmul.mubr.f32.gmra.mxu0 %v5605
    %v5673 = vpop.f32.mrf.mxu0
    %v5674 = vadd.f32 0.0, %v5673
    %v5675 = vpop.f32.mrf.mxu0
    %5676 = vdwg.mxu0
    %v5677 = vadd.f32 %v4392, %v5163
    %v5678 = vadd.f32 %v4393, %v5236
    %v5679 = vadd.f32 %v4394, %v5309
    %v5680 = vadd.f32 %v4395, %v5382
    %v5681 = vadd.f32 %v4396, %v5455
    %v5682 = vadd.f32 %v4397, %v5528
    %v5683 = vadd.f32 %v4398, %v5601
    %v5684 = vadd.f32 %v4399, %v5674
    %v5685 = vld [vmem:[%s5] sm:$0xff]
    %v5686 = vld [vmem:[%s5 + $0x8] sm:$0xff]
    %v5687 = vld [vmem:[%s5 + $0x10] sm:$0xff]
    %v5688 = vld [vmem:[%s5 + $0x18] sm:$0xff]
    %v5689 = vld [vmem:[%s6] sm:$0x1]
    %v5691 = vlaneseq
    %v5692 = vshrl.u32 %v5691, 7
    %v5693 = vsub.s32 0, %v5692
    %v5694 = vrot.slane %v5689, %v5693
    %v5697 = vsel %vm88, %v5677, 0
    %v5700 = vsel %vm88, %v5678, 0
    %v5703 = vsel %vm88, %v5679, 0
    %v5706 = vsel %vm88, %v5680, 0
    %v5709 = vsel %vm88, %v5681, 0
    %v5712 = vsel %vm88, %v5682, 0
    %v5715 = vsel %vm88, %v5683, 0
    %v5718 = vsel %vm88, %v5684, 0
    %5720 = vmatprep.subr.mxu0 0.0
    %5721 = vmatpush1.msra.mxu0 0.0
    %5722 = vmatprep.subr.mxu0 0.0
    %5723 = vmatpush1.msra.mxu0 0.0
    %5724 = vmatprep.subr.mxu0 0.0
    %5725 = vmatpush1.msra.mxu0 0.0
    %5726 = vmatprep.subr.mxu0 0.0
    %5727 = vmatpush1.msra.mxu0 0.0
    %5728 = vmatprep.subr.mxu0 0.0
    %5729 = vmatpush1.msra.mxu0 0.0
    %5730 = vmatprep.subr.mxu0 0.0
    %5731 = vmatpush1.msra.mxu0 0.0
    %5732 = vmatprep.subr.mxu0 0.0
    %5733 = vmatpush1.msra.mxu0 0.0
    %5734 = vmatprep.subr.mxu0 0.0
    %5735 = vmatpush1.msra.mxu0 0.0
    %5736 = vmatprep.subr.mxu0 0.0
    %5737 = vmatpush1.msra.mxu0 0.0
    %5738 = vmatprep.subr.mxu0 0.0
    %5739 = vmatpush1.msra.mxu0 0.0
    %5740 = vmatprep.subr.mxu0 0.0
    %5741 = vmatpush1.msra.mxu0 0.0
    %5742 = vmatprep.subr.mxu0 0.0
    %5743 = vmatpush1.msra.mxu0 0.0
    %5744 = vmatprep.subr.mxu0 0.0
    %5745 = vmatpush1.msra.mxu0 %v5688
    %5746 = vmatprep.subr.mxu0 0.0
    %5747 = vmatpush1.msra.mxu0 %v5687
    %5748 = vmatprep.subr.mxu0 0.0
    %5749 = vmatpush1.msra.mxu0 %v5686
    %5750 = vmatprep.subr.mxu0 0.0
    %5751 = vmatpush1.msra.mxu0 %v5685
    %5752 = vmatprep.subr.mxu0 0.0
    %5753 = vmatpush2.msra.mxu0 0.0
    %5754 = vmatprep.subr.mxu0 0.0
    %5755 = vmatpush2.msra.mxu0 0.0
    %5756 = vmatprep.subr.mxu0 0.0
    %5757 = vmatpush2.msra.mxu0 0.0
    %5758 = vmatprep.subr.mxu0 0.0
    %5759 = vmatpush2.msra.mxu0 0.0
    %5760 = vmatprep.subr.mxu0 0.0
    %5761 = vmatpush2.msra.mxu0 0.0
    %5762 = vmatprep.subr.mxu0 0.0
    %5763 = vmatpush2.msra.mxu0 0.0
    %5764 = vmatprep.subr.mxu0 0.0
    %5765 = vmatpush2.msra.mxu0 0.0
    %5766 = vmatprep.subr.mxu0 0.0
    %5767 = vmatpush2.msra.mxu0 0.0
    %5768 = vmatprep.subr.mxu0 0.0
    %5769 = vmatpush2.msra.mxu0 0.0
    %5770 = vmatprep.subr.mxu0 0.0
    %5771 = vmatpush2.msra.mxu0 0.0
    %5772 = vmatprep.subr.mxu0 0.0
    %5773 = vmatpush2.msra.mxu0 0.0
    %5774 = vmatprep.subr.mxu0 0.0
    %5775 = vmatpush2.msra.mxu0 0.0
    %5776 = vmatprep.subr.mxu0 0.0
    %5777 = vmatpush2.msra.mxu0 0.0
    %5778 = vmatprep.subr.mxu0 0.0
    %5779 = vmatpush2.msra.mxu0 0.0
    %5780 = vmatprep.subr.mxu0 0.0
    %5781 = vmatpush2.msra.mxu0 0.0
    %5782 = vmatprep.subr.mxu0 0.0
    %5783 = vmatpush2.msra.mxu0 0.0
    %5784 = vmatprep.mubr.f32.mxu0 0.0
    %5785 = vmatmul.mubr.f32.gmra.mxu0 %v5697
    %v5786 = vpop.f32.mrf.mxu0
    %v5787 = vadd.f32 %v5694, %v5786
    %v5788 = vpop.f32.mrf.mxu0
    %5789 = vmatprep.mubr.f32.mxu0 0.0
    %5790 = vmatmul.mubr.f32.gmra.mxu0 %v5700
    %v5791 = vpop.f32.mrf.mxu0
    %v5792 = vadd.f32 %v5694, %v5791
    %v5793 = vpop.f32.mrf.mxu0
    %5794 = vmatprep.mubr.f32.mxu0 0.0
    %5795 = vmatmul.mubr.f32.gmra.mxu0 %v5703
    %v5796 = vpop.f32.mrf.mxu0
    %v5797 = vadd.f32 %v5694, %v5796
    %v5798 = vpop.f32.mrf.mxu0
    %5799 = vmatprep.mubr.f32.mxu0 0.0
    %5800 = vmatmul.mubr.f32.gmra.mxu0 %v5706
    %v5801 = vpop.f32.mrf.mxu0
    %v5802 = vadd.f32 %v5694, %v5801
    %v5803 = vpop.f32.mrf.mxu0
    %5804 = vmatprep.mubr.f32.mxu0 0.0
    %5805 = vmatmul.mubr.f32.gmra.mxu0 %v5709
    %v5806 = vpop.f32.mrf.mxu0
    %v5807 = vadd.f32 %v5694, %v5806
    %v5808 = vpop.f32.mrf.mxu0
    %5809 = vmatprep.mubr.f32.mxu0 0.0
    %5810 = vmatmul.mubr.f32.gmra.mxu0 %v5712
    %v5811 = vpop.f32.mrf.mxu0
    %v5812 = vadd.f32 %v5694, %v5811
    %v5813 = vpop.f32.mrf.mxu0
    %5814 = vmatprep.mubr.f32.mxu0 0.0
    %5815 = vmatmul.mubr.f32.gmra.mxu0 %v5715
    %v5816 = vpop.f32.mrf.mxu0
    %v5817 = vadd.f32 %v5694, %v5816
    %v5818 = vpop.f32.mrf.mxu0
    %5819 = vmatprep.mubr.f32.mxu0 0.0
    %5820 = vmatmul.mubr.f32.gmra.mxu0 %v5718
    %v5821 = vpop.f32.mrf.mxu0
    %v5822 = vadd.f32 %v5694, %v5821
    %v5823 = vpop.f32.mrf.mxu0
    %5824 = vdwg.mxu0
    %v5825 = vtanh.pop %v5787
    %v5826 = vtanh.pop %v5792
    %v5827 = vtanh.pop %v5797
    %v5828 = vtanh.pop %v5802
    %v5829 = vtanh.pop %v5807
    %v5830 = vtanh.pop %v5812
    %v5831 = vtanh.pop %v5817
    %v5832 = vtanh.pop %v5822
    %v5833 = vld [vmem:[%s7] sm:$0x1]
    %v5835 = vlaneseq
    %v5836 = vshrl.u32 %v5835, 7
    %v5837 = vsub.s32 0, %v5836
    %v5838 = vrot.slane %v5833, %v5837
    %v5840 = vmul.f32 %v5825, %v5838
    %v5841 = vmul.f32 %v5826, %v5838
    %v5842 = vmul.f32 %v5827, %v5838
    %v5843 = vmul.f32 %v5828, %v5838
    %v5844 = vmul.f32 %v5829, %v5838
    %v5845 = vmul.f32 %v5830, %v5838
    %v5846 = vmul.f32 %v5831, %v5838
    %v5847 = vmul.f32 %v5832, %v5838
    %vm5848 = vcmask 130048
    %v5849 = vsel %vm5848, %v5840, 0.0
    %5850 = vadd.xlane.f32.xlu0 %v5849
    %v5851 = vpop.xlane.xlu0 %5850
    %v5852 = vsel %vm5848, %v5841, 0.0
    %5853 = vadd.xlane.f32.xlu0 %v5852
    %v5854 = vpop.xlane.xlu0 %5853
    %v5855 = vsel %vm5848, %v5842, 0.0
    %5856 = vadd.xlane.f32.xlu0 %v5855
    %v5857 = vpop.xlane.xlu0 %5856
    %v5858 = vsel %vm5848, %v5843, 0.0
    %5859 = vadd.xlane.f32.xlu0 %v5858
    %v5860 = vpop.xlane.xlu0 %5859
    %v5861 = vsel %vm5848, %v5844, 0.0
    %5862 = vadd.xlane.f32.xlu0 %v5861
    %v5863 = vpop.xlane.xlu0 %5862
    %v5864 = vsel %vm5848, %v5845, 0.0
    %5865 = vadd.xlane.f32.xlu0 %v5864
    %v5866 = vpop.xlane.xlu0 %5865
    %v5867 = vsel %vm5848, %v5846, 0.0
    %5868 = vadd.xlane.f32.xlu0 %v5867
    %v5869 = vpop.xlane.xlu0 %5868
    %v5870 = vsel %vm5848, %v5847, 0.0
    %5871 = vadd.xlane.f32.xlu0 %v5870
    %v5872 = vpop.xlane.xlu0 %5871
    %s5873 = sld [smem:[#allocation2]]
    %v5874 = vstv %s5873
    %v5875 = vadd.f32 %v5851, %v5874
    %v5876 = vadd.f32 %v5854, %v5874
    %v5877 = vadd.f32 %v5857, %v5874
    %v5878 = vadd.f32 %v5860, %v5874
    %v5879 = vadd.f32 %v5863, %v5874
    %v5880 = vadd.f32 %v5866, %v5874
    %v5881 = vadd.f32 %v5869, %v5874
    %v5882 = vadd.f32 %v5872, %v5874
    %v5883 = vlaneseq
    %v5884 = vshrl.u32 %v5883, 7
    %v5885 = vsub.s32 0, %v5884
    %v5886 = vrot.slane %v83, %v5885
    %5888 = vbcast.lane.b32.xlu0 %v5886, 256
    %v5889 = vpop.permute.xlu0 %5888
    %v5890 = vlaneseq
    %v5891 = vshrl.u32 %v5890, 7
    %v5892 = vsub.s32 1, %v5891
    %v5893 = vrot.slane %v83, %v5892
    %5895 = vbcast.lane.b32.xlu0 %v5893, 256
    %v5896 = vpop.permute.xlu0 %5895
    %v5897 = vlaneseq
    %v5898 = vshrl.u32 %v5897, 7
    %v5899 = vsub.s32 2, %v5898
    %v5900 = vrot.slane %v83, %v5899
    %5902 = vbcast.lane.b32.xlu0 %v5900, 256
    %v5903 = vpop.permute.xlu0 %5902
    %v5904 = vlaneseq
    %v5905 = vshrl.u32 %v5904, 7
    %v5906 = vsub.s32 3, %v5905
    %v5907 = vrot.slane %v83, %v5906
    %5909 = vbcast.lane.b32.xlu0 %v5907, 256
    %v5910 = vpop.permute.xlu0 %5909
    %v5911 = vlaneseq
    %v5912 = vshrl.u32 %v5911, 7
    %v5913 = vsub.s32 4, %v5912
    %v5914 = vrot.slane %v83, %v5913
    %5916 = vbcast.lane.b32.xlu0 %v5914, 256
    %v5917 = vpop.permute.xlu0 %5916
    %v5918 = vlaneseq
    %v5919 = vshrl.u32 %v5918, 7
    %v5920 = vsub.s32 5, %v5919
    %v5921 = vrot.slane %v83, %v5920
    %5923 = vbcast.lane.b32.xlu0 %v5921, 256
    %v5924 = vpop.permute.xlu0 %5923
    %v5925 = vlaneseq
    %v5926 = vshrl.u32 %v5925, 7
    %v5927 = vsub.s32 6, %v5926
    %v5928 = vrot.slane %v83, %v5927
    %5930 = vbcast.lane.b32.xlu0 %v5928, 256
    %v5931 = vpop.permute.xlu0 %5930
    %v5932 = vlaneseq
    %v5933 = vshrl.u32 %v5932, 7
    %v5934 = vsub.s32 7, %v5933
    %v5935 = vrot.slane %v83, %v5934
    %5937 = vbcast.lane.b32.xlu0 %v5935, 256
    %v5938 = vpop.permute.xlu0 %5937
    %v5947 = vadd.f32 %v5875, %v5889
    %v5948 = vadd.f32 %v5876, %v5896
    %v5949 = vadd.f32 %v5877, %v5903
    %v5950 = vadd.f32 %v5878, %v5910
    %v5951 = vadd.f32 %v5879, %v5917
    %v5952 = vadd.f32 %v5880, %v5924
    %v5953 = vadd.f32 %v5881, %v5931
    %v5954 = vadd.f32 %v5882, %v5938
    %5963 = vset.pattern.permute.xlu0 0
    %5964 = vperm.xlu0 %5963, %v5947
    %v5965 = vpop.permute.xlu0 %5964
    %5966 = vset.pattern.permute.xlu0 0
    %5967 = vperm.xlu0 %5966, %v5948
    %v5968 = vpop.permute.xlu0 %5967
    %5969 = vset.pattern.permute.xlu0 0
    %5970 = vperm.xlu0 %5969, %v5949
    %v5971 = vpop.permute.xlu0 %5970
    %5972 = vset.pattern.permute.xlu0 0
    %5973 = vperm.xlu0 %5972, %v5950
    %v5974 = vpop.permute.xlu0 %5973
    %5975 = vset.pattern.permute.xlu0 0
    %5976 = vperm.xlu0 %5975, %v5951
    %v5977 = vpop.permute.xlu0 %5976
    %5978 = vset.pattern.permute.xlu0 0
    %5979 = vperm.xlu0 %5978, %v5952
    %v5980 = vpop.permute.xlu0 %5979
    %5981 = vset.pattern.permute.xlu0 0
    %5982 = vperm.xlu0 %5981, %v5953
    %v5983 = vpop.permute.xlu0 %5982
    %5984 = vset.pattern.permute.xlu0 0
    %5985 = vperm.xlu0 %5984, %v5954
    %v5986 = vpop.permute.xlu0 %5985
    %v5987 = vlaneseq
    %v5988 = vshrl.u32 %v5987, 7
    %v5989 = vsub.s32 %v445, %v5988
    %v5990 = vrot.slane %v5965, %v5989
    %v5991 = vlaneseq
    %v5992 = vshrl.u32 %v5991, 7
    %v5993 = vsub.s32 %v445, %v5992
    %v5994 = vrot.slane %v5968, %v5993
    %v5995 = vlaneseq
    %v5996 = vshrl.u32 %v5995, 7
    %v5997 = vsub.s32 %v445, %v5996
    %v5998 = vrot.slane %v5971, %v5997
    %v5999 = vlaneseq
    %v6000 = vshrl.u32 %v5999, 7
    %v6001 = vsub.s32 %v445, %v6000
    %v6002 = vrot.slane %v5974, %v6001
    %v6003 = vlaneseq
    %v6004 = vshrl.u32 %v6003, 7
    %v6005 = vsub.s32 %v445, %v6004
    %v6006 = vrot.slane %v5977, %v6005
    %v6007 = vlaneseq
    %v6008 = vshrl.u32 %v6007, 7
    %v6009 = vsub.s32 %v445, %v6008
    %v6010 = vrot.slane %v5980, %v6009
    %v6011 = vlaneseq
    %v6012 = vshrl.u32 %v6011, 7
    %v6013 = vsub.s32 %v445, %v6012
    %v6014 = vrot.slane %v5983, %v6013
    %v6015 = vlaneseq
    %v6016 = vshrl.u32 %v6015, 7
    %v6017 = vsub.s32 %v445, %v6016
    %v6018 = vrot.slane %v5986, %v6017
    %vm6019 = vcmask 1041409
    %v6020 = vsel %vm6019, %v5994, %v5990
    %vm6021 = vcmask 1042434
    %v6022 = vsel %vm6021, %v5998, %v6020
    %vm6023 = vcmask 1043459
    %v6024 = vsel %vm6023, %v6002, %v6022
    %vm6025 = vcmask 1044484
    %v6026 = vsel %vm6025, %v6006, %v6024
    %vm6027 = vcmask 1045509
    %v6028 = vsel %vm6027, %v6010, %v6026
    %vm6029 = vcmask 1046534
    %v6030 = vsel %vm6029, %v6014, %v6028
    %vm6031 = vcmask 1047559
    %v6032 = vsel %vm6031, %v6018, %v6030
    %v6034 = vsel %vm1165, %v6032, -inf
    %6035 = vmax.xlane.f32.xlu0 %v6034
    %v6036 = vpop.xlane.xlu0 %6035
    %v6038 = vlaneseq
    %v6039 = vshrl.u32 %v6038, 7
    %v6040 = vsub.s32 0, %v6039
    %v6041 = vrot.slane %v6036, %v6040
    %v6042 = vlaneseq
    %v6043 = vshrl.u32 %v6042, 7
    %v6044 = vsub.s32 1, %v6043
    %v6045 = vrot.slane %v6036, %v6044
    %v6046 = vlaneseq
    %v6047 = vshrl.u32 %v6046, 7
    %v6048 = vsub.s32 2, %v6047
    %v6049 = vrot.slane %v6036, %v6048
    %v6050 = vlaneseq
    %v6051 = vshrl.u32 %v6050, 7
    %v6052 = vsub.s32 3, %v6051
    %v6053 = vrot.slane %v6036, %v6052
    %v6054 = vlaneseq
    %v6055 = vshrl.u32 %v6054, 7
    %v6056 = vsub.s32 4, %v6055
    %v6057 = vrot.slane %v6036, %v6056
    %v6058 = vlaneseq
    %v6059 = vshrl.u32 %v6058, 7
    %v6060 = vsub.s32 5, %v6059
    %v6061 = vrot.slane %v6036, %v6060
    %v6062 = vlaneseq
    %v6063 = vshrl.u32 %v6062, 7
    %v6064 = vsub.s32 6, %v6063
    %v6065 = vrot.slane %v6036, %v6064
    %v6066 = vlaneseq
    %v6067 = vshrl.u32 %v6066, 7
    %v6068 = vsub.s32 7, %v6067
    %v6069 = vrot.slane %v6036, %v6068
    %v6078 = vsub.f32 %v5947, %v6041
    %v6079 = vsub.f32 %v5948, %v6045
    %v6080 = vsub.f32 %v5949, %v6049
    %v6081 = vsub.f32 %v5950, %v6053
    %v6082 = vsub.f32 %v5951, %v6057
    %v6083 = vsub.f32 %v5952, %v6061
    %v6084 = vsub.f32 %v5953, %v6065
    %v6085 = vsub.f32 %v5954, %v6069
    %v6086 = vmul.f32 %v6078, 1.442695
    %v6087 = vpow.pop %v6086
    %v6088 = vmul.f32 %v6079, 1.442695
    %v6089 = vpow.pop %v6088
    %v6090 = vmul.f32 %v6080, 1.442695
    %v6091 = vpow.pop %v6090
    %v6092 = vmul.f32 %v6081, 1.442695
    %v6093 = vpow.pop %v6092
    %v6094 = vmul.f32 %v6082, 1.442695
    %v6095 = vpow.pop %v6094
    %v6096 = vmul.f32 %v6083, 1.442695
    %v6097 = vpow.pop %v6096
    %v6098 = vmul.f32 %v6084, 1.442695
    %v6099 = vpow.pop %v6098
    %v6100 = vmul.f32 %v6085, 1.442695
    %v6101 = vpow.pop %v6100
    %6110 = vset.pattern.permute.xlu0 0
    %6111 = vperm.xlu0 %6110, %v6087
    %v6112 = vpop.permute.xlu0 %6111
    %6113 = vset.pattern.permute.xlu0 0
    %6114 = vperm.xlu0 %6113, %v6089
    %v6115 = vpop.permute.xlu0 %6114
    %6116 = vset.pattern.permute.xlu0 0
    %6117 = vperm.xlu0 %6116, %v6091
    %v6118 = vpop.permute.xlu0 %6117
    %6119 = vset.pattern.permute.xlu0 0
    %6120 = vperm.xlu0 %6119, %v6093
    %v6121 = vpop.permute.xlu0 %6120
    %6122 = vset.pattern.permute.xlu0 0
    %6123 = vperm.xlu0 %6122, %v6095
    %v6124 = vpop.permute.xlu0 %6123
    %6125 = vset.pattern.permute.xlu0 0
    %6126 = vperm.xlu0 %6125, %v6097
    %v6127 = vpop.permute.xlu0 %6126
    %6128 = vset.pattern.permute.xlu0 0
    %6129 = vperm.xlu0 %6128, %v6099
    %v6130 = vpop.permute.xlu0 %6129
    %6131 = vset.pattern.permute.xlu0 0
    %6132 = vperm.xlu0 %6131, %v6101
    %v6133 = vpop.permute.xlu0 %6132
    %v6134 = vlaneseq
    %v6135 = vshrl.u32 %v6134, 7
    %v6136 = vsub.s32 %v445, %v6135
    %v6137 = vrot.slane %v6112, %v6136
    %v6138 = vlaneseq
    %v6139 = vshrl.u32 %v6138, 7
    %v6140 = vsub.s32 %v445, %v6139
    %v6141 = vrot.slane %v6115, %v6140
    %v6142 = vlaneseq
    %v6143 = vshrl.u32 %v6142, 7
    %v6144 = vsub.s32 %v445, %v6143
    %v6145 = vrot.slane %v6118, %v6144
    %v6146 = vlaneseq
    %v6147 = vshrl.u32 %v6146, 7
    %v6148 = vsub.s32 %v445, %v6147
    %v6149 = vrot.slane %v6121, %v6148
    %v6150 = vlaneseq
    %v6151 = vshrl.u32 %v6150, 7
    %v6152 = vsub.s32 %v445, %v6151
    %v6153 = vrot.slane %v6124, %v6152
    %v6154 = vlaneseq
    %v6155 = vshrl.u32 %v6154, 7
    %v6156 = vsub.s32 %v445, %v6155
    %v6157 = vrot.slane %v6127, %v6156
    %v6158 = vlaneseq
    %v6159 = vshrl.u32 %v6158, 7
    %v6160 = vsub.s32 %v445, %v6159
    %v6161 = vrot.slane %v6130, %v6160
    %v6162 = vlaneseq
    %v6163 = vshrl.u32 %v6162, 7
    %v6164 = vsub.s32 %v445, %v6163
    %v6165 = vrot.slane %v6133, %v6164
    %v6166 = vsel %vm6019, %v6141, %v6137
    %v6167 = vsel %vm6021, %v6145, %v6166
    %v6168 = vsel %vm6023, %v6149, %v6167
    %v6169 = vsel %vm6025, %v6153, %v6168
    %v6170 = vsel %vm6027, %v6157, %v6169
    %v6171 = vsel %vm6029, %v6161, %v6170
    %v6172 = vsel %vm6031, %v6165, %v6171
    %v6174 = vsel %vm1165, %v6172, 0.0
    %6175 = vadd.xlane.f32.xlu0 %v6174
    %v6176 = vpop.xlane.xlu0 %6175
    %v6177 = vrcp.pop %v6176
    %v6179 = vlaneseq
    %v6180 = vshrl.u32 %v6179, 7
    %v6181 = vsub.s32 0, %v6180
    %v6182 = vrot.slane %v6177, %v6181
    %v6183 = vlaneseq
    %v6184 = vshrl.u32 %v6183, 7
    %v6185 = vsub.s32 1, %v6184
    %v6186 = vrot.slane %v6177, %v6185
    %v6187 = vlaneseq
    %v6188 = vshrl.u32 %v6187, 7
    %v6189 = vsub.s32 2, %v6188
    %v6190 = vrot.slane %v6177, %v6189
    %v6191 = vlaneseq
    %v6192 = vshrl.u32 %v6191, 7
    %v6193 = vsub.s32 3, %v6192
    %v6194 = vrot.slane %v6177, %v6193
    %v6195 = vlaneseq
    %v6196 = vshrl.u32 %v6195, 7
    %v6197 = vsub.s32 4, %v6196
    %v6198 = vrot.slane %v6177, %v6197
    %v6199 = vlaneseq
    %v6200 = vshrl.u32 %v6199, 7
    %v6201 = vsub.s32 5, %v6200
    %v6202 = vrot.slane %v6177, %v6201
    %v6203 = vlaneseq
    %v6204 = vshrl.u32 %v6203, 7
    %v6205 = vsub.s32 6, %v6204
    %v6206 = vrot.slane %v6177, %v6205
    %v6207 = vlaneseq
    %v6208 = vshrl.u32 %v6207, 7
    %v6209 = vsub.s32 7, %v6208
    %v6210 = vrot.slane %v6177, %v6209
    %v6219 = vmul.f32 %v6087, %v6182
    %v6220 = vmul.f32 %v6089, %v6186
    %v6221 = vmul.f32 %v6091, %v6190
    %v6222 = vmul.f32 %v6093, %v6194
    %v6223 = vmul.f32 %v6095, %v6198
    %v6224 = vmul.f32 %v6097, %v6202
    %v6225 = vmul.f32 %v6099, %v6206
    %v6226 = vmul.f32 %v6101, %v6210
    %6228 = vset.pattern.permute.xlu0 0
    %6229 = vperm.xlu0 %6228, %v6219
    %v6230 = vpop.permute.xlu0 %6229
    %6233 = vset.pattern.permute.xlu0 0
    %6234 = vperm.xlu0 %6233, %v6220
    %v6235 = vpop.permute.xlu0 %6234
    %6238 = vset.pattern.permute.xlu0 0
    %6239 = vperm.xlu0 %6238, %v6221
    %v6240 = vpop.permute.xlu0 %6239
    %6243 = vset.pattern.permute.xlu0 0
    %6244 = vperm.xlu0 %6243, %v6222
    %v6245 = vpop.permute.xlu0 %6244
    %6248 = vset.pattern.permute.xlu0 0
    %6249 = vperm.xlu0 %6248, %v6223
    %v6250 = vpop.permute.xlu0 %6249
    %6253 = vset.pattern.permute.xlu0 0
    %6254 = vperm.xlu0 %6253, %v6224
    %v6255 = vpop.permute.xlu0 %6254
    %6258 = vset.pattern.permute.xlu0 0
    %6259 = vperm.xlu0 %6258, %v6225
    %v6260 = vpop.permute.xlu0 %6259
    %6263 = vset.pattern.permute.xlu0 0
    %6264 = vperm.xlu0 %6263, %v6226
    %v6265 = vpop.permute.xlu0 %6264
    %v6267 = vmul.f32 %v6230, %v5677
    %v6268 = vmul.f32 %v6235, %v5678
    %v6269 = vmul.f32 %v6240, %v5679
    %v6270 = vmul.f32 %v6245, %v5680
    %v6271 = vmul.f32 %v6250, %v5681
    %v6272 = vmul.f32 %v6255, %v5682
    %v6273 = vmul.f32 %v6260, %v5683
    %v6274 = vmul.f32 %v6265, %v5684
    %v6275 = vsel %vm88, %v6267, 0.0
    %v6276 = vrot.slane %v6275, 4
    %v6277 = vadd.f32 %v6275, %v6276
    %v6278 = vrot.slane %v6277, 2
    %v6279 = vadd.f32 %v6277, %v6278
    %v6280 = vrot.slane %v6279, 1
    %v6281 = vadd.f32 %v6279, %v6280
    %v6282 = vsel %vm88, %v6268, 0.0
    %v6283 = vrot.slane %v6282, 4
    %v6284 = vadd.f32 %v6282, %v6283
    %v6285 = vrot.slane %v6284, 2
    %v6286 = vadd.f32 %v6284, %v6285
    %v6287 = vrot.slane %v6286, 1
    %v6288 = vadd.f32 %v6286, %v6287
    %v6289 = vsel %vm88, %v6269, 0.0
    %v6290 = vrot.slane %v6289, 4
    %v6291 = vadd.f32 %v6289, %v6290
    %v6292 = vrot.slane %v6291, 2
    %v6293 = vadd.f32 %v6291, %v6292
    %v6294 = vrot.slane %v6293, 1
    %v6295 = vadd.f32 %v6293, %v6294
    %v6296 = vsel %vm88, %v6270, 0.0
    %v6297 = vrot.slane %v6296, 4
    %v6298 = vadd.f32 %v6296, %v6297
    %v6299 = vrot.slane %v6298, 2
    %v6300 = vadd.f32 %v6298, %v6299
    %v6301 = vrot.slane %v6300, 1
    %v6302 = vadd.f32 %v6300, %v6301
    %v6303 = vsel %vm88, %v6271, 0.0
    %v6304 = vrot.slane %v6303, 4
    %v6305 = vadd.f32 %v6303, %v6304
    %v6306 = vrot.slane %v6305, 2
    %v6307 = vadd.f32 %v6305, %v6306
    %v6308 = vrot.slane %v6307, 1
    %v6309 = vadd.f32 %v6307, %v6308
    %v6310 = vsel %vm88, %v6272, 0.0
    %v6311 = vrot.slane %v6310, 4
    %v6312 = vadd.f32 %v6310, %v6311
    %v6313 = vrot.slane %v6312, 2
    %v6314 = vadd.f32 %v6312, %v6313
    %v6315 = vrot.slane %v6314, 1
    %v6316 = vadd.f32 %v6314, %v6315
    %v6317 = vsel %vm88, %v6273, 0.0
    %v6318 = vrot.slane %v6317, 4
    %v6319 = vadd.f32 %v6317, %v6318
    %v6320 = vrot.slane %v6319, 2
    %v6321 = vadd.f32 %v6319, %v6320
    %v6322 = vrot.slane %v6321, 1
    %v6323 = vadd.f32 %v6321, %v6322
    %v6324 = vsel %vm88, %v6274, 0.0
    %v6325 = vrot.slane %v6324, 4
    %v6326 = vadd.f32 %v6324, %v6325
    %v6327 = vrot.slane %v6326, 2
    %v6328 = vadd.f32 %v6326, %v6327
    %v6329 = vrot.slane %v6328, 1
    %v6330 = vadd.f32 %v6328, %v6329
    %v6339 = vsel %vm6019, %v6288, %v6281
    %v6340 = vsel %vm6021, %v6295, %v6339
    %v6341 = vsel %vm6023, %v6302, %v6340
    %v6342 = vsel %vm6025, %v6309, %v6341
    %v6343 = vsel %vm6027, %v6316, %v6342
    %v6344 = vsel %vm6029, %v6323, %v6343
    %v6345 = vsel %vm6031, %v6330, %v6344
    %6347 = vst.msk [vmem:[#allocation9] sm:$0xff] %vm88, %v6345
    // Predicated region
    $region50: #{tpu_custom_call.1} parent=1 // pred_check
      _
    $region51: #{tpu_custom_call.1} parent=1 // pred_check_branch
      %6349 = sbr.rel (0) target = $region53
    $region52: #{tpu_custom_call.1} parent=1 // pred_region
      %s6351 = ssub.s32 128, 128
      %6352 = vsyncadd [#allocation5], %s6351
      %s6354 = sshll.u32 [#allocation9], 4
      %s6355 = int_to_ptr.vmem [resolvable:$true] %s6354
      %6357 = dma.vmem_to_hbm [thread:$0]  %s6355, 128, %s9, [#allocation5]
    $region53: #{tpu_custom_call.1} parent=1 // pred_fallthru
      _
    // Predicated region
    $region54: #{tpu_custom_call.1} parent=1 // pred_check
      _
    $region55: #{tpu_custom_call.1} parent=1 // pred_check_branch
      %6359 = sbr.rel (0) target = $region57
    $region56: #{tpu_custom_call.1} parent=1 // pred_region
      %6360 = dma.done [#allocation5], 128
    $region57: #{tpu_custom_call.1} parent=1 // pred_fallthru
      _
    %6361 = vsyncpa [#allocation4], 1
    %6362 = vsyncpa [#allocation7], 1
    %6363 = vsyncpa [#allocation5], 1

</llo_original>
